<compile_context>
chip_gen: v5e
topology: v5e:2x2
jax: 0.10.0
libtpu: 0.0.40
codegen_flags: <defaults>
</compile_context>

<pallas_src>
import numpy as np
import jax
import jax.numpy as jnp
from jax import lax
from jax.experimental import pallas as pl
from jax.experimental.pallas import tpu as pltpu


A_PAD = 128  # lane-dense width for the final fc2 output block


# ------------------------------- small helpers ------------------------------ #

def _round_up(x, m):
    return ((x + m - 1) // m) * m


def _pads(w0):
    """Zero-padding rows (rounded to multiples of 8) for the three conv stages."""
    return (_round_up(w0 + 1, 8),
            _round_up(w0 // 2 + 1, 8),
            _round_up(w0 // 4 + 1, 8))


def _imod(x, m):
    return (x & (m - 1)) if (m & (m - 1)) == 0 else (x % m)


def _idiv(x, m):
    return (x >> (m.bit_length() - 1)) if (m & (m - 1)) == 0 else (x // m)


def _pool_perm(n, h, w, last):
    """(N*H*W, N*H*W) permutation grouping conv-output rows by 2x2 pool sub-position.

    Row t = ab*Q + t_in of (P @ conv_out) is conv-output pixel (2i+a, 2j+b) of
    image `im` (ab blocks of size Q = N*(H//2)*(W//2)); within a block:
      last=False: t_in ordered (im, i, j)      -> feeds the next conv layer
      last=True : t_in ordered (i*W//2+j, im)  -> feeds the flatten-folded fc1
    """
    hh, wh = h // 2, w // 2
    q, m = n * hh * wh, n * h * w
    p = np.zeros((m, m), np.float32)
    for a in range(2):
        for b in range(2):
            for im in range(n):
                for i in range(hh):
                    for j in range(wh):
                        t_in = (i * wh + j) * n + im if last else (im * hh + i) * wh + j
                        src = (im * h + 2 * i + a) * w + (2 * j + b)
                        p[(a * 2 + b) * q + t_in, src] = 1.0
    return jnp.asarray(p)


def _full_spec(shape):
    nd = len(shape)
    return pl.BlockSpec(tuple(shape), lambda *_: (0,) * nd)


# --------------------------------- the kernel ------------------------------- #

def _make_fused_kernel(n, h0, w0, s3):
    pad1, pad2, pad3 = _pads(w0)
    layer_cfg = ((h0, w0, pad1), (h0 // 2, w0 // 2, pad2), (h0 // 4, w0 // 4, pad3))

    def kernel(x_ref, w1_ref, b1_ref, p1_ref, w2_ref, b2_ref, p2_ref,
               w3_ref, b3_ref, p3_ref, wf1_ref, bf1_ref, wf2_ref, bf2_ref,
               o_ref, xp2_ref, xp3_ref, a3_ref):

        def conv_relu_pool(src_ref, cfg, w_ref, b_ref, p_ref):
            """conv3x3(pad=1) + bias + ReLU + maxpool(2,2) on a flat pixel layout."""
            h, w, pad = cfg
            m = n * h * w                     # all images x all pixels -> matmul M
            cout = w_ref.shape[2]
            # per-output-row (y, x) coordinates, for boundary masking
            r = lax.broadcasted_iota(jnp.int32, (m, 1), 0)
            yy = _imod(_idiv(r, w), h)
            xx = _imod(r, w)
            m_y = {0: (yy >= 1).astype(jnp.float32), 1: None,
                   2: (yy <= h - 2).astype(jnp.float32)}
            m_x = {0: (xx >= 1).astype(jnp.float32), 1: None,
                   2: (xx <= w - 2).astype(jnp.float32)}

            acc = jnp.zeros((m, cout), jnp.float32)
            for dy in range(3):
                for dx in range(3):
                    off = (dy - 1) * w + (dx - 1)
                    # in-kernel im2col: shifted static slice of the padded buffer
                    xs = src_ref[pad + off: pad + off + m, :]
                    mask = None
                    for cond in (m_y[dy], m_x[dx]):
                        if cond is not None:
                            mask = cond if mask is None else mask * cond
                    if mask is not None:
                        xs = xs * mask
                    acc = acc + jnp.dot(xs.astype(jnp.bfloat16),
                                        w_ref[dy * 3 + dx],
                                        preferred_element_type=jnp.float32)

            # 2x2 max-pool: permute rows into 4 sub-position blocks, elementwise max.
            grouped = jnp.dot(p_ref[...], acc, preferred_element_type=jnp.float32)
            q = m // 4
            pooled = jnp.maximum(
                jnp.maximum(grouped[0:q], grouped[q:2 * q]),
                jnp.maximum(grouped[2 * q:3 * q], grouped[3 * q:4 * q]))
            # maxpool(relu(conv + b)) == relu(maxpool(conv) + b)
            return jnp.maximum(pooled + b_ref[...], 0.0)

        # conv1 (input arrives pre-padded from the wrapper)
        act1 = conv_relu_pool(x_ref, layer_cfg[0], w1_ref, b1_ref, p1_ref)

        # conv2: stage act1 into a zero-padded VMEM buffer
        xp2_ref[...] = jnp.zeros_like(xp2_ref)
        xp2_ref[pad2:pad2 + act1.shape[0], :] = act1
        act2 = conv_relu_pool(xp2_ref, layer_cfg[1], w2_ref, b2_ref, p2_ref)

        # conv3
        xp3_ref[...] = jnp.zeros_like(xp3_ref)
        xp3_ref[pad3:pad3 + act2.shape[0], :] = act2
        act3 = conv_relu_pool(xp3_ref, layer_cfg[2], w3_ref, b3_ref, p3_ref)

        # fc1 + ReLU + fc2.  act3 rows are ordered (spatial position s, image), so
        # torch.flatten's channel-major layout is realised by summing per-position
        # matmuls against the pre-permuted fc1 weight (flatten folded into weights).
        a3_ref[...] = act3
        hid = wf1_ref.shape[2]
        h1 = jnp.zeros((n, hid), jnp.float32)
        for s in range(s3):
            h1 = h1 + jnp.dot(a3_ref[s * n:(s + 1) * n, :].astype(jnp.bfloat16),
                              wf1_ref[s], preferred_element_type=jnp.float32)
        h1 = jnp.maximum(h1 + bf1_ref[...], 0.0)
        o_ref[...] = (jnp.dot(h1.astype(jnp.bfloat16), wf2_ref[...],
                              preferred_element_type=jnp.float32) + bf2_ref[...])

    return kernel


# --------------------------- parameter / input prep -------------------------- #

def _prepare(params, n, h0, w0):
    """One-time prep: reorder / pad / cast all weights into kernel-ready layouts."""
    s3 = (h0 // 8) * (w0 // 8)
    prep = {}
    for i, name in enumerate(("conv1", "conv2", "conv3")):
        w4 = params[f"{name}_w"]                         # (Cout, Cin, 3, 3) torch
        cout, cin = w4.shape[0], w4.shape[1]
        wk = jnp.transpose(w4, (2, 3, 1, 0)).reshape(9, cin, cout)    # k = dy*3+dx
        if i == 0:
            cin_p = _round_up(cin, 8)
            if cin_p > cin:                              # pad conv1 Cin for the MXU
                wk = jnp.pad(wk, ((0, 0), (0, cin_p - cin), (0, 0)))
        prep[f"w{i + 1}"] = wk.astype(jnp.bfloat16)
        prep[f"b{i + 1}"] = params[f"{name}_b"].astype(jnp.float32).reshape(1, cout)
    prep["p1"] = _pool_perm(n, h0, w0, last=False)
    prep["p2"] = _pool_perm(n, h0 // 2, w0 // 2, last=False)
    prep["p3"] = _pool_perm(n, h0 // 4, w0 // 4, last=True)

    c3 = params["conv3_w"].shape[0]
    hid = params["fc1_w"].shape[0]
    # fold torch.flatten's channel-major ordering into fc1's weight layout
    prep["wf1"] = jnp.transpose(params["fc1_w"].reshape(hid, c3, s3),
                                (2, 1, 0)).astype(jnp.bfloat16)        # (S3, C3, hid)
    prep["bf1"] = params["fc1_b"].astype(jnp.float32).reshape(1, hid)

    na = params["fc2_w"].shape[0]
    wf2 = jnp.transpose(params["fc2_w"], (1, 0))                       # (hid, A)
    prep["wf2"] = jnp.pad(wf2, ((0, 0), (0, A_PAD - na))).astype(jnp.bfloat16)
    prep["bf2"] = jnp.pad(params["fc2_b"],
                          (0, A_PAD - na)).astype(jnp.float32).reshape(1, A_PAD)
    return prep, s3


def cnn_bc_forward(x_nchw, params):
    """Forward pass of CNN_BC: one fused Pallas kernel for the whole network."""
    n, c0, h0, w0 = x_nchw.shape
    num_actions = params["fc2_w"].shape[0]
    prep, s3 = _prepare(params, n, h0, w0)
    pad1, pad2, pad3 = _pads(w0)

    # NCHW -> flat (N*H*W, C) pixel rows; pad channels (MXU) and rows (conv halo)
    x = jnp.transpose(x_nchw, (0, 2, 3, 1)).astype(jnp.float32)
    x = x.reshape(n * h0 * w0, c0)
    cin_p = _round_up(c0, 8)
    if cin_p > c0:
        x = jnp.pad(x, ((0, 0), (0, cin_p - c0)))
    x = jnp.pad(x, ((pad1, pad1), (0, 0)))

    c1 = prep["w1"].shape[2]
    c2 = prep["w2"].shape[2]
    c3 = prep["w3"].shape[2]
    m2 = n * (h0 // 2) * (w0 // 2)
    m3 = n * (h0 // 4) * (w0 // 4)

    args = (x, prep["w1"], prep["b1"], prep["p1"],
            prep["w2"], prep["b2"], prep["p2"],
            prep["w3"], prep["b3"], prep["p3"],
            prep["wf1"], prep["bf1"], prep["wf2"], prep["bf2"])

    # TODO(synk): for non-toy batch sizes, add a leading "parallel" grid axis over
    # batch tiles so v7x can shard work across its two TensorCores.
    out = pl.pallas_call(
        _make_fused_kernel(n, h0, w0, s3),
        out_shape=jax.ShapeDtypeStruct((n, A_PAD), jnp.float32),
        grid=(1,),
        in_specs=[_full_spec(a.shape) for a in args],
        out_specs=_full_spec((n, A_PAD)),
        scratch_shapes=[
            pltpu.VMEM((m2 + 2 * pad2, c1), jnp.float32),   # padded conv2 input
            pltpu.VMEM((m3 + 2 * pad3, c2), jnp.float32),   # padded conv3 input
            pltpu.VMEM((s3 * n, c3), jnp.float32),          # flattened conv3 output
        ],
        compiler_params=pltpu.CompilerParams(
            dimension_semantics=("arbitrary",)),
    )(*args)
    return out[:, :num_actions]


# ------------------------------ params / reference --------------------------- #

def init_params(key, width=16, height=16, input_channels=3, num_actions=5):
    """Deterministic synthetic parameters in PyTorch layouts."""
    keys = jax.random.split(key, 10)

    def w(k, shape, scale=0.05):
        return scale * jax.random.normal(k, shape, dtype=jnp.float32)

    fc1_in = 128 * (height // 8) * (width // 8)
    return {
        "conv1_w": w(keys[0], (32, input_channels, 3, 3)),   # (Cout, Cin, 3, 3)
        "conv1_b": w(keys[1], (32,)),
        "conv2_w": w(keys[2], (64, 32, 3, 3)),
        "conv2_b": w(keys[3], (64,)),
        "conv3_w": w(keys[4], (128, 64, 3, 3)),
        "conv3_b": w(keys[5], (128,)),
        "fc1_w": w(keys[6], (256, fc1_in)),                  # (out, in) torch layout
        "fc1_b": w(keys[7], (256,)),
        "fc2_w": w(keys[8], (num_actions, 256)),
        "fc2_b": w(keys[9], (num_actions,)),
    }


def reference_forward(x_nchw, params):
    """Pure-JAX (XLA, f32) reference for the correctness check."""
    x = jnp.transpose(x_nchw, (0, 2, 3, 1)).astype(jnp.float32)
    for name in ("conv1", "conv2", "conv3"):
        w4 = params[f"{name}_w"]
        b = params[f"{name}_b"]
        y = lax.conv_general_dilated(
            x, jnp.transpose(w4, (2, 3, 1, 0)), (1, 1), "SAME",
            dimension_numbers=("NHWC", "HWIO", "NHWC"))
        y = jnp.maximum(y + b, 0.0)
        x = lax.reduce_window(y, -jnp.inf, lax.max,
                              (1, 2, 2, 1), (1, 2, 2, 1), "VALID")
    n = x.shape[0]
    xf = jnp.transpose(x, (0, 3, 1, 2)).reshape(n, -1)
    h = jnp.maximum(xf @ params["fc1_w"].T + params["fc1_b"], 0.0)
    return h @ params["fc2_w"].T + params["fc2_b"]


if __name__ == "__main__":
    key = jax.random.PRNGKey(0)
    k_x, k_p = jax.random.split(key)

    # 16x16 RGB images, batch=2, 5 actions -> fc1 input = 128 * 2 * 2 = 512.
    B, C, H, W = 2, 3, 16, 16
    x = jax.random.normal(k_x, (B, C, H, W), dtype=jnp.float32)
    params = init_params(k_p, width=W, height=H, input_channels=C, num_actions=5)

    fwd = jax.jit(cnn_bc_forward)
    out = jax.block_until_ready(fwd(x, params))
    ref = jax.block_until_ready(reference_forward(x, params))

    assert out.shape == (B, 5), out.shape
    # bf16 MXU operands vs. the f32 XLA reference -> slightly looser tolerance.
    assert jnp.allclose(out, ref, atol=1e-2, rtol=1e-2), (
        float(jnp.max(jnp.abs(out - ref))))
    print("KERNEL_OK")
</pallas_src>

<mosaic_0001>
module attributes {stable_mosaic.version = 11 : i64} {
  func.func @kernel(%arg0: i32, %arg1: memref<560x8xf32, #tpu.memory_space<vmem>>, %arg2: memref<9x8x32xbf16, #tpu.memory_space<vmem>>, %arg3: memref<1x32xf32, #tpu.memory_space<vmem>>, %arg4: memref<512x512xf32, #tpu.memory_space<vmem>>, %arg5: memref<9x32x64xbf16, #tpu.memory_space<vmem>>, %arg6: memref<1x64xf32, #tpu.memory_space<vmem>>, %arg7: memref<128x128xf32, #tpu.memory_space<vmem>>, %arg8: memref<9x64x128xbf16, #tpu.memory_space<vmem>>, %arg9: memref<1x128xf32, #tpu.memory_space<vmem>>, %arg10: memref<32x32xf32, #tpu.memory_space<vmem>>, %arg11: memref<4x128x256xbf16, #tpu.memory_space<vmem>>, %arg12: memref<1x256xf32, #tpu.memory_space<vmem>>, %arg13: memref<256x128xbf16, #tpu.memory_space<vmem>>, %arg14: memref<1x128xf32, #tpu.memory_space<vmem>>, %arg15: memref<2x128xf32, #tpu.memory_space<vmem>>, %arg16: memref<160x32xf32, #tpu.memory_space<vmem>>, %arg17: memref<48x64xf32, #tpu.memory_space<vmem>>, %arg18: memref<8x128xf32, #tpu.memory_space<vmem>>) attributes {dimension_semantics = [#tpu.dimension_semantics<arbitrary>], iteration_bounds = array<i64: 1>, scalar_prefetch = 0 : i64, scratch_operands = 3 : i64, tpu.core_type = #tpu.core_type<tc>, window_params = [{pipeline_mode = #tpu.pipeline_mode<synchronous>, transform_indices = @transform_0, window_bounds = array<i64: 560, 8>}, {pipeline_mode = #tpu.pipeline_mode<synchronous>, transform_indices = @transform_1, window_bounds = array<i64: 9, 8, 32>}, {pipeline_mode = #tpu.pipeline_mode<synchronous>, transform_indices = @transform_2, window_bounds = array<i64: 1, 32>}, {pipeline_mode = #tpu.pipeline_mode<synchronous>, transform_indices = @transform_3, window_bounds = array<i64: 512, 512>}, {pipeline_mode = #tpu.pipeline_mode<synchronous>, transform_indices = @transform_4, window_bounds = array<i64: 9, 32, 64>}, {pipeline_mode = #tpu.pipeline_mode<synchronous>, transform_indices = @transform_5, window_bounds = array<i64: 1, 64>}, {pipeline_mode = #tpu.pipeline_mode<synchronous>, transform_indices = @transform_6, window_bounds = array<i64: 128, 128>}, {pipeline_mode = #tpu.pipeline_mode<synchronous>, transform_indices = @transform_7, window_bounds = array<i64: 9, 64, 128>}, {pipeline_mode = #tpu.pipeline_mode<synchronous>, transform_indices = @transform_8, window_bounds = array<i64: 1, 128>}, {pipeline_mode = #tpu.pipeline_mode<synchronous>, transform_indices = @transform_9, window_bounds = array<i64: 32, 32>}, {pipeline_mode = #tpu.pipeline_mode<synchronous>, transform_indices = @transform_10, window_bounds = array<i64: 4, 128, 256>}, {pipeline_mode = #tpu.pipeline_mode<synchronous>, transform_indices = @transform_11, window_bounds = array<i64: 1, 256>}, {pipeline_mode = #tpu.pipeline_mode<synchronous>, transform_indices = @transform_12, window_bounds = array<i64: 256, 128>}, {pipeline_mode = #tpu.pipeline_mode<synchronous>, transform_indices = @transform_13, window_bounds = array<i64: 1, 128>}, {pipeline_mode = #tpu.pipeline_mode<synchronous>, transform_indices = @transform_14, window_bounds = array<i64: 2, 128>}]} {
    %0 = tpu.iota {dimensions = array<i32: 0>} : vector<512x1xi32>
    %c4_i32 = arith.constant 4 : i32
    %1 = vector.broadcast %c4_i32 : i32 to vector<512x1xi32>
    %2 = arith.shrsi %0, %1 : vector<512x1xi32>
    %c15_i32 = arith.constant 15 : i32
    %3 = vector.broadcast %c15_i32 : i32 to vector<512x1xi32>
    %4 = arith.andi %2, %3 : vector<512x1xi32>
    %c15_i32_0 = arith.constant 15 : i32
    %5 = vector.broadcast %c15_i32_0 : i32 to vector<512x1xi32>
    %6 = arith.andi %0, %5 : vector<512x1xi32>
    %c1_i32 = arith.constant 1 : i32
    %7 = vector.broadcast %c1_i32 : i32 to vector<512x1xi32>
    %8 = arith.cmpi sge, %4, %7 : vector<512x1xi32>
    %9 = arith.extui %8 : vector<512x1xi1> to vector<512x1xi32>
    %10 = arith.sitofp %9 : vector<512x1xi32> to vector<512x1xf32>
    %c14_i32 = arith.constant 14 : i32
    %11 = vector.broadcast %c14_i32 : i32 to vector<512x1xi32>
    %12 = arith.cmpi sle, %4, %11 : vector<512x1xi32>
    %13 = arith.extui %12 : vector<512x1xi1> to vector<512x1xi32>
    %14 = arith.sitofp %13 : vector<512x1xi32> to vector<512x1xf32>
    %c1_i32_1 = arith.constant 1 : i32
    %15 = vector.broadcast %c1_i32_1 : i32 to vector<512x1xi32>
    %16 = arith.cmpi sge, %6, %15 : vector<512x1xi32>
    %17 = arith.extui %16 : vector<512x1xi1> to vector<512x1xi32>
    %18 = arith.sitofp %17 : vector<512x1xi32> to vector<512x1xf32>
    %c14_i32_2 = arith.constant 14 : i32
    %19 = vector.broadcast %c14_i32_2 : i32 to vector<512x1xi32>
    %20 = arith.cmpi sle, %6, %19 : vector<512x1xi32>
    %21 = arith.extui %20 : vector<512x1xi1> to vector<512x1xi32>
    %22 = arith.sitofp %21 : vector<512x1xi32> to vector<512x1xf32>
    %cst = arith.constant 0.000000e+00 : f32
    %23 = vector.broadcast %cst : f32 to vector<512x32xf32>
    %c7 = arith.constant 7 : index
    %c0 = arith.constant 0 : index
    %24 = vector.load %arg1[%c7, %c0] : memref<560x8xf32, #tpu.memory_space<vmem>>, vector<512x8xf32>
    %25 = arith.mulf %10, %18 : vector<512x1xf32>
    %26 = vector.broadcast %25 : vector<512x1xf32> to vector<512x8xf32>
    %27 = arith.mulf %24, %26 : vector<512x8xf32>
    %28 = arith.truncf %27 : vector<512x8xf32> to vector<512x8xbf16>
    %c0_3 = arith.constant 0 : index
    %c0_4 = arith.constant 0 : index
    %c0_5 = arith.constant 0 : index
    %29 = vector.load %arg2[%c0_3, %c0_4, %c0_5] : memref<9x8x32xbf16, #tpu.memory_space<vmem>>, vector<1x8x32xbf16>
    %30 = vector.shape_cast %29 : vector<1x8x32xbf16> to vector<8x32xbf16>
    %cst_6 = arith.constant dense<0.000000e+00> : vector<512x32xf32>
    %31 = tpu.matmul %28, %30, %cst_6 {dimension_numbers = #tpu.dot_dimension_numbers<[1], [0], [0], [1], [0, 0, 1, 1], [], []>} : vector<512x8xbf16>, vector<8x32xbf16>, vector<512x32xf32> -> vector<512x32xf32>
    %32 = arith.addf %23, %31 : vector<512x32xf32>
    %c8 = arith.constant 8 : index
    %c0_7 = arith.constant 0 : index
    %33 = vector.load %arg1[%c8, %c0_7] : memref<560x8xf32, #tpu.memory_space<vmem>>, vector<512x8xf32>
    %34 = vector.broadcast %10 : vector<512x1xf32> to vector<512x8xf32>
    %35 = arith.mulf %33, %34 : vector<512x8xf32>
    %36 = arith.truncf %35 : vector<512x8xf32> to vector<512x8xbf16>
    %c1 = arith.constant 1 : index
    %c0_8 = arith.constant 0 : index
    %c0_9 = arith.constant 0 : index
    %37 = vector.load %arg2[%c1, %c0_8, %c0_9] : memref<9x8x32xbf16, #tpu.memory_space<vmem>>, vector<1x8x32xbf16>
    %38 = vector.shape_cast %37 : vector<1x8x32xbf16> to vector<8x32xbf16>
    %cst_10 = arith.constant dense<0.000000e+00> : vector<512x32xf32>
    %39 = tpu.matmul %36, %38, %cst_10 {dimension_numbers = #tpu.dot_dimension_numbers<[1], [0], [0], [1], [0, 0, 1, 1], [], []>} : vector<512x8xbf16>, vector<8x32xbf16>, vector<512x32xf32> -> vector<512x32xf32>
    %40 = arith.addf %32, %39 : vector<512x32xf32>
    %c9 = arith.constant 9 : index
    %c0_11 = arith.constant 0 : index
    %41 = vector.load %arg1[%c9, %c0_11] : memref<560x8xf32, #tpu.memory_space<vmem>>, vector<512x8xf32>
    %42 = arith.mulf %10, %22 : vector<512x1xf32>
    %43 = vector.broadcast %42 : vector<512x1xf32> to vector<512x8xf32>
    %44 = arith.mulf %41, %43 : vector<512x8xf32>
    %45 = arith.truncf %44 : vector<512x8xf32> to vector<512x8xbf16>
    %c2 = arith.constant 2 : index
    %c0_12 = arith.constant 0 : index
    %c0_13 = arith.constant 0 : index
    %46 = vector.load %arg2[%c2, %c0_12, %c0_13] : memref<9x8x32xbf16, #tpu.memory_space<vmem>>, vector<1x8x32xbf16>
    %47 = vector.shape_cast %46 : vector<1x8x32xbf16> to vector<8x32xbf16>
    %cst_14 = arith.constant dense<0.000000e+00> : vector<512x32xf32>
    %48 = tpu.matmul %45, %47, %cst_14 {dimension_numbers = #tpu.dot_dimension_numbers<[1], [0], [0], [1], [0, 0, 1, 1], [], []>} : vector<512x8xbf16>, vector<8x32xbf16>, vector<512x32xf32> -> vector<512x32xf32>
    %49 = arith.addf %40, %48 : vector<512x32xf32>
    %c23 = arith.constant 23 : index
    %c0_15 = arith.constant 0 : index
    %50 = vector.load %arg1[%c23, %c0_15] : memref<560x8xf32, #tpu.memory_space<vmem>>, vector<512x8xf32>
    %51 = vector.broadcast %18 : vector<512x1xf32> to vector<512x8xf32>
    %52 = arith.mulf %50, %51 : vector<512x8xf32>
    %53 = arith.truncf %52 : vector<512x8xf32> to vector<512x8xbf16>
    %c3 = arith.constant 3 : index
    %c0_16 = arith.constant 0 : index
    %c0_17 = arith.constant 0 : index
    %54 = vector.load %arg2[%c3, %c0_16, %c0_17] : memref<9x8x32xbf16, #tpu.memory_space<vmem>>, vector<1x8x32xbf16>
    %55 = vector.shape_cast %54 : vector<1x8x32xbf16> to vector<8x32xbf16>
    %cst_18 = arith.constant dense<0.000000e+00> : vector<512x32xf32>
    %56 = tpu.matmul %53, %55, %cst_18 {dimension_numbers = #tpu.dot_dimension_numbers<[1], [0], [0], [1], [0, 0, 1, 1], [], []>} : vector<512x8xbf16>, vector<8x32xbf16>, vector<512x32xf32> -> vector<512x32xf32>
    %57 = arith.addf %49, %56 : vector<512x32xf32>
    %c24 = arith.constant 24 : index
    %c0_19 = arith.constant 0 : index
    %58 = vector.load %arg1[%c24, %c0_19] : memref<560x8xf32, #tpu.memory_space<vmem>>, vector<512x8xf32>
    %59 = arith.truncf %58 : vector<512x8xf32> to vector<512x8xbf16>
    %c4 = arith.constant 4 : index
    %c0_20 = arith.constant 0 : index
    %c0_21 = arith.constant 0 : index
    %60 = vector.load %arg2[%c4, %c0_20, %c0_21] : memref<9x8x32xbf16, #tpu.memory_space<vmem>>, vector<1x8x32xbf16>
    %61 = vector.shape_cast %60 : vector<1x8x32xbf16> to vector<8x32xbf16>
    %cst_22 = arith.constant dense<0.000000e+00> : vector<512x32xf32>
    %62 = tpu.matmul %59, %61, %cst_22 {dimension_numbers = #tpu.dot_dimension_numbers<[1], [0], [0], [1], [0, 0, 1, 1], [], []>} : vector<512x8xbf16>, vector<8x32xbf16>, vector<512x32xf32> -> vector<512x32xf32>
    %63 = arith.addf %57, %62 : vector<512x32xf32>
    %c25 = arith.constant 25 : index
    %c0_23 = arith.constant 0 : index
    %64 = vector.load %arg1[%c25, %c0_23] : memref<560x8xf32, #tpu.memory_space<vmem>>, vector<512x8xf32>
    %65 = vector.broadcast %22 : vector<512x1xf32> to vector<512x8xf32>
    %66 = arith.mulf %64, %65 : vector<512x8xf32>
    %67 = arith.truncf %66 : vector<512x8xf32> to vector<512x8xbf16>
    %c5 = arith.constant 5 : index
    %c0_24 = arith.constant 0 : index
    %c0_25 = arith.constant 0 : index
    %68 = vector.load %arg2[%c5, %c0_24, %c0_25] : memref<9x8x32xbf16, #tpu.memory_space<vmem>>, vector<1x8x32xbf16>
    %69 = vector.shape_cast %68 : vector<1x8x32xbf16> to vector<8x32xbf16>
    %cst_26 = arith.constant dense<0.000000e+00> : vector<512x32xf32>
    %70 = tpu.matmul %67, %69, %cst_26 {dimension_numbers = #tpu.dot_dimension_numbers<[1], [0], [0], [1], [0, 0, 1, 1], [], []>} : vector<512x8xbf16>, vector<8x32xbf16>, vector<512x32xf32> -> vector<512x32xf32>
    %71 = arith.addf %63, %70 : vector<512x32xf32>
    %c39 = arith.constant 39 : index
    %c0_27 = arith.constant 0 : index
    %72 = vector.load %arg1[%c39, %c0_27] : memref<560x8xf32, #tpu.memory_space<vmem>>, vector<512x8xf32>
    %73 = arith.mulf %14, %18 : vector<512x1xf32>
    %74 = vector.broadcast %73 : vector<512x1xf32> to vector<512x8xf32>
    %75 = arith.mulf %72, %74 : vector<512x8xf32>
    %76 = arith.truncf %75 : vector<512x8xf32> to vector<512x8xbf16>
    %c6 = arith.constant 6 : index
    %c0_28 = arith.constant 0 : index
    %c0_29 = arith.constant 0 : index
    %77 = vector.load %arg2[%c6, %c0_28, %c0_29] : memref<9x8x32xbf16, #tpu.memory_space<vmem>>, vector<1x8x32xbf16>
    %78 = vector.shape_cast %77 : vector<1x8x32xbf16> to vector<8x32xbf16>
    %cst_30 = arith.constant dense<0.000000e+00> : vector<512x32xf32>
    %79 = tpu.matmul %76, %78, %cst_30 {dimension_numbers = #tpu.dot_dimension_numbers<[1], [0], [0], [1], [0, 0, 1, 1], [], []>} : vector<512x8xbf16>, vector<8x32xbf16>, vector<512x32xf32> -> vector<512x32xf32>
    %80 = arith.addf %71, %79 : vector<512x32xf32>
    %c40 = arith.constant 40 : index
    %c0_31 = arith.constant 0 : index
    %81 = vector.load %arg1[%c40, %c0_31] : memref<560x8xf32, #tpu.memory_space<vmem>>, vector<512x8xf32>
    %82 = vector.broadcast %14 : vector<512x1xf32> to vector<512x8xf32>
    %83 = arith.mulf %81, %82 : vector<512x8xf32>
    %84 = arith.truncf %83 : vector<512x8xf32> to vector<512x8xbf16>
    %c7_32 = arith.constant 7 : index
    %c0_33 = arith.constant 0 : index
    %c0_34 = arith.constant 0 : index
    %85 = vector.load %arg2[%c7_32, %c0_33, %c0_34] : memref<9x8x32xbf16, #tpu.memory_space<vmem>>, vector<1x8x32xbf16>
    %86 = vector.shape_cast %85 : vector<1x8x32xbf16> to vector<8x32xbf16>
    %cst_35 = arith.constant dense<0.000000e+00> : vector<512x32xf32>
    %87 = tpu.matmul %84, %86, %cst_35 {dimension_numbers = #tpu.dot_dimension_numbers<[1], [0], [0], [1], [0, 0, 1, 1], [], []>} : vector<512x8xbf16>, vector<8x32xbf16>, vector<512x32xf32> -> vector<512x32xf32>
    %88 = arith.addf %80, %87 : vector<512x32xf32>
    %c41 = arith.constant 41 : index
    %c0_36 = arith.constant 0 : index
    %89 = vector.load %arg1[%c41, %c0_36] : memref<560x8xf32, #tpu.memory_space<vmem>>, vector<512x8xf32>
    %90 = arith.mulf %14, %22 : vector<512x1xf32>
    %91 = vector.broadcast %90 : vector<512x1xf32> to vector<512x8xf32>
    %92 = arith.mulf %89, %91 : vector<512x8xf32>
    %93 = arith.truncf %92 : vector<512x8xf32> to vector<512x8xbf16>
    %c8_37 = arith.constant 8 : index
    %c0_38 = arith.constant 0 : index
    %c0_39 = arith.constant 0 : index
    %94 = vector.load %arg2[%c8_37, %c0_38, %c0_39] : memref<9x8x32xbf16, #tpu.memory_space<vmem>>, vector<1x8x32xbf16>
    %95 = vector.shape_cast %94 : vector<1x8x32xbf16> to vector<8x32xbf16>
    %cst_40 = arith.constant dense<0.000000e+00> : vector<512x32xf32>
    %96 = tpu.matmul %93, %95, %cst_40 {dimension_numbers = #tpu.dot_dimension_numbers<[1], [0], [0], [1], [0, 0, 1, 1], [], []>} : vector<512x8xbf16>, vector<8x32xbf16>, vector<512x32xf32> -> vector<512x32xf32>
    %97 = arith.addf %88, %96 : vector<512x32xf32>
    %c0_41 = arith.constant 0 : index
    %c0_42 = arith.constant 0 : index
    %98 = vector.load %arg4[%c0_41, %c0_42] : memref<512x512xf32, #tpu.memory_space<vmem>>, vector<512x512xf32>
    %cst_43 = arith.constant dense<0.000000e+00> : vector<512x32xf32>
    %99 = tpu.matmul %98, %97, %cst_43 {dimension_numbers = #tpu.dot_dimension_numbers<[1], [0], [0], [1], [0, 0, 1, 1], [], []>} : vector<512x512xf32>, vector<512x32xf32>, vector<512x32xf32> -> vector<512x32xf32>
    %100 = vector.extract_strided_slice %99 {offsets = [0, 0], sizes = [128, 32], strides = [1, 1]} : vector<512x32xf32> to vector<128x32xf32>
    %101 = vector.extract_strided_slice %99 {offsets = [128, 0], sizes = [128, 32], strides = [1, 1]} : vector<512x32xf32> to vector<128x32xf32>
    %102 = arith.maximumf %100, %101 : vector<128x32xf32>
    %103 = vector.extract_strided_slice %99 {offsets = [256, 0], sizes = [128, 32], strides = [1, 1]} : vector<512x32xf32> to vector<128x32xf32>
    %104 = vector.extract_strided_slice %99 {offsets = [384, 0], sizes = [128, 32], strides = [1, 1]} : vector<512x32xf32> to vector<128x32xf32>
    %105 = arith.maximumf %103, %104 : vector<128x32xf32>
    %106 = arith.maximumf %102, %105 : vector<128x32xf32>
    %c0_44 = arith.constant 0 : index
    %c0_45 = arith.constant 0 : index
    %107 = vector.load %arg3[%c0_44, %c0_45] : memref<1x32xf32, #tpu.memory_space<vmem>>, vector<1x32xf32>
    %108 = vector.broadcast %107 : vector<1x32xf32> to vector<128x32xf32>
    %109 = arith.addf %106, %108 : vector<128x32xf32>
    %cst_46 = arith.constant 0.000000e+00 : f32
    %110 = vector.broadcast %cst_46 : f32 to vector<128x32xf32>
    %111 = arith.maximumf %109, %110 : vector<128x32xf32>
    %cst_47 = arith.constant 0.000000e+00 : f32
    %112 = vector.broadcast %cst_47 : f32 to vector<160x32xf32>
    %c0_48 = arith.constant 0 : index
    %c0_49 = arith.constant 0 : index
    %113 = vector.load %arg16[%c0_48, %c0_49] : memref<160x32xf32, #tpu.memory_space<vmem>>, vector<160x32xf32>
    tpu.vector_store %arg16[%c0_48, %c0_49], %112 {strides = array<i32>} : memref<160x32xf32, #tpu.memory_space<vmem>>, vector<160x32xf32>,
    %c16 = arith.constant 16 : index
    %c0_50 = arith.constant 0 : index
    %114 = vector.load %arg16[%c16, %c0_50] : memref<160x32xf32, #tpu.memory_space<vmem>>, vector<128x32xf32>
    tpu.vector_store %arg16[%c16, %c0_50], %111 {strides = array<i32>} : memref<160x32xf32, #tpu.memory_space<vmem>>, vector<128x32xf32>,
    %115 = tpu.iota {dimensions = array<i32: 0>} : vector<128x1xi32>
    %c3_i32 = arith.constant 3 : i32
    %116 = vector.broadcast %c3_i32 : i32 to vector<128x1xi32>
    %117 = arith.shrsi %115, %116 : vector<128x1xi32>
    %c7_i32 = arith.constant 7 : i32
    %118 = vector.broadcast %c7_i32 : i32 to vector<128x1xi32>
    %119 = arith.andi %117, %118 : vector<128x1xi32>
    %c7_i32_51 = arith.constant 7 : i32
    %120 = vector.broadcast %c7_i32_51 : i32 to vector<128x1xi32>
    %121 = arith.andi %115, %120 : vector<128x1xi32>
    %c1_i32_52 = arith.constant 1 : i32
    %122 = vector.broadcast %c1_i32_52 : i32 to vector<128x1xi32>
    %123 = arith.cmpi sge, %119, %122 : vector<128x1xi32>
    %124 = arith.extui %123 : vector<128x1xi1> to vector<128x1xi32>
    %125 = arith.sitofp %124 : vector<128x1xi32> to vector<128x1xf32>
    %c6_i32 = arith.constant 6 : i32
    %126 = vector.broadcast %c6_i32 : i32 to vector<128x1xi32>
    %127 = arith.cmpi sle, %119, %126 : vector<128x1xi32>
    %128 = arith.extui %127 : vector<128x1xi1> to vector<128x1xi32>
    %129 = arith.sitofp %128 : vector<128x1xi32> to vector<128x1xf32>
    %c1_i32_53 = arith.constant 1 : i32
    %130 = vector.broadcast %c1_i32_53 : i32 to vector<128x1xi32>
    %131 = arith.cmpi sge, %121, %130 : vector<128x1xi32>
    %132 = arith.extui %131 : vector<128x1xi1> to vector<128x1xi32>
    %133 = arith.sitofp %132 : vector<128x1xi32> to vector<128x1xf32>
    %c6_i32_54 = arith.constant 6 : i32
    %134 = vector.broadcast %c6_i32_54 : i32 to vector<128x1xi32>
    %135 = arith.cmpi sle, %121, %134 : vector<128x1xi32>
    %136 = arith.extui %135 : vector<128x1xi1> to vector<128x1xi32>
    %137 = arith.sitofp %136 : vector<128x1xi32> to vector<128x1xf32>
    %cst_55 = arith.constant 0.000000e+00 : f32
    %138 = vector.broadcast %cst_55 : f32 to vector<128x64xf32>
    %c7_56 = arith.constant 7 : index
    %c0_57 = arith.constant 0 : index
    %139 = vector.load %arg16[%c7_56, %c0_57] : memref<160x32xf32, #tpu.memory_space<vmem>>, vector<128x32xf32>
    %140 = arith.mulf %125, %133 : vector<128x1xf32>
    %141 = vector.broadcast %140 : vector<128x1xf32> to vector<128x32xf32>
    %142 = arith.mulf %139, %141 : vector<128x32xf32>
    %143 = arith.truncf %142 : vector<128x32xf32> to vector<128x32xbf16>
    %c0_58 = arith.constant 0 : index
    %c0_59 = arith.constant 0 : index
    %c0_60 = arith.constant 0 : index
    %144 = vector.load %arg5[%c0_58, %c0_59, %c0_60] : memref<9x32x64xbf16, #tpu.memory_space<vmem>>, vector<1x32x64xbf16>
    %145 = vector.shape_cast %144 : vector<1x32x64xbf16> to vector<32x64xbf16>
    %cst_61 = arith.constant dense<0.000000e+00> : vector<128x64xf32>
    %146 = tpu.matmul %143, %145, %cst_61 {dimension_numbers = #tpu.dot_dimension_numbers<[1], [0], [0], [1], [0, 0, 1, 1], [], []>} : vector<128x32xbf16>, vector<32x64xbf16>, vector<128x64xf32> -> vector<128x64xf32>
    %147 = arith.addf %138, %146 : vector<128x64xf32>
    %c8_62 = arith.constant 8 : index
    %c0_63 = arith.constant 0 : index
    %148 = vector.load %arg16[%c8_62, %c0_63] : memref<160x32xf32, #tpu.memory_space<vmem>>, vector<128x32xf32>
    %149 = vector.broadcast %125 : vector<128x1xf32> to vector<128x32xf32>
    %150 = arith.mulf %148, %149 : vector<128x32xf32>
    %151 = arith.truncf %150 : vector<128x32xf32> to vector<128x32xbf16>
    %c1_64 = arith.constant 1 : index
    %c0_65 = arith.constant 0 : index
    %c0_66 = arith.constant 0 : index
    %152 = vector.load %arg5[%c1_64, %c0_65, %c0_66] : memref<9x32x64xbf16, #tpu.memory_space<vmem>>, vector<1x32x64xbf16>
    %153 = vector.shape_cast %152 : vector<1x32x64xbf16> to vector<32x64xbf16>
    %cst_67 = arith.constant dense<0.000000e+00> : vector<128x64xf32>
    %154 = tpu.matmul %151, %153, %cst_67 {dimension_numbers = #tpu.dot_dimension_numbers<[1], [0], [0], [1], [0, 0, 1, 1], [], []>} : vector<128x32xbf16>, vector<32x64xbf16>, vector<128x64xf32> -> vector<128x64xf32>
    %155 = arith.addf %147, %154 : vector<128x64xf32>
    %c9_68 = arith.constant 9 : index
    %c0_69 = arith.constant 0 : index
    %156 = vector.load %arg16[%c9_68, %c0_69] : memref<160x32xf32, #tpu.memory_space<vmem>>, vector<128x32xf32>
    %157 = arith.mulf %125, %137 : vector<128x1xf32>
    %158 = vector.broadcast %157 : vector<128x1xf32> to vector<128x32xf32>
    %159 = arith.mulf %156, %158 : vector<128x32xf32>
    %160 = arith.truncf %159 : vector<128x32xf32> to vector<128x32xbf16>
    %c2_70 = arith.constant 2 : index
    %c0_71 = arith.constant 0 : index
    %c0_72 = arith.constant 0 : index
    %161 = vector.load %arg5[%c2_70, %c0_71, %c0_72] : memref<9x32x64xbf16, #tpu.memory_space<vmem>>, vector<1x32x64xbf16>
    %162 = vector.shape_cast %161 : vector<1x32x64xbf16> to vector<32x64xbf16>
    %cst_73 = arith.constant dense<0.000000e+00> : vector<128x64xf32>
    %163 = tpu.matmul %160, %162, %cst_73 {dimension_numbers = #tpu.dot_dimension_numbers<[1], [0], [0], [1], [0, 0, 1, 1], [], []>} : vector<128x32xbf16>, vector<32x64xbf16>, vector<128x64xf32> -> vector<128x64xf32>
    %164 = arith.addf %155, %163 : vector<128x64xf32>
    %c15 = arith.constant 15 : index
    %c0_74 = arith.constant 0 : index
    %165 = vector.load %arg16[%c15, %c0_74] : memref<160x32xf32, #tpu.memory_space<vmem>>, vector<128x32xf32>
    %166 = vector.broadcast %133 : vector<128x1xf32> to vector<128x32xf32>
    %167 = arith.mulf %165, %166 : vector<128x32xf32>
    %168 = arith.truncf %167 : vector<128x32xf32> to vector<128x32xbf16>
    %c3_75 = arith.constant 3 : index
    %c0_76 = arith.constant 0 : index
    %c0_77 = arith.constant 0 : index
    %169 = vector.load %arg5[%c3_75, %c0_76, %c0_77] : memref<9x32x64xbf16, #tpu.memory_space<vmem>>, vector<1x32x64xbf16>
    %170 = vector.shape_cast %169 : vector<1x32x64xbf16> to vector<32x64xbf16>
    %cst_78 = arith.constant dense<0.000000e+00> : vector<128x64xf32>
    %171 = tpu.matmul %168, %170, %cst_78 {dimension_numbers = #tpu.dot_dimension_numbers<[1], [0], [0], [1], [0, 0, 1, 1], [], []>} : vector<128x32xbf16>, vector<32x64xbf16>, vector<128x64xf32> -> vector<128x64xf32>
    %172 = arith.addf %164, %171 : vector<128x64xf32>
    %c16_79 = arith.constant 16 : index
    %c0_80 = arith.constant 0 : index
    %173 = vector.load %arg16[%c16_79, %c0_80] : memref<160x32xf32, #tpu.memory_space<vmem>>, vector<128x32xf32>
    %174 = arith.truncf %173 : vector<128x32xf32> to vector<128x32xbf16>
    %c4_81 = arith.constant 4 : index
    %c0_82 = arith.constant 0 : index
    %c0_83 = arith.constant 0 : index
    %175 = vector.load %arg5[%c4_81, %c0_82, %c0_83] : memref<9x32x64xbf16, #tpu.memory_space<vmem>>, vector<1x32x64xbf16>
    %176 = vector.shape_cast %175 : vector<1x32x64xbf16> to vector<32x64xbf16>
    %cst_84 = arith.constant dense<0.000000e+00> : vector<128x64xf32>
    %177 = tpu.matmul %174, %176, %cst_84 {dimension_numbers = #tpu.dot_dimension_numbers<[1], [0], [0], [1], [0, 0, 1, 1], [], []>} : vector<128x32xbf16>, vector<32x64xbf16>, vector<128x64xf32> -> vector<128x64xf32>
    %178 = arith.addf %172, %177 : vector<128x64xf32>
    %c17 = arith.constant 17 : index
    %c0_85 = arith.constant 0 : index
    %179 = vector.load %arg16[%c17, %c0_85] : memref<160x32xf32, #tpu.memory_space<vmem>>, vector<128x32xf32>
    %180 = vector.broadcast %137 : vector<128x1xf32> to vector<128x32xf32>
    %181 = arith.mulf %179, %180 : vector<128x32xf32>
    %182 = arith.truncf %181 : vector<128x32xf32> to vector<128x32xbf16>
    %c5_86 = arith.constant 5 : index
    %c0_87 = arith.constant 0 : index
    %c0_88 = arith.constant 0 : index
    %183 = vector.load %arg5[%c5_86, %c0_87, %c0_88] : memref<9x32x64xbf16, #tpu.memory_space<vmem>>, vector<1x32x64xbf16>
    %184 = vector.shape_cast %183 : vector<1x32x64xbf16> to vector<32x64xbf16>
    %cst_89 = arith.constant dense<0.000000e+00> : vector<128x64xf32>
    %185 = tpu.matmul %182, %184, %cst_89 {dimension_numbers = #tpu.dot_dimension_numbers<[1], [0], [0], [1], [0, 0, 1, 1], [], []>} : vector<128x32xbf16>, vector<32x64xbf16>, vector<128x64xf32> -> vector<128x64xf32>
    %186 = arith.addf %178, %185 : vector<128x64xf32>
    %c23_90 = arith.constant 23 : index
    %c0_91 = arith.constant 0 : index
    %187 = vector.load %arg16[%c23_90, %c0_91] : memref<160x32xf32, #tpu.memory_space<vmem>>, vector<128x32xf32>
    %188 = arith.mulf %129, %133 : vector<128x1xf32>
    %189 = vector.broadcast %188 : vector<128x1xf32> to vector<128x32xf32>
    %190 = arith.mulf %187, %189 : vector<128x32xf32>
    %191 = arith.truncf %190 : vector<128x32xf32> to vector<128x32xbf16>
    %c6_92 = arith.constant 6 : index
    %c0_93 = arith.constant 0 : index
    %c0_94 = arith.constant 0 : index
    %192 = vector.load %arg5[%c6_92, %c0_93, %c0_94] : memref<9x32x64xbf16, #tpu.memory_space<vmem>>, vector<1x32x64xbf16>
    %193 = vector.shape_cast %192 : vector<1x32x64xbf16> to vector<32x64xbf16>
    %cst_95 = arith.constant dense<0.000000e+00> : vector<128x64xf32>
    %194 = tpu.matmul %191, %193, %cst_95 {dimension_numbers = #tpu.dot_dimension_numbers<[1], [0], [0], [1], [0, 0, 1, 1], [], []>} : vector<128x32xbf16>, vector<32x64xbf16>, vector<128x64xf32> -> vector<128x64xf32>
    %195 = arith.addf %186, %194 : vector<128x64xf32>
    %c24_96 = arith.constant 24 : index
    %c0_97 = arith.constant 0 : index
    %196 = vector.load %arg16[%c24_96, %c0_97] : memref<160x32xf32, #tpu.memory_space<vmem>>, vector<128x32xf32>
    %197 = vector.broadcast %129 : vector<128x1xf32> to vector<128x32xf32>
    %198 = arith.mulf %196, %197 : vector<128x32xf32>
    %199 = arith.truncf %198 : vector<128x32xf32> to vector<128x32xbf16>
    %c7_98 = arith.constant 7 : index
    %c0_99 = arith.constant 0 : index
    %c0_100 = arith.constant 0 : index
    %200 = vector.load %arg5[%c7_98, %c0_99, %c0_100] : memref<9x32x64xbf16, #tpu.memory_space<vmem>>, vector<1x32x64xbf16>
    %201 = vector.shape_cast %200 : vector<1x32x64xbf16> to vector<32x64xbf16>
    %cst_101 = arith.constant dense<0.000000e+00> : vector<128x64xf32>
    %202 = tpu.matmul %199, %201, %cst_101 {dimension_numbers = #tpu.dot_dimension_numbers<[1], [0], [0], [1], [0, 0, 1, 1], [], []>} : vector<128x32xbf16>, vector<32x64xbf16>, vector<128x64xf32> -> vector<128x64xf32>
    %203 = arith.addf %195, %202 : vector<128x64xf32>
    %c25_102 = arith.constant 25 : index
    %c0_103 = arith.constant 0 : index
    %204 = vector.load %arg16[%c25_102, %c0_103] : memref<160x32xf32, #tpu.memory_space<vmem>>, vector<128x32xf32>
    %205 = arith.mulf %129, %137 : vector<128x1xf32>
    %206 = vector.broadcast %205 : vector<128x1xf32> to vector<128x32xf32>
    %207 = arith.mulf %204, %206 : vector<128x32xf32>
    %208 = arith.truncf %207 : vector<128x32xf32> to vector<128x32xbf16>
    %c8_104 = arith.constant 8 : index
    %c0_105 = arith.constant 0 : index
    %c0_106 = arith.constant 0 : index
    %209 = vector.load %arg5[%c8_104, %c0_105, %c0_106] : memref<9x32x64xbf16, #tpu.memory_space<vmem>>, vector<1x32x64xbf16>
    %210 = vector.shape_cast %209 : vector<1x32x64xbf16> to vector<32x64xbf16>
    %cst_107 = arith.constant dense<0.000000e+00> : vector<128x64xf32>
    %211 = tpu.matmul %208, %210, %cst_107 {dimension_numbers = #tpu.dot_dimension_numbers<[1], [0], [0], [1], [0, 0, 1, 1], [], []>} : vector<128x32xbf16>, vector<32x64xbf16>, vector<128x64xf32> -> vector<128x64xf32>
    %212 = arith.addf %203, %211 : vector<128x64xf32>
    %c0_108 = arith.constant 0 : index
    %c0_109 = arith.constant 0 : index
    %213 = vector.load %arg7[%c0_108, %c0_109] : memref<128x128xf32, #tpu.memory_space<vmem>>, vector<128x128xf32>
    %cst_110 = arith.constant dense<0.000000e+00> : vector<128x64xf32>
    %214 = tpu.matmul %213, %212, %cst_110 {dimension_numbers = #tpu.dot_dimension_numbers<[1], [0], [0], [1], [0, 0, 1, 1], [], []>} : vector<128x128xf32>, vector<128x64xf32>, vector<128x64xf32> -> vector<128x64xf32>
    %215 = vector.extract_strided_slice %214 {offsets = [0, 0], sizes = [32, 64], strides = [1, 1]} : vector<128x64xf32> to vector<32x64xf32>
    %216 = vector.extract_strided_slice %214 {offsets = [32, 0], sizes = [32, 64], strides = [1, 1]} : vector<128x64xf32> to vector<32x64xf32>
    %217 = arith.maximumf %215, %216 : vector<32x64xf32>
    %218 = vector.extract_strided_slice %214 {offsets = [64, 0], sizes = [32, 64], strides = [1, 1]} : vector<128x64xf32> to vector<32x64xf32>
    %219 = vector.extract_strided_slice %214 {offsets = [96, 0], sizes = [32, 64], strides = [1, 1]} : vector<128x64xf32> to vector<32x64xf32>
    %220 = arith.maximumf %218, %219 : vector<32x64xf32>
    %221 = arith.maximumf %217, %220 : vector<32x64xf32>
    %c0_111 = arith.constant 0 : index
    %c0_112 = arith.constant 0 : index
    %222 = vector.load %arg6[%c0_111, %c0_112] : memref<1x64xf32, #tpu.memory_space<vmem>>, vector<1x64xf32>
    %223 = vector.broadcast %222 : vector<1x64xf32> to vector<32x64xf32>
    %224 = arith.addf %221, %223 : vector<32x64xf32>
    %cst_113 = arith.constant 0.000000e+00 : f32
    %225 = vector.broadcast %cst_113 : f32 to vector<32x64xf32>
    %226 = arith.maximumf %224, %225 : vector<32x64xf32>
    %cst_114 = arith.constant 0.000000e+00 : f32
    %227 = vector.broadcast %cst_114 : f32 to vector<48x64xf32>
    %c0_115 = arith.constant 0 : index
    %c0_116 = arith.constant 0 : index
    %228 = vector.load %arg17[%c0_115, %c0_116] : memref<48x64xf32, #tpu.memory_space<vmem>>, vector<48x64xf32>
    tpu.vector_store %arg17[%c0_115, %c0_116], %227 {strides = array<i32>} : memref<48x64xf32, #tpu.memory_space<vmem>>, vector<48x64xf32>,
    %c8_117 = arith.constant 8 : index
    %c0_118 = arith.constant 0 : index
    %229 = vector.load %arg17[%c8_117, %c0_118] : memref<48x64xf32, #tpu.memory_space<vmem>>, vector<32x64xf32>
    tpu.vector_store %arg17[%c8_117, %c0_118], %226 {strides = array<i32>} : memref<48x64xf32, #tpu.memory_space<vmem>>, vector<32x64xf32>,
    %230 = tpu.iota {dimensions = array<i32: 0>} : vector<32x1xi32>
    %c2_i32 = arith.constant 2 : i32
    %231 = vector.broadcast %c2_i32 : i32 to vector<32x1xi32>
    %232 = arith.shrsi %230, %231 : vector<32x1xi32>
    %c3_i32_119 = arith.constant 3 : i32
    %233 = vector.broadcast %c3_i32_119 : i32 to vector<32x1xi32>
    %234 = arith.andi %232, %233 : vector<32x1xi32>
    %c3_i32_120 = arith.constant 3 : i32
    %235 = vector.broadcast %c3_i32_120 : i32 to vector<32x1xi32>
    %236 = arith.andi %230, %235 : vector<32x1xi32>
    %c1_i32_121 = arith.constant 1 : i32
    %237 = vector.broadcast %c1_i32_121 : i32 to vector<32x1xi32>
    %238 = arith.cmpi sge, %234, %237 : vector<32x1xi32>
    %239 = arith.extui %238 : vector<32x1xi1> to vector<32x1xi32>
    %240 = arith.sitofp %239 : vector<32x1xi32> to vector<32x1xf32>
    %c2_i32_122 = arith.constant 2 : i32
    %241 = vector.broadcast %c2_i32_122 : i32 to vector<32x1xi32>
    %242 = arith.cmpi sle, %234, %241 : vector<32x1xi32>
    %243 = arith.extui %242 : vector<32x1xi1> to vector<32x1xi32>
    %244 = arith.sitofp %243 : vector<32x1xi32> to vector<32x1xf32>
    %c1_i32_123 = arith.constant 1 : i32
    %245 = vector.broadcast %c1_i32_123 : i32 to vector<32x1xi32>
    %246 = arith.cmpi sge, %236, %245 : vector<32x1xi32>
    %247 = arith.extui %246 : vector<32x1xi1> to vector<32x1xi32>
    %248 = arith.sitofp %247 : vector<32x1xi32> to vector<32x1xf32>
    %c2_i32_124 = arith.constant 2 : i32
    %249 = vector.broadcast %c2_i32_124 : i32 to vector<32x1xi32>
    %250 = arith.cmpi sle, %236, %249 : vector<32x1xi32>
    %251 = arith.extui %250 : vector<32x1xi1> to vector<32x1xi32>
    %252 = arith.sitofp %251 : vector<32x1xi32> to vector<32x1xf32>
    %cst_125 = arith.constant 0.000000e+00 : f32
    %253 = vector.broadcast %cst_125 : f32 to vector<32x128xf32>
    %c3_126 = arith.constant 3 : index
    %c0_127 = arith.constant 0 : index
    %254 = vector.load %arg17[%c3_126, %c0_127] : memref<48x64xf32, #tpu.memory_space<vmem>>, vector<32x64xf32>
    %255 = arith.mulf %240, %248 : vector<32x1xf32>
    %256 = vector.broadcast %255 : vector<32x1xf32> to vector<32x64xf32>
    %257 = arith.mulf %254, %256 : vector<32x64xf32>
    %258 = arith.truncf %257 : vector<32x64xf32> to vector<32x64xbf16>
    %c0_128 = arith.constant 0 : index
    %c0_129 = arith.constant 0 : index
    %c0_130 = arith.constant 0 : index
    %259 = vector.load %arg8[%c0_128, %c0_129, %c0_130] : memref<9x64x128xbf16, #tpu.memory_space<vmem>>, vector<1x64x128xbf16>
    %260 = vector.shape_cast %259 : vector<1x64x128xbf16> to vector<64x128xbf16>
    %cst_131 = arith.constant dense<0.000000e+00> : vector<32x128xf32>
    %261 = tpu.matmul %258, %260, %cst_131 {dimension_numbers = #tpu.dot_dimension_numbers<[1], [0], [0], [1], [0, 0, 1, 1], [], []>} : vector<32x64xbf16>, vector<64x128xbf16>, vector<32x128xf32> -> vector<32x128xf32>
    %262 = arith.addf %253, %261 : vector<32x128xf32>
    %c4_132 = arith.constant 4 : index
    %c0_133 = arith.constant 0 : index
    %263 = vector.load %arg17[%c4_132, %c0_133] : memref<48x64xf32, #tpu.memory_space<vmem>>, vector<32x64xf32>
    %264 = vector.broadcast %240 : vector<32x1xf32> to vector<32x64xf32>
    %265 = arith.mulf %263, %264 : vector<32x64xf32>
    %266 = arith.truncf %265 : vector<32x64xf32> to vector<32x64xbf16>
    %c1_134 = arith.constant 1 : index
    %c0_135 = arith.constant 0 : index
    %c0_136 = arith.constant 0 : index
    %267 = vector.load %arg8[%c1_134, %c0_135, %c0_136] : memref<9x64x128xbf16, #tpu.memory_space<vmem>>, vector<1x64x128xbf16>
    %268 = vector.shape_cast %267 : vector<1x64x128xbf16> to vector<64x128xbf16>
    %cst_137 = arith.constant dense<0.000000e+00> : vector<32x128xf32>
    %269 = tpu.matmul %266, %268, %cst_137 {dimension_numbers = #tpu.dot_dimension_numbers<[1], [0], [0], [1], [0, 0, 1, 1], [], []>} : vector<32x64xbf16>, vector<64x128xbf16>, vector<32x128xf32> -> vector<32x128xf32>
    %270 = arith.addf %262, %269 : vector<32x128xf32>
    %c5_138 = arith.constant 5 : index
    %c0_139 = arith.constant 0 : index
    %271 = vector.load %arg17[%c5_138, %c0_139] : memref<48x64xf32, #tpu.memory_space<vmem>>, vector<32x64xf32>
    %272 = arith.mulf %240, %252 : vector<32x1xf32>
    %273 = vector.broadcast %272 : vector<32x1xf32> to vector<32x64xf32>
    %274 = arith.mulf %271, %273 : vector<32x64xf32>
    %275 = arith.truncf %274 : vector<32x64xf32> to vector<32x64xbf16>
    %c2_140 = arith.constant 2 : index
    %c0_141 = arith.constant 0 : index
    %c0_142 = arith.constant 0 : index
    %276 = vector.load %arg8[%c2_140, %c0_141, %c0_142] : memref<9x64x128xbf16, #tpu.memory_space<vmem>>, vector<1x64x128xbf16>
    %277 = vector.shape_cast %276 : vector<1x64x128xbf16> to vector<64x128xbf16>
    %cst_143 = arith.constant dense<0.000000e+00> : vector<32x128xf32>
    %278 = tpu.matmul %275, %277, %cst_143 {dimension_numbers = #tpu.dot_dimension_numbers<[1], [0], [0], [1], [0, 0, 1, 1], [], []>} : vector<32x64xbf16>, vector<64x128xbf16>, vector<32x128xf32> -> vector<32x128xf32>
    %279 = arith.addf %270, %278 : vector<32x128xf32>
    %c7_144 = arith.constant 7 : index
    %c0_145 = arith.constant 0 : index
    %280 = vector.load %arg17[%c7_144, %c0_145] : memref<48x64xf32, #tpu.memory_space<vmem>>, vector<32x64xf32>
    %281 = vector.broadcast %248 : vector<32x1xf32> to vector<32x64xf32>
    %282 = arith.mulf %280, %281 : vector<32x64xf32>
    %283 = arith.truncf %282 : vector<32x64xf32> to vector<32x64xbf16>
    %c3_146 = arith.constant 3 : index
    %c0_147 = arith.constant 0 : index
    %c0_148 = arith.constant 0 : index
    %284 = vector.load %arg8[%c3_146, %c0_147, %c0_148] : memref<9x64x128xbf16, #tpu.memory_space<vmem>>, vector<1x64x128xbf16>
    %285 = vector.shape_cast %284 : vector<1x64x128xbf16> to vector<64x128xbf16>
    %cst_149 = arith.constant dense<0.000000e+00> : vector<32x128xf32>
    %286 = tpu.matmul %283, %285, %cst_149 {dimension_numbers = #tpu.dot_dimension_numbers<[1], [0], [0], [1], [0, 0, 1, 1], [], []>} : vector<32x64xbf16>, vector<64x128xbf16>, vector<32x128xf32> -> vector<32x128xf32>
    %287 = arith.addf %279, %286 : vector<32x128xf32>
    %c8_150 = arith.constant 8 : index
    %c0_151 = arith.constant 0 : index
    %288 = vector.load %arg17[%c8_150, %c0_151] : memref<48x64xf32, #tpu.memory_space<vmem>>, vector<32x64xf32>
    %289 = arith.truncf %288 : vector<32x64xf32> to vector<32x64xbf16>
    %c4_152 = arith.constant 4 : index
    %c0_153 = arith.constant 0 : index
    %c0_154 = arith.constant 0 : index
    %290 = vector.load %arg8[%c4_152, %c0_153, %c0_154] : memref<9x64x128xbf16, #tpu.memory_space<vmem>>, vector<1x64x128xbf16>
    %291 = vector.shape_cast %290 : vector<1x64x128xbf16> to vector<64x128xbf16>
    %cst_155 = arith.constant dense<0.000000e+00> : vector<32x128xf32>
    %292 = tpu.matmul %289, %291, %cst_155 {dimension_numbers = #tpu.dot_dimension_numbers<[1], [0], [0], [1], [0, 0, 1, 1], [], []>} : vector<32x64xbf16>, vector<64x128xbf16>, vector<32x128xf32> -> vector<32x128xf32>
    %293 = arith.addf %287, %292 : vector<32x128xf32>
    %c9_156 = arith.constant 9 : index
    %c0_157 = arith.constant 0 : index
    %294 = vector.load %arg17[%c9_156, %c0_157] : memref<48x64xf32, #tpu.memory_space<vmem>>, vector<32x64xf32>
    %295 = vector.broadcast %252 : vector<32x1xf32> to vector<32x64xf32>
    %296 = arith.mulf %294, %295 : vector<32x64xf32>
    %297 = arith.truncf %296 : vector<32x64xf32> to vector<32x64xbf16>
    %c5_158 = arith.constant 5 : index
    %c0_159 = arith.constant 0 : index
    %c0_160 = arith.constant 0 : index
    %298 = vector.load %arg8[%c5_158, %c0_159, %c0_160] : memref<9x64x128xbf16, #tpu.memory_space<vmem>>, vector<1x64x128xbf16>
    %299 = vector.shape_cast %298 : vector<1x64x128xbf16> to vector<64x128xbf16>
    %cst_161 = arith.constant dense<0.000000e+00> : vector<32x128xf32>
    %300 = tpu.matmul %297, %299, %cst_161 {dimension_numbers = #tpu.dot_dimension_numbers<[1], [0], [0], [1], [0, 0, 1, 1], [], []>} : vector<32x64xbf16>, vector<64x128xbf16>, vector<32x128xf32> -> vector<32x128xf32>
    %301 = arith.addf %293, %300 : vector<32x128xf32>
    %c11 = arith.constant 11 : index
    %c0_162 = arith.constant 0 : index
    %302 = vector.load %arg17[%c11, %c0_162] : memref<48x64xf32, #tpu.memory_space<vmem>>, vector<32x64xf32>
    %303 = arith.mulf %244, %248 : vector<32x1xf32>
    %304 = vector.broadcast %303 : vector<32x1xf32> to vector<32x64xf32>
    %305 = arith.mulf %302, %304 : vector<32x64xf32>
    %306 = arith.truncf %305 : vector<32x64xf32> to vector<32x64xbf16>
    %c6_163 = arith.constant 6 : index
    %c0_164 = arith.constant 0 : index
    %c0_165 = arith.constant 0 : index
    %307 = vector.load %arg8[%c6_163, %c0_164, %c0_165] : memref<9x64x128xbf16, #tpu.memory_space<vmem>>, vector<1x64x128xbf16>
    %308 = vector.shape_cast %307 : vector<1x64x128xbf16> to vector<64x128xbf16>
    %cst_166 = arith.constant dense<0.000000e+00> : vector<32x128xf32>
    %309 = tpu.matmul %306, %308, %cst_166 {dimension_numbers = #tpu.dot_dimension_numbers<[1], [0], [0], [1], [0, 0, 1, 1], [], []>} : vector<32x64xbf16>, vector<64x128xbf16>, vector<32x128xf32> -> vector<32x128xf32>
    %310 = arith.addf %301, %309 : vector<32x128xf32>
    %c12 = arith.constant 12 : index
    %c0_167 = arith.constant 0 : index
    %311 = vector.load %arg17[%c12, %c0_167] : memref<48x64xf32, #tpu.memory_space<vmem>>, vector<32x64xf32>
    %312 = vector.broadcast %244 : vector<32x1xf32> to vector<32x64xf32>
    %313 = arith.mulf %311, %312 : vector<32x64xf32>
    %314 = arith.truncf %313 : vector<32x64xf32> to vector<32x64xbf16>
    %c7_168 = arith.constant 7 : index
    %c0_169 = arith.constant 0 : index
    %c0_170 = arith.constant 0 : index
    %315 = vector.load %arg8[%c7_168, %c0_169, %c0_170] : memref<9x64x128xbf16, #tpu.memory_space<vmem>>, vector<1x64x128xbf16>
    %316 = vector.shape_cast %315 : vector<1x64x128xbf16> to vector<64x128xbf16>
    %cst_171 = arith.constant dense<0.000000e+00> : vector<32x128xf32>
    %317 = tpu.matmul %314, %316, %cst_171 {dimension_numbers = #tpu.dot_dimension_numbers<[1], [0], [0], [1], [0, 0, 1, 1], [], []>} : vector<32x64xbf16>, vector<64x128xbf16>, vector<32x128xf32> -> vector<32x128xf32>
    %318 = arith.addf %310, %317 : vector<32x128xf32>
    %c13 = arith.constant 13 : index
    %c0_172 = arith.constant 0 : index
    %319 = vector.load %arg17[%c13, %c0_172] : memref<48x64xf32, #tpu.memory_space<vmem>>, vector<32x64xf32>
    %320 = arith.mulf %244, %252 : vector<32x1xf32>
    %321 = vector.broadcast %320 : vector<32x1xf32> to vector<32x64xf32>
    %322 = arith.mulf %319, %321 : vector<32x64xf32>
    %323 = arith.truncf %322 : vector<32x64xf32> to vector<32x64xbf16>
    %c8_173 = arith.constant 8 : index
    %c0_174 = arith.constant 0 : index
    %c0_175 = arith.constant 0 : index
    %324 = vector.load %arg8[%c8_173, %c0_174, %c0_175] : memref<9x64x128xbf16, #tpu.memory_space<vmem>>, vector<1x64x128xbf16>
    %325 = vector.shape_cast %324 : vector<1x64x128xbf16> to vector<64x128xbf16>
    %cst_176 = arith.constant dense<0.000000e+00> : vector<32x128xf32>
    %326 = tpu.matmul %323, %325, %cst_176 {dimension_numbers = #tpu.dot_dimension_numbers<[1], [0], [0], [1], [0, 0, 1, 1], [], []>} : vector<32x64xbf16>, vector<64x128xbf16>, vector<32x128xf32> -> vector<32x128xf32>
    %327 = arith.addf %318, %326 : vector<32x128xf32>
    %c0_177 = arith.constant 0 : index
    %c0_178 = arith.constant 0 : index
    %328 = vector.load %arg10[%c0_177, %c0_178] : memref<32x32xf32, #tpu.memory_space<vmem>>, vector<32x32xf32>
    %cst_179 = arith.constant dense<0.000000e+00> : vector<32x128xf32>
    %329 = tpu.matmul %328, %327, %cst_179 {dimension_numbers = #tpu.dot_dimension_numbers<[1], [0], [0], [1], [0, 0, 1, 1], [], []>} : vector<32x32xf32>, vector<32x128xf32>, vector<32x128xf32> -> vector<32x128xf32>
    %330 = vector.extract_strided_slice %329 {offsets = [0, 0], sizes = [8, 128], strides = [1, 1]} : vector<32x128xf32> to vector<8x128xf32>
    %331 = vector.extract_strided_slice %329 {offsets = [8, 0], sizes = [8, 128], strides = [1, 1]} : vector<32x128xf32> to vector<8x128xf32>
    %332 = arith.maximumf %330, %331 : vector<8x128xf32>
    %333 = vector.extract_strided_slice %329 {offsets = [16, 0], sizes = [8, 128], strides = [1, 1]} : vector<32x128xf32> to vector<8x128xf32>
    %334 = vector.extract_strided_slice %329 {offsets = [24, 0], sizes = [8, 128], strides = [1, 1]} : vector<32x128xf32> to vector<8x128xf32>
    %335 = arith.maximumf %333, %334 : vector<8x128xf32>
    %336 = arith.maximumf %332, %335 : vector<8x128xf32>
    %c0_180 = arith.constant 0 : index
    %c0_181 = arith.constant 0 : index
    %337 = vector.load %arg9[%c0_180, %c0_181] : memref<1x128xf32, #tpu.memory_space<vmem>>, vector<1x128xf32>
    %338 = vector.broadcast %337 : vector<1x128xf32> to vector<8x128xf32>
    %339 = arith.addf %336, %338 : vector<8x128xf32>
    %cst_182 = arith.constant 0.000000e+00 : f32
    %340 = vector.broadcast %cst_182 : f32 to vector<8x128xf32>
    %341 = arith.maximumf %339, %340 : vector<8x128xf32>
    %c0_183 = arith.constant 0 : index
    %c0_184 = arith.constant 0 : index
    %342 = vector.load %arg18[%c0_183, %c0_184] : memref<8x128xf32, #tpu.memory_space<vmem>>, vector<8x128xf32>
    tpu.vector_store %arg18[%c0_183, %c0_184], %341 {strides = array<i32>} : memref<8x128xf32, #tpu.memory_space<vmem>>, vector<8x128xf32>,
    %cst_185 = arith.constant 0.000000e+00 : f32
    %343 = vector.broadcast %cst_185 : f32 to vector<2x256xf32>
    %c0_186 = arith.constant 0 : index
    %c0_187 = arith.constant 0 : index
    %344 = vector.load %arg18[%c0_186, %c0_187] : memref<8x128xf32, #tpu.memory_space<vmem>>, vector<2x128xf32>
    %345 = arith.truncf %344 : vector<2x128xf32> to vector<2x128xbf16>
    %c0_188 = arith.constant 0 : index
    %c0_189 = arith.constant 0 : index
    %c0_190 = arith.constant 0 : index
    %346 = vector.load %arg11[%c0_188, %c0_189, %c0_190] : memref<4x128x256xbf16, #tpu.memory_space<vmem>>, vector<1x128x256xbf16>
    %347 = vector.shape_cast %346 : vector<1x128x256xbf16> to vector<128x256xbf16>
    %cst_191 = arith.constant dense<0.000000e+00> : vector<2x256xf32>
    %348 = tpu.matmul %345, %347, %cst_191 {dimension_numbers = #tpu.dot_dimension_numbers<[1], [0], [0], [1], [0, 0, 1, 1], [], []>} : vector<2x128xbf16>, vector<128x256xbf16>, vector<2x256xf32> -> vector<2x256xf32>
    %349 = arith.addf %343, %348 : vector<2x256xf32>
    %c2_192 = arith.constant 2 : index
    %c0_193 = arith.constant 0 : index
    %350 = vector.load %arg18[%c2_192, %c0_193] : memref<8x128xf32, #tpu.memory_space<vmem>>, vector<2x128xf32>
    %351 = arith.truncf %350 : vector<2x128xf32> to vector<2x128xbf16>
    %c1_194 = arith.constant 1 : index
    %c0_195 = arith.constant 0 : index
    %c0_196 = arith.constant 0 : index
    %352 = vector.load %arg11[%c1_194, %c0_195, %c0_196] : memref<4x128x256xbf16, #tpu.memory_space<vmem>>, vector<1x128x256xbf16>
    %353 = vector.shape_cast %352 : vector<1x128x256xbf16> to vector<128x256xbf16>
    %cst_197 = arith.constant dense<0.000000e+00> : vector<2x256xf32>
    %354 = tpu.matmul %351, %353, %cst_197 {dimension_numbers = #tpu.dot_dimension_numbers<[1], [0], [0], [1], [0, 0, 1, 1], [], []>} : vector<2x128xbf16>, vector<128x256xbf16>, vector<2x256xf32> -> vector<2x256xf32>
    %355 = arith.addf %349, %354 : vector<2x256xf32>
    %c4_198 = arith.constant 4 : index
    %c0_199 = arith.constant 0 : index
    %356 = vector.load %arg18[%c4_198, %c0_199] : memref<8x128xf32, #tpu.memory_space<vmem>>, vector<2x128xf32>
    %357 = arith.truncf %356 : vector<2x128xf32> to vector<2x128xbf16>
    %c2_200 = arith.constant 2 : index
    %c0_201 = arith.constant 0 : index
    %c0_202 = arith.constant 0 : index
    %358 = vector.load %arg11[%c2_200, %c0_201, %c0_202] : memref<4x128x256xbf16, #tpu.memory_space<vmem>>, vector<1x128x256xbf16>
    %359 = vector.shape_cast %358 : vector<1x128x256xbf16> to vector<128x256xbf16>
    %cst_203 = arith.constant dense<0.000000e+00> : vector<2x256xf32>
    %360 = tpu.matmul %357, %359, %cst_203 {dimension_numbers = #tpu.dot_dimension_numbers<[1], [0], [0], [1], [0, 0, 1, 1], [], []>} : vector<2x128xbf16>, vector<128x256xbf16>, vector<2x256xf32> -> vector<2x256xf32>
    %361 = arith.addf %355, %360 : vector<2x256xf32>
    %c6_204 = arith.constant 6 : index
    %c0_205 = arith.constant 0 : index
    %362 = vector.load %arg18[%c6_204, %c0_205] : memref<8x128xf32, #tpu.memory_space<vmem>>, vector<2x128xf32>
    %363 = arith.truncf %362 : vector<2x128xf32> to vector<2x128xbf16>
    %c3_206 = arith.constant 3 : index
    %c0_207 = arith.constant 0 : index
    %c0_208 = arith.constant 0 : index
    %364 = vector.load %arg11[%c3_206, %c0_207, %c0_208] : memref<4x128x256xbf16, #tpu.memory_space<vmem>>, vector<1x128x256xbf16>
    %365 = vector.shape_cast %364 : vector<1x128x256xbf16> to vector<128x256xbf16>
    %cst_209 = arith.constant dense<0.000000e+00> : vector<2x256xf32>
    %366 = tpu.matmul %363, %365, %cst_209 {dimension_numbers = #tpu.dot_dimension_numbers<[1], [0], [0], [1], [0, 0, 1, 1], [], []>} : vector<2x128xbf16>, vector<128x256xbf16>, vector<2x256xf32> -> vector<2x256xf32>
    %367 = arith.addf %361, %366 : vector<2x256xf32>
    %c0_210 = arith.constant 0 : index
    %c0_211 = arith.constant 0 : index
    %368 = vector.load %arg12[%c0_210, %c0_211] : memref<1x256xf32, #tpu.memory_space<vmem>>, vector<1x256xf32>
    %369 = vector.broadcast %368 : vector<1x256xf32> to vector<2x256xf32>
    %370 = arith.addf %367, %369 : vector<2x256xf32>
    %cst_212 = arith.constant 0.000000e+00 : f32
    %371 = vector.broadcast %cst_212 : f32 to vector<2x256xf32>
    %372 = arith.maximumf %370, %371 : vector<2x256xf32>
    %373 = arith.truncf %372 : vector<2x256xf32> to vector<2x256xbf16>
    %c0_213 = arith.constant 0 : index
    %c0_214 = arith.constant 0 : index
    %374 = vector.load %arg13[%c0_213, %c0_214] : memref<256x128xbf16, #tpu.memory_space<vmem>>, vector<256x128xbf16>
    %cst_215 = arith.constant dense<0.000000e+00> : vector<2x128xf32>
    %375 = tpu.matmul %373, %374, %cst_215 {dimension_numbers = #tpu.dot_dimension_numbers<[1], [0], [0], [1], [0, 0, 1, 1], [], []>} : vector<2x256xbf16>, vector<256x128xbf16>, vector<2x128xf32> -> vector<2x128xf32>
    %c0_216 = arith.constant 0 : index
    %c0_217 = arith.constant 0 : index
    %376 = vector.load %arg14[%c0_216, %c0_217] : memref<1x128xf32, #tpu.memory_space<vmem>>, vector<1x128xf32>
    %377 = vector.broadcast %376 : vector<1x128xf32> to vector<2x128xf32>
    %378 = arith.addf %375, %377 : vector<2x128xf32>
    %c0_218 = arith.constant 0 : index
    %c0_219 = arith.constant 0 : index
    %379 = vector.load %arg15[%c0_218, %c0_219] : memref<2x128xf32, #tpu.memory_space<vmem>>, vector<2x128xf32>
    tpu.vector_store %arg15[%c0_218, %c0_219], %378 {strides = array<i32>} : memref<2x128xf32, #tpu.memory_space<vmem>>, vector<2x128xf32>,
    return
  }
  func.func @transform_0(%arg0: i32) -> (i32, i32) {
    %c0_i32 = arith.constant 0 : i32
    %c0_i32_0 = arith.constant 0 : i32
    %c0_i32_1 = arith.constant 0 : i32
    return %c0_i32, %c0_i32_0 : i32, i32
  }
  func.func @transform_1(%arg0: i32) -> (i32, i32, i32) {
    %c0_i32 = arith.constant 0 : i32
    %c0_i32_0 = arith.constant 0 : i32
    %c0_i32_1 = arith.constant 0 : i32
    %c0_i32_2 = arith.constant 0 : i32
    return %c0_i32, %c0_i32_0, %c0_i32_1 : i32, i32, i32
  }
  func.func @transform_2(%arg0: i32) -> (i32, i32) {
    %c0_i32 = arith.constant 0 : i32
    %c0_i32_0 = arith.constant 0 : i32
    %c0_i32_1 = arith.constant 0 : i32
    return %c0_i32, %c0_i32_0 : i32, i32
  }
  func.func @transform_3(%arg0: i32) -> (i32, i32) {
    %c0_i32 = arith.constant 0 : i32
    %c0_i32_0 = arith.constant 0 : i32
    %c0_i32_1 = arith.constant 0 : i32
    return %c0_i32, %c0_i32_0 : i32, i32
  }
  func.func @transform_4(%arg0: i32) -> (i32, i32, i32) {
    %c0_i32 = arith.constant 0 : i32
    %c0_i32_0 = arith.constant 0 : i32
    %c0_i32_1 = arith.constant 0 : i32
    %c0_i32_2 = arith.constant 0 : i32
    return %c0_i32, %c0_i32_0, %c0_i32_1 : i32, i32, i32
  }
  func.func @transform_5(%arg0: i32) -> (i32, i32) {
    %c0_i32 = arith.constant 0 : i32
    %c0_i32_0 = arith.constant 0 : i32
    %c0_i32_1 = arith.constant 0 : i32
    return %c0_i32, %c0_i32_0 : i32, i32
  }
  func.func @transform_6(%arg0: i32) -> (i32, i32) {
    %c0_i32 = arith.constant 0 : i32
    %c0_i32_0 = arith.constant 0 : i32
    %c0_i32_1 = arith.constant 0 : i32
    return %c0_i32, %c0_i32_0 : i32, i32
  }
  func.func @transform_7(%arg0: i32) -> (i32, i32, i32) {
    %c0_i32 = arith.constant 0 : i32
    %c0_i32_0 = arith.constant 0 : i32
    %c0_i32_1 = arith.constant 0 : i32
    %c0_i32_2 = arith.constant 0 : i32
    return %c0_i32, %c0_i32_0, %c0_i32_1 : i32, i32, i32
  }
  func.func @transform_8(%arg0: i32) -> (i32, i32) {
    %c0_i32 = arith.constant 0 : i32
    %c0_i32_0 = arith.constant 0 : i32
    %c0_i32_1 = arith.constant 0 : i32
    return %c0_i32, %c0_i32_0 : i32, i32
  }
  func.func @transform_9(%arg0: i32) -> (i32, i32) {
    %c0_i32 = arith.constant 0 : i32
    %c0_i32_0 = arith.constant 0 : i32
    %c0_i32_1 = arith.constant 0 : i32
    return %c0_i32, %c0_i32_0 : i32, i32
  }
  func.func @transform_10(%arg0: i32) -> (i32, i32, i32) {
    %c0_i32 = arith.constant 0 : i32
    %c0_i32_0 = arith.constant 0 : i32
    %c0_i32_1 = arith.constant 0 : i32
    %c0_i32_2 = arith.constant 0 : i32
    return %c0_i32, %c0_i32_0, %c0_i32_1 : i32, i32, i32
  }
  func.func @transform_11(%arg0: i32) -> (i32, i32) {
    %c0_i32 = arith.constant 0 : i32
    %c0_i32_0 = arith.constant 0 : i32
    %c0_i32_1 = arith.constant 0 : i32
    return %c0_i32, %c0_i32_0 : i32, i32
  }
  func.func @transform_12(%arg0: i32) -> (i32, i32) {
    %c0_i32 = arith.constant 0 : i32
    %c0_i32_0 = arith.constant 0 : i32
    %c0_i32_1 = arith.constant 0 : i32
    return %c0_i32, %c0_i32_0 : i32, i32
  }
  func.func @transform_13(%arg0: i32) -> (i32, i32) {
    %c0_i32 = arith.constant 0 : i32
    %c0_i32_0 = arith.constant 0 : i32
    %c0_i32_1 = arith.constant 0 : i32
    return %c0_i32, %c0_i32_0 : i32, i32
  }
  func.func @transform_14(%arg0: i32) -> (i32, i32) {
    %c0_i32 = arith.constant 0 : i32
    %c0_i32_0 = arith.constant 0 : i32
    %c0_i32_1 = arith.constant 0 : i32
    return %c0_i32, %c0_i32_0 : i32, i32
  }
}

</mosaic_0001>

<llo_original>
// kernel: cnn_bc_forward.1
$region0: #{cnn_bc_forward.1}
  #allocation0 [shape = 'u32[]', space=smem, size = 0x4, offset = 0x4, fixed_abs, tag = 'smem constant byte address 0x4 - core index']
  #allocation1 [shape = 'u32[72,128]{1,0:T(1,128)}', space=vmem, size = 0x9000, scoped, tag = 'internal scratch']
  #allocation2 [shape = 'f32[160,32]{1,0:T(8,128)}', space=vmem, size = 0x14000, scoped, tag = 'scratch operand']
  #allocation3 [shape = 'f32[48,64]{1,0:T(8,128)}', space=vmem, size = 0x6000, scoped, tag = 'scratch operand']
  #allocation4 [shape = 'f32[8,128]{1,0:T(8,128)}', space=vmem, size = 0x1000, scoped, tag = 'scratch operand']
  %s0 = inlined_call_operand.vmem [shape: f32[560,8], index: 0, kind: input, shape index: {}]
  %s1 = inlined_call_operand.vmem [shape: bf16[9,8,32], index: 1, kind: input, shape index: {}]
  %s2 = inlined_call_operand.vmem [shape: f32[1,32], index: 2, kind: input, shape index: {}]
  %s3 = inlined_call_operand.vmem [shape: f32[512,512], index: 3, kind: input, shape index: {}]
  %s4 = inlined_call_operand.vmem [shape: bf16[9,32,64], index: 4, kind: input, shape index: {}]
  %s5 = inlined_call_operand.vmem [shape: f32[1,64], index: 5, kind: input, shape index: {}]
  %s6 = inlined_call_operand.vmem [shape: f32[128,128], index: 6, kind: input, shape index: {}]
  %s7 = inlined_call_operand.vmem [shape: bf16[9,64,128], index: 7, kind: input, shape index: {}]
  %s8 = inlined_call_operand.vmem [shape: f32[1,128], index: 8, kind: input, shape index: {}]
  %s9 = inlined_call_operand.vmem [shape: f32[32,32], index: 9, kind: input, shape index: {}]
  %s10 = inlined_call_operand.vmem [shape: bf16[4,128,256], index: 10, kind: input, shape index: {}]
  %s11 = inlined_call_operand.vmem [shape: f32[1,256], index: 11, kind: input, shape index: {}]
  %s12 = inlined_call_operand.vmem [shape: bf16[256,128], index: 12, kind: input, shape index: {}]
  %s13 = inlined_call_operand.vmem [shape: f32[1,128], index: 13, kind: input, shape index: {}]
  %s14 = inlined_call_operand.hbm [shape: f32[2,128], index: 14, kind: output, shape index: {}]
  %s15 = sld [smem:[#allocation0]]
  $region66: #{cnn_bc_forward.1} parent=0
    _
  %s17 = ssub.s32 1, %s15
  %s18 = scalar_select 0, %s17, %s15
  $region1: #{cnn_bc_forward.1} parent=0
    #allocation5 [shape = 'u8[1024]{0}', space=vmem, size = 0x400, scoped, tag = 'output window, operand 0, single buffered']
    #allocation6 [shape = 's32[1]{0}', space=sflag, size = 0x4, scoped, tag = 'scoped memory for cnn_bc_forward.1']
    %19 = vsyncpa [#allocation6], 0
    // Predicated region
    $region2: #{cnn_bc_forward.1} parent=1 // pred_check
      _
    $region3: #{cnn_bc_forward.1} parent=1 // pred_check_branch
      %21 = sbr.rel (0) target = $region5
    $region4: #{cnn_bc_forward.1} parent=1 // pred_region
      _
    $region5: #{cnn_bc_forward.1} parent=1 // pred_fallthru
      _
    // Predicated region
    $region6: #{cnn_bc_forward.1} parent=1 // pred_check
      _
    $region7: #{cnn_bc_forward.1} parent=1 // pred_check_branch
      %23 = sbr.rel (0) target = $region9
    $region8: #{cnn_bc_forward.1} parent=1 // pred_region
      _
    $region9: #{cnn_bc_forward.1} parent=1 // pred_fallthru
      _
    // Predicated region
    $region10: #{cnn_bc_forward.1} parent=1 // pred_check
      _
    $region11: #{cnn_bc_forward.1} parent=1 // pred_check_branch
      %25 = sbr.rel (0) target = $region13
    $region12: #{cnn_bc_forward.1} parent=1 // pred_region
      _
    $region13: #{cnn_bc_forward.1} parent=1 // pred_fallthru
      _
    // Predicated region
    $region14: #{cnn_bc_forward.1} parent=1 // pred_check
      _
    $region15: #{cnn_bc_forward.1} parent=1 // pred_check_branch
      %27 = sbr.rel (0) target = $region17
    $region16: #{cnn_bc_forward.1} parent=1 // pred_region
      _
    $region17: #{cnn_bc_forward.1} parent=1 // pred_fallthru
      _
    // Predicated region
    $region18: #{cnn_bc_forward.1} parent=1 // pred_check
      _
    $region19: #{cnn_bc_forward.1} parent=1 // pred_check_branch
      %29 = sbr.rel (0) target = $region21
    $region20: #{cnn_bc_forward.1} parent=1 // pred_region
      _
    $region21: #{cnn_bc_forward.1} parent=1 // pred_fallthru
      _
    // Predicated region
    $region22: #{cnn_bc_forward.1} parent=1 // pred_check
      _
    $region23: #{cnn_bc_forward.1} parent=1 // pred_check_branch
      %31 = sbr.rel (0) target = $region25
    $region24: #{cnn_bc_forward.1} parent=1 // pred_region
      _
    $region25: #{cnn_bc_forward.1} parent=1 // pred_fallthru
      _
    // Predicated region
    $region26: #{cnn_bc_forward.1} parent=1 // pred_check
      _
    $region27: #{cnn_bc_forward.1} parent=1 // pred_check_branch
      %33 = sbr.rel (0) target = $region29
    $region28: #{cnn_bc_forward.1} parent=1 // pred_region
      _
    $region29: #{cnn_bc_forward.1} parent=1 // pred_fallthru
      _
    // Predicated region
    $region30: #{cnn_bc_forward.1} parent=1 // pred_check
      _
    $region31: #{cnn_bc_forward.1} parent=1 // pred_check_branch
      %35 = sbr.rel (0) target = $region33
    $region32: #{cnn_bc_forward.1} parent=1 // pred_region
      _
    $region33: #{cnn_bc_forward.1} parent=1 // pred_fallthru
      _
    // Predicated region
    $region34: #{cnn_bc_forward.1} parent=1 // pred_check
      _
    $region35: #{cnn_bc_forward.1} parent=1 // pred_check_branch
      %37 = sbr.rel (0) target = $region37
    $region36: #{cnn_bc_forward.1} parent=1 // pred_region
      _
    $region37: #{cnn_bc_forward.1} parent=1 // pred_fallthru
      _
    // Predicated region
    $region38: #{cnn_bc_forward.1} parent=1 // pred_check
      _
    $region39: #{cnn_bc_forward.1} parent=1 // pred_check_branch
      %39 = sbr.rel (0) target = $region41
    $region40: #{cnn_bc_forward.1} parent=1 // pred_region
      _
    $region41: #{cnn_bc_forward.1} parent=1 // pred_fallthru
      _
    // Predicated region
    $region42: #{cnn_bc_forward.1} parent=1 // pred_check
      _
    $region43: #{cnn_bc_forward.1} parent=1 // pred_check_branch
      %41 = sbr.rel (0) target = $region45
    $region44: #{cnn_bc_forward.1} parent=1 // pred_region
      _
    $region45: #{cnn_bc_forward.1} parent=1 // pred_fallthru
      _
    // Predicated region
    $region46: #{cnn_bc_forward.1} parent=1 // pred_check
      _
    $region47: #{cnn_bc_forward.1} parent=1 // pred_check_branch
      %43 = sbr.rel (0) target = $region49
    $region48: #{cnn_bc_forward.1} parent=1 // pred_region
      _
    $region49: #{cnn_bc_forward.1} parent=1 // pred_fallthru
      _
    // Predicated region
    $region50: #{cnn_bc_forward.1} parent=1 // pred_check
      _
    $region51: #{cnn_bc_forward.1} parent=1 // pred_check_branch
      %45 = sbr.rel (0) target = $region53
    $region52: #{cnn_bc_forward.1} parent=1 // pred_region
      _
    $region53: #{cnn_bc_forward.1} parent=1 // pred_fallthru
      _
    // Predicated region
    $region54: #{cnn_bc_forward.1} parent=1 // pred_check
      _
    $region55: #{cnn_bc_forward.1} parent=1 // pred_check_branch
      %47 = sbr.rel (0) target = $region57
    $region56: #{cnn_bc_forward.1} parent=1 // pred_region
      _
    $region57: #{cnn_bc_forward.1} parent=1 // pred_fallthru
      _
    %v49 = vlaneseq
    %v50 = vshrl.u32 %v49, 7
    %v51 = vadd.s32 %v50, 8
    %v52 = vadd.s32 %v50, 16
    %v53 = vadd.s32 %v50, 24
    %v54 = vadd.s32 %v50, 32
    %v55 = vadd.s32 %v50, 40
    %v56 = vadd.s32 %v50, 48
    %v57 = vadd.s32 %v50, 56
    %v58 = vadd.s32 %v50, 64
    %v59 = vadd.s32 %v50, 72
    %v60 = vadd.s32 %v50, 80
    %v61 = vadd.s32 %v50, 88
    %v62 = vadd.s32 %v50, 96
    %v63 = vadd.s32 %v50, 104
    %v64 = vadd.s32 %v50, 112
    %v65 = vadd.s32 %v50, 120
    %v66 = vadd.s32 %v50, 128
    %v67 = vadd.s32 %v50, 136
    %v68 = vadd.s32 %v50, 144
    %v69 = vadd.s32 %v50, 152
    %v70 = vadd.s32 %v50, 160
    %v71 = vadd.s32 %v50, 168
    %v72 = vadd.s32 %v50, 176
    %v73 = vadd.s32 %v50, 184
    %v74 = vadd.s32 %v50, 192
    %v75 = vadd.s32 %v50, 200
    %v76 = vadd.s32 %v50, 208
    %v77 = vadd.s32 %v50, 216
    %v78 = vadd.s32 %v50, 224
    %v79 = vadd.s32 %v50, 232
    %v80 = vadd.s32 %v50, 240
    %v81 = vadd.s32 %v50, 248
    %v82 = vadd.s32 %v50, 256
    %v83 = vadd.s32 %v50, 264
    %v84 = vadd.s32 %v50, 272
    %v85 = vadd.s32 %v50, 280
    %v86 = vadd.s32 %v50, 288
    %v87 = vadd.s32 %v50, 296
    %v88 = vadd.s32 %v50, 304
    %v89 = vadd.s32 %v50, 312
    %v90 = vadd.s32 %v50, 320
    %v91 = vadd.s32 %v50, 328
    %v92 = vadd.s32 %v50, 336
    %v93 = vadd.s32 %v50, 344
    %v94 = vadd.s32 %v50, 352
    %v95 = vadd.s32 %v50, 360
    %v96 = vadd.s32 %v50, 368
    %v97 = vadd.s32 %v50, 376
    %v98 = vadd.s32 %v50, 384
    %v99 = vadd.s32 %v50, 392
    %v100 = vadd.s32 %v50, 400
    %v101 = vadd.s32 %v50, 408
    %v102 = vadd.s32 %v50, 416
    %v103 = vadd.s32 %v50, 424
    %v104 = vadd.s32 %v50, 432
    %v105 = vadd.s32 %v50, 440
    %v106 = vadd.s32 %v50, 448
    %v107 = vadd.s32 %v50, 456
    %v108 = vadd.s32 %v50, 464
    %v109 = vadd.s32 %v50, 472
    %v110 = vadd.s32 %v50, 480
    %v111 = vadd.s32 %v50, 488
    %v112 = vadd.s32 %v50, 496
    %v113 = vadd.s32 %v50, 504
    %v114 = vshra.s32 %v50, 4
    %v115 = vshra.s32 %v51, 4
    %v116 = vshra.s32 %v52, 4
    %v117 = vshra.s32 %v53, 4
    %v118 = vshra.s32 %v54, 4
    %v119 = vshra.s32 %v55, 4
    %v120 = vshra.s32 %v56, 4
    %v121 = vshra.s32 %v57, 4
    %v122 = vshra.s32 %v58, 4
    %v123 = vshra.s32 %v59, 4
    %v124 = vshra.s32 %v60, 4
    %v125 = vshra.s32 %v61, 4
    %v126 = vshra.s32 %v62, 4
    %v127 = vshra.s32 %v63, 4
    %v128 = vshra.s32 %v64, 4
    %v129 = vshra.s32 %v65, 4
    %v130 = vshra.s32 %v66, 4
    %v131 = vshra.s32 %v67, 4
    %v132 = vshra.s32 %v68, 4
    %v133 = vshra.s32 %v69, 4
    %v134 = vshra.s32 %v70, 4
    %v135 = vshra.s32 %v71, 4
    %v136 = vshra.s32 %v72, 4
    %v137 = vshra.s32 %v73, 4
    %v138 = vshra.s32 %v74, 4
    %v139 = vshra.s32 %v75, 4
    %v140 = vshra.s32 %v76, 4
    %v141 = vshra.s32 %v77, 4
    %v142 = vshra.s32 %v78, 4
    %v143 = vshra.s32 %v79, 4
    %v144 = vshra.s32 %v80, 4
    %v145 = vshra.s32 %v81, 4
    %v146 = vshra.s32 %v82, 4
    %v147 = vshra.s32 %v83, 4
    %v148 = vshra.s32 %v84, 4
    %v149 = vshra.s32 %v85, 4
    %v150 = vshra.s32 %v86, 4
    %v151 = vshra.s32 %v87, 4
    %v152 = vshra.s32 %v88, 4
    %v153 = vshra.s32 %v89, 4
    %v154 = vshra.s32 %v90, 4
    %v155 = vshra.s32 %v91, 4
    %v156 = vshra.s32 %v92, 4
    %v157 = vshra.s32 %v93, 4
    %v158 = vshra.s32 %v94, 4
    %v159 = vshra.s32 %v95, 4
    %v160 = vshra.s32 %v96, 4
    %v161 = vshra.s32 %v97, 4
    %v162 = vshra.s32 %v98, 4
    %v163 = vshra.s32 %v99, 4
    %v164 = vshra.s32 %v100, 4
    %v165 = vshra.s32 %v101, 4
    %v166 = vshra.s32 %v102, 4
    %v167 = vshra.s32 %v103, 4
    %v168 = vshra.s32 %v104, 4
    %v169 = vshra.s32 %v105, 4
    %v170 = vshra.s32 %v106, 4
    %v171 = vshra.s32 %v107, 4
    %v172 = vshra.s32 %v108, 4
    %v173 = vshra.s32 %v109, 4
    %v174 = vshra.s32 %v110, 4
    %v175 = vshra.s32 %v111, 4
    %v176 = vshra.s32 %v112, 4
    %v177 = vshra.s32 %v113, 4
    %v178 = vand.u32 %v114, 15
    %v179 = vand.u32 %v115, 15
    %v180 = vand.u32 %v116, 15
    %v181 = vand.u32 %v117, 15
    %v182 = vand.u32 %v118, 15
    %v183 = vand.u32 %v119, 15
    %v184 = vand.u32 %v120, 15
    %v185 = vand.u32 %v121, 15
    %v186 = vand.u32 %v122, 15
    %v187 = vand.u32 %v123, 15
    %v188 = vand.u32 %v124, 15
    %v189 = vand.u32 %v125, 15
    %v190 = vand.u32 %v126, 15
    %v191 = vand.u32 %v127, 15
    %v192 = vand.u32 %v128, 15
    %v193 = vand.u32 %v129, 15
    %v194 = vand.u32 %v130, 15
    %v195 = vand.u32 %v131, 15
    %v196 = vand.u32 %v132, 15
    %v197 = vand.u32 %v133, 15
    %v198 = vand.u32 %v134, 15
    %v199 = vand.u32 %v135, 15
    %v200 = vand.u32 %v136, 15
    %v201 = vand.u32 %v137, 15
    %v202 = vand.u32 %v138, 15
    %v203 = vand.u32 %v139, 15
    %v204 = vand.u32 %v140, 15
    %v205 = vand.u32 %v141, 15
    %v206 = vand.u32 %v142, 15
    %v207 = vand.u32 %v143, 15
    %v208 = vand.u32 %v144, 15
    %v209 = vand.u32 %v145, 15
    %v210 = vand.u32 %v146, 15
    %v211 = vand.u32 %v147, 15
    %v212 = vand.u32 %v148, 15
    %v213 = vand.u32 %v149, 15
    %v214 = vand.u32 %v150, 15
    %v215 = vand.u32 %v151, 15
    %v216 = vand.u32 %v152, 15
    %v217 = vand.u32 %v153, 15
    %v218 = vand.u32 %v154, 15
    %v219 = vand.u32 %v155, 15
    %v220 = vand.u32 %v156, 15
    %v221 = vand.u32 %v157, 15
    %v222 = vand.u32 %v158, 15
    %v223 = vand.u32 %v159, 15
    %v224 = vand.u32 %v160, 15
    %v225 = vand.u32 %v161, 15
    %v226 = vand.u32 %v162, 15
    %v227 = vand.u32 %v163, 15
    %v228 = vand.u32 %v164, 15
    %v229 = vand.u32 %v165, 15
    %v230 = vand.u32 %v166, 15
    %v231 = vand.u32 %v167, 15
    %v232 = vand.u32 %v168, 15
    %v233 = vand.u32 %v169, 15
    %v234 = vand.u32 %v170, 15
    %v235 = vand.u32 %v171, 15
    %v236 = vand.u32 %v172, 15
    %v237 = vand.u32 %v173, 15
    %v238 = vand.u32 %v174, 15
    %v239 = vand.u32 %v175, 15
    %v240 = vand.u32 %v176, 15
    %v241 = vand.u32 %v177, 15
    %v242 = vand.u32 %v50, 15
    %v243 = vand.u32 %v51, 15
    %v244 = vand.u32 %v52, 15
    %v245 = vand.u32 %v53, 15
    %v246 = vand.u32 %v54, 15
    %v247 = vand.u32 %v55, 15
    %v248 = vand.u32 %v56, 15
    %v249 = vand.u32 %v57, 15
    %v250 = vand.u32 %v58, 15
    %v251 = vand.u32 %v59, 15
    %v252 = vand.u32 %v60, 15
    %v253 = vand.u32 %v61, 15
    %v254 = vand.u32 %v62, 15
    %v255 = vand.u32 %v63, 15
    %v256 = vand.u32 %v64, 15
    %v257 = vand.u32 %v65, 15
    %v258 = vand.u32 %v66, 15
    %v259 = vand.u32 %v67, 15
    %v260 = vand.u32 %v68, 15
    %v261 = vand.u32 %v69, 15
    %v262 = vand.u32 %v70, 15
    %v263 = vand.u32 %v71, 15
    %v264 = vand.u32 %v72, 15
    %v265 = vand.u32 %v73, 15
    %v266 = vand.u32 %v74, 15
    %v267 = vand.u32 %v75, 15
    %v268 = vand.u32 %v76, 15
    %v269 = vand.u32 %v77, 15
    %v270 = vand.u32 %v78, 15
    %v271 = vand.u32 %v79, 15
    %v272 = vand.u32 %v80, 15
    %v273 = vand.u32 %v81, 15
    %v274 = vand.u32 %v82, 15
    %v275 = vand.u32 %v83, 15
    %v276 = vand.u32 %v84, 15
    %v277 = vand.u32 %v85, 15
    %v278 = vand.u32 %v86, 15
    %v279 = vand.u32 %v87, 15
    %v280 = vand.u32 %v88, 15
    %v281 = vand.u32 %v89, 15
    %v282 = vand.u32 %v90, 15
    %v283 = vand.u32 %v91, 15
    %v284 = vand.u32 %v92, 15
    %v285 = vand.u32 %v93, 15
    %v286 = vand.u32 %v94, 15
    %v287 = vand.u32 %v95, 15
    %v288 = vand.u32 %v96, 15
    %v289 = vand.u32 %v97, 15
    %v290 = vand.u32 %v98, 15
    %v291 = vand.u32 %v99, 15
    %v292 = vand.u32 %v100, 15
    %v293 = vand.u32 %v101, 15
    %v294 = vand.u32 %v102, 15
    %v295 = vand.u32 %v103, 15
    %v296 = vand.u32 %v104, 15
    %v297 = vand.u32 %v105, 15
    %v298 = vand.u32 %v106, 15
    %v299 = vand.u32 %v107, 15
    %v300 = vand.u32 %v108, 15
    %v301 = vand.u32 %v109, 15
    %v302 = vand.u32 %v110, 15
    %v303 = vand.u32 %v111, 15
    %v304 = vand.u32 %v112, 15
    %v305 = vand.u32 %v113, 15
    %vm306 = vcmp.ge.s32.totalorder %v178, 1
    %vm307 = vcmp.ge.s32.totalorder %v179, 1
    %vm308 = vcmp.ge.s32.totalorder %v180, 1
    %vm309 = vcmp.ge.s32.totalorder %v181, 1
    %vm310 = vcmp.ge.s32.totalorder %v182, 1
    %vm311 = vcmp.ge.s32.totalorder %v183, 1
    %vm312 = vcmp.ge.s32.totalorder %v184, 1
    %vm313 = vcmp.ge.s32.totalorder %v185, 1
    %vm314 = vcmp.ge.s32.totalorder %v186, 1
    %vm315 = vcmp.ge.s32.totalorder %v187, 1
    %vm316 = vcmp.ge.s32.totalorder %v188, 1
    %vm317 = vcmp.ge.s32.totalorder %v189, 1
    %vm318 = vcmp.ge.s32.totalorder %v190, 1
    %vm319 = vcmp.ge.s32.totalorder %v191, 1
    %vm320 = vcmp.ge.s32.totalorder %v192, 1
    %vm321 = vcmp.ge.s32.totalorder %v193, 1
    %vm322 = vcmp.ge.s32.totalorder %v194, 1
    %vm323 = vcmp.ge.s32.totalorder %v195, 1
    %vm324 = vcmp.ge.s32.totalorder %v196, 1
    %vm325 = vcmp.ge.s32.totalorder %v197, 1
    %vm326 = vcmp.ge.s32.totalorder %v198, 1
    %vm327 = vcmp.ge.s32.totalorder %v199, 1
    %vm328 = vcmp.ge.s32.totalorder %v200, 1
    %vm329 = vcmp.ge.s32.totalorder %v201, 1
    %vm330 = vcmp.ge.s32.totalorder %v202, 1
    %vm331 = vcmp.ge.s32.totalorder %v203, 1
    %vm332 = vcmp.ge.s32.totalorder %v204, 1
    %vm333 = vcmp.ge.s32.totalorder %v205, 1
    %vm334 = vcmp.ge.s32.totalorder %v206, 1
    %vm335 = vcmp.ge.s32.totalorder %v207, 1
    %vm336 = vcmp.ge.s32.totalorder %v208, 1
    %vm337 = vcmp.ge.s32.totalorder %v209, 1
    %vm338 = vcmp.ge.s32.totalorder %v210, 1
    %vm339 = vcmp.ge.s32.totalorder %v211, 1
    %vm340 = vcmp.ge.s32.totalorder %v212, 1
    %vm341 = vcmp.ge.s32.totalorder %v213, 1
    %vm342 = vcmp.ge.s32.totalorder %v214, 1
    %vm343 = vcmp.ge.s32.totalorder %v215, 1
    %vm344 = vcmp.ge.s32.totalorder %v216, 1
    %vm345 = vcmp.ge.s32.totalorder %v217, 1
    %vm346 = vcmp.ge.s32.totalorder %v218, 1
    %vm347 = vcmp.ge.s32.totalorder %v219, 1
    %vm348 = vcmp.ge.s32.totalorder %v220, 1
    %vm349 = vcmp.ge.s32.totalorder %v221, 1
    %vm350 = vcmp.ge.s32.totalorder %v222, 1
    %vm351 = vcmp.ge.s32.totalorder %v223, 1
    %vm352 = vcmp.ge.s32.totalorder %v224, 1
    %vm353 = vcmp.ge.s32.totalorder %v225, 1
    %vm354 = vcmp.ge.s32.totalorder %v226, 1
    %vm355 = vcmp.ge.s32.totalorder %v227, 1
    %vm356 = vcmp.ge.s32.totalorder %v228, 1
    %vm357 = vcmp.ge.s32.totalorder %v229, 1
    %vm358 = vcmp.ge.s32.totalorder %v230, 1
    %vm359 = vcmp.ge.s32.totalorder %v231, 1
    %vm360 = vcmp.ge.s32.totalorder %v232, 1
    %vm361 = vcmp.ge.s32.totalorder %v233, 1
    %vm362 = vcmp.ge.s32.totalorder %v234, 1
    %vm363 = vcmp.ge.s32.totalorder %v235, 1
    %vm364 = vcmp.ge.s32.totalorder %v236, 1
    %vm365 = vcmp.ge.s32.totalorder %v237, 1
    %vm366 = vcmp.ge.s32.totalorder %v238, 1
    %vm367 = vcmp.ge.s32.totalorder %v239, 1
    %vm368 = vcmp.ge.s32.totalorder %v240, 1
    %vm369 = vcmp.ge.s32.totalorder %v241, 1
    %v370 = vsel %vm306, 1, 0
    %v371 = vsel %vm307, 1, 0
    %v372 = vsel %vm308, 1, 0
    %v373 = vsel %vm309, 1, 0
    %v374 = vsel %vm310, 1, 0
    %v375 = vsel %vm311, 1, 0
    %v376 = vsel %vm312, 1, 0
    %v377 = vsel %vm313, 1, 0
    %v378 = vsel %vm314, 1, 0
    %v379 = vsel %vm315, 1, 0
    %v380 = vsel %vm316, 1, 0
    %v381 = vsel %vm317, 1, 0
    %v382 = vsel %vm318, 1, 0
    %v383 = vsel %vm319, 1, 0
    %v384 = vsel %vm320, 1, 0
    %v385 = vsel %vm321, 1, 0
    %v386 = vsel %vm322, 1, 0
    %v387 = vsel %vm323, 1, 0
    %v388 = vsel %vm324, 1, 0
    %v389 = vsel %vm325, 1, 0
    %v390 = vsel %vm326, 1, 0
    %v391 = vsel %vm327, 1, 0
    %v392 = vsel %vm328, 1, 0
    %v393 = vsel %vm329, 1, 0
    %v394 = vsel %vm330, 1, 0
    %v395 = vsel %vm331, 1, 0
    %v396 = vsel %vm332, 1, 0
    %v397 = vsel %vm333, 1, 0
    %v398 = vsel %vm334, 1, 0
    %v399 = vsel %vm335, 1, 0
    %v400 = vsel %vm336, 1, 0
    %v401 = vsel %vm337, 1, 0
    %v402 = vsel %vm338, 1, 0
    %v403 = vsel %vm339, 1, 0
    %v404 = vsel %vm340, 1, 0
    %v405 = vsel %vm341, 1, 0
    %v406 = vsel %vm342, 1, 0
    %v407 = vsel %vm343, 1, 0
    %v408 = vsel %vm344, 1, 0
    %v409 = vsel %vm345, 1, 0
    %v410 = vsel %vm346, 1, 0
    %v411 = vsel %vm347, 1, 0
    %v412 = vsel %vm348, 1, 0
    %v413 = vsel %vm349, 1, 0
    %v414 = vsel %vm350, 1, 0
    %v415 = vsel %vm351, 1, 0
    %v416 = vsel %vm352, 1, 0
    %v417 = vsel %vm353, 1, 0
    %v418 = vsel %vm354, 1, 0
    %v419 = vsel %vm355, 1, 0
    %v420 = vsel %vm356, 1, 0
    %v421 = vsel %vm357, 1, 0
    %v422 = vsel %vm358, 1, 0
    %v423 = vsel %vm359, 1, 0
    %v424 = vsel %vm360, 1, 0
    %v425 = vsel %vm361, 1, 0
    %v426 = vsel %vm362, 1, 0
    %v427 = vsel %vm363, 1, 0
    %v428 = vsel %vm364, 1, 0
    %v429 = vsel %vm365, 1, 0
    %v430 = vsel %vm366, 1, 0
    %v431 = vsel %vm367, 1, 0
    %v432 = vsel %vm368, 1, 0
    %v433 = vsel %vm369, 1, 0
    %v434 = vcvt.s32.f32 %v370
    %v435 = vcvt.s32.f32 %v371
    %v436 = vcvt.s32.f32 %v372
    %v437 = vcvt.s32.f32 %v373
    %v438 = vcvt.s32.f32 %v374
    %v439 = vcvt.s32.f32 %v375
    %v440 = vcvt.s32.f32 %v376
    %v441 = vcvt.s32.f32 %v377
    %v442 = vcvt.s32.f32 %v378
    %v443 = vcvt.s32.f32 %v379
    %v444 = vcvt.s32.f32 %v380
    %v445 = vcvt.s32.f32 %v381
    %v446 = vcvt.s32.f32 %v382
    %v447 = vcvt.s32.f32 %v383
    %v448 = vcvt.s32.f32 %v384
    %v449 = vcvt.s32.f32 %v385
    %v450 = vcvt.s32.f32 %v386
    %v451 = vcvt.s32.f32 %v387
    %v452 = vcvt.s32.f32 %v388
    %v453 = vcvt.s32.f32 %v389
    %v454 = vcvt.s32.f32 %v390
    %v455 = vcvt.s32.f32 %v391
    %v456 = vcvt.s32.f32 %v392
    %v457 = vcvt.s32.f32 %v393
    %v458 = vcvt.s32.f32 %v394
    %v459 = vcvt.s32.f32 %v395
    %v460 = vcvt.s32.f32 %v396
    %v461 = vcvt.s32.f32 %v397
    %v462 = vcvt.s32.f32 %v398
    %v463 = vcvt.s32.f32 %v399
    %v464 = vcvt.s32.f32 %v400
    %v465 = vcvt.s32.f32 %v401
    %v466 = vcvt.s32.f32 %v402
    %v467 = vcvt.s32.f32 %v403
    %v468 = vcvt.s32.f32 %v404
    %v469 = vcvt.s32.f32 %v405
    %v470 = vcvt.s32.f32 %v406
    %v471 = vcvt.s32.f32 %v407
    %v472 = vcvt.s32.f32 %v408
    %v473 = vcvt.s32.f32 %v409
    %v474 = vcvt.s32.f32 %v410
    %v475 = vcvt.s32.f32 %v411
    %v476 = vcvt.s32.f32 %v412
    %v477 = vcvt.s32.f32 %v413
    %v478 = vcvt.s32.f32 %v414
    %v479 = vcvt.s32.f32 %v415
    %v480 = vcvt.s32.f32 %v416
    %v481 = vcvt.s32.f32 %v417
    %v482 = vcvt.s32.f32 %v418
    %v483 = vcvt.s32.f32 %v419
    %v484 = vcvt.s32.f32 %v420
    %v485 = vcvt.s32.f32 %v421
    %v486 = vcvt.s32.f32 %v422
    %v487 = vcvt.s32.f32 %v423
    %v488 = vcvt.s32.f32 %v424
    %v489 = vcvt.s32.f32 %v425
    %v490 = vcvt.s32.f32 %v426
    %v491 = vcvt.s32.f32 %v427
    %v492 = vcvt.s32.f32 %v428
    %v493 = vcvt.s32.f32 %v429
    %v494 = vcvt.s32.f32 %v430
    %v495 = vcvt.s32.f32 %v431
    %v496 = vcvt.s32.f32 %v432
    %v497 = vcvt.s32.f32 %v433
    %vm498 = vcmp.le.s32.totalorder %v178, 14
    %vm499 = vcmp.le.s32.totalorder %v179, 14
    %vm500 = vcmp.le.s32.totalorder %v180, 14
    %vm501 = vcmp.le.s32.totalorder %v181, 14
    %vm502 = vcmp.le.s32.totalorder %v182, 14
    %vm503 = vcmp.le.s32.totalorder %v183, 14
    %vm504 = vcmp.le.s32.totalorder %v184, 14
    %vm505 = vcmp.le.s32.totalorder %v185, 14
    %vm506 = vcmp.le.s32.totalorder %v186, 14
    %vm507 = vcmp.le.s32.totalorder %v187, 14
    %vm508 = vcmp.le.s32.totalorder %v188, 14
    %vm509 = vcmp.le.s32.totalorder %v189, 14
    %vm510 = vcmp.le.s32.totalorder %v190, 14
    %vm511 = vcmp.le.s32.totalorder %v191, 14
    %vm512 = vcmp.le.s32.totalorder %v192, 14
    %vm513 = vcmp.le.s32.totalorder %v193, 14
    %vm514 = vcmp.le.s32.totalorder %v194, 14
    %vm515 = vcmp.le.s32.totalorder %v195, 14
    %vm516 = vcmp.le.s32.totalorder %v196, 14
    %vm517 = vcmp.le.s32.totalorder %v197, 14
    %vm518 = vcmp.le.s32.totalorder %v198, 14
    %vm519 = vcmp.le.s32.totalorder %v199, 14
    %vm520 = vcmp.le.s32.totalorder %v200, 14
    %vm521 = vcmp.le.s32.totalorder %v201, 14
    %vm522 = vcmp.le.s32.totalorder %v202, 14
    %vm523 = vcmp.le.s32.totalorder %v203, 14
    %vm524 = vcmp.le.s32.totalorder %v204, 14
    %vm525 = vcmp.le.s32.totalorder %v205, 14
    %vm526 = vcmp.le.s32.totalorder %v206, 14
    %vm527 = vcmp.le.s32.totalorder %v207, 14
    %vm528 = vcmp.le.s32.totalorder %v208, 14
    %vm529 = vcmp.le.s32.totalorder %v209, 14
    %vm530 = vcmp.le.s32.totalorder %v210, 14
    %vm531 = vcmp.le.s32.totalorder %v211, 14
    %vm532 = vcmp.le.s32.totalorder %v212, 14
    %vm533 = vcmp.le.s32.totalorder %v213, 14
    %vm534 = vcmp.le.s32.totalorder %v214, 14
    %vm535 = vcmp.le.s32.totalorder %v215, 14
    %vm536 = vcmp.le.s32.totalorder %v216, 14
    %vm537 = vcmp.le.s32.totalorder %v217, 14
    %vm538 = vcmp.le.s32.totalorder %v218, 14
    %vm539 = vcmp.le.s32.totalorder %v219, 14
    %vm540 = vcmp.le.s32.totalorder %v220, 14
    %vm541 = vcmp.le.s32.totalorder %v221, 14
    %vm542 = vcmp.le.s32.totalorder %v222, 14
    %vm543 = vcmp.le.s32.totalorder %v223, 14
    %vm544 = vcmp.le.s32.totalorder %v224, 14
    %vm545 = vcmp.le.s32.totalorder %v225, 14
    %vm546 = vcmp.le.s32.totalorder %v226, 14
    %vm547 = vcmp.le.s32.totalorder %v227, 14
    %vm548 = vcmp.le.s32.totalorder %v228, 14
    %vm549 = vcmp.le.s32.totalorder %v229, 14
    %vm550 = vcmp.le.s32.totalorder %v230, 14
    %vm551 = vcmp.le.s32.totalorder %v231, 14
    %vm552 = vcmp.le.s32.totalorder %v232, 14
    %vm553 = vcmp.le.s32.totalorder %v233, 14
    %vm554 = vcmp.le.s32.totalorder %v234, 14
    %vm555 = vcmp.le.s32.totalorder %v235, 14
    %vm556 = vcmp.le.s32.totalorder %v236, 14
    %vm557 = vcmp.le.s32.totalorder %v237, 14
    %vm558 = vcmp.le.s32.totalorder %v238, 14
    %vm559 = vcmp.le.s32.totalorder %v239, 14
    %vm560 = vcmp.le.s32.totalorder %v240, 14
    %vm561 = vcmp.le.s32.totalorder %v241, 14
    %v562 = vsel %vm498, 1, 0
    %v563 = vsel %vm499, 1, 0
    %v564 = vsel %vm500, 1, 0
    %v565 = vsel %vm501, 1, 0
    %v566 = vsel %vm502, 1, 0
    %v567 = vsel %vm503, 1, 0
    %v568 = vsel %vm504, 1, 0
    %v569 = vsel %vm505, 1, 0
    %v570 = vsel %vm506, 1, 0
    %v571 = vsel %vm507, 1, 0
    %v572 = vsel %vm508, 1, 0
    %v573 = vsel %vm509, 1, 0
    %v574 = vsel %vm510, 1, 0
    %v575 = vsel %vm511, 1, 0
    %v576 = vsel %vm512, 1, 0
    %v577 = vsel %vm513, 1, 0
    %v578 = vsel %vm514, 1, 0
    %v579 = vsel %vm515, 1, 0
    %v580 = vsel %vm516, 1, 0
    %v581 = vsel %vm517, 1, 0
    %v582 = vsel %vm518, 1, 0
    %v583 = vsel %vm519, 1, 0
    %v584 = vsel %vm520, 1, 0
    %v585 = vsel %vm521, 1, 0
    %v586 = vsel %vm522, 1, 0
    %v587 = vsel %vm523, 1, 0
    %v588 = vsel %vm524, 1, 0
    %v589 = vsel %vm525, 1, 0
    %v590 = vsel %vm526, 1, 0
    %v591 = vsel %vm527, 1, 0
    %v592 = vsel %vm528, 1, 0
    %v593 = vsel %vm529, 1, 0
    %v594 = vsel %vm530, 1, 0
    %v595 = vsel %vm531, 1, 0
    %v596 = vsel %vm532, 1, 0
    %v597 = vsel %vm533, 1, 0
    %v598 = vsel %vm534, 1, 0
    %v599 = vsel %vm535, 1, 0
    %v600 = vsel %vm536, 1, 0
    %v601 = vsel %vm537, 1, 0
    %v602 = vsel %vm538, 1, 0
    %v603 = vsel %vm539, 1, 0
    %v604 = vsel %vm540, 1, 0
    %v605 = vsel %vm541, 1, 0
    %v606 = vsel %vm542, 1, 0
    %v607 = vsel %vm543, 1, 0
    %v608 = vsel %vm544, 1, 0
    %v609 = vsel %vm545, 1, 0
    %v610 = vsel %vm546, 1, 0
    %v611 = vsel %vm547, 1, 0
    %v612 = vsel %vm548, 1, 0
    %v613 = vsel %vm549, 1, 0
    %v614 = vsel %vm550, 1, 0
    %v615 = vsel %vm551, 1, 0
    %v616 = vsel %vm552, 1, 0
    %v617 = vsel %vm553, 1, 0
    %v618 = vsel %vm554, 1, 0
    %v619 = vsel %vm555, 1, 0
    %v620 = vsel %vm556, 1, 0
    %v621 = vsel %vm557, 1, 0
    %v622 = vsel %vm558, 1, 0
    %v623 = vsel %vm559, 1, 0
    %v624 = vsel %vm560, 1, 0
    %v625 = vsel %vm561, 1, 0
    %v626 = vcvt.s32.f32 %v562
    %v627 = vcvt.s32.f32 %v563
    %v628 = vcvt.s32.f32 %v564
    %v629 = vcvt.s32.f32 %v565
    %v630 = vcvt.s32.f32 %v566
    %v631 = vcvt.s32.f32 %v567
    %v632 = vcvt.s32.f32 %v568
    %v633 = vcvt.s32.f32 %v569
    %v634 = vcvt.s32.f32 %v570
    %v635 = vcvt.s32.f32 %v571
    %v636 = vcvt.s32.f32 %v572
    %v637 = vcvt.s32.f32 %v573
    %v638 = vcvt.s32.f32 %v574
    %v639 = vcvt.s32.f32 %v575
    %v640 = vcvt.s32.f32 %v576
    %v641 = vcvt.s32.f32 %v577
    %v642 = vcvt.s32.f32 %v578
    %v643 = vcvt.s32.f32 %v579
    %v644 = vcvt.s32.f32 %v580
    %v645 = vcvt.s32.f32 %v581
    %v646 = vcvt.s32.f32 %v582
    %v647 = vcvt.s32.f32 %v583
    %v648 = vcvt.s32.f32 %v584
    %v649 = vcvt.s32.f32 %v585
    %v650 = vcvt.s32.f32 %v586
    %v651 = vcvt.s32.f32 %v587
    %v652 = vcvt.s32.f32 %v588
    %v653 = vcvt.s32.f32 %v589
    %v654 = vcvt.s32.f32 %v590
    %v655 = vcvt.s32.f32 %v591
    %v656 = vcvt.s32.f32 %v592
    %v657 = vcvt.s32.f32 %v593
    %v658 = vcvt.s32.f32 %v594
    %v659 = vcvt.s32.f32 %v595
    %v660 = vcvt.s32.f32 %v596
    %v661 = vcvt.s32.f32 %v597
    %v662 = vcvt.s32.f32 %v598
    %v663 = vcvt.s32.f32 %v599
    %v664 = vcvt.s32.f32 %v600
    %v665 = vcvt.s32.f32 %v601
    %v666 = vcvt.s32.f32 %v602
    %v667 = vcvt.s32.f32 %v603
    %v668 = vcvt.s32.f32 %v604
    %v669 = vcvt.s32.f32 %v605
    %v670 = vcvt.s32.f32 %v606
    %v671 = vcvt.s32.f32 %v607
    %v672 = vcvt.s32.f32 %v608
    %v673 = vcvt.s32.f32 %v609
    %v674 = vcvt.s32.f32 %v610
    %v675 = vcvt.s32.f32 %v611
    %v676 = vcvt.s32.f32 %v612
    %v677 = vcvt.s32.f32 %v613
    %v678 = vcvt.s32.f32 %v614
    %v679 = vcvt.s32.f32 %v615
    %v680 = vcvt.s32.f32 %v616
    %v681 = vcvt.s32.f32 %v617
    %v682 = vcvt.s32.f32 %v618
    %v683 = vcvt.s32.f32 %v619
    %v684 = vcvt.s32.f32 %v620
    %v685 = vcvt.s32.f32 %v621
    %v686 = vcvt.s32.f32 %v622
    %v687 = vcvt.s32.f32 %v623
    %v688 = vcvt.s32.f32 %v624
    %v689 = vcvt.s32.f32 %v625
    %vm690 = vcmp.ge.s32.totalorder %v242, 1
    %vm691 = vcmp.ge.s32.totalorder %v243, 1
    %vm692 = vcmp.ge.s32.totalorder %v244, 1
    %vm693 = vcmp.ge.s32.totalorder %v245, 1
    %vm694 = vcmp.ge.s32.totalorder %v246, 1
    %vm695 = vcmp.ge.s32.totalorder %v247, 1
    %vm696 = vcmp.ge.s32.totalorder %v248, 1
    %vm697 = vcmp.ge.s32.totalorder %v249, 1
    %vm698 = vcmp.ge.s32.totalorder %v250, 1
    %vm699 = vcmp.ge.s32.totalorder %v251, 1
    %vm700 = vcmp.ge.s32.totalorder %v252, 1
    %vm701 = vcmp.ge.s32.totalorder %v253, 1
    %vm702 = vcmp.ge.s32.totalorder %v254, 1
    %vm703 = vcmp.ge.s32.totalorder %v255, 1
    %vm704 = vcmp.ge.s32.totalorder %v256, 1
    %vm705 = vcmp.ge.s32.totalorder %v257, 1
    %vm706 = vcmp.ge.s32.totalorder %v258, 1
    %vm707 = vcmp.ge.s32.totalorder %v259, 1
    %vm708 = vcmp.ge.s32.totalorder %v260, 1
    %vm709 = vcmp.ge.s32.totalorder %v261, 1
    %vm710 = vcmp.ge.s32.totalorder %v262, 1
    %vm711 = vcmp.ge.s32.totalorder %v263, 1
    %vm712 = vcmp.ge.s32.totalorder %v264, 1
    %vm713 = vcmp.ge.s32.totalorder %v265, 1
    %vm714 = vcmp.ge.s32.totalorder %v266, 1
    %vm715 = vcmp.ge.s32.totalorder %v267, 1
    %vm716 = vcmp.ge.s32.totalorder %v268, 1
    %vm717 = vcmp.ge.s32.totalorder %v269, 1
    %vm718 = vcmp.ge.s32.totalorder %v270, 1
    %vm719 = vcmp.ge.s32.totalorder %v271, 1
    %vm720 = vcmp.ge.s32.totalorder %v272, 1
    %vm721 = vcmp.ge.s32.totalorder %v273, 1
    %vm722 = vcmp.ge.s32.totalorder %v274, 1
    %vm723 = vcmp.ge.s32.totalorder %v275, 1
    %vm724 = vcmp.ge.s32.totalorder %v276, 1
    %vm725 = vcmp.ge.s32.totalorder %v277, 1
    %vm726 = vcmp.ge.s32.totalorder %v278, 1
    %vm727 = vcmp.ge.s32.totalorder %v279, 1
    %vm728 = vcmp.ge.s32.totalorder %v280, 1
    %vm729 = vcmp.ge.s32.totalorder %v281, 1
    %vm730 = vcmp.ge.s32.totalorder %v282, 1
    %vm731 = vcmp.ge.s32.totalorder %v283, 1
    %vm732 = vcmp.ge.s32.totalorder %v284, 1
    %vm733 = vcmp.ge.s32.totalorder %v285, 1
    %vm734 = vcmp.ge.s32.totalorder %v286, 1
    %vm735 = vcmp.ge.s32.totalorder %v287, 1
    %vm736 = vcmp.ge.s32.totalorder %v288, 1
    %vm737 = vcmp.ge.s32.totalorder %v289, 1
    %vm738 = vcmp.ge.s32.totalorder %v290, 1
    %vm739 = vcmp.ge.s32.totalorder %v291, 1
    %vm740 = vcmp.ge.s32.totalorder %v292, 1
    %vm741 = vcmp.ge.s32.totalorder %v293, 1
    %vm742 = vcmp.ge.s32.totalorder %v294, 1
    %vm743 = vcmp.ge.s32.totalorder %v295, 1
    %vm744 = vcmp.ge.s32.totalorder %v296, 1
    %vm745 = vcmp.ge.s32.totalorder %v297, 1
    %vm746 = vcmp.ge.s32.totalorder %v298, 1
    %vm747 = vcmp.ge.s32.totalorder %v299, 1
    %vm748 = vcmp.ge.s32.totalorder %v300, 1
    %vm749 = vcmp.ge.s32.totalorder %v301, 1
    %vm750 = vcmp.ge.s32.totalorder %v302, 1
    %vm751 = vcmp.ge.s32.totalorder %v303, 1
    %vm752 = vcmp.ge.s32.totalorder %v304, 1
    %vm753 = vcmp.ge.s32.totalorder %v305, 1
    %v754 = vsel %vm690, 1, 0
    %v755 = vsel %vm691, 1, 0
    %v756 = vsel %vm692, 1, 0
    %v757 = vsel %vm693, 1, 0
    %v758 = vsel %vm694, 1, 0
    %v759 = vsel %vm695, 1, 0
    %v760 = vsel %vm696, 1, 0
    %v761 = vsel %vm697, 1, 0
    %v762 = vsel %vm698, 1, 0
    %v763 = vsel %vm699, 1, 0
    %v764 = vsel %vm700, 1, 0
    %v765 = vsel %vm701, 1, 0
    %v766 = vsel %vm702, 1, 0
    %v767 = vsel %vm703, 1, 0
    %v768 = vsel %vm704, 1, 0
    %v769 = vsel %vm705, 1, 0
    %v770 = vsel %vm706, 1, 0
    %v771 = vsel %vm707, 1, 0
    %v772 = vsel %vm708, 1, 0
    %v773 = vsel %vm709, 1, 0
    %v774 = vsel %vm710, 1, 0
    %v775 = vsel %vm711, 1, 0
    %v776 = vsel %vm712, 1, 0
    %v777 = vsel %vm713, 1, 0
    %v778 = vsel %vm714, 1, 0
    %v779 = vsel %vm715, 1, 0
    %v780 = vsel %vm716, 1, 0
    %v781 = vsel %vm717, 1, 0
    %v782 = vsel %vm718, 1, 0
    %v783 = vsel %vm719, 1, 0
    %v784 = vsel %vm720, 1, 0
    %v785 = vsel %vm721, 1, 0
    %v786 = vsel %vm722, 1, 0
    %v787 = vsel %vm723, 1, 0
    %v788 = vsel %vm724, 1, 0
    %v789 = vsel %vm725, 1, 0
    %v790 = vsel %vm726, 1, 0
    %v791 = vsel %vm727, 1, 0
    %v792 = vsel %vm728, 1, 0
    %v793 = vsel %vm729, 1, 0
    %v794 = vsel %vm730, 1, 0
    %v795 = vsel %vm731, 1, 0
    %v796 = vsel %vm732, 1, 0
    %v797 = vsel %vm733, 1, 0
    %v798 = vsel %vm734, 1, 0
    %v799 = vsel %vm735, 1, 0
    %v800 = vsel %vm736, 1, 0
    %v801 = vsel %vm737, 1, 0
    %v802 = vsel %vm738, 1, 0
    %v803 = vsel %vm739, 1, 0
    %v804 = vsel %vm740, 1, 0
    %v805 = vsel %vm741, 1, 0
    %v806 = vsel %vm742, 1, 0
    %v807 = vsel %vm743, 1, 0
    %v808 = vsel %vm744, 1, 0
    %v809 = vsel %vm745, 1, 0
    %v810 = vsel %vm746, 1, 0
    %v811 = vsel %vm747, 1, 0
    %v812 = vsel %vm748, 1, 0
    %v813 = vsel %vm749, 1, 0
    %v814 = vsel %vm750, 1, 0
    %v815 = vsel %vm751, 1, 0
    %v816 = vsel %vm752, 1, 0
    %v817 = vsel %vm753, 1, 0
    %v818 = vcvt.s32.f32 %v754
    %v819 = vcvt.s32.f32 %v755
    %v820 = vcvt.s32.f32 %v756
    %v821 = vcvt.s32.f32 %v757
    %v822 = vcvt.s32.f32 %v758
    %v823 = vcvt.s32.f32 %v759
    %v824 = vcvt.s32.f32 %v760
    %v825 = vcvt.s32.f32 %v761
    %v826 = vcvt.s32.f32 %v762
    %v827 = vcvt.s32.f32 %v763
    %v828 = vcvt.s32.f32 %v764
    %v829 = vcvt.s32.f32 %v765
    %v830 = vcvt.s32.f32 %v766
    %v831 = vcvt.s32.f32 %v767
    %v832 = vcvt.s32.f32 %v768
    %v833 = vcvt.s32.f32 %v769
    %v834 = vcvt.s32.f32 %v770
    %v835 = vcvt.s32.f32 %v771
    %v836 = vcvt.s32.f32 %v772
    %v837 = vcvt.s32.f32 %v773
    %v838 = vcvt.s32.f32 %v774
    %v839 = vcvt.s32.f32 %v775
    %v840 = vcvt.s32.f32 %v776
    %v841 = vcvt.s32.f32 %v777
    %v842 = vcvt.s32.f32 %v778
    %v843 = vcvt.s32.f32 %v779
    %v844 = vcvt.s32.f32 %v780
    %v845 = vcvt.s32.f32 %v781
    %v846 = vcvt.s32.f32 %v782
    %v847 = vcvt.s32.f32 %v783
    %v848 = vcvt.s32.f32 %v784
    %v849 = vcvt.s32.f32 %v785
    %v850 = vcvt.s32.f32 %v786
    %v851 = vcvt.s32.f32 %v787
    %v852 = vcvt.s32.f32 %v788
    %v853 = vcvt.s32.f32 %v789
    %v854 = vcvt.s32.f32 %v790
    %v855 = vcvt.s32.f32 %v791
    %v856 = vcvt.s32.f32 %v792
    %v857 = vcvt.s32.f32 %v793
    %v858 = vcvt.s32.f32 %v794
    %v859 = vcvt.s32.f32 %v795
    %v860 = vcvt.s32.f32 %v796
    %v861 = vcvt.s32.f32 %v797
    %v862 = vcvt.s32.f32 %v798
    %v863 = vcvt.s32.f32 %v799
    %v864 = vcvt.s32.f32 %v800
    %v865 = vcvt.s32.f32 %v801
    %v866 = vcvt.s32.f32 %v802
    %v867 = vcvt.s32.f32 %v803
    %v868 = vcvt.s32.f32 %v804
    %v869 = vcvt.s32.f32 %v805
    %v870 = vcvt.s32.f32 %v806
    %v871 = vcvt.s32.f32 %v807
    %v872 = vcvt.s32.f32 %v808
    %v873 = vcvt.s32.f32 %v809
    %v874 = vcvt.s32.f32 %v810
    %v875 = vcvt.s32.f32 %v811
    %v876 = vcvt.s32.f32 %v812
    %v877 = vcvt.s32.f32 %v813
    %v878 = vcvt.s32.f32 %v814
    %v879 = vcvt.s32.f32 %v815
    %v880 = vcvt.s32.f32 %v816
    %v881 = vcvt.s32.f32 %v817
    %vm882 = vcmp.le.s32.totalorder %v242, 14
    %vm883 = vcmp.le.s32.totalorder %v243, 14
    %vm884 = vcmp.le.s32.totalorder %v244, 14
    %vm885 = vcmp.le.s32.totalorder %v245, 14
    %vm886 = vcmp.le.s32.totalorder %v246, 14
    %vm887 = vcmp.le.s32.totalorder %v247, 14
    %vm888 = vcmp.le.s32.totalorder %v248, 14
    %vm889 = vcmp.le.s32.totalorder %v249, 14
    %vm890 = vcmp.le.s32.totalorder %v250, 14
    %vm891 = vcmp.le.s32.totalorder %v251, 14
    %vm892 = vcmp.le.s32.totalorder %v252, 14
    %vm893 = vcmp.le.s32.totalorder %v253, 14
    %vm894 = vcmp.le.s32.totalorder %v254, 14
    %vm895 = vcmp.le.s32.totalorder %v255, 14
    %vm896 = vcmp.le.s32.totalorder %v256, 14
    %vm897 = vcmp.le.s32.totalorder %v257, 14
    %vm898 = vcmp.le.s32.totalorder %v258, 14
    %vm899 = vcmp.le.s32.totalorder %v259, 14
    %vm900 = vcmp.le.s32.totalorder %v260, 14
    %vm901 = vcmp.le.s32.totalorder %v261, 14
    %vm902 = vcmp.le.s32.totalorder %v262, 14
    %vm903 = vcmp.le.s32.totalorder %v263, 14
    %vm904 = vcmp.le.s32.totalorder %v264, 14
    %vm905 = vcmp.le.s32.totalorder %v265, 14
    %vm906 = vcmp.le.s32.totalorder %v266, 14
    %vm907 = vcmp.le.s32.totalorder %v267, 14
    %vm908 = vcmp.le.s32.totalorder %v268, 14
    %vm909 = vcmp.le.s32.totalorder %v269, 14
    %vm910 = vcmp.le.s32.totalorder %v270, 14
    %vm911 = vcmp.le.s32.totalorder %v271, 14
    %vm912 = vcmp.le.s32.totalorder %v272, 14
    %vm913 = vcmp.le.s32.totalorder %v273, 14
    %vm914 = vcmp.le.s32.totalorder %v274, 14
    %vm915 = vcmp.le.s32.totalorder %v275, 14
    %vm916 = vcmp.le.s32.totalorder %v276, 14
    %vm917 = vcmp.le.s32.totalorder %v277, 14
    %vm918 = vcmp.le.s32.totalorder %v278, 14
    %vm919 = vcmp.le.s32.totalorder %v279, 14
    %vm920 = vcmp.le.s32.totalorder %v280, 14
    %vm921 = vcmp.le.s32.totalorder %v281, 14
    %vm922 = vcmp.le.s32.totalorder %v282, 14
    %vm923 = vcmp.le.s32.totalorder %v283, 14
    %vm924 = vcmp.le.s32.totalorder %v284, 14
    %vm925 = vcmp.le.s32.totalorder %v285, 14
    %vm926 = vcmp.le.s32.totalorder %v286, 14
    %vm927 = vcmp.le.s32.totalorder %v287, 14
    %vm928 = vcmp.le.s32.totalorder %v288, 14
    %vm929 = vcmp.le.s32.totalorder %v289, 14
    %vm930 = vcmp.le.s32.totalorder %v290, 14
    %vm931 = vcmp.le.s32.totalorder %v291, 14
    %vm932 = vcmp.le.s32.totalorder %v292, 14
    %vm933 = vcmp.le.s32.totalorder %v293, 14
    %vm934 = vcmp.le.s32.totalorder %v294, 14
    %vm935 = vcmp.le.s32.totalorder %v295, 14
    %vm936 = vcmp.le.s32.totalorder %v296, 14
    %vm937 = vcmp.le.s32.totalorder %v297, 14
    %vm938 = vcmp.le.s32.totalorder %v298, 14
    %vm939 = vcmp.le.s32.totalorder %v299, 14
    %vm940 = vcmp.le.s32.totalorder %v300, 14
    %vm941 = vcmp.le.s32.totalorder %v301, 14
    %vm942 = vcmp.le.s32.totalorder %v302, 14
    %vm943 = vcmp.le.s32.totalorder %v303, 14
    %vm944 = vcmp.le.s32.totalorder %v304, 14
    %vm945 = vcmp.le.s32.totalorder %v305, 14
    %v946 = vsel %vm882, 1, 0
    %v947 = vsel %vm883, 1, 0
    %v948 = vsel %vm884, 1, 0
    %v949 = vsel %vm885, 1, 0
    %v950 = vsel %vm886, 1, 0
    %v951 = vsel %vm887, 1, 0
    %v952 = vsel %vm888, 1, 0
    %v953 = vsel %vm889, 1, 0
    %v954 = vsel %vm890, 1, 0
    %v955 = vsel %vm891, 1, 0
    %v956 = vsel %vm892, 1, 0
    %v957 = vsel %vm893, 1, 0
    %v958 = vsel %vm894, 1, 0
    %v959 = vsel %vm895, 1, 0
    %v960 = vsel %vm896, 1, 0
    %v961 = vsel %vm897, 1, 0
    %v962 = vsel %vm898, 1, 0
    %v963 = vsel %vm899, 1, 0
    %v964 = vsel %vm900, 1, 0
    %v965 = vsel %vm901, 1, 0
    %v966 = vsel %vm902, 1, 0
    %v967 = vsel %vm903, 1, 0
    %v968 = vsel %vm904, 1, 0
    %v969 = vsel %vm905, 1, 0
    %v970 = vsel %vm906, 1, 0
    %v971 = vsel %vm907, 1, 0
    %v972 = vsel %vm908, 1, 0
    %v973 = vsel %vm909, 1, 0
    %v974 = vsel %vm910, 1, 0
    %v975 = vsel %vm911, 1, 0
    %v976 = vsel %vm912, 1, 0
    %v977 = vsel %vm913, 1, 0
    %v978 = vsel %vm914, 1, 0
    %v979 = vsel %vm915, 1, 0
    %v980 = vsel %vm916, 1, 0
    %v981 = vsel %vm917, 1, 0
    %v982 = vsel %vm918, 1, 0
    %v983 = vsel %vm919, 1, 0
    %v984 = vsel %vm920, 1, 0
    %v985 = vsel %vm921, 1, 0
    %v986 = vsel %vm922, 1, 0
    %v987 = vsel %vm923, 1, 0
    %v988 = vsel %vm924, 1, 0
    %v989 = vsel %vm925, 1, 0
    %v990 = vsel %vm926, 1, 0
    %v991 = vsel %vm927, 1, 0
    %v992 = vsel %vm928, 1, 0
    %v993 = vsel %vm929, 1, 0
    %v994 = vsel %vm930, 1, 0
    %v995 = vsel %vm931, 1, 0
    %v996 = vsel %vm932, 1, 0
    %v997 = vsel %vm933, 1, 0
    %v998 = vsel %vm934, 1, 0
    %v999 = vsel %vm935, 1, 0
    %v1000 = vsel %vm936, 1, 0
    %v1001 = vsel %vm937, 1, 0
    %v1002 = vsel %vm938, 1, 0
    %v1003 = vsel %vm939, 1, 0
    %v1004 = vsel %vm940, 1, 0
    %v1005 = vsel %vm941, 1, 0
    %v1006 = vsel %vm942, 1, 0
    %v1007 = vsel %vm943, 1, 0
    %v1008 = vsel %vm944, 1, 0
    %v1009 = vsel %vm945, 1, 0
    %v1010 = vcvt.s32.f32 %v946
    %v1011 = vcvt.s32.f32 %v947
    %v1012 = vcvt.s32.f32 %v948
    %v1013 = vcvt.s32.f32 %v949
    %v1014 = vcvt.s32.f32 %v950
    %v1015 = vcvt.s32.f32 %v951
    %v1016 = vcvt.s32.f32 %v952
    %v1017 = vcvt.s32.f32 %v953
    %v1018 = vcvt.s32.f32 %v954
    %v1019 = vcvt.s32.f32 %v955
    %v1020 = vcvt.s32.f32 %v956
    %v1021 = vcvt.s32.f32 %v957
    %v1022 = vcvt.s32.f32 %v958
    %v1023 = vcvt.s32.f32 %v959
    %v1024 = vcvt.s32.f32 %v960
    %v1025 = vcvt.s32.f32 %v961
    %v1026 = vcvt.s32.f32 %v962
    %v1027 = vcvt.s32.f32 %v963
    %v1028 = vcvt.s32.f32 %v964
    %v1029 = vcvt.s32.f32 %v965
    %v1030 = vcvt.s32.f32 %v966
    %v1031 = vcvt.s32.f32 %v967
    %v1032 = vcvt.s32.f32 %v968
    %v1033 = vcvt.s32.f32 %v969
    %v1034 = vcvt.s32.f32 %v970
    %v1035 = vcvt.s32.f32 %v971
    %v1036 = vcvt.s32.f32 %v972
    %v1037 = vcvt.s32.f32 %v973
    %v1038 = vcvt.s32.f32 %v974
    %v1039 = vcvt.s32.f32 %v975
    %v1040 = vcvt.s32.f32 %v976
    %v1041 = vcvt.s32.f32 %v977
    %v1042 = vcvt.s32.f32 %v978
    %v1043 = vcvt.s32.f32 %v979
    %v1044 = vcvt.s32.f32 %v980
    %v1045 = vcvt.s32.f32 %v981
    %v1046 = vcvt.s32.f32 %v982
    %v1047 = vcvt.s32.f32 %v983
    %v1048 = vcvt.s32.f32 %v984
    %v1049 = vcvt.s32.f32 %v985
    %v1050 = vcvt.s32.f32 %v986
    %v1051 = vcvt.s32.f32 %v987
    %v1052 = vcvt.s32.f32 %v988
    %v1053 = vcvt.s32.f32 %v989
    %v1054 = vcvt.s32.f32 %v990
    %v1055 = vcvt.s32.f32 %v991
    %v1056 = vcvt.s32.f32 %v992
    %v1057 = vcvt.s32.f32 %v993
    %v1058 = vcvt.s32.f32 %v994
    %v1059 = vcvt.s32.f32 %v995
    %v1060 = vcvt.s32.f32 %v996
    %v1061 = vcvt.s32.f32 %v997
    %v1062 = vcvt.s32.f32 %v998
    %v1063 = vcvt.s32.f32 %v999
    %v1064 = vcvt.s32.f32 %v1000
    %v1065 = vcvt.s32.f32 %v1001
    %v1066 = vcvt.s32.f32 %v1002
    %v1067 = vcvt.s32.f32 %v1003
    %v1068 = vcvt.s32.f32 %v1004
    %v1069 = vcvt.s32.f32 %v1005
    %v1070 = vcvt.s32.f32 %v1006
    %v1071 = vcvt.s32.f32 %v1007
    %v1072 = vcvt.s32.f32 %v1008
    %v1073 = vcvt.s32.f32 %v1009
    %v1074 = vld [vmem:[%s0 + $0x7] sm:$0xff]
    %v1075 = vld [vmem:[%s0 + $0xf] sm:$0xff]
    %v1076 = vld [vmem:[%s0 + $0x17] sm:$0xff]
    %v1077 = vld [vmem:[%s0 + $0x1f] sm:$0xff]
    %v1078 = vld [vmem:[%s0 + $0x27] sm:$0xff]
    %v1079 = vld [vmem:[%s0 + $0x2f] sm:$0xff]
    %v1080 = vld [vmem:[%s0 + $0x37] sm:$0xff]
    %v1081 = vld [vmem:[%s0 + $0x3f] sm:$0xff]
    %v1082 = vld [vmem:[%s0 + $0x47] sm:$0xff]
    %v1083 = vld [vmem:[%s0 + $0x4f] sm:$0xff]
    %v1084 = vld [vmem:[%s0 + $0x57] sm:$0xff]
    %v1085 = vld [vmem:[%s0 + $0x5f] sm:$0xff]
    %v1086 = vld [vmem:[%s0 + $0x67] sm:$0xff]
    %v1087 = vld [vmem:[%s0 + $0x6f] sm:$0xff]
    %v1088 = vld [vmem:[%s0 + $0x77] sm:$0xff]
    %v1089 = vld [vmem:[%s0 + $0x7f] sm:$0xff]
    %v1090 = vld [vmem:[%s0 + $0x87] sm:$0xff]
    %v1091 = vld [vmem:[%s0 + $0x8f] sm:$0xff]
    %v1092 = vld [vmem:[%s0 + $0x97] sm:$0xff]
    %v1093 = vld [vmem:[%s0 + $0x9f] sm:$0xff]
    %v1094 = vld [vmem:[%s0 + $0xa7] sm:$0xff]
    %v1095 = vld [vmem:[%s0 + $0xaf] sm:$0xff]
    %v1096 = vld [vmem:[%s0 + $0xb7] sm:$0xff]
    %v1097 = vld [vmem:[%s0 + $0xbf] sm:$0xff]
    %v1098 = vld [vmem:[%s0 + $0xc7] sm:$0xff]
    %v1099 = vld [vmem:[%s0 + $0xcf] sm:$0xff]
    %v1100 = vld [vmem:[%s0 + $0xd7] sm:$0xff]
    %v1101 = vld [vmem:[%s0 + $0xdf] sm:$0xff]
    %v1102 = vld [vmem:[%s0 + $0xe7] sm:$0xff]
    %v1103 = vld [vmem:[%s0 + $0xef] sm:$0xff]
    %v1104 = vld [vmem:[%s0 + $0xf7] sm:$0xff]
    %v1105 = vld [vmem:[%s0 + $0xff] sm:$0xff]
    %v1106 = vld [vmem:[%s0 + $0x107] sm:$0xff]
    %v1107 = vld [vmem:[%s0 + $0x10f] sm:$0xff]
    %v1108 = vld [vmem:[%s0 + $0x117] sm:$0xff]
    %v1109 = vld [vmem:[%s0 + $0x11f] sm:$0xff]
    %v1110 = vld [vmem:[%s0 + $0x127] sm:$0xff]
    %v1111 = vld [vmem:[%s0 + $0x12f] sm:$0xff]
    %v1112 = vld [vmem:[%s0 + $0x137] sm:$0xff]
    %v1113 = vld [vmem:[%s0 + $0x13f] sm:$0xff]
    %v1114 = vld [vmem:[%s0 + $0x147] sm:$0xff]
    %v1115 = vld [vmem:[%s0 + $0x14f] sm:$0xff]
    %v1116 = vld [vmem:[%s0 + $0x157] sm:$0xff]
    %v1117 = vld [vmem:[%s0 + $0x15f] sm:$0xff]
    %v1118 = vld [vmem:[%s0 + $0x167] sm:$0xff]
    %v1119 = vld [vmem:[%s0 + $0x16f] sm:$0xff]
    %v1120 = vld [vmem:[%s0 + $0x177] sm:$0xff]
    %v1121 = vld [vmem:[%s0 + $0x17f] sm:$0xff]
    %v1122 = vld [vmem:[%s0 + $0x187] sm:$0xff]
    %v1123 = vld [vmem:[%s0 + $0x18f] sm:$0xff]
    %v1124 = vld [vmem:[%s0 + $0x197] sm:$0xff]
    %v1125 = vld [vmem:[%s0 + $0x19f] sm:$0xff]
    %v1126 = vld [vmem:[%s0 + $0x1a7] sm:$0xff]
    %v1127 = vld [vmem:[%s0 + $0x1af] sm:$0xff]
    %v1128 = vld [vmem:[%s0 + $0x1b7] sm:$0xff]
    %v1129 = vld [vmem:[%s0 + $0x1bf] sm:$0xff]
    %v1130 = vld [vmem:[%s0 + $0x1c7] sm:$0xff]
    %v1131 = vld [vmem:[%s0 + $0x1cf] sm:$0xff]
    %v1132 = vld [vmem:[%s0 + $0x1d7] sm:$0xff]
    %v1133 = vld [vmem:[%s0 + $0x1df] sm:$0xff]
    %v1134 = vld [vmem:[%s0 + $0x1e7] sm:$0xff]
    %v1135 = vld [vmem:[%s0 + $0x1ef] sm:$0xff]
    %v1136 = vld [vmem:[%s0 + $0x1f7] sm:$0xff]
    %v1137 = vld [vmem:[%s0 + $0x1ff] sm:$0xff]
    %v1138 = vmul.f32 %v434, %v818
    %v1139 = vmul.f32 %v435, %v819
    %v1140 = vmul.f32 %v436, %v820
    %v1141 = vmul.f32 %v437, %v821
    %v1142 = vmul.f32 %v438, %v822
    %v1143 = vmul.f32 %v439, %v823
    %v1144 = vmul.f32 %v440, %v824
    %v1145 = vmul.f32 %v441, %v825
    %v1146 = vmul.f32 %v442, %v826
    %v1147 = vmul.f32 %v443, %v827
    %v1148 = vmul.f32 %v444, %v828
    %v1149 = vmul.f32 %v445, %v829
    %v1150 = vmul.f32 %v446, %v830
    %v1151 = vmul.f32 %v447, %v831
    %v1152 = vmul.f32 %v448, %v832
    %v1153 = vmul.f32 %v449, %v833
    %v1154 = vmul.f32 %v450, %v834
    %v1155 = vmul.f32 %v451, %v835
    %v1156 = vmul.f32 %v452, %v836
    %v1157 = vmul.f32 %v453, %v837
    %v1158 = vmul.f32 %v454, %v838
    %v1159 = vmul.f32 %v455, %v839
    %v1160 = vmul.f32 %v456, %v840
    %v1161 = vmul.f32 %v457, %v841
    %v1162 = vmul.f32 %v458, %v842
    %v1163 = vmul.f32 %v459, %v843
    %v1164 = vmul.f32 %v460, %v844
    %v1165 = vmul.f32 %v461, %v845
    %v1166 = vmul.f32 %v462, %v846
    %v1167 = vmul.f32 %v463, %v847
    %v1168 = vmul.f32 %v464, %v848
    %v1169 = vmul.f32 %v465, %v849
    %v1170 = vmul.f32 %v466, %v850
    %v1171 = vmul.f32 %v467, %v851
    %v1172 = vmul.f32 %v468, %v852
    %v1173 = vmul.f32 %v469, %v853
    %v1174 = vmul.f32 %v470, %v854
    %v1175 = vmul.f32 %v471, %v855
    %v1176 = vmul.f32 %v472, %v856
    %v1177 = vmul.f32 %v473, %v857
    %v1178 = vmul.f32 %v474, %v858
    %v1179 = vmul.f32 %v475, %v859
    %v1180 = vmul.f32 %v476, %v860
    %v1181 = vmul.f32 %v477, %v861
    %v1182 = vmul.f32 %v478, %v862
    %v1183 = vmul.f32 %v479, %v863
    %v1184 = vmul.f32 %v480, %v864
    %v1185 = vmul.f32 %v481, %v865
    %v1186 = vmul.f32 %v482, %v866
    %v1187 = vmul.f32 %v483, %v867
    %v1188 = vmul.f32 %v484, %v868
    %v1189 = vmul.f32 %v485, %v869
    %v1190 = vmul.f32 %v486, %v870
    %v1191 = vmul.f32 %v487, %v871
    %v1192 = vmul.f32 %v488, %v872
    %v1193 = vmul.f32 %v489, %v873
    %v1194 = vmul.f32 %v490, %v874
    %v1195 = vmul.f32 %v491, %v875
    %v1196 = vmul.f32 %v492, %v876
    %v1197 = vmul.f32 %v493, %v877
    %v1198 = vmul.f32 %v494, %v878
    %v1199 = vmul.f32 %v495, %v879
    %v1200 = vmul.f32 %v496, %v880
    %v1201 = vmul.f32 %v497, %v881
    %v1202 = vmul.f32 %v1074, %v1138
    %v1203 = vmul.f32 %v1075, %v1139
    %v1204 = vmul.f32 %v1076, %v1140
    %v1205 = vmul.f32 %v1077, %v1141
    %v1206 = vmul.f32 %v1078, %v1142
    %v1207 = vmul.f32 %v1079, %v1143
    %v1208 = vmul.f32 %v1080, %v1144
    %v1209 = vmul.f32 %v1081, %v1145
    %v1210 = vmul.f32 %v1082, %v1146
    %v1211 = vmul.f32 %v1083, %v1147
    %v1212 = vmul.f32 %v1084, %v1148
    %v1213 = vmul.f32 %v1085, %v1149
    %v1214 = vmul.f32 %v1086, %v1150
    %v1215 = vmul.f32 %v1087, %v1151
    %v1216 = vmul.f32 %v1088, %v1152
    %v1217 = vmul.f32 %v1089, %v1153
    %v1218 = vmul.f32 %v1090, %v1154
    %v1219 = vmul.f32 %v1091, %v1155
    %v1220 = vmul.f32 %v1092, %v1156
    %v1221 = vmul.f32 %v1093, %v1157
    %v1222 = vmul.f32 %v1094, %v1158
    %v1223 = vmul.f32 %v1095, %v1159
    %v1224 = vmul.f32 %v1096, %v1160
    %v1225 = vmul.f32 %v1097, %v1161
    %v1226 = vmul.f32 %v1098, %v1162
    %v1227 = vmul.f32 %v1099, %v1163
    %v1228 = vmul.f32 %v1100, %v1164
    %v1229 = vmul.f32 %v1101, %v1165
    %v1230 = vmul.f32 %v1102, %v1166
    %v1231 = vmul.f32 %v1103, %v1167
    %v1232 = vmul.f32 %v1104, %v1168
    %v1233 = vmul.f32 %v1105, %v1169
    %v1234 = vmul.f32 %v1106, %v1170
    %v1235 = vmul.f32 %v1107, %v1171
    %v1236 = vmul.f32 %v1108, %v1172
    %v1237 = vmul.f32 %v1109, %v1173
    %v1238 = vmul.f32 %v1110, %v1174
    %v1239 = vmul.f32 %v1111, %v1175
    %v1240 = vmul.f32 %v1112, %v1176
    %v1241 = vmul.f32 %v1113, %v1177
    %v1242 = vmul.f32 %v1114, %v1178
    %v1243 = vmul.f32 %v1115, %v1179
    %v1244 = vmul.f32 %v1116, %v1180
    %v1245 = vmul.f32 %v1117, %v1181
    %v1246 = vmul.f32 %v1118, %v1182
    %v1247 = vmul.f32 %v1119, %v1183
    %v1248 = vmul.f32 %v1120, %v1184
    %v1249 = vmul.f32 %v1121, %v1185
    %v1250 = vmul.f32 %v1122, %v1186
    %v1251 = vmul.f32 %v1123, %v1187
    %v1252 = vmul.f32 %v1124, %v1188
    %v1253 = vmul.f32 %v1125, %v1189
    %v1254 = vmul.f32 %v1126, %v1190
    %v1255 = vmul.f32 %v1127, %v1191
    %v1256 = vmul.f32 %v1128, %v1192
    %v1257 = vmul.f32 %v1129, %v1193
    %v1258 = vmul.f32 %v1130, %v1194
    %v1259 = vmul.f32 %v1131, %v1195
    %v1260 = vmul.f32 %v1132, %v1196
    %v1261 = vmul.f32 %v1133, %v1197
    %v1262 = vmul.f32 %v1134, %v1198
    %v1263 = vmul.f32 %v1135, %v1199
    %v1264 = vmul.f32 %v1136, %v1200
    %v1265 = vmul.f32 %v1137, %v1201
    %v1266 = vpack.c.bf16 %v1203, %v1202
    %v1267 = vpack.c.bf16 %v1205, %v1204
    %v1268 = vpack.c.bf16 %v1207, %v1206
    %v1269 = vpack.c.bf16 %v1209, %v1208
    %v1270 = vpack.c.bf16 %v1211, %v1210
    %v1271 = vpack.c.bf16 %v1213, %v1212
    %v1272 = vpack.c.bf16 %v1215, %v1214
    %v1273 = vpack.c.bf16 %v1217, %v1216
    %v1274 = vpack.c.bf16 %v1219, %v1218
    %v1275 = vpack.c.bf16 %v1221, %v1220
    %v1276 = vpack.c.bf16 %v1223, %v1222
    %v1277 = vpack.c.bf16 %v1225, %v1224
    %v1278 = vpack.c.bf16 %v1227, %v1226
    %v1279 = vpack.c.bf16 %v1229, %v1228
    %v1280 = vpack.c.bf16 %v1231, %v1230
    %v1281 = vpack.c.bf16 %v1233, %v1232
    %v1282 = vpack.c.bf16 %v1235, %v1234
    %v1283 = vpack.c.bf16 %v1237, %v1236
    %v1284 = vpack.c.bf16 %v1239, %v1238
    %v1285 = vpack.c.bf16 %v1241, %v1240
    %v1286 = vpack.c.bf16 %v1243, %v1242
    %v1287 = vpack.c.bf16 %v1245, %v1244
    %v1288 = vpack.c.bf16 %v1247, %v1246
    %v1289 = vpack.c.bf16 %v1249, %v1248
    %v1290 = vpack.c.bf16 %v1251, %v1250
    %v1291 = vpack.c.bf16 %v1253, %v1252
    %v1292 = vpack.c.bf16 %v1255, %v1254
    %v1293 = vpack.c.bf16 %v1257, %v1256
    %v1294 = vpack.c.bf16 %v1259, %v1258
    %v1295 = vpack.c.bf16 %v1261, %v1260
    %v1296 = vpack.c.bf16 %v1263, %v1262
    %v1297 = vpack.c.bf16 %v1265, %v1264
    %v1298 = vld [vmem:[%s1] sm:$0xf]
    %v1299 = vld [vmem:[%s0 + $0x8] sm:$0xff]
    %v1300 = vld [vmem:[%s0 + $0x10] sm:$0xff]
    %v1301 = vld [vmem:[%s0 + $0x18] sm:$0xff]
    %v1302 = vld [vmem:[%s0 + $0x20] sm:$0xff]
    %v1303 = vld [vmem:[%s0 + $0x28] sm:$0xff]
    %v1304 = vld [vmem:[%s0 + $0x30] sm:$0xff]
    %v1305 = vld [vmem:[%s0 + $0x38] sm:$0xff]
    %v1306 = vld [vmem:[%s0 + $0x40] sm:$0xff]
    %v1307 = vld [vmem:[%s0 + $0x48] sm:$0xff]
    %v1308 = vld [vmem:[%s0 + $0x50] sm:$0xff]
    %v1309 = vld [vmem:[%s0 + $0x58] sm:$0xff]
    %v1310 = vld [vmem:[%s0 + $0x60] sm:$0xff]
    %v1311 = vld [vmem:[%s0 + $0x68] sm:$0xff]
    %v1312 = vld [vmem:[%s0 + $0x70] sm:$0xff]
    %v1313 = vld [vmem:[%s0 + $0x78] sm:$0xff]
    %v1314 = vld [vmem:[%s0 + $0x80] sm:$0xff]
    %v1315 = vld [vmem:[%s0 + $0x88] sm:$0xff]
    %v1316 = vld [vmem:[%s0 + $0x90] sm:$0xff]
    %v1317 = vld [vmem:[%s0 + $0x98] sm:$0xff]
    %v1318 = vld [vmem:[%s0 + $0xa0] sm:$0xff]
    %v1319 = vld [vmem:[%s0 + $0xa8] sm:$0xff]
    %v1320 = vld [vmem:[%s0 + $0xb0] sm:$0xff]
    %v1321 = vld [vmem:[%s0 + $0xb8] sm:$0xff]
    %v1322 = vld [vmem:[%s0 + $0xc0] sm:$0xff]
    %v1323 = vld [vmem:[%s0 + $0xc8] sm:$0xff]
    %v1324 = vld [vmem:[%s0 + $0xd0] sm:$0xff]
    %v1325 = vld [vmem:[%s0 + $0xd8] sm:$0xff]
    %v1326 = vld [vmem:[%s0 + $0xe0] sm:$0xff]
    %v1327 = vld [vmem:[%s0 + $0xe8] sm:$0xff]
    %v1328 = vld [vmem:[%s0 + $0xf0] sm:$0xff]
    %v1329 = vld [vmem:[%s0 + $0xf8] sm:$0xff]
    %v1330 = vld [vmem:[%s0 + $0x100] sm:$0xff]
    %v1331 = vld [vmem:[%s0 + $0x108] sm:$0xff]
    %v1332 = vld [vmem:[%s0 + $0x110] sm:$0xff]
    %v1333 = vld [vmem:[%s0 + $0x118] sm:$0xff]
    %v1334 = vld [vmem:[%s0 + $0x120] sm:$0xff]
    %v1335 = vld [vmem:[%s0 + $0x128] sm:$0xff]
    %v1336 = vld [vmem:[%s0 + $0x130] sm:$0xff]
    %v1337 = vld [vmem:[%s0 + $0x138] sm:$0xff]
    %v1338 = vld [vmem:[%s0 + $0x140] sm:$0xff]
    %v1339 = vld [vmem:[%s0 + $0x148] sm:$0xff]
    %v1340 = vld [vmem:[%s0 + $0x150] sm:$0xff]
    %v1341 = vld [vmem:[%s0 + $0x158] sm:$0xff]
    %v1342 = vld [vmem:[%s0 + $0x160] sm:$0xff]
    %v1343 = vld [vmem:[%s0 + $0x168] sm:$0xff]
    %v1344 = vld [vmem:[%s0 + $0x170] sm:$0xff]
    %v1345 = vld [vmem:[%s0 + $0x178] sm:$0xff]
    %v1346 = vld [vmem:[%s0 + $0x180] sm:$0xff]
    %v1347 = vld [vmem:[%s0 + $0x188] sm:$0xff]
    %v1348 = vld [vmem:[%s0 + $0x190] sm:$0xff]
    %v1349 = vld [vmem:[%s0 + $0x198] sm:$0xff]
    %v1350 = vld [vmem:[%s0 + $0x1a0] sm:$0xff]
    %v1351 = vld [vmem:[%s0 + $0x1a8] sm:$0xff]
    %v1352 = vld [vmem:[%s0 + $0x1b0] sm:$0xff]
    %v1353 = vld [vmem:[%s0 + $0x1b8] sm:$0xff]
    %v1354 = vld [vmem:[%s0 + $0x1c0] sm:$0xff]
    %v1355 = vld [vmem:[%s0 + $0x1c8] sm:$0xff]
    %v1356 = vld [vmem:[%s0 + $0x1d0] sm:$0xff]
    %v1357 = vld [vmem:[%s0 + $0x1d8] sm:$0xff]
    %v1358 = vld [vmem:[%s0 + $0x1e0] sm:$0xff]
    %v1359 = vld [vmem:[%s0 + $0x1e8] sm:$0xff]
    %v1360 = vld [vmem:[%s0 + $0x1f0] sm:$0xff]
    %v1361 = vld [vmem:[%s0 + $0x1f8] sm:$0xff]
    %v1362 = vld [vmem:[%s0 + $0x200] sm:$0xff]
    %v1363 = vmul.f32 %v1299, %v434
    %v1364 = vmul.f32 %v1300, %v435
    %v1365 = vmul.f32 %v1301, %v436
    %v1366 = vmul.f32 %v1302, %v437
    %v1367 = vmul.f32 %v1303, %v438
    %v1368 = vmul.f32 %v1304, %v439
    %v1369 = vmul.f32 %v1305, %v440
    %v1370 = vmul.f32 %v1306, %v441
    %v1371 = vmul.f32 %v1307, %v442
    %v1372 = vmul.f32 %v1308, %v443
    %v1373 = vmul.f32 %v1309, %v444
    %v1374 = vmul.f32 %v1310, %v445
    %v1375 = vmul.f32 %v1311, %v446
    %v1376 = vmul.f32 %v1312, %v447
    %v1377 = vmul.f32 %v1313, %v448
    %v1378 = vmul.f32 %v1314, %v449
    %v1379 = vmul.f32 %v1315, %v450
    %v1380 = vmul.f32 %v1316, %v451
    %v1381 = vmul.f32 %v1317, %v452
    %v1382 = vmul.f32 %v1318, %v453
    %v1383 = vmul.f32 %v1319, %v454
    %v1384 = vmul.f32 %v1320, %v455
    %v1385 = vmul.f32 %v1321, %v456
    %v1386 = vmul.f32 %v1322, %v457
    %v1387 = vmul.f32 %v1323, %v458
    %v1388 = vmul.f32 %v1324, %v459
    %v1389 = vmul.f32 %v1325, %v460
    %v1390 = vmul.f32 %v1326, %v461
    %v1391 = vmul.f32 %v1327, %v462
    %v1392 = vmul.f32 %v1328, %v463
    %v1393 = vmul.f32 %v1329, %v464
    %v1394 = vmul.f32 %v1330, %v465
    %v1395 = vmul.f32 %v1331, %v466
    %v1396 = vmul.f32 %v1332, %v467
    %v1397 = vmul.f32 %v1333, %v468
    %v1398 = vmul.f32 %v1334, %v469
    %v1399 = vmul.f32 %v1335, %v470
    %v1400 = vmul.f32 %v1336, %v471
    %v1401 = vmul.f32 %v1337, %v472
    %v1402 = vmul.f32 %v1338, %v473
    %v1403 = vmul.f32 %v1339, %v474
    %v1404 = vmul.f32 %v1340, %v475
    %v1405 = vmul.f32 %v1341, %v476
    %v1406 = vmul.f32 %v1342, %v477
    %v1407 = vmul.f32 %v1343, %v478
    %v1408 = vmul.f32 %v1344, %v479
    %v1409 = vmul.f32 %v1345, %v480
    %v1410 = vmul.f32 %v1346, %v481
    %v1411 = vmul.f32 %v1347, %v482
    %v1412 = vmul.f32 %v1348, %v483
    %v1413 = vmul.f32 %v1349, %v484
    %v1414 = vmul.f32 %v1350, %v485
    %v1415 = vmul.f32 %v1351, %v486
    %v1416 = vmul.f32 %v1352, %v487
    %v1417 = vmul.f32 %v1353, %v488
    %v1418 = vmul.f32 %v1354, %v489
    %v1419 = vmul.f32 %v1355, %v490
    %v1420 = vmul.f32 %v1356, %v491
    %v1421 = vmul.f32 %v1357, %v492
    %v1422 = vmul.f32 %v1358, %v493
    %v1423 = vmul.f32 %v1359, %v494
    %v1424 = vmul.f32 %v1360, %v495
    %v1425 = vmul.f32 %v1361, %v496
    %v1426 = vmul.f32 %v1362, %v497
    %v1427 = vpack.c.bf16 %v1364, %v1363
    %v1428 = vpack.c.bf16 %v1366, %v1365
    %v1429 = vpack.c.bf16 %v1368, %v1367
    %v1430 = vpack.c.bf16 %v1370, %v1369
    %v1431 = vpack.c.bf16 %v1372, %v1371
    %v1432 = vpack.c.bf16 %v1374, %v1373
    %v1433 = vpack.c.bf16 %v1376, %v1375
    %v1434 = vpack.c.bf16 %v1378, %v1377
    %v1435 = vpack.c.bf16 %v1380, %v1379
    %v1436 = vpack.c.bf16 %v1382, %v1381
    %v1437 = vpack.c.bf16 %v1384, %v1383
    %v1438 = vpack.c.bf16 %v1386, %v1385
    %v1439 = vpack.c.bf16 %v1388, %v1387
    %v1440 = vpack.c.bf16 %v1390, %v1389
    %v1441 = vpack.c.bf16 %v1392, %v1391
    %v1442 = vpack.c.bf16 %v1394, %v1393
    %v1443 = vpack.c.bf16 %v1396, %v1395
    %v1444 = vpack.c.bf16 %v1398, %v1397
    %v1445 = vpack.c.bf16 %v1400, %v1399
    %v1446 = vpack.c.bf16 %v1402, %v1401
    %v1447 = vpack.c.bf16 %v1404, %v1403
    %v1448 = vpack.c.bf16 %v1406, %v1405
    %v1449 = vpack.c.bf16 %v1408, %v1407
    %v1450 = vpack.c.bf16 %v1410, %v1409
    %v1451 = vpack.c.bf16 %v1412, %v1411
    %v1452 = vpack.c.bf16 %v1414, %v1413
    %v1453 = vpack.c.bf16 %v1416, %v1415
    %v1454 = vpack.c.bf16 %v1418, %v1417
    %v1455 = vpack.c.bf16 %v1420, %v1419
    %v1456 = vpack.c.bf16 %v1422, %v1421
    %v1457 = vpack.c.bf16 %v1424, %v1423
    %v1458 = vpack.c.bf16 %v1426, %v1425
    %s1459 = scalar_lea.vmem %s1, 4
    %v1460 = vld [vmem:[%s1459] sm:$0xf]
    %vm1461 = vcmask 64512
    %v1463 = vsel %vm1461, %v1427, 0
    %v1466 = vsel %vm1461, %v1428, 0
    %v1469 = vsel %vm1461, %v1429, 0
    %v1472 = vsel %vm1461, %v1430, 0
    %v1475 = vsel %vm1461, %v1431, 0
    %v1478 = vsel %vm1461, %v1432, 0
    %v1481 = vsel %vm1461, %v1433, 0
    %v1484 = vsel %vm1461, %v1434, 0
    %v1487 = vsel %vm1461, %v1435, 0
    %v1490 = vsel %vm1461, %v1436, 0
    %v1493 = vsel %vm1461, %v1437, 0
    %v1496 = vsel %vm1461, %v1438, 0
    %v1499 = vsel %vm1461, %v1439, 0
    %v1502 = vsel %vm1461, %v1440, 0
    %v1505 = vsel %vm1461, %v1441, 0
    %v1508 = vsel %vm1461, %v1442, 0
    %v1511 = vsel %vm1461, %v1443, 0
    %v1514 = vsel %vm1461, %v1444, 0
    %v1517 = vsel %vm1461, %v1445, 0
    %v1520 = vsel %vm1461, %v1446, 0
    %v1523 = vsel %vm1461, %v1447, 0
    %v1526 = vsel %vm1461, %v1448, 0
    %v1529 = vsel %vm1461, %v1449, 0
    %v1532 = vsel %vm1461, %v1450, 0
    %v1535 = vsel %vm1461, %v1451, 0
    %v1538 = vsel %vm1461, %v1452, 0
    %v1541 = vsel %vm1461, %v1453, 0
    %v1544 = vsel %vm1461, %v1454, 0
    %v1547 = vsel %vm1461, %v1455, 0
    %v1550 = vsel %vm1461, %v1456, 0
    %v1553 = vsel %vm1461, %v1457, 0
    %v1556 = vsel %vm1461, %v1458, 0
    %vm1558 = vcmask 1043456
    %v1560 = vsel %vm1558, %v1460, 0
    %1562 = vmatpush.bf16.msra.mxu0 0
    %1563 = vmatpush.bf16.msra.mxu0 0
    %1564 = vmatpush.bf16.msra.mxu0 0
    %1565 = vmatpush.bf16.msra.mxu0 0
    %1566 = vmatpush.bf16.msra.mxu0 0
    %1567 = vmatpush.bf16.msra.mxu0 0
    %1568 = vmatpush.bf16.msra.mxu0 0
    %1569 = vmatpush.bf16.msra.mxu0 %v1560
    %1570 = vmatmul.bf16.gmra.mxu0 %v1463
    %v1571 = vpop.f32.mrf.mxu0
    %v1572 = vadd.f32 0.0, %v1571
    %v1573 = vpop.f32.mrf.mxu0
    %v1574 = vadd.f32 0.0, %v1573
    %1575 = vmatmul.bf16.gmra.mxu0 %v1466
    %v1576 = vpop.f32.mrf.mxu0
    %v1577 = vadd.f32 0.0, %v1576
    %v1578 = vpop.f32.mrf.mxu0
    %v1579 = vadd.f32 0.0, %v1578
    %1580 = vmatmul.bf16.gmra.mxu0 %v1469
    %v1581 = vpop.f32.mrf.mxu0
    %v1582 = vadd.f32 0.0, %v1581
    %v1583 = vpop.f32.mrf.mxu0
    %v1584 = vadd.f32 0.0, %v1583
    %1585 = vmatmul.bf16.gmra.mxu0 %v1472
    %v1586 = vpop.f32.mrf.mxu0
    %v1587 = vadd.f32 0.0, %v1586
    %v1588 = vpop.f32.mrf.mxu0
    %v1589 = vadd.f32 0.0, %v1588
    %1590 = vmatmul.bf16.gmra.mxu0 %v1475
    %v1591 = vpop.f32.mrf.mxu0
    %v1592 = vadd.f32 0.0, %v1591
    %v1593 = vpop.f32.mrf.mxu0
    %v1594 = vadd.f32 0.0, %v1593
    %1595 = vmatmul.bf16.gmra.mxu0 %v1478
    %v1596 = vpop.f32.mrf.mxu0
    %v1597 = vadd.f32 0.0, %v1596
    %v1598 = vpop.f32.mrf.mxu0
    %v1599 = vadd.f32 0.0, %v1598
    %1600 = vmatmul.bf16.gmra.mxu0 %v1481
    %v1601 = vpop.f32.mrf.mxu0
    %v1602 = vadd.f32 0.0, %v1601
    %v1603 = vpop.f32.mrf.mxu0
    %v1604 = vadd.f32 0.0, %v1603
    %1605 = vmatmul.bf16.gmra.mxu0 %v1484
    %v1606 = vpop.f32.mrf.mxu0
    %v1607 = vadd.f32 0.0, %v1606
    %v1608 = vpop.f32.mrf.mxu0
    %v1609 = vadd.f32 0.0, %v1608
    %1610 = vmatmul.bf16.gmra.mxu0 %v1487
    %v1611 = vpop.f32.mrf.mxu0
    %v1612 = vadd.f32 0.0, %v1611
    %v1613 = vpop.f32.mrf.mxu0
    %v1614 = vadd.f32 0.0, %v1613
    %1615 = vmatmul.bf16.gmra.mxu0 %v1490
    %v1616 = vpop.f32.mrf.mxu0
    %v1617 = vadd.f32 0.0, %v1616
    %v1618 = vpop.f32.mrf.mxu0
    %v1619 = vadd.f32 0.0, %v1618
    %1620 = vmatmul.bf16.gmra.mxu0 %v1493
    %v1621 = vpop.f32.mrf.mxu0
    %v1622 = vadd.f32 0.0, %v1621
    %v1623 = vpop.f32.mrf.mxu0
    %v1624 = vadd.f32 0.0, %v1623
    %1625 = vmatmul.bf16.gmra.mxu0 %v1496
    %v1626 = vpop.f32.mrf.mxu0
    %v1627 = vadd.f32 0.0, %v1626
    %v1628 = vpop.f32.mrf.mxu0
    %v1629 = vadd.f32 0.0, %v1628
    %1630 = vmatmul.bf16.gmra.mxu0 %v1499
    %v1631 = vpop.f32.mrf.mxu0
    %v1632 = vadd.f32 0.0, %v1631
    %v1633 = vpop.f32.mrf.mxu0
    %v1634 = vadd.f32 0.0, %v1633
    %1635 = vmatmul.bf16.gmra.mxu0 %v1502
    %v1636 = vpop.f32.mrf.mxu0
    %v1637 = vadd.f32 0.0, %v1636
    %v1638 = vpop.f32.mrf.mxu0
    %v1639 = vadd.f32 0.0, %v1638
    %1640 = vmatmul.bf16.gmra.mxu0 %v1505
    %v1641 = vpop.f32.mrf.mxu0
    %v1642 = vadd.f32 0.0, %v1641
    %v1643 = vpop.f32.mrf.mxu0
    %v1644 = vadd.f32 0.0, %v1643
    %1645 = vmatmul.bf16.gmra.mxu0 %v1508
    %v1646 = vpop.f32.mrf.mxu0
    %v1647 = vadd.f32 0.0, %v1646
    %v1648 = vpop.f32.mrf.mxu0
    %v1649 = vadd.f32 0.0, %v1648
    %1650 = vmatmul.bf16.gmra.mxu0 %v1511
    %v1651 = vpop.f32.mrf.mxu0
    %v1652 = vadd.f32 0.0, %v1651
    %v1653 = vpop.f32.mrf.mxu0
    %v1654 = vadd.f32 0.0, %v1653
    %1655 = vmatmul.bf16.gmra.mxu0 %v1514
    %v1656 = vpop.f32.mrf.mxu0
    %v1657 = vadd.f32 0.0, %v1656
    %v1658 = vpop.f32.mrf.mxu0
    %v1659 = vadd.f32 0.0, %v1658
    %1660 = vmatmul.bf16.gmra.mxu0 %v1517
    %v1661 = vpop.f32.mrf.mxu0
    %v1662 = vadd.f32 0.0, %v1661
    %v1663 = vpop.f32.mrf.mxu0
    %v1664 = vadd.f32 0.0, %v1663
    %1665 = vmatmul.bf16.gmra.mxu0 %v1520
    %v1666 = vpop.f32.mrf.mxu0
    %v1667 = vadd.f32 0.0, %v1666
    %v1668 = vpop.f32.mrf.mxu0
    %v1669 = vadd.f32 0.0, %v1668
    %1670 = vmatmul.bf16.gmra.mxu0 %v1523
    %v1671 = vpop.f32.mrf.mxu0
    %v1672 = vadd.f32 0.0, %v1671
    %v1673 = vpop.f32.mrf.mxu0
    %v1674 = vadd.f32 0.0, %v1673
    %1675 = vmatmul.bf16.gmra.mxu0 %v1526
    %v1676 = vpop.f32.mrf.mxu0
    %v1677 = vadd.f32 0.0, %v1676
    %v1678 = vpop.f32.mrf.mxu0
    %v1679 = vadd.f32 0.0, %v1678
    %1680 = vmatmul.bf16.gmra.mxu0 %v1529
    %v1681 = vpop.f32.mrf.mxu0
    %v1682 = vadd.f32 0.0, %v1681
    %v1683 = vpop.f32.mrf.mxu0
    %v1684 = vadd.f32 0.0, %v1683
    %1685 = vmatmul.bf16.gmra.mxu0 %v1532
    %v1686 = vpop.f32.mrf.mxu0
    %v1687 = vadd.f32 0.0, %v1686
    %v1688 = vpop.f32.mrf.mxu0
    %v1689 = vadd.f32 0.0, %v1688
    %1690 = vmatmul.bf16.gmra.mxu0 %v1535
    %v1691 = vpop.f32.mrf.mxu0
    %v1692 = vadd.f32 0.0, %v1691
    %v1693 = vpop.f32.mrf.mxu0
    %v1694 = vadd.f32 0.0, %v1693
    %1695 = vmatmul.bf16.gmra.mxu0 %v1538
    %v1696 = vpop.f32.mrf.mxu0
    %v1697 = vadd.f32 0.0, %v1696
    %v1698 = vpop.f32.mrf.mxu0
    %v1699 = vadd.f32 0.0, %v1698
    %1700 = vmatmul.bf16.gmra.mxu0 %v1541
    %v1701 = vpop.f32.mrf.mxu0
    %v1702 = vadd.f32 0.0, %v1701
    %v1703 = vpop.f32.mrf.mxu0
    %v1704 = vadd.f32 0.0, %v1703
    %1705 = vmatmul.bf16.gmra.mxu0 %v1544
    %v1706 = vpop.f32.mrf.mxu0
    %v1707 = vadd.f32 0.0, %v1706
    %v1708 = vpop.f32.mrf.mxu0
    %v1709 = vadd.f32 0.0, %v1708
    %1710 = vmatmul.bf16.gmra.mxu0 %v1547
    %v1711 = vpop.f32.mrf.mxu0
    %v1712 = vadd.f32 0.0, %v1711
    %v1713 = vpop.f32.mrf.mxu0
    %v1714 = vadd.f32 0.0, %v1713
    %1715 = vmatmul.bf16.gmra.mxu0 %v1550
    %v1716 = vpop.f32.mrf.mxu0
    %v1717 = vadd.f32 0.0, %v1716
    %v1718 = vpop.f32.mrf.mxu0
    %v1719 = vadd.f32 0.0, %v1718
    %1720 = vmatmul.bf16.gmra.mxu0 %v1553
    %v1721 = vpop.f32.mrf.mxu0
    %v1722 = vadd.f32 0.0, %v1721
    %v1723 = vpop.f32.mrf.mxu0
    %v1724 = vadd.f32 0.0, %v1723
    %1725 = vmatmul.bf16.gmra.mxu0 %v1556
    %v1726 = vpop.f32.mrf.mxu0
    %v1727 = vadd.f32 0.0, %v1726
    %v1728 = vpop.f32.mrf.mxu0
    %v1729 = vadd.f32 0.0, %v1728
    %1730 = vdwg.mxu0
    %v1732 = vsel %vm1461, %v1266, 0
    %v1735 = vsel %vm1461, %v1267, 0
    %v1738 = vsel %vm1461, %v1268, 0
    %v1741 = vsel %vm1461, %v1269, 0
    %v1744 = vsel %vm1461, %v1270, 0
    %v1747 = vsel %vm1461, %v1271, 0
    %v1750 = vsel %vm1461, %v1272, 0
    %v1753 = vsel %vm1461, %v1273, 0
    %v1756 = vsel %vm1461, %v1274, 0
    %v1759 = vsel %vm1461, %v1275, 0
    %v1762 = vsel %vm1461, %v1276, 0
    %v1765 = vsel %vm1461, %v1277, 0
    %v1768 = vsel %vm1461, %v1278, 0
    %v1771 = vsel %vm1461, %v1279, 0
    %v1774 = vsel %vm1461, %v1280, 0
    %v1777 = vsel %vm1461, %v1281, 0
    %v1780 = vsel %vm1461, %v1282, 0
    %v1783 = vsel %vm1461, %v1283, 0
    %v1786 = vsel %vm1461, %v1284, 0
    %v1789 = vsel %vm1461, %v1285, 0
    %v1792 = vsel %vm1461, %v1286, 0
    %v1795 = vsel %vm1461, %v1287, 0
    %v1798 = vsel %vm1461, %v1288, 0
    %v1801 = vsel %vm1461, %v1289, 0
    %v1804 = vsel %vm1461, %v1290, 0
    %v1807 = vsel %vm1461, %v1291, 0
    %v1810 = vsel %vm1461, %v1292, 0
    %v1813 = vsel %vm1461, %v1293, 0
    %v1816 = vsel %vm1461, %v1294, 0
    %v1819 = vsel %vm1461, %v1295, 0
    %v1822 = vsel %vm1461, %v1296, 0
    %v1825 = vsel %vm1461, %v1297, 0
    %v1828 = vsel %vm1558, %v1298, 0
    %1830 = vmatpush.bf16.msra.mxu0 0
    %1831 = vmatpush.bf16.msra.mxu0 0
    %1832 = vmatpush.bf16.msra.mxu0 0
    %1833 = vmatpush.bf16.msra.mxu0 0
    %1834 = vmatpush.bf16.msra.mxu0 0
    %1835 = vmatpush.bf16.msra.mxu0 0
    %1836 = vmatpush.bf16.msra.mxu0 0
    %1837 = vmatpush.bf16.msra.mxu0 %v1828
    %1838 = vmatmul.bf16.gmra.mxu0 %v1732
    %v1839 = vpop.f32.mrf.mxu0
    %v1840 = vadd.f32 %v1572, %v1839
    %v1841 = vpop.f32.mrf.mxu0
    %v1842 = vadd.f32 %v1574, %v1841
    %1843 = vmatmul.bf16.gmra.mxu0 %v1735
    %v1844 = vpop.f32.mrf.mxu0
    %v1845 = vadd.f32 %v1577, %v1844
    %v1846 = vpop.f32.mrf.mxu0
    %v1847 = vadd.f32 %v1579, %v1846
    %1848 = vmatmul.bf16.gmra.mxu0 %v1738
    %v1849 = vpop.f32.mrf.mxu0
    %v1850 = vadd.f32 %v1582, %v1849
    %v1851 = vpop.f32.mrf.mxu0
    %v1852 = vadd.f32 %v1584, %v1851
    %1853 = vmatmul.bf16.gmra.mxu0 %v1741
    %v1854 = vpop.f32.mrf.mxu0
    %v1855 = vadd.f32 %v1587, %v1854
    %v1856 = vpop.f32.mrf.mxu0
    %v1857 = vadd.f32 %v1589, %v1856
    %1858 = vmatmul.bf16.gmra.mxu0 %v1744
    %v1859 = vpop.f32.mrf.mxu0
    %v1860 = vadd.f32 %v1592, %v1859
    %v1861 = vpop.f32.mrf.mxu0
    %v1862 = vadd.f32 %v1594, %v1861
    %1863 = vmatmul.bf16.gmra.mxu0 %v1747
    %v1864 = vpop.f32.mrf.mxu0
    %v1865 = vadd.f32 %v1597, %v1864
    %v1866 = vpop.f32.mrf.mxu0
    %v1867 = vadd.f32 %v1599, %v1866
    %1868 = vmatmul.bf16.gmra.mxu0 %v1750
    %v1869 = vpop.f32.mrf.mxu0
    %v1870 = vadd.f32 %v1602, %v1869
    %v1871 = vpop.f32.mrf.mxu0
    %v1872 = vadd.f32 %v1604, %v1871
    %1873 = vmatmul.bf16.gmra.mxu0 %v1753
    %v1874 = vpop.f32.mrf.mxu0
    %v1875 = vadd.f32 %v1607, %v1874
    %v1876 = vpop.f32.mrf.mxu0
    %v1877 = vadd.f32 %v1609, %v1876
    %1878 = vmatmul.bf16.gmra.mxu0 %v1756
    %v1879 = vpop.f32.mrf.mxu0
    %v1880 = vadd.f32 %v1612, %v1879
    %v1881 = vpop.f32.mrf.mxu0
    %v1882 = vadd.f32 %v1614, %v1881
    %1883 = vmatmul.bf16.gmra.mxu0 %v1759
    %v1884 = vpop.f32.mrf.mxu0
    %v1885 = vadd.f32 %v1617, %v1884
    %v1886 = vpop.f32.mrf.mxu0
    %v1887 = vadd.f32 %v1619, %v1886
    %1888 = vmatmul.bf16.gmra.mxu0 %v1762
    %v1889 = vpop.f32.mrf.mxu0
    %v1890 = vadd.f32 %v1622, %v1889
    %v1891 = vpop.f32.mrf.mxu0
    %v1892 = vadd.f32 %v1624, %v1891
    %1893 = vmatmul.bf16.gmra.mxu0 %v1765
    %v1894 = vpop.f32.mrf.mxu0
    %v1895 = vadd.f32 %v1627, %v1894
    %v1896 = vpop.f32.mrf.mxu0
    %v1897 = vadd.f32 %v1629, %v1896
    %1898 = vmatmul.bf16.gmra.mxu0 %v1768
    %v1899 = vpop.f32.mrf.mxu0
    %v1900 = vadd.f32 %v1632, %v1899
    %v1901 = vpop.f32.mrf.mxu0
    %v1902 = vadd.f32 %v1634, %v1901
    %1903 = vmatmul.bf16.gmra.mxu0 %v1771
    %v1904 = vpop.f32.mrf.mxu0
    %v1905 = vadd.f32 %v1637, %v1904
    %v1906 = vpop.f32.mrf.mxu0
    %v1907 = vadd.f32 %v1639, %v1906
    %1908 = vmatmul.bf16.gmra.mxu0 %v1774
    %v1909 = vpop.f32.mrf.mxu0
    %v1910 = vadd.f32 %v1642, %v1909
    %v1911 = vpop.f32.mrf.mxu0
    %v1912 = vadd.f32 %v1644, %v1911
    %1913 = vmatmul.bf16.gmra.mxu0 %v1777
    %v1914 = vpop.f32.mrf.mxu0
    %v1915 = vadd.f32 %v1647, %v1914
    %v1916 = vpop.f32.mrf.mxu0
    %v1917 = vadd.f32 %v1649, %v1916
    %1918 = vmatmul.bf16.gmra.mxu0 %v1780
    %v1919 = vpop.f32.mrf.mxu0
    %v1920 = vadd.f32 %v1652, %v1919
    %v1921 = vpop.f32.mrf.mxu0
    %v1922 = vadd.f32 %v1654, %v1921
    %1923 = vmatmul.bf16.gmra.mxu0 %v1783
    %v1924 = vpop.f32.mrf.mxu0
    %v1925 = vadd.f32 %v1657, %v1924
    %v1926 = vpop.f32.mrf.mxu0
    %v1927 = vadd.f32 %v1659, %v1926
    %1928 = vmatmul.bf16.gmra.mxu0 %v1786
    %v1929 = vpop.f32.mrf.mxu0
    %v1930 = vadd.f32 %v1662, %v1929
    %v1931 = vpop.f32.mrf.mxu0
    %v1932 = vadd.f32 %v1664, %v1931
    %1933 = vmatmul.bf16.gmra.mxu0 %v1789
    %v1934 = vpop.f32.mrf.mxu0
    %v1935 = vadd.f32 %v1667, %v1934
    %v1936 = vpop.f32.mrf.mxu0
    %v1937 = vadd.f32 %v1669, %v1936
    %1938 = vmatmul.bf16.gmra.mxu0 %v1792
    %v1939 = vpop.f32.mrf.mxu0
    %v1940 = vadd.f32 %v1672, %v1939
    %v1941 = vpop.f32.mrf.mxu0
    %v1942 = vadd.f32 %v1674, %v1941
    %1943 = vmatmul.bf16.gmra.mxu0 %v1795
    %v1944 = vpop.f32.mrf.mxu0
    %v1945 = vadd.f32 %v1677, %v1944
    %v1946 = vpop.f32.mrf.mxu0
    %v1947 = vadd.f32 %v1679, %v1946
    %1948 = vmatmul.bf16.gmra.mxu0 %v1798
    %v1949 = vpop.f32.mrf.mxu0
    %v1950 = vadd.f32 %v1682, %v1949
    %v1951 = vpop.f32.mrf.mxu0
    %v1952 = vadd.f32 %v1684, %v1951
    %1953 = vmatmul.bf16.gmra.mxu0 %v1801
    %v1954 = vpop.f32.mrf.mxu0
    %v1955 = vadd.f32 %v1687, %v1954
    %v1956 = vpop.f32.mrf.mxu0
    %v1957 = vadd.f32 %v1689, %v1956
    %1958 = vmatmul.bf16.gmra.mxu0 %v1804
    %v1959 = vpop.f32.mrf.mxu0
    %v1960 = vadd.f32 %v1692, %v1959
    %v1961 = vpop.f32.mrf.mxu0
    %v1962 = vadd.f32 %v1694, %v1961
    %1963 = vmatmul.bf16.gmra.mxu0 %v1807
    %v1964 = vpop.f32.mrf.mxu0
    %v1965 = vadd.f32 %v1697, %v1964
    %v1966 = vpop.f32.mrf.mxu0
    %v1967 = vadd.f32 %v1699, %v1966
    %1968 = vmatmul.bf16.gmra.mxu0 %v1810
    %v1969 = vpop.f32.mrf.mxu0
    %v1970 = vadd.f32 %v1702, %v1969
    %v1971 = vpop.f32.mrf.mxu0
    %v1972 = vadd.f32 %v1704, %v1971
    %1973 = vmatmul.bf16.gmra.mxu0 %v1813
    %v1974 = vpop.f32.mrf.mxu0
    %v1975 = vadd.f32 %v1707, %v1974
    %v1976 = vpop.f32.mrf.mxu0
    %v1977 = vadd.f32 %v1709, %v1976
    %1978 = vmatmul.bf16.gmra.mxu0 %v1816
    %v1979 = vpop.f32.mrf.mxu0
    %v1980 = vadd.f32 %v1712, %v1979
    %v1981 = vpop.f32.mrf.mxu0
    %v1982 = vadd.f32 %v1714, %v1981
    %1983 = vmatmul.bf16.gmra.mxu0 %v1819
    %v1984 = vpop.f32.mrf.mxu0
    %v1985 = vadd.f32 %v1717, %v1984
    %v1986 = vpop.f32.mrf.mxu0
    %v1987 = vadd.f32 %v1719, %v1986
    %1988 = vmatmul.bf16.gmra.mxu0 %v1822
    %v1989 = vpop.f32.mrf.mxu0
    %v1990 = vadd.f32 %v1722, %v1989
    %v1991 = vpop.f32.mrf.mxu0
    %v1992 = vadd.f32 %v1724, %v1991
    %1993 = vmatmul.bf16.gmra.mxu0 %v1825
    %v1994 = vpop.f32.mrf.mxu0
    %v1995 = vadd.f32 %v1727, %v1994
    %v1996 = vpop.f32.mrf.mxu0
    %v1997 = vadd.f32 %v1729, %v1996
    %1998 = vdwg.mxu0
    %v1999 = vld [vmem:[%s0 + $0x9] sm:$0xff]
    %v2000 = vld [vmem:[%s0 + $0x11] sm:$0xff]
    %v2001 = vld [vmem:[%s0 + $0x19] sm:$0xff]
    %v2002 = vld [vmem:[%s0 + $0x21] sm:$0xff]
    %v2003 = vld [vmem:[%s0 + $0x29] sm:$0xff]
    %v2004 = vld [vmem:[%s0 + $0x31] sm:$0xff]
    %v2005 = vld [vmem:[%s0 + $0x39] sm:$0xff]
    %v2006 = vld [vmem:[%s0 + $0x41] sm:$0xff]
    %v2007 = vld [vmem:[%s0 + $0x49] sm:$0xff]
    %v2008 = vld [vmem:[%s0 + $0x51] sm:$0xff]
    %v2009 = vld [vmem:[%s0 + $0x59] sm:$0xff]
    %v2010 = vld [vmem:[%s0 + $0x61] sm:$0xff]
    %v2011 = vld [vmem:[%s0 + $0x69] sm:$0xff]
    %v2012 = vld [vmem:[%s0 + $0x71] sm:$0xff]
    %v2013 = vld [vmem:[%s0 + $0x79] sm:$0xff]
    %v2014 = vld [vmem:[%s0 + $0x81] sm:$0xff]
    %v2015 = vld [vmem:[%s0 + $0x89] sm:$0xff]
    %v2016 = vld [vmem:[%s0 + $0x91] sm:$0xff]
    %v2017 = vld [vmem:[%s0 + $0x99] sm:$0xff]
    %v2018 = vld [vmem:[%s0 + $0xa1] sm:$0xff]
    %v2019 = vld [vmem:[%s0 + $0xa9] sm:$0xff]
    %v2020 = vld [vmem:[%s0 + $0xb1] sm:$0xff]
    %v2021 = vld [vmem:[%s0 + $0xb9] sm:$0xff]
    %v2022 = vld [vmem:[%s0 + $0xc1] sm:$0xff]
    %v2023 = vld [vmem:[%s0 + $0xc9] sm:$0xff]
    %v2024 = vld [vmem:[%s0 + $0xd1] sm:$0xff]
    %v2025 = vld [vmem:[%s0 + $0xd9] sm:$0xff]
    %v2026 = vld [vmem:[%s0 + $0xe1] sm:$0xff]
    %v2027 = vld [vmem:[%s0 + $0xe9] sm:$0xff]
    %v2028 = vld [vmem:[%s0 + $0xf1] sm:$0xff]
    %v2029 = vld [vmem:[%s0 + $0xf9] sm:$0xff]
    %v2030 = vld [vmem:[%s0 + $0x101] sm:$0xff]
    %v2031 = vld [vmem:[%s0 + $0x109] sm:$0xff]
    %v2032 = vld [vmem:[%s0 + $0x111] sm:$0xff]
    %v2033 = vld [vmem:[%s0 + $0x119] sm:$0xff]
    %v2034 = vld [vmem:[%s0 + $0x121] sm:$0xff]
    %v2035 = vld [vmem:[%s0 + $0x129] sm:$0xff]
    %v2036 = vld [vmem:[%s0 + $0x131] sm:$0xff]
    %v2037 = vld [vmem:[%s0 + $0x139] sm:$0xff]
    %v2038 = vld [vmem:[%s0 + $0x141] sm:$0xff]
    %v2039 = vld [vmem:[%s0 + $0x149] sm:$0xff]
    %v2040 = vld [vmem:[%s0 + $0x151] sm:$0xff]
    %v2041 = vld [vmem:[%s0 + $0x159] sm:$0xff]
    %v2042 = vld [vmem:[%s0 + $0x161] sm:$0xff]
    %v2043 = vld [vmem:[%s0 + $0x169] sm:$0xff]
    %v2044 = vld [vmem:[%s0 + $0x171] sm:$0xff]
    %v2045 = vld [vmem:[%s0 + $0x179] sm:$0xff]
    %v2046 = vld [vmem:[%s0 + $0x181] sm:$0xff]
    %v2047 = vld [vmem:[%s0 + $0x189] sm:$0xff]
    %v2048 = vld [vmem:[%s0 + $0x191] sm:$0xff]
    %v2049 = vld [vmem:[%s0 + $0x199] sm:$0xff]
    %v2050 = vld [vmem:[%s0 + $0x1a1] sm:$0xff]
    %v2051 = vld [vmem:[%s0 + $0x1a9] sm:$0xff]
    %v2052 = vld [vmem:[%s0 + $0x1b1] sm:$0xff]
    %v2053 = vld [vmem:[%s0 + $0x1b9] sm:$0xff]
    %v2054 = vld [vmem:[%s0 + $0x1c1] sm:$0xff]
    %v2055 = vld [vmem:[%s0 + $0x1c9] sm:$0xff]
    %v2056 = vld [vmem:[%s0 + $0x1d1] sm:$0xff]
    %v2057 = vld [vmem:[%s0 + $0x1d9] sm:$0xff]
    %v2058 = vld [vmem:[%s0 + $0x1e1] sm:$0xff]
    %v2059 = vld [vmem:[%s0 + $0x1e9] sm:$0xff]
    %v2060 = vld [vmem:[%s0 + $0x1f1] sm:$0xff]
    %v2061 = vld [vmem:[%s0 + $0x1f9] sm:$0xff]
    %v2062 = vld [vmem:[%s0 + $0x201] sm:$0xff]
    %v2063 = vmul.f32 %v434, %v1010
    %v2064 = vmul.f32 %v435, %v1011
    %v2065 = vmul.f32 %v436, %v1012
    %v2066 = vmul.f32 %v437, %v1013
    %v2067 = vmul.f32 %v438, %v1014
    %v2068 = vmul.f32 %v439, %v1015
    %v2069 = vmul.f32 %v440, %v1016
    %v2070 = vmul.f32 %v441, %v1017
    %v2071 = vmul.f32 %v442, %v1018
    %v2072 = vmul.f32 %v443, %v1019
    %v2073 = vmul.f32 %v444, %v1020
    %v2074 = vmul.f32 %v445, %v1021
    %v2075 = vmul.f32 %v446, %v1022
    %v2076 = vmul.f32 %v447, %v1023
    %v2077 = vmul.f32 %v448, %v1024
    %v2078 = vmul.f32 %v449, %v1025
    %v2079 = vmul.f32 %v450, %v1026
    %v2080 = vmul.f32 %v451, %v1027
    %v2081 = vmul.f32 %v452, %v1028
    %v2082 = vmul.f32 %v453, %v1029
    %v2083 = vmul.f32 %v454, %v1030
    %v2084 = vmul.f32 %v455, %v1031
    %v2085 = vmul.f32 %v456, %v1032
    %v2086 = vmul.f32 %v457, %v1033
    %v2087 = vmul.f32 %v458, %v1034
    %v2088 = vmul.f32 %v459, %v1035
    %v2089 = vmul.f32 %v460, %v1036
    %v2090 = vmul.f32 %v461, %v1037
    %v2091 = vmul.f32 %v462, %v1038
    %v2092 = vmul.f32 %v463, %v1039
    %v2093 = vmul.f32 %v464, %v1040
    %v2094 = vmul.f32 %v465, %v1041
    %v2095 = vmul.f32 %v466, %v1042
    %v2096 = vmul.f32 %v467, %v1043
    %v2097 = vmul.f32 %v468, %v1044
    %v2098 = vmul.f32 %v469, %v1045
    %v2099 = vmul.f32 %v470, %v1046
    %v2100 = vmul.f32 %v471, %v1047
    %v2101 = vmul.f32 %v472, %v1048
    %v2102 = vmul.f32 %v473, %v1049
    %v2103 = vmul.f32 %v474, %v1050
    %v2104 = vmul.f32 %v475, %v1051
    %v2105 = vmul.f32 %v476, %v1052
    %v2106 = vmul.f32 %v477, %v1053
    %v2107 = vmul.f32 %v478, %v1054
    %v2108 = vmul.f32 %v479, %v1055
    %v2109 = vmul.f32 %v480, %v1056
    %v2110 = vmul.f32 %v481, %v1057
    %v2111 = vmul.f32 %v482, %v1058
    %v2112 = vmul.f32 %v483, %v1059
    %v2113 = vmul.f32 %v484, %v1060
    %v2114 = vmul.f32 %v485, %v1061
    %v2115 = vmul.f32 %v486, %v1062
    %v2116 = vmul.f32 %v487, %v1063
    %v2117 = vmul.f32 %v488, %v1064
    %v2118 = vmul.f32 %v489, %v1065
    %v2119 = vmul.f32 %v490, %v1066
    %v2120 = vmul.f32 %v491, %v1067
    %v2121 = vmul.f32 %v492, %v1068
    %v2122 = vmul.f32 %v493, %v1069
    %v2123 = vmul.f32 %v494, %v1070
    %v2124 = vmul.f32 %v495, %v1071
    %v2125 = vmul.f32 %v496, %v1072
    %v2126 = vmul.f32 %v497, %v1073
    %v2127 = vmul.f32 %v1999, %v2063
    %v2128 = vmul.f32 %v2000, %v2064
    %v2129 = vmul.f32 %v2001, %v2065
    %v2130 = vmul.f32 %v2002, %v2066
    %v2131 = vmul.f32 %v2003, %v2067
    %v2132 = vmul.f32 %v2004, %v2068
    %v2133 = vmul.f32 %v2005, %v2069
    %v2134 = vmul.f32 %v2006, %v2070
    %v2135 = vmul.f32 %v2007, %v2071
    %v2136 = vmul.f32 %v2008, %v2072
    %v2137 = vmul.f32 %v2009, %v2073
    %v2138 = vmul.f32 %v2010, %v2074
    %v2139 = vmul.f32 %v2011, %v2075
    %v2140 = vmul.f32 %v2012, %v2076
    %v2141 = vmul.f32 %v2013, %v2077
    %v2142 = vmul.f32 %v2014, %v2078
    %v2143 = vmul.f32 %v2015, %v2079
    %v2144 = vmul.f32 %v2016, %v2080
    %v2145 = vmul.f32 %v2017, %v2081
    %v2146 = vmul.f32 %v2018, %v2082
    %v2147 = vmul.f32 %v2019, %v2083
    %v2148 = vmul.f32 %v2020, %v2084
    %v2149 = vmul.f32 %v2021, %v2085
    %v2150 = vmul.f32 %v2022, %v2086
    %v2151 = vmul.f32 %v2023, %v2087
    %v2152 = vmul.f32 %v2024, %v2088
    %v2153 = vmul.f32 %v2025, %v2089
    %v2154 = vmul.f32 %v2026, %v2090
    %v2155 = vmul.f32 %v2027, %v2091
    %v2156 = vmul.f32 %v2028, %v2092
    %v2157 = vmul.f32 %v2029, %v2093
    %v2158 = vmul.f32 %v2030, %v2094
    %v2159 = vmul.f32 %v2031, %v2095
    %v2160 = vmul.f32 %v2032, %v2096
    %v2161 = vmul.f32 %v2033, %v2097
    %v2162 = vmul.f32 %v2034, %v2098
    %v2163 = vmul.f32 %v2035, %v2099
    %v2164 = vmul.f32 %v2036, %v2100
    %v2165 = vmul.f32 %v2037, %v2101
    %v2166 = vmul.f32 %v2038, %v2102
    %v2167 = vmul.f32 %v2039, %v2103
    %v2168 = vmul.f32 %v2040, %v2104
    %v2169 = vmul.f32 %v2041, %v2105
    %v2170 = vmul.f32 %v2042, %v2106
    %v2171 = vmul.f32 %v2043, %v2107
    %v2172 = vmul.f32 %v2044, %v2108
    %v2173 = vmul.f32 %v2045, %v2109
    %v2174 = vmul.f32 %v2046, %v2110
    %v2175 = vmul.f32 %v2047, %v2111
    %v2176 = vmul.f32 %v2048, %v2112
    %v2177 = vmul.f32 %v2049, %v2113
    %v2178 = vmul.f32 %v2050, %v2114
    %v2179 = vmul.f32 %v2051, %v2115
    %v2180 = vmul.f32 %v2052, %v2116
    %v2181 = vmul.f32 %v2053, %v2117
    %v2182 = vmul.f32 %v2054, %v2118
    %v2183 = vmul.f32 %v2055, %v2119
    %v2184 = vmul.f32 %v2056, %v2120
    %v2185 = vmul.f32 %v2057, %v2121
    %v2186 = vmul.f32 %v2058, %v2122
    %v2187 = vmul.f32 %v2059, %v2123
    %v2188 = vmul.f32 %v2060, %v2124
    %v2189 = vmul.f32 %v2061, %v2125
    %v2190 = vmul.f32 %v2062, %v2126
    %v2191 = vpack.c.bf16 %v2128, %v2127
    %v2192 = vpack.c.bf16 %v2130, %v2129
    %v2193 = vpack.c.bf16 %v2132, %v2131
    %v2194 = vpack.c.bf16 %v2134, %v2133
    %v2195 = vpack.c.bf16 %v2136, %v2135
    %v2196 = vpack.c.bf16 %v2138, %v2137
    %v2197 = vpack.c.bf16 %v2140, %v2139
    %v2198 = vpack.c.bf16 %v2142, %v2141
    %v2199 = vpack.c.bf16 %v2144, %v2143
    %v2200 = vpack.c.bf16 %v2146, %v2145
    %v2201 = vpack.c.bf16 %v2148, %v2147
    %v2202 = vpack.c.bf16 %v2150, %v2149
    %v2203 = vpack.c.bf16 %v2152, %v2151
    %v2204 = vpack.c.bf16 %v2154, %v2153
    %v2205 = vpack.c.bf16 %v2156, %v2155
    %v2206 = vpack.c.bf16 %v2158, %v2157
    %v2207 = vpack.c.bf16 %v2160, %v2159
    %v2208 = vpack.c.bf16 %v2162, %v2161
    %v2209 = vpack.c.bf16 %v2164, %v2163
    %v2210 = vpack.c.bf16 %v2166, %v2165
    %v2211 = vpack.c.bf16 %v2168, %v2167
    %v2212 = vpack.c.bf16 %v2170, %v2169
    %v2213 = vpack.c.bf16 %v2172, %v2171
    %v2214 = vpack.c.bf16 %v2174, %v2173
    %v2215 = vpack.c.bf16 %v2176, %v2175
    %v2216 = vpack.c.bf16 %v2178, %v2177
    %v2217 = vpack.c.bf16 %v2180, %v2179
    %v2218 = vpack.c.bf16 %v2182, %v2181
    %v2219 = vpack.c.bf16 %v2184, %v2183
    %v2220 = vpack.c.bf16 %v2186, %v2185
    %v2221 = vpack.c.bf16 %v2188, %v2187
    %v2222 = vpack.c.bf16 %v2190, %v2189
    %s2223 = scalar_lea.vmem %s1, 8
    %v2224 = vld [vmem:[%s2223] sm:$0xf]
    %v2226 = vsel %vm1461, %v2191, 0
    %v2229 = vsel %vm1461, %v2192, 0
    %v2232 = vsel %vm1461, %v2193, 0
    %v2235 = vsel %vm1461, %v2194, 0
    %v2238 = vsel %vm1461, %v2195, 0
    %v2241 = vsel %vm1461, %v2196, 0
    %v2244 = vsel %vm1461, %v2197, 0
    %v2247 = vsel %vm1461, %v2198, 0
    %v2250 = vsel %vm1461, %v2199, 0
    %v2253 = vsel %vm1461, %v2200, 0
    %v2256 = vsel %vm1461, %v2201, 0
    %v2259 = vsel %vm1461, %v2202, 0
    %v2262 = vsel %vm1461, %v2203, 0
    %v2265 = vsel %vm1461, %v2204, 0
    %v2268 = vsel %vm1461, %v2205, 0
    %v2271 = vsel %vm1461, %v2206, 0
    %v2274 = vsel %vm1461, %v2207, 0
    %v2277 = vsel %vm1461, %v2208, 0
    %v2280 = vsel %vm1461, %v2209, 0
    %v2283 = vsel %vm1461, %v2210, 0
    %v2286 = vsel %vm1461, %v2211, 0
    %v2289 = vsel %vm1461, %v2212, 0
    %v2292 = vsel %vm1461, %v2213, 0
    %v2295 = vsel %vm1461, %v2214, 0
    %v2298 = vsel %vm1461, %v2215, 0
    %v2301 = vsel %vm1461, %v2216, 0
    %v2304 = vsel %vm1461, %v2217, 0
    %v2307 = vsel %vm1461, %v2218, 0
    %v2310 = vsel %vm1461, %v2219, 0
    %v2313 = vsel %vm1461, %v2220, 0
    %v2316 = vsel %vm1461, %v2221, 0
    %v2319 = vsel %vm1461, %v2222, 0
    %v2322 = vsel %vm1558, %v2224, 0
    %2324 = vmatpush.bf16.msra.mxu0 0
    %2325 = vmatpush.bf16.msra.mxu0 0
    %2326 = vmatpush.bf16.msra.mxu0 0
    %2327 = vmatpush.bf16.msra.mxu0 0
    %2328 = vmatpush.bf16.msra.mxu0 0
    %2329 = vmatpush.bf16.msra.mxu0 0
    %2330 = vmatpush.bf16.msra.mxu0 0
    %2331 = vmatpush.bf16.msra.mxu0 %v2322
    %2332 = vmatmul.bf16.gmra.mxu0 %v2226
    %v2333 = vpop.f32.mrf.mxu0
    %v2334 = vadd.f32 0.0, %v2333
    %v2335 = vpop.f32.mrf.mxu0
    %v2336 = vadd.f32 0.0, %v2335
    %2337 = vmatmul.bf16.gmra.mxu0 %v2229
    %v2338 = vpop.f32.mrf.mxu0
    %v2339 = vadd.f32 0.0, %v2338
    %v2340 = vpop.f32.mrf.mxu0
    %v2341 = vadd.f32 0.0, %v2340
    %2342 = vmatmul.bf16.gmra.mxu0 %v2232
    %v2343 = vpop.f32.mrf.mxu0
    %v2344 = vadd.f32 0.0, %v2343
    %v2345 = vpop.f32.mrf.mxu0
    %v2346 = vadd.f32 0.0, %v2345
    %2347 = vmatmul.bf16.gmra.mxu0 %v2235
    %v2348 = vpop.f32.mrf.mxu0
    %v2349 = vadd.f32 0.0, %v2348
    %v2350 = vpop.f32.mrf.mxu0
    %v2351 = vadd.f32 0.0, %v2350
    %2352 = vmatmul.bf16.gmra.mxu0 %v2238
    %v2353 = vpop.f32.mrf.mxu0
    %v2354 = vadd.f32 0.0, %v2353
    %v2355 = vpop.f32.mrf.mxu0
    %v2356 = vadd.f32 0.0, %v2355
    %2357 = vmatmul.bf16.gmra.mxu0 %v2241
    %v2358 = vpop.f32.mrf.mxu0
    %v2359 = vadd.f32 0.0, %v2358
    %v2360 = vpop.f32.mrf.mxu0
    %v2361 = vadd.f32 0.0, %v2360
    %2362 = vmatmul.bf16.gmra.mxu0 %v2244
    %v2363 = vpop.f32.mrf.mxu0
    %v2364 = vadd.f32 0.0, %v2363
    %v2365 = vpop.f32.mrf.mxu0
    %v2366 = vadd.f32 0.0, %v2365
    %2367 = vmatmul.bf16.gmra.mxu0 %v2247
    %v2368 = vpop.f32.mrf.mxu0
    %v2369 = vadd.f32 0.0, %v2368
    %v2370 = vpop.f32.mrf.mxu0
    %v2371 = vadd.f32 0.0, %v2370
    %2372 = vmatmul.bf16.gmra.mxu0 %v2250
    %v2373 = vpop.f32.mrf.mxu0
    %v2374 = vadd.f32 0.0, %v2373
    %v2375 = vpop.f32.mrf.mxu0
    %v2376 = vadd.f32 0.0, %v2375
    %2377 = vmatmul.bf16.gmra.mxu0 %v2253
    %v2378 = vpop.f32.mrf.mxu0
    %v2379 = vadd.f32 0.0, %v2378
    %v2380 = vpop.f32.mrf.mxu0
    %v2381 = vadd.f32 0.0, %v2380
    %2382 = vmatmul.bf16.gmra.mxu0 %v2256
    %v2383 = vpop.f32.mrf.mxu0
    %v2384 = vadd.f32 0.0, %v2383
    %v2385 = vpop.f32.mrf.mxu0
    %v2386 = vadd.f32 0.0, %v2385
    %2387 = vmatmul.bf16.gmra.mxu0 %v2259
    %v2388 = vpop.f32.mrf.mxu0
    %v2389 = vadd.f32 0.0, %v2388
    %v2390 = vpop.f32.mrf.mxu0
    %v2391 = vadd.f32 0.0, %v2390
    %2392 = vmatmul.bf16.gmra.mxu0 %v2262
    %v2393 = vpop.f32.mrf.mxu0
    %v2394 = vadd.f32 0.0, %v2393
    %v2395 = vpop.f32.mrf.mxu0
    %v2396 = vadd.f32 0.0, %v2395
    %2397 = vmatmul.bf16.gmra.mxu0 %v2265
    %v2398 = vpop.f32.mrf.mxu0
    %v2399 = vadd.f32 0.0, %v2398
    %v2400 = vpop.f32.mrf.mxu0
    %v2401 = vadd.f32 0.0, %v2400
    %2402 = vmatmul.bf16.gmra.mxu0 %v2268
    %v2403 = vpop.f32.mrf.mxu0
    %v2404 = vadd.f32 0.0, %v2403
    %v2405 = vpop.f32.mrf.mxu0
    %v2406 = vadd.f32 0.0, %v2405
    %2407 = vmatmul.bf16.gmra.mxu0 %v2271
    %v2408 = vpop.f32.mrf.mxu0
    %v2409 = vadd.f32 0.0, %v2408
    %v2410 = vpop.f32.mrf.mxu0
    %v2411 = vadd.f32 0.0, %v2410
    %2412 = vmatmul.bf16.gmra.mxu0 %v2274
    %v2413 = vpop.f32.mrf.mxu0
    %v2414 = vadd.f32 0.0, %v2413
    %v2415 = vpop.f32.mrf.mxu0
    %v2416 = vadd.f32 0.0, %v2415
    %2417 = vmatmul.bf16.gmra.mxu0 %v2277
    %v2418 = vpop.f32.mrf.mxu0
    %v2419 = vadd.f32 0.0, %v2418
    %v2420 = vpop.f32.mrf.mxu0
    %v2421 = vadd.f32 0.0, %v2420
    %2422 = vmatmul.bf16.gmra.mxu0 %v2280
    %v2423 = vpop.f32.mrf.mxu0
    %v2424 = vadd.f32 0.0, %v2423
    %v2425 = vpop.f32.mrf.mxu0
    %v2426 = vadd.f32 0.0, %v2425
    %2427 = vmatmul.bf16.gmra.mxu0 %v2283
    %v2428 = vpop.f32.mrf.mxu0
    %v2429 = vadd.f32 0.0, %v2428
    %v2430 = vpop.f32.mrf.mxu0
    %v2431 = vadd.f32 0.0, %v2430
    %2432 = vmatmul.bf16.gmra.mxu0 %v2286
    %v2433 = vpop.f32.mrf.mxu0
    %v2434 = vadd.f32 0.0, %v2433
    %v2435 = vpop.f32.mrf.mxu0
    %v2436 = vadd.f32 0.0, %v2435
    %2437 = vmatmul.bf16.gmra.mxu0 %v2289
    %v2438 = vpop.f32.mrf.mxu0
    %v2439 = vadd.f32 0.0, %v2438
    %v2440 = vpop.f32.mrf.mxu0
    %v2441 = vadd.f32 0.0, %v2440
    %2442 = vmatmul.bf16.gmra.mxu0 %v2292
    %v2443 = vpop.f32.mrf.mxu0
    %v2444 = vadd.f32 0.0, %v2443
    %v2445 = vpop.f32.mrf.mxu0
    %v2446 = vadd.f32 0.0, %v2445
    %2447 = vmatmul.bf16.gmra.mxu0 %v2295
    %v2448 = vpop.f32.mrf.mxu0
    %v2449 = vadd.f32 0.0, %v2448
    %v2450 = vpop.f32.mrf.mxu0
    %v2451 = vadd.f32 0.0, %v2450
    %2452 = vmatmul.bf16.gmra.mxu0 %v2298
    %v2453 = vpop.f32.mrf.mxu0
    %v2454 = vadd.f32 0.0, %v2453
    %v2455 = vpop.f32.mrf.mxu0
    %v2456 = vadd.f32 0.0, %v2455
    %2457 = vmatmul.bf16.gmra.mxu0 %v2301
    %v2458 = vpop.f32.mrf.mxu0
    %v2459 = vadd.f32 0.0, %v2458
    %v2460 = vpop.f32.mrf.mxu0
    %v2461 = vadd.f32 0.0, %v2460
    %2462 = vmatmul.bf16.gmra.mxu0 %v2304
    %v2463 = vpop.f32.mrf.mxu0
    %v2464 = vadd.f32 0.0, %v2463
    %v2465 = vpop.f32.mrf.mxu0
    %v2466 = vadd.f32 0.0, %v2465
    %2467 = vmatmul.bf16.gmra.mxu0 %v2307
    %v2468 = vpop.f32.mrf.mxu0
    %v2469 = vadd.f32 0.0, %v2468
    %v2470 = vpop.f32.mrf.mxu0
    %v2471 = vadd.f32 0.0, %v2470
    %2472 = vmatmul.bf16.gmra.mxu0 %v2310
    %v2473 = vpop.f32.mrf.mxu0
    %v2474 = vadd.f32 0.0, %v2473
    %v2475 = vpop.f32.mrf.mxu0
    %v2476 = vadd.f32 0.0, %v2475
    %2477 = vmatmul.bf16.gmra.mxu0 %v2313
    %v2478 = vpop.f32.mrf.mxu0
    %v2479 = vadd.f32 0.0, %v2478
    %v2480 = vpop.f32.mrf.mxu0
    %v2481 = vadd.f32 0.0, %v2480
    %2482 = vmatmul.bf16.gmra.mxu0 %v2316
    %v2483 = vpop.f32.mrf.mxu0
    %v2484 = vadd.f32 0.0, %v2483
    %v2485 = vpop.f32.mrf.mxu0
    %v2486 = vadd.f32 0.0, %v2485
    %2487 = vmatmul.bf16.gmra.mxu0 %v2319
    %v2488 = vpop.f32.mrf.mxu0
    %v2489 = vadd.f32 0.0, %v2488
    %v2490 = vpop.f32.mrf.mxu0
    %v2491 = vadd.f32 0.0, %v2490
    %2492 = vdwg.mxu0
    %v2493 = vadd.f32 %v1840, %v2334
    %v2494 = vadd.f32 %v1842, %v2336
    %v2495 = vadd.f32 %v1845, %v2339
    %v2496 = vadd.f32 %v1847, %v2341
    %v2497 = vadd.f32 %v1850, %v2344
    %v2498 = vadd.f32 %v1852, %v2346
    %v2499 = vadd.f32 %v1855, %v2349
    %v2500 = vadd.f32 %v1857, %v2351
    %v2501 = vadd.f32 %v1860, %v2354
    %v2502 = vadd.f32 %v1862, %v2356
    %v2503 = vadd.f32 %v1865, %v2359
    %v2504 = vadd.f32 %v1867, %v2361
    %v2505 = vadd.f32 %v1870, %v2364
    %v2506 = vadd.f32 %v1872, %v2366
    %v2507 = vadd.f32 %v1875, %v2369
    %v2508 = vadd.f32 %v1877, %v2371
    %v2509 = vadd.f32 %v1880, %v2374
    %v2510 = vadd.f32 %v1882, %v2376
    %v2511 = vadd.f32 %v1885, %v2379
    %v2512 = vadd.f32 %v1887, %v2381
    %v2513 = vadd.f32 %v1890, %v2384
    %v2514 = vadd.f32 %v1892, %v2386
    %v2515 = vadd.f32 %v1895, %v2389
    %v2516 = vadd.f32 %v1897, %v2391
    %v2517 = vadd.f32 %v1900, %v2394
    %v2518 = vadd.f32 %v1902, %v2396
    %v2519 = vadd.f32 %v1905, %v2399
    %v2520 = vadd.f32 %v1907, %v2401
    %v2521 = vadd.f32 %v1910, %v2404
    %v2522 = vadd.f32 %v1912, %v2406
    %v2523 = vadd.f32 %v1915, %v2409
    %v2524 = vadd.f32 %v1917, %v2411
    %v2525 = vadd.f32 %v1920, %v2414
    %v2526 = vadd.f32 %v1922, %v2416
    %v2527 = vadd.f32 %v1925, %v2419
    %v2528 = vadd.f32 %v1927, %v2421
    %v2529 = vadd.f32 %v1930, %v2424
    %v2530 = vadd.f32 %v1932, %v2426
    %v2531 = vadd.f32 %v1935, %v2429
    %v2532 = vadd.f32 %v1937, %v2431
    %v2533 = vadd.f32 %v1940, %v2434
    %v2534 = vadd.f32 %v1942, %v2436
    %v2535 = vadd.f32 %v1945, %v2439
    %v2536 = vadd.f32 %v1947, %v2441
    %v2537 = vadd.f32 %v1950, %v2444
    %v2538 = vadd.f32 %v1952, %v2446
    %v2539 = vadd.f32 %v1955, %v2449
    %v2540 = vadd.f32 %v1957, %v2451
    %v2541 = vadd.f32 %v1960, %v2454
    %v2542 = vadd.f32 %v1962, %v2456
    %v2543 = vadd.f32 %v1965, %v2459
    %v2544 = vadd.f32 %v1967, %v2461
    %v2545 = vadd.f32 %v1970, %v2464
    %v2546 = vadd.f32 %v1972, %v2466
    %v2547 = vadd.f32 %v1975, %v2469
    %v2548 = vadd.f32 %v1977, %v2471
    %v2549 = vadd.f32 %v1980, %v2474
    %v2550 = vadd.f32 %v1982, %v2476
    %v2551 = vadd.f32 %v1985, %v2479
    %v2552 = vadd.f32 %v1987, %v2481
    %v2553 = vadd.f32 %v1990, %v2484
    %v2554 = vadd.f32 %v1992, %v2486
    %v2555 = vadd.f32 %v1995, %v2489
    %v2556 = vadd.f32 %v1997, %v2491
    %v2557 = vld [vmem:[%s0 + $0x17] sm:$0xff]
    %v2558 = vld [vmem:[%s0 + $0x1f] sm:$0xff]
    %v2559 = vld [vmem:[%s0 + $0x27] sm:$0xff]
    %v2560 = vld [vmem:[%s0 + $0x2f] sm:$0xff]
    %v2561 = vld [vmem:[%s0 + $0x37] sm:$0xff]
    %v2562 = vld [vmem:[%s0 + $0x3f] sm:$0xff]
    %v2563 = vld [vmem:[%s0 + $0x47] sm:$0xff]
    %v2564 = vld [vmem:[%s0 + $0x4f] sm:$0xff]
    %v2565 = vld [vmem:[%s0 + $0x57] sm:$0xff]
    %v2566 = vld [vmem:[%s0 + $0x5f] sm:$0xff]
    %v2567 = vld [vmem:[%s0 + $0x67] sm:$0xff]
    %v2568 = vld [vmem:[%s0 + $0x6f] sm:$0xff]
    %v2569 = vld [vmem:[%s0 + $0x77] sm:$0xff]
    %v2570 = vld [vmem:[%s0 + $0x7f] sm:$0xff]
    %v2571 = vld [vmem:[%s0 + $0x87] sm:$0xff]
    %v2572 = vld [vmem:[%s0 + $0x8f] sm:$0xff]
    %v2573 = vld [vmem:[%s0 + $0x97] sm:$0xff]
    %v2574 = vld [vmem:[%s0 + $0x9f] sm:$0xff]
    %v2575 = vld [vmem:[%s0 + $0xa7] sm:$0xff]
    %v2576 = vld [vmem:[%s0 + $0xaf] sm:$0xff]
    %v2577 = vld [vmem:[%s0 + $0xb7] sm:$0xff]
    %v2578 = vld [vmem:[%s0 + $0xbf] sm:$0xff]
    %v2579 = vld [vmem:[%s0 + $0xc7] sm:$0xff]
    %v2580 = vld [vmem:[%s0 + $0xcf] sm:$0xff]
    %v2581 = vld [vmem:[%s0 + $0xd7] sm:$0xff]
    %v2582 = vld [vmem:[%s0 + $0xdf] sm:$0xff]
    %v2583 = vld [vmem:[%s0 + $0xe7] sm:$0xff]
    %v2584 = vld [vmem:[%s0 + $0xef] sm:$0xff]
    %v2585 = vld [vmem:[%s0 + $0xf7] sm:$0xff]
    %v2586 = vld [vmem:[%s0 + $0xff] sm:$0xff]
    %v2587 = vld [vmem:[%s0 + $0x107] sm:$0xff]
    %v2588 = vld [vmem:[%s0 + $0x10f] sm:$0xff]
    %v2589 = vld [vmem:[%s0 + $0x117] sm:$0xff]
    %v2590 = vld [vmem:[%s0 + $0x11f] sm:$0xff]
    %v2591 = vld [vmem:[%s0 + $0x127] sm:$0xff]
    %v2592 = vld [vmem:[%s0 + $0x12f] sm:$0xff]
    %v2593 = vld [vmem:[%s0 + $0x137] sm:$0xff]
    %v2594 = vld [vmem:[%s0 + $0x13f] sm:$0xff]
    %v2595 = vld [vmem:[%s0 + $0x147] sm:$0xff]
    %v2596 = vld [vmem:[%s0 + $0x14f] sm:$0xff]
    %v2597 = vld [vmem:[%s0 + $0x157] sm:$0xff]
    %v2598 = vld [vmem:[%s0 + $0x15f] sm:$0xff]
    %v2599 = vld [vmem:[%s0 + $0x167] sm:$0xff]
    %v2600 = vld [vmem:[%s0 + $0x16f] sm:$0xff]
    %v2601 = vld [vmem:[%s0 + $0x177] sm:$0xff]
    %v2602 = vld [vmem:[%s0 + $0x17f] sm:$0xff]
    %v2603 = vld [vmem:[%s0 + $0x187] sm:$0xff]
    %v2604 = vld [vmem:[%s0 + $0x18f] sm:$0xff]
    %v2605 = vld [vmem:[%s0 + $0x197] sm:$0xff]
    %v2606 = vld [vmem:[%s0 + $0x19f] sm:$0xff]
    %v2607 = vld [vmem:[%s0 + $0x1a7] sm:$0xff]
    %v2608 = vld [vmem:[%s0 + $0x1af] sm:$0xff]
    %v2609 = vld [vmem:[%s0 + $0x1b7] sm:$0xff]
    %v2610 = vld [vmem:[%s0 + $0x1bf] sm:$0xff]
    %v2611 = vld [vmem:[%s0 + $0x1c7] sm:$0xff]
    %v2612 = vld [vmem:[%s0 + $0x1cf] sm:$0xff]
    %v2613 = vld [vmem:[%s0 + $0x1d7] sm:$0xff]
    %v2614 = vld [vmem:[%s0 + $0x1df] sm:$0xff]
    %v2615 = vld [vmem:[%s0 + $0x1e7] sm:$0xff]
    %v2616 = vld [vmem:[%s0 + $0x1ef] sm:$0xff]
    %v2617 = vld [vmem:[%s0 + $0x1f7] sm:$0xff]
    %v2618 = vld [vmem:[%s0 + $0x1ff] sm:$0xff]
    %v2619 = vld [vmem:[%s0 + $0x207] sm:$0xff]
    %v2620 = vld [vmem:[%s0 + $0x20f] sm:$0xff]
    %v2621 = vmul.f32 %v2557, %v818
    %v2622 = vmul.f32 %v2558, %v819
    %v2623 = vmul.f32 %v2559, %v820
    %v2624 = vmul.f32 %v2560, %v821
    %v2625 = vmul.f32 %v2561, %v822
    %v2626 = vmul.f32 %v2562, %v823
    %v2627 = vmul.f32 %v2563, %v824
    %v2628 = vmul.f32 %v2564, %v825
    %v2629 = vmul.f32 %v2565, %v826
    %v2630 = vmul.f32 %v2566, %v827
    %v2631 = vmul.f32 %v2567, %v828
    %v2632 = vmul.f32 %v2568, %v829
    %v2633 = vmul.f32 %v2569, %v830
    %v2634 = vmul.f32 %v2570, %v831
    %v2635 = vmul.f32 %v2571, %v832
    %v2636 = vmul.f32 %v2572, %v833
    %v2637 = vmul.f32 %v2573, %v834
    %v2638 = vmul.f32 %v2574, %v835
    %v2639 = vmul.f32 %v2575, %v836
    %v2640 = vmul.f32 %v2576, %v837
    %v2641 = vmul.f32 %v2577, %v838
    %v2642 = vmul.f32 %v2578, %v839
    %v2643 = vmul.f32 %v2579, %v840
    %v2644 = vmul.f32 %v2580, %v841
    %v2645 = vmul.f32 %v2581, %v842
    %v2646 = vmul.f32 %v2582, %v843
    %v2647 = vmul.f32 %v2583, %v844
    %v2648 = vmul.f32 %v2584, %v845
    %v2649 = vmul.f32 %v2585, %v846
    %v2650 = vmul.f32 %v2586, %v847
    %v2651 = vmul.f32 %v2587, %v848
    %v2652 = vmul.f32 %v2588, %v849
    %v2653 = vmul.f32 %v2589, %v850
    %v2654 = vmul.f32 %v2590, %v851
    %v2655 = vmul.f32 %v2591, %v852
    %v2656 = vmul.f32 %v2592, %v853
    %v2657 = vmul.f32 %v2593, %v854
    %v2658 = vmul.f32 %v2594, %v855
    %v2659 = vmul.f32 %v2595, %v856
    %v2660 = vmul.f32 %v2596, %v857
    %v2661 = vmul.f32 %v2597, %v858
    %v2662 = vmul.f32 %v2598, %v859
    %v2663 = vmul.f32 %v2599, %v860
    %v2664 = vmul.f32 %v2600, %v861
    %v2665 = vmul.f32 %v2601, %v862
    %v2666 = vmul.f32 %v2602, %v863
    %v2667 = vmul.f32 %v2603, %v864
    %v2668 = vmul.f32 %v2604, %v865
    %v2669 = vmul.f32 %v2605, %v866
    %v2670 = vmul.f32 %v2606, %v867
    %v2671 = vmul.f32 %v2607, %v868
    %v2672 = vmul.f32 %v2608, %v869
    %v2673 = vmul.f32 %v2609, %v870
    %v2674 = vmul.f32 %v2610, %v871
    %v2675 = vmul.f32 %v2611, %v872
    %v2676 = vmul.f32 %v2612, %v873
    %v2677 = vmul.f32 %v2613, %v874
    %v2678 = vmul.f32 %v2614, %v875
    %v2679 = vmul.f32 %v2615, %v876
    %v2680 = vmul.f32 %v2616, %v877
    %v2681 = vmul.f32 %v2617, %v878
    %v2682 = vmul.f32 %v2618, %v879
    %v2683 = vmul.f32 %v2619, %v880
    %v2684 = vmul.f32 %v2620, %v881
    %v2685 = vpack.c.bf16 %v2622, %v2621
    %v2686 = vpack.c.bf16 %v2624, %v2623
    %v2687 = vpack.c.bf16 %v2626, %v2625
    %v2688 = vpack.c.bf16 %v2628, %v2627
    %v2689 = vpack.c.bf16 %v2630, %v2629
    %v2690 = vpack.c.bf16 %v2632, %v2631
    %v2691 = vpack.c.bf16 %v2634, %v2633
    %v2692 = vpack.c.bf16 %v2636, %v2635
    %v2693 = vpack.c.bf16 %v2638, %v2637
    %v2694 = vpack.c.bf16 %v2640, %v2639
    %v2695 = vpack.c.bf16 %v2642, %v2641
    %v2696 = vpack.c.bf16 %v2644, %v2643
    %v2697 = vpack.c.bf16 %v2646, %v2645
    %v2698 = vpack.c.bf16 %v2648, %v2647
    %v2699 = vpack.c.bf16 %v2650, %v2649
    %v2700 = vpack.c.bf16 %v2652, %v2651
    %v2701 = vpack.c.bf16 %v2654, %v2653
    %v2702 = vpack.c.bf16 %v2656, %v2655
    %v2703 = vpack.c.bf16 %v2658, %v2657
    %v2704 = vpack.c.bf16 %v2660, %v2659
    %v2705 = vpack.c.bf16 %v2662, %v2661
    %v2706 = vpack.c.bf16 %v2664, %v2663
    %v2707 = vpack.c.bf16 %v2666, %v2665
    %v2708 = vpack.c.bf16 %v2668, %v2667
    %v2709 = vpack.c.bf16 %v2670, %v2669
    %v2710 = vpack.c.bf16 %v2672, %v2671
    %v2711 = vpack.c.bf16 %v2674, %v2673
    %v2712 = vpack.c.bf16 %v2676, %v2675
    %v2713 = vpack.c.bf16 %v2678, %v2677
    %v2714 = vpack.c.bf16 %v2680, %v2679
    %v2715 = vpack.c.bf16 %v2682, %v2681
    %v2716 = vpack.c.bf16 %v2684, %v2683
    %s2717 = scalar_lea.vmem %s1, 12
    %v2718 = vld [vmem:[%s2717] sm:$0xf]
    %v2720 = vsel %vm1461, %v2685, 0
    %v2723 = vsel %vm1461, %v2686, 0
    %v2726 = vsel %vm1461, %v2687, 0
    %v2729 = vsel %vm1461, %v2688, 0
    %v2732 = vsel %vm1461, %v2689, 0
    %v2735 = vsel %vm1461, %v2690, 0
    %v2738 = vsel %vm1461, %v2691, 0
    %v2741 = vsel %vm1461, %v2692, 0
    %v2744 = vsel %vm1461, %v2693, 0
    %v2747 = vsel %vm1461, %v2694, 0
    %v2750 = vsel %vm1461, %v2695, 0
    %v2753 = vsel %vm1461, %v2696, 0
    %v2756 = vsel %vm1461, %v2697, 0
    %v2759 = vsel %vm1461, %v2698, 0
    %v2762 = vsel %vm1461, %v2699, 0
    %v2765 = vsel %vm1461, %v2700, 0
    %v2768 = vsel %vm1461, %v2701, 0
    %v2771 = vsel %vm1461, %v2702, 0
    %v2774 = vsel %vm1461, %v2703, 0
    %v2777 = vsel %vm1461, %v2704, 0
    %v2780 = vsel %vm1461, %v2705, 0
    %v2783 = vsel %vm1461, %v2706, 0
    %v2786 = vsel %vm1461, %v2707, 0
    %v2789 = vsel %vm1461, %v2708, 0
    %v2792 = vsel %vm1461, %v2709, 0
    %v2795 = vsel %vm1461, %v2710, 0
    %v2798 = vsel %vm1461, %v2711, 0
    %v2801 = vsel %vm1461, %v2712, 0
    %v2804 = vsel %vm1461, %v2713, 0
    %v2807 = vsel %vm1461, %v2714, 0
    %v2810 = vsel %vm1461, %v2715, 0
    %v2813 = vsel %vm1461, %v2716, 0
    %v2816 = vsel %vm1558, %v2718, 0
    %2818 = vmatpush.bf16.msra.mxu0 0
    %2819 = vmatpush.bf16.msra.mxu0 0
    %2820 = vmatpush.bf16.msra.mxu0 0
    %2821 = vmatpush.bf16.msra.mxu0 0
    %2822 = vmatpush.bf16.msra.mxu0 0
    %2823 = vmatpush.bf16.msra.mxu0 0
    %2824 = vmatpush.bf16.msra.mxu0 0
    %2825 = vmatpush.bf16.msra.mxu0 %v2816
    %2826 = vmatmul.bf16.gmra.mxu0 %v2720
    %v2827 = vpop.f32.mrf.mxu0
    %v2828 = vadd.f32 0.0, %v2827
    %v2829 = vpop.f32.mrf.mxu0
    %v2830 = vadd.f32 0.0, %v2829
    %2831 = vmatmul.bf16.gmra.mxu0 %v2723
    %v2832 = vpop.f32.mrf.mxu0
    %v2833 = vadd.f32 0.0, %v2832
    %v2834 = vpop.f32.mrf.mxu0
    %v2835 = vadd.f32 0.0, %v2834
    %2836 = vmatmul.bf16.gmra.mxu0 %v2726
    %v2837 = vpop.f32.mrf.mxu0
    %v2838 = vadd.f32 0.0, %v2837
    %v2839 = vpop.f32.mrf.mxu0
    %v2840 = vadd.f32 0.0, %v2839
    %2841 = vmatmul.bf16.gmra.mxu0 %v2729
    %v2842 = vpop.f32.mrf.mxu0
    %v2843 = vadd.f32 0.0, %v2842
    %v2844 = vpop.f32.mrf.mxu0
    %v2845 = vadd.f32 0.0, %v2844
    %2846 = vmatmul.bf16.gmra.mxu0 %v2732
    %v2847 = vpop.f32.mrf.mxu0
    %v2848 = vadd.f32 0.0, %v2847
    %v2849 = vpop.f32.mrf.mxu0
    %v2850 = vadd.f32 0.0, %v2849
    %2851 = vmatmul.bf16.gmra.mxu0 %v2735
    %v2852 = vpop.f32.mrf.mxu0
    %v2853 = vadd.f32 0.0, %v2852
    %v2854 = vpop.f32.mrf.mxu0
    %v2855 = vadd.f32 0.0, %v2854
    %2856 = vmatmul.bf16.gmra.mxu0 %v2738
    %v2857 = vpop.f32.mrf.mxu0
    %v2858 = vadd.f32 0.0, %v2857
    %v2859 = vpop.f32.mrf.mxu0
    %v2860 = vadd.f32 0.0, %v2859
    %2861 = vmatmul.bf16.gmra.mxu0 %v2741
    %v2862 = vpop.f32.mrf.mxu0
    %v2863 = vadd.f32 0.0, %v2862
    %v2864 = vpop.f32.mrf.mxu0
    %v2865 = vadd.f32 0.0, %v2864
    %2866 = vmatmul.bf16.gmra.mxu0 %v2744
    %v2867 = vpop.f32.mrf.mxu0
    %v2868 = vadd.f32 0.0, %v2867
    %v2869 = vpop.f32.mrf.mxu0
    %v2870 = vadd.f32 0.0, %v2869
    %2871 = vmatmul.bf16.gmra.mxu0 %v2747
    %v2872 = vpop.f32.mrf.mxu0
    %v2873 = vadd.f32 0.0, %v2872
    %v2874 = vpop.f32.mrf.mxu0
    %v2875 = vadd.f32 0.0, %v2874
    %2876 = vmatmul.bf16.gmra.mxu0 %v2750
    %v2877 = vpop.f32.mrf.mxu0
    %v2878 = vadd.f32 0.0, %v2877
    %v2879 = vpop.f32.mrf.mxu0
    %v2880 = vadd.f32 0.0, %v2879
    %2881 = vmatmul.bf16.gmra.mxu0 %v2753
    %v2882 = vpop.f32.mrf.mxu0
    %v2883 = vadd.f32 0.0, %v2882
    %v2884 = vpop.f32.mrf.mxu0
    %v2885 = vadd.f32 0.0, %v2884
    %2886 = vmatmul.bf16.gmra.mxu0 %v2756
    %v2887 = vpop.f32.mrf.mxu0
    %v2888 = vadd.f32 0.0, %v2887
    %v2889 = vpop.f32.mrf.mxu0
    %v2890 = vadd.f32 0.0, %v2889
    %2891 = vmatmul.bf16.gmra.mxu0 %v2759
    %v2892 = vpop.f32.mrf.mxu0
    %v2893 = vadd.f32 0.0, %v2892
    %v2894 = vpop.f32.mrf.mxu0
    %v2895 = vadd.f32 0.0, %v2894
    %2896 = vmatmul.bf16.gmra.mxu0 %v2762
    %v2897 = vpop.f32.mrf.mxu0
    %v2898 = vadd.f32 0.0, %v2897
    %v2899 = vpop.f32.mrf.mxu0
    %v2900 = vadd.f32 0.0, %v2899
    %2901 = vmatmul.bf16.gmra.mxu0 %v2765
    %v2902 = vpop.f32.mrf.mxu0
    %v2903 = vadd.f32 0.0, %v2902
    %v2904 = vpop.f32.mrf.mxu0
    %v2905 = vadd.f32 0.0, %v2904
    %2906 = vmatmul.bf16.gmra.mxu0 %v2768
    %v2907 = vpop.f32.mrf.mxu0
    %v2908 = vadd.f32 0.0, %v2907
    %v2909 = vpop.f32.mrf.mxu0
    %v2910 = vadd.f32 0.0, %v2909
    %2911 = vmatmul.bf16.gmra.mxu0 %v2771
    %v2912 = vpop.f32.mrf.mxu0
    %v2913 = vadd.f32 0.0, %v2912
    %v2914 = vpop.f32.mrf.mxu0
    %v2915 = vadd.f32 0.0, %v2914
    %2916 = vmatmul.bf16.gmra.mxu0 %v2774
    %v2917 = vpop.f32.mrf.mxu0
    %v2918 = vadd.f32 0.0, %v2917
    %v2919 = vpop.f32.mrf.mxu0
    %v2920 = vadd.f32 0.0, %v2919
    %2921 = vmatmul.bf16.gmra.mxu0 %v2777
    %v2922 = vpop.f32.mrf.mxu0
    %v2923 = vadd.f32 0.0, %v2922
    %v2924 = vpop.f32.mrf.mxu0
    %v2925 = vadd.f32 0.0, %v2924
    %2926 = vmatmul.bf16.gmra.mxu0 %v2780
    %v2927 = vpop.f32.mrf.mxu0
    %v2928 = vadd.f32 0.0, %v2927
    %v2929 = vpop.f32.mrf.mxu0
    %v2930 = vadd.f32 0.0, %v2929
    %2931 = vmatmul.bf16.gmra.mxu0 %v2783
    %v2932 = vpop.f32.mrf.mxu0
    %v2933 = vadd.f32 0.0, %v2932
    %v2934 = vpop.f32.mrf.mxu0
    %v2935 = vadd.f32 0.0, %v2934
    %2936 = vmatmul.bf16.gmra.mxu0 %v2786
    %v2937 = vpop.f32.mrf.mxu0
    %v2938 = vadd.f32 0.0, %v2937
    %v2939 = vpop.f32.mrf.mxu0
    %v2940 = vadd.f32 0.0, %v2939
    %2941 = vmatmul.bf16.gmra.mxu0 %v2789
    %v2942 = vpop.f32.mrf.mxu0
    %v2943 = vadd.f32 0.0, %v2942
    %v2944 = vpop.f32.mrf.mxu0
    %v2945 = vadd.f32 0.0, %v2944
    %2946 = vmatmul.bf16.gmra.mxu0 %v2792
    %v2947 = vpop.f32.mrf.mxu0
    %v2948 = vadd.f32 0.0, %v2947
    %v2949 = vpop.f32.mrf.mxu0
    %v2950 = vadd.f32 0.0, %v2949
    %2951 = vmatmul.bf16.gmra.mxu0 %v2795
    %v2952 = vpop.f32.mrf.mxu0
    %v2953 = vadd.f32 0.0, %v2952
    %v2954 = vpop.f32.mrf.mxu0
    %v2955 = vadd.f32 0.0, %v2954
    %2956 = vmatmul.bf16.gmra.mxu0 %v2798
    %v2957 = vpop.f32.mrf.mxu0
    %v2958 = vadd.f32 0.0, %v2957
    %v2959 = vpop.f32.mrf.mxu0
    %v2960 = vadd.f32 0.0, %v2959
    %2961 = vmatmul.bf16.gmra.mxu0 %v2801
    %v2962 = vpop.f32.mrf.mxu0
    %v2963 = vadd.f32 0.0, %v2962
    %v2964 = vpop.f32.mrf.mxu0
    %v2965 = vadd.f32 0.0, %v2964
    %2966 = vmatmul.bf16.gmra.mxu0 %v2804
    %v2967 = vpop.f32.mrf.mxu0
    %v2968 = vadd.f32 0.0, %v2967
    %v2969 = vpop.f32.mrf.mxu0
    %v2970 = vadd.f32 0.0, %v2969
    %2971 = vmatmul.bf16.gmra.mxu0 %v2807
    %v2972 = vpop.f32.mrf.mxu0
    %v2973 = vadd.f32 0.0, %v2972
    %v2974 = vpop.f32.mrf.mxu0
    %v2975 = vadd.f32 0.0, %v2974
    %2976 = vmatmul.bf16.gmra.mxu0 %v2810
    %v2977 = vpop.f32.mrf.mxu0
    %v2978 = vadd.f32 0.0, %v2977
    %v2979 = vpop.f32.mrf.mxu0
    %v2980 = vadd.f32 0.0, %v2979
    %2981 = vmatmul.bf16.gmra.mxu0 %v2813
    %v2982 = vpop.f32.mrf.mxu0
    %v2983 = vadd.f32 0.0, %v2982
    %v2984 = vpop.f32.mrf.mxu0
    %v2985 = vadd.f32 0.0, %v2984
    %2986 = vdwg.mxu0
    %v2987 = vadd.f32 %v2493, %v2828
    %v2988 = vadd.f32 %v2494, %v2830
    %v2989 = vadd.f32 %v2495, %v2833
    %v2990 = vadd.f32 %v2496, %v2835
    %v2991 = vadd.f32 %v2497, %v2838
    %v2992 = vadd.f32 %v2498, %v2840
    %v2993 = vadd.f32 %v2499, %v2843
    %v2994 = vadd.f32 %v2500, %v2845
    %v2995 = vadd.f32 %v2501, %v2848
    %v2996 = vadd.f32 %v2502, %v2850
    %v2997 = vadd.f32 %v2503, %v2853
    %v2998 = vadd.f32 %v2504, %v2855
    %v2999 = vadd.f32 %v2505, %v2858
    %v3000 = vadd.f32 %v2506, %v2860
    %v3001 = vadd.f32 %v2507, %v2863
    %v3002 = vadd.f32 %v2508, %v2865
    %v3003 = vadd.f32 %v2509, %v2868
    %v3004 = vadd.f32 %v2510, %v2870
    %v3005 = vadd.f32 %v2511, %v2873
    %v3006 = vadd.f32 %v2512, %v2875
    %v3007 = vadd.f32 %v2513, %v2878
    %v3008 = vadd.f32 %v2514, %v2880
    %v3009 = vadd.f32 %v2515, %v2883
    %v3010 = vadd.f32 %v2516, %v2885
    %v3011 = vadd.f32 %v2517, %v2888
    %v3012 = vadd.f32 %v2518, %v2890
    %v3013 = vadd.f32 %v2519, %v2893
    %v3014 = vadd.f32 %v2520, %v2895
    %v3015 = vadd.f32 %v2521, %v2898
    %v3016 = vadd.f32 %v2522, %v2900
    %v3017 = vadd.f32 %v2523, %v2903
    %v3018 = vadd.f32 %v2524, %v2905
    %v3019 = vadd.f32 %v2525, %v2908
    %v3020 = vadd.f32 %v2526, %v2910
    %v3021 = vadd.f32 %v2527, %v2913
    %v3022 = vadd.f32 %v2528, %v2915
    %v3023 = vadd.f32 %v2529, %v2918
    %v3024 = vadd.f32 %v2530, %v2920
    %v3025 = vadd.f32 %v2531, %v2923
    %v3026 = vadd.f32 %v2532, %v2925
    %v3027 = vadd.f32 %v2533, %v2928
    %v3028 = vadd.f32 %v2534, %v2930
    %v3029 = vadd.f32 %v2535, %v2933
    %v3030 = vadd.f32 %v2536, %v2935
    %v3031 = vadd.f32 %v2537, %v2938
    %v3032 = vadd.f32 %v2538, %v2940
    %v3033 = vadd.f32 %v2539, %v2943
    %v3034 = vadd.f32 %v2540, %v2945
    %v3035 = vadd.f32 %v2541, %v2948
    %v3036 = vadd.f32 %v2542, %v2950
    %v3037 = vadd.f32 %v2543, %v2953
    %v3038 = vadd.f32 %v2544, %v2955
    %v3039 = vadd.f32 %v2545, %v2958
    %v3040 = vadd.f32 %v2546, %v2960
    %v3041 = vadd.f32 %v2547, %v2963
    %v3042 = vadd.f32 %v2548, %v2965
    %v3043 = vadd.f32 %v2549, %v2968
    %v3044 = vadd.f32 %v2550, %v2970
    %v3045 = vadd.f32 %v2551, %v2973
    %v3046 = vadd.f32 %v2552, %v2975
    %v3047 = vadd.f32 %v2553, %v2978
    %v3048 = vadd.f32 %v2554, %v2980
    %v3049 = vadd.f32 %v2555, %v2983
    %v3050 = vadd.f32 %v2556, %v2985
    %v3051 = vld [vmem:[%s0 + $0x18] sm:$0xff]
    %v3052 = vld [vmem:[%s0 + $0x20] sm:$0xff]
    %v3053 = vld [vmem:[%s0 + $0x28] sm:$0xff]
    %v3054 = vld [vmem:[%s0 + $0x30] sm:$0xff]
    %v3055 = vld [vmem:[%s0 + $0x38] sm:$0xff]
    %v3056 = vld [vmem:[%s0 + $0x40] sm:$0xff]
    %v3057 = vld [vmem:[%s0 + $0x48] sm:$0xff]
    %v3058 = vld [vmem:[%s0 + $0x50] sm:$0xff]
    %v3059 = vld [vmem:[%s0 + $0x58] sm:$0xff]
    %v3060 = vld [vmem:[%s0 + $0x60] sm:$0xff]
    %v3061 = vld [vmem:[%s0 + $0x68] sm:$0xff]
    %v3062 = vld [vmem:[%s0 + $0x70] sm:$0xff]
    %v3063 = vld [vmem:[%s0 + $0x78] sm:$0xff]
    %v3064 = vld [vmem:[%s0 + $0x80] sm:$0xff]
    %v3065 = vld [vmem:[%s0 + $0x88] sm:$0xff]
    %v3066 = vld [vmem:[%s0 + $0x90] sm:$0xff]
    %v3067 = vld [vmem:[%s0 + $0x98] sm:$0xff]
    %v3068 = vld [vmem:[%s0 + $0xa0] sm:$0xff]
    %v3069 = vld [vmem:[%s0 + $0xa8] sm:$0xff]
    %v3070 = vld [vmem:[%s0 + $0xb0] sm:$0xff]
    %v3071 = vld [vmem:[%s0 + $0xb8] sm:$0xff]
    %v3072 = vld [vmem:[%s0 + $0xc0] sm:$0xff]
    %v3073 = vld [vmem:[%s0 + $0xc8] sm:$0xff]
    %v3074 = vld [vmem:[%s0 + $0xd0] sm:$0xff]
    %v3075 = vld [vmem:[%s0 + $0xd8] sm:$0xff]
    %v3076 = vld [vmem:[%s0 + $0xe0] sm:$0xff]
    %v3077 = vld [vmem:[%s0 + $0xe8] sm:$0xff]
    %v3078 = vld [vmem:[%s0 + $0xf0] sm:$0xff]
    %v3079 = vld [vmem:[%s0 + $0xf8] sm:$0xff]
    %v3080 = vld [vmem:[%s0 + $0x100] sm:$0xff]
    %v3081 = vld [vmem:[%s0 + $0x108] sm:$0xff]
    %v3082 = vld [vmem:[%s0 + $0x110] sm:$0xff]
    %v3083 = vld [vmem:[%s0 + $0x118] sm:$0xff]
    %v3084 = vld [vmem:[%s0 + $0x120] sm:$0xff]
    %v3085 = vld [vmem:[%s0 + $0x128] sm:$0xff]
    %v3086 = vld [vmem:[%s0 + $0x130] sm:$0xff]
    %v3087 = vld [vmem:[%s0 + $0x138] sm:$0xff]
    %v3088 = vld [vmem:[%s0 + $0x140] sm:$0xff]
    %v3089 = vld [vmem:[%s0 + $0x148] sm:$0xff]
    %v3090 = vld [vmem:[%s0 + $0x150] sm:$0xff]
    %v3091 = vld [vmem:[%s0 + $0x158] sm:$0xff]
    %v3092 = vld [vmem:[%s0 + $0x160] sm:$0xff]
    %v3093 = vld [vmem:[%s0 + $0x168] sm:$0xff]
    %v3094 = vld [vmem:[%s0 + $0x170] sm:$0xff]
    %v3095 = vld [vmem:[%s0 + $0x178] sm:$0xff]
    %v3096 = vld [vmem:[%s0 + $0x180] sm:$0xff]
    %v3097 = vld [vmem:[%s0 + $0x188] sm:$0xff]
    %v3098 = vld [vmem:[%s0 + $0x190] sm:$0xff]
    %v3099 = vld [vmem:[%s0 + $0x198] sm:$0xff]
    %v3100 = vld [vmem:[%s0 + $0x1a0] sm:$0xff]
    %v3101 = vld [vmem:[%s0 + $0x1a8] sm:$0xff]
    %v3102 = vld [vmem:[%s0 + $0x1b0] sm:$0xff]
    %v3103 = vld [vmem:[%s0 + $0x1b8] sm:$0xff]
    %v3104 = vld [vmem:[%s0 + $0x1c0] sm:$0xff]
    %v3105 = vld [vmem:[%s0 + $0x1c8] sm:$0xff]
    %v3106 = vld [vmem:[%s0 + $0x1d0] sm:$0xff]
    %v3107 = vld [vmem:[%s0 + $0x1d8] sm:$0xff]
    %v3108 = vld [vmem:[%s0 + $0x1e0] sm:$0xff]
    %v3109 = vld [vmem:[%s0 + $0x1e8] sm:$0xff]
    %v3110 = vld [vmem:[%s0 + $0x1f0] sm:$0xff]
    %v3111 = vld [vmem:[%s0 + $0x1f8] sm:$0xff]
    %v3112 = vld [vmem:[%s0 + $0x200] sm:$0xff]
    %v3113 = vld [vmem:[%s0 + $0x208] sm:$0xff]
    %v3114 = vld [vmem:[%s0 + $0x210] sm:$0xff]
    %v3115 = vpack.c.bf16 %v3052, %v3051
    %v3116 = vpack.c.bf16 %v3054, %v3053
    %v3117 = vpack.c.bf16 %v3056, %v3055
    %v3118 = vpack.c.bf16 %v3058, %v3057
    %v3119 = vpack.c.bf16 %v3060, %v3059
    %v3120 = vpack.c.bf16 %v3062, %v3061
    %v3121 = vpack.c.bf16 %v3064, %v3063
    %v3122 = vpack.c.bf16 %v3066, %v3065
    %v3123 = vpack.c.bf16 %v3068, %v3067
    %v3124 = vpack.c.bf16 %v3070, %v3069
    %v3125 = vpack.c.bf16 %v3072, %v3071
    %v3126 = vpack.c.bf16 %v3074, %v3073
    %v3127 = vpack.c.bf16 %v3076, %v3075
    %v3128 = vpack.c.bf16 %v3078, %v3077
    %v3129 = vpack.c.bf16 %v3080, %v3079
    %v3130 = vpack.c.bf16 %v3082, %v3081
    %v3131 = vpack.c.bf16 %v3084, %v3083
    %v3132 = vpack.c.bf16 %v3086, %v3085
    %v3133 = vpack.c.bf16 %v3088, %v3087
    %v3134 = vpack.c.bf16 %v3090, %v3089
    %v3135 = vpack.c.bf16 %v3092, %v3091
    %v3136 = vpack.c.bf16 %v3094, %v3093
    %v3137 = vpack.c.bf16 %v3096, %v3095
    %v3138 = vpack.c.bf16 %v3098, %v3097
    %v3139 = vpack.c.bf16 %v3100, %v3099
    %v3140 = vpack.c.bf16 %v3102, %v3101
    %v3141 = vpack.c.bf16 %v3104, %v3103
    %v3142 = vpack.c.bf16 %v3106, %v3105
    %v3143 = vpack.c.bf16 %v3108, %v3107
    %v3144 = vpack.c.bf16 %v3110, %v3109
    %v3145 = vpack.c.bf16 %v3112, %v3111
    %v3146 = vpack.c.bf16 %v3114, %v3113
    %s3147 = scalar_lea.vmem %s1, 16
    %v3148 = vld [vmem:[%s3147] sm:$0xf]
    %v3150 = vsel %vm1461, %v3115, 0
    %v3153 = vsel %vm1461, %v3116, 0
    %v3156 = vsel %vm1461, %v3117, 0
    %v3159 = vsel %vm1461, %v3118, 0
    %v3162 = vsel %vm1461, %v3119, 0
    %v3165 = vsel %vm1461, %v3120, 0
    %v3168 = vsel %vm1461, %v3121, 0
    %v3171 = vsel %vm1461, %v3122, 0
    %v3174 = vsel %vm1461, %v3123, 0
    %v3177 = vsel %vm1461, %v3124, 0
    %v3180 = vsel %vm1461, %v3125, 0
    %v3183 = vsel %vm1461, %v3126, 0
    %v3186 = vsel %vm1461, %v3127, 0
    %v3189 = vsel %vm1461, %v3128, 0
    %v3192 = vsel %vm1461, %v3129, 0
    %v3195 = vsel %vm1461, %v3130, 0
    %v3198 = vsel %vm1461, %v3131, 0
    %v3201 = vsel %vm1461, %v3132, 0
    %v3204 = vsel %vm1461, %v3133, 0
    %v3207 = vsel %vm1461, %v3134, 0
    %v3210 = vsel %vm1461, %v3135, 0
    %v3213 = vsel %vm1461, %v3136, 0
    %v3216 = vsel %vm1461, %v3137, 0
    %v3219 = vsel %vm1461, %v3138, 0
    %v3222 = vsel %vm1461, %v3139, 0
    %v3225 = vsel %vm1461, %v3140, 0
    %v3228 = vsel %vm1461, %v3141, 0
    %v3231 = vsel %vm1461, %v3142, 0
    %v3234 = vsel %vm1461, %v3143, 0
    %v3237 = vsel %vm1461, %v3144, 0
    %v3240 = vsel %vm1461, %v3145, 0
    %v3243 = vsel %vm1461, %v3146, 0
    %v3246 = vsel %vm1558, %v3148, 0
    %3248 = vmatpush.bf16.msra.mxu0 0
    %3249 = vmatpush.bf16.msra.mxu0 0
    %3250 = vmatpush.bf16.msra.mxu0 0
    %3251 = vmatpush.bf16.msra.mxu0 0
    %3252 = vmatpush.bf16.msra.mxu0 0
    %3253 = vmatpush.bf16.msra.mxu0 0
    %3254 = vmatpush.bf16.msra.mxu0 0
    %3255 = vmatpush.bf16.msra.mxu0 %v3246
    %3256 = vmatmul.bf16.gmra.mxu0 %v3150
    %v3257 = vpop.f32.mrf.mxu0
    %v3258 = vadd.f32 0.0, %v3257
    %v3259 = vpop.f32.mrf.mxu0
    %v3260 = vadd.f32 0.0, %v3259
    %3261 = vmatmul.bf16.gmra.mxu0 %v3153
    %v3262 = vpop.f32.mrf.mxu0
    %v3263 = vadd.f32 0.0, %v3262
    %v3264 = vpop.f32.mrf.mxu0
    %v3265 = vadd.f32 0.0, %v3264
    %3266 = vmatmul.bf16.gmra.mxu0 %v3156
    %v3267 = vpop.f32.mrf.mxu0
    %v3268 = vadd.f32 0.0, %v3267
    %v3269 = vpop.f32.mrf.mxu0
    %v3270 = vadd.f32 0.0, %v3269
    %3271 = vmatmul.bf16.gmra.mxu0 %v3159
    %v3272 = vpop.f32.mrf.mxu0
    %v3273 = vadd.f32 0.0, %v3272
    %v3274 = vpop.f32.mrf.mxu0
    %v3275 = vadd.f32 0.0, %v3274
    %3276 = vmatmul.bf16.gmra.mxu0 %v3162
    %v3277 = vpop.f32.mrf.mxu0
    %v3278 = vadd.f32 0.0, %v3277
    %v3279 = vpop.f32.mrf.mxu0
    %v3280 = vadd.f32 0.0, %v3279
    %3281 = vmatmul.bf16.gmra.mxu0 %v3165
    %v3282 = vpop.f32.mrf.mxu0
    %v3283 = vadd.f32 0.0, %v3282
    %v3284 = vpop.f32.mrf.mxu0
    %v3285 = vadd.f32 0.0, %v3284
    %3286 = vmatmul.bf16.gmra.mxu0 %v3168
    %v3287 = vpop.f32.mrf.mxu0
    %v3288 = vadd.f32 0.0, %v3287
    %v3289 = vpop.f32.mrf.mxu0
    %v3290 = vadd.f32 0.0, %v3289
    %3291 = vmatmul.bf16.gmra.mxu0 %v3171
    %v3292 = vpop.f32.mrf.mxu0
    %v3293 = vadd.f32 0.0, %v3292
    %v3294 = vpop.f32.mrf.mxu0
    %v3295 = vadd.f32 0.0, %v3294
    %3296 = vmatmul.bf16.gmra.mxu0 %v3174
    %v3297 = vpop.f32.mrf.mxu0
    %v3298 = vadd.f32 0.0, %v3297
    %v3299 = vpop.f32.mrf.mxu0
    %v3300 = vadd.f32 0.0, %v3299
    %3301 = vmatmul.bf16.gmra.mxu0 %v3177
    %v3302 = vpop.f32.mrf.mxu0
    %v3303 = vadd.f32 0.0, %v3302
    %v3304 = vpop.f32.mrf.mxu0
    %v3305 = vadd.f32 0.0, %v3304
    %3306 = vmatmul.bf16.gmra.mxu0 %v3180
    %v3307 = vpop.f32.mrf.mxu0
    %v3308 = vadd.f32 0.0, %v3307
    %v3309 = vpop.f32.mrf.mxu0
    %v3310 = vadd.f32 0.0, %v3309
    %3311 = vmatmul.bf16.gmra.mxu0 %v3183
    %v3312 = vpop.f32.mrf.mxu0
    %v3313 = vadd.f32 0.0, %v3312
    %v3314 = vpop.f32.mrf.mxu0
    %v3315 = vadd.f32 0.0, %v3314
    %3316 = vmatmul.bf16.gmra.mxu0 %v3186
    %v3317 = vpop.f32.mrf.mxu0
    %v3318 = vadd.f32 0.0, %v3317
    %v3319 = vpop.f32.mrf.mxu0
    %v3320 = vadd.f32 0.0, %v3319
    %3321 = vmatmul.bf16.gmra.mxu0 %v3189
    %v3322 = vpop.f32.mrf.mxu0
    %v3323 = vadd.f32 0.0, %v3322
    %v3324 = vpop.f32.mrf.mxu0
    %v3325 = vadd.f32 0.0, %v3324
    %3326 = vmatmul.bf16.gmra.mxu0 %v3192
    %v3327 = vpop.f32.mrf.mxu0
    %v3328 = vadd.f32 0.0, %v3327
    %v3329 = vpop.f32.mrf.mxu0
    %v3330 = vadd.f32 0.0, %v3329
    %3331 = vmatmul.bf16.gmra.mxu0 %v3195
    %v3332 = vpop.f32.mrf.mxu0
    %v3333 = vadd.f32 0.0, %v3332
    %v3334 = vpop.f32.mrf.mxu0
    %v3335 = vadd.f32 0.0, %v3334
    %3336 = vmatmul.bf16.gmra.mxu0 %v3198
    %v3337 = vpop.f32.mrf.mxu0
    %v3338 = vadd.f32 0.0, %v3337
    %v3339 = vpop.f32.mrf.mxu0
    %v3340 = vadd.f32 0.0, %v3339
    %3341 = vmatmul.bf16.gmra.mxu0 %v3201
    %v3342 = vpop.f32.mrf.mxu0
    %v3343 = vadd.f32 0.0, %v3342
    %v3344 = vpop.f32.mrf.mxu0
    %v3345 = vadd.f32 0.0, %v3344
    %3346 = vmatmul.bf16.gmra.mxu0 %v3204
    %v3347 = vpop.f32.mrf.mxu0
    %v3348 = vadd.f32 0.0, %v3347
    %v3349 = vpop.f32.mrf.mxu0
    %v3350 = vadd.f32 0.0, %v3349
    %3351 = vmatmul.bf16.gmra.mxu0 %v3207
    %v3352 = vpop.f32.mrf.mxu0
    %v3353 = vadd.f32 0.0, %v3352
    %v3354 = vpop.f32.mrf.mxu0
    %v3355 = vadd.f32 0.0, %v3354
    %3356 = vmatmul.bf16.gmra.mxu0 %v3210
    %v3357 = vpop.f32.mrf.mxu0
    %v3358 = vadd.f32 0.0, %v3357
    %v3359 = vpop.f32.mrf.mxu0
    %v3360 = vadd.f32 0.0, %v3359
    %3361 = vmatmul.bf16.gmra.mxu0 %v3213
    %v3362 = vpop.f32.mrf.mxu0
    %v3363 = vadd.f32 0.0, %v3362
    %v3364 = vpop.f32.mrf.mxu0
    %v3365 = vadd.f32 0.0, %v3364
    %3366 = vmatmul.bf16.gmra.mxu0 %v3216
    %v3367 = vpop.f32.mrf.mxu0
    %v3368 = vadd.f32 0.0, %v3367
    %v3369 = vpop.f32.mrf.mxu0
    %v3370 = vadd.f32 0.0, %v3369
    %3371 = vmatmul.bf16.gmra.mxu0 %v3219
    %v3372 = vpop.f32.mrf.mxu0
    %v3373 = vadd.f32 0.0, %v3372
    %v3374 = vpop.f32.mrf.mxu0
    %v3375 = vadd.f32 0.0, %v3374
    %3376 = vmatmul.bf16.gmra.mxu0 %v3222
    %v3377 = vpop.f32.mrf.mxu0
    %v3378 = vadd.f32 0.0, %v3377
    %v3379 = vpop.f32.mrf.mxu0
    %v3380 = vadd.f32 0.0, %v3379
    %3381 = vmatmul.bf16.gmra.mxu0 %v3225
    %v3382 = vpop.f32.mrf.mxu0
    %v3383 = vadd.f32 0.0, %v3382
    %v3384 = vpop.f32.mrf.mxu0
    %v3385 = vadd.f32 0.0, %v3384
    %3386 = vmatmul.bf16.gmra.mxu0 %v3228
    %v3387 = vpop.f32.mrf.mxu0
    %v3388 = vadd.f32 0.0, %v3387
    %v3389 = vpop.f32.mrf.mxu0
    %v3390 = vadd.f32 0.0, %v3389
    %3391 = vmatmul.bf16.gmra.mxu0 %v3231
    %v3392 = vpop.f32.mrf.mxu0
    %v3393 = vadd.f32 0.0, %v3392
    %v3394 = vpop.f32.mrf.mxu0
    %v3395 = vadd.f32 0.0, %v3394
    %3396 = vmatmul.bf16.gmra.mxu0 %v3234
    %v3397 = vpop.f32.mrf.mxu0
    %v3398 = vadd.f32 0.0, %v3397
    %v3399 = vpop.f32.mrf.mxu0
    %v3400 = vadd.f32 0.0, %v3399
    %3401 = vmatmul.bf16.gmra.mxu0 %v3237
    %v3402 = vpop.f32.mrf.mxu0
    %v3403 = vadd.f32 0.0, %v3402
    %v3404 = vpop.f32.mrf.mxu0
    %v3405 = vadd.f32 0.0, %v3404
    %3406 = vmatmul.bf16.gmra.mxu0 %v3240
    %v3407 = vpop.f32.mrf.mxu0
    %v3408 = vadd.f32 0.0, %v3407
    %v3409 = vpop.f32.mrf.mxu0
    %v3410 = vadd.f32 0.0, %v3409
    %3411 = vmatmul.bf16.gmra.mxu0 %v3243
    %v3412 = vpop.f32.mrf.mxu0
    %v3413 = vadd.f32 0.0, %v3412
    %v3414 = vpop.f32.mrf.mxu0
    %v3415 = vadd.f32 0.0, %v3414
    %3416 = vdwg.mxu0
    %v3417 = vadd.f32 %v2987, %v3258
    %v3418 = vadd.f32 %v2988, %v3260
    %v3419 = vadd.f32 %v2989, %v3263
    %v3420 = vadd.f32 %v2990, %v3265
    %v3421 = vadd.f32 %v2991, %v3268
    %v3422 = vadd.f32 %v2992, %v3270
    %v3423 = vadd.f32 %v2993, %v3273
    %v3424 = vadd.f32 %v2994, %v3275
    %v3425 = vadd.f32 %v2995, %v3278
    %v3426 = vadd.f32 %v2996, %v3280
    %v3427 = vadd.f32 %v2997, %v3283
    %v3428 = vadd.f32 %v2998, %v3285
    %v3429 = vadd.f32 %v2999, %v3288
    %v3430 = vadd.f32 %v3000, %v3290
    %v3431 = vadd.f32 %v3001, %v3293
    %v3432 = vadd.f32 %v3002, %v3295
    %v3433 = vadd.f32 %v3003, %v3298
    %v3434 = vadd.f32 %v3004, %v3300
    %v3435 = vadd.f32 %v3005, %v3303
    %v3436 = vadd.f32 %v3006, %v3305
    %v3437 = vadd.f32 %v3007, %v3308
    %v3438 = vadd.f32 %v3008, %v3310
    %v3439 = vadd.f32 %v3009, %v3313
    %v3440 = vadd.f32 %v3010, %v3315
    %v3441 = vadd.f32 %v3011, %v3318
    %v3442 = vadd.f32 %v3012, %v3320
    %v3443 = vadd.f32 %v3013, %v3323
    %v3444 = vadd.f32 %v3014, %v3325
    %v3445 = vadd.f32 %v3015, %v3328
    %v3446 = vadd.f32 %v3016, %v3330
    %v3447 = vadd.f32 %v3017, %v3333
    %v3448 = vadd.f32 %v3018, %v3335
    %v3449 = vadd.f32 %v3019, %v3338
    %v3450 = vadd.f32 %v3020, %v3340
    %v3451 = vadd.f32 %v3021, %v3343
    %v3452 = vadd.f32 %v3022, %v3345
    %v3453 = vadd.f32 %v3023, %v3348
    %v3454 = vadd.f32 %v3024, %v3350
    %v3455 = vadd.f32 %v3025, %v3353
    %v3456 = vadd.f32 %v3026, %v3355
    %v3457 = vadd.f32 %v3027, %v3358
    %v3458 = vadd.f32 %v3028, %v3360
    %v3459 = vadd.f32 %v3029, %v3363
    %v3460 = vadd.f32 %v3030, %v3365
    %v3461 = vadd.f32 %v3031, %v3368
    %v3462 = vadd.f32 %v3032, %v3370
    %v3463 = vadd.f32 %v3033, %v3373
    %v3464 = vadd.f32 %v3034, %v3375
    %v3465 = vadd.f32 %v3035, %v3378
    %v3466 = vadd.f32 %v3036, %v3380
    %v3467 = vadd.f32 %v3037, %v3383
    %v3468 = vadd.f32 %v3038, %v3385
    %v3469 = vadd.f32 %v3039, %v3388
    %v3470 = vadd.f32 %v3040, %v3390
    %v3471 = vadd.f32 %v3041, %v3393
    %v3472 = vadd.f32 %v3042, %v3395
    %v3473 = vadd.f32 %v3043, %v3398
    %v3474 = vadd.f32 %v3044, %v3400
    %v3475 = vadd.f32 %v3045, %v3403
    %v3476 = vadd.f32 %v3046, %v3405
    %v3477 = vadd.f32 %v3047, %v3408
    %v3478 = vadd.f32 %v3048, %v3410
    %v3479 = vadd.f32 %v3049, %v3413
    %v3480 = vadd.f32 %v3050, %v3415
    %v3481 = vld [vmem:[%s0 + $0x19] sm:$0xff]
    %v3482 = vld [vmem:[%s0 + $0x21] sm:$0xff]
    %v3483 = vld [vmem:[%s0 + $0x29] sm:$0xff]
    %v3484 = vld [vmem:[%s0 + $0x31] sm:$0xff]
    %v3485 = vld [vmem:[%s0 + $0x39] sm:$0xff]
    %v3486 = vld [vmem:[%s0 + $0x41] sm:$0xff]
    %v3487 = vld [vmem:[%s0 + $0x49] sm:$0xff]
    %v3488 = vld [vmem:[%s0 + $0x51] sm:$0xff]
    %v3489 = vld [vmem:[%s0 + $0x59] sm:$0xff]
    %v3490 = vld [vmem:[%s0 + $0x61] sm:$0xff]
    %v3491 = vld [vmem:[%s0 + $0x69] sm:$0xff]
    %v3492 = vld [vmem:[%s0 + $0x71] sm:$0xff]
    %v3493 = vld [vmem:[%s0 + $0x79] sm:$0xff]
    %v3494 = vld [vmem:[%s0 + $0x81] sm:$0xff]
    %v3495 = vld [vmem:[%s0 + $0x89] sm:$0xff]
    %v3496 = vld [vmem:[%s0 + $0x91] sm:$0xff]
    %v3497 = vld [vmem:[%s0 + $0x99] sm:$0xff]
    %v3498 = vld [vmem:[%s0 + $0xa1] sm:$0xff]
    %v3499 = vld [vmem:[%s0 + $0xa9] sm:$0xff]
    %v3500 = vld [vmem:[%s0 + $0xb1] sm:$0xff]
    %v3501 = vld [vmem:[%s0 + $0xb9] sm:$0xff]
    %v3502 = vld [vmem:[%s0 + $0xc1] sm:$0xff]
    %v3503 = vld [vmem:[%s0 + $0xc9] sm:$0xff]
    %v3504 = vld [vmem:[%s0 + $0xd1] sm:$0xff]
    %v3505 = vld [vmem:[%s0 + $0xd9] sm:$0xff]
    %v3506 = vld [vmem:[%s0 + $0xe1] sm:$0xff]
    %v3507 = vld [vmem:[%s0 + $0xe9] sm:$0xff]
    %v3508 = vld [vmem:[%s0 + $0xf1] sm:$0xff]
    %v3509 = vld [vmem:[%s0 + $0xf9] sm:$0xff]
    %v3510 = vld [vmem:[%s0 + $0x101] sm:$0xff]
    %v3511 = vld [vmem:[%s0 + $0x109] sm:$0xff]
    %v3512 = vld [vmem:[%s0 + $0x111] sm:$0xff]
    %v3513 = vld [vmem:[%s0 + $0x119] sm:$0xff]
    %v3514 = vld [vmem:[%s0 + $0x121] sm:$0xff]
    %v3515 = vld [vmem:[%s0 + $0x129] sm:$0xff]
    %v3516 = vld [vmem:[%s0 + $0x131] sm:$0xff]
    %v3517 = vld [vmem:[%s0 + $0x139] sm:$0xff]
    %v3518 = vld [vmem:[%s0 + $0x141] sm:$0xff]
    %v3519 = vld [vmem:[%s0 + $0x149] sm:$0xff]
    %v3520 = vld [vmem:[%s0 + $0x151] sm:$0xff]
    %v3521 = vld [vmem:[%s0 + $0x159] sm:$0xff]
    %v3522 = vld [vmem:[%s0 + $0x161] sm:$0xff]
    %v3523 = vld [vmem:[%s0 + $0x169] sm:$0xff]
    %v3524 = vld [vmem:[%s0 + $0x171] sm:$0xff]
    %v3525 = vld [vmem:[%s0 + $0x179] sm:$0xff]
    %v3526 = vld [vmem:[%s0 + $0x181] sm:$0xff]
    %v3527 = vld [vmem:[%s0 + $0x189] sm:$0xff]
    %v3528 = vld [vmem:[%s0 + $0x191] sm:$0xff]
    %v3529 = vld [vmem:[%s0 + $0x199] sm:$0xff]
    %v3530 = vld [vmem:[%s0 + $0x1a1] sm:$0xff]
    %v3531 = vld [vmem:[%s0 + $0x1a9] sm:$0xff]
    %v3532 = vld [vmem:[%s0 + $0x1b1] sm:$0xff]
    %v3533 = vld [vmem:[%s0 + $0x1b9] sm:$0xff]
    %v3534 = vld [vmem:[%s0 + $0x1c1] sm:$0xff]
    %v3535 = vld [vmem:[%s0 + $0x1c9] sm:$0xff]
    %v3536 = vld [vmem:[%s0 + $0x1d1] sm:$0xff]
    %v3537 = vld [vmem:[%s0 + $0x1d9] sm:$0xff]
    %v3538 = vld [vmem:[%s0 + $0x1e1] sm:$0xff]
    %v3539 = vld [vmem:[%s0 + $0x1e9] sm:$0xff]
    %v3540 = vld [vmem:[%s0 + $0x1f1] sm:$0xff]
    %v3541 = vld [vmem:[%s0 + $0x1f9] sm:$0xff]
    %v3542 = vld [vmem:[%s0 + $0x201] sm:$0xff]
    %v3543 = vld [vmem:[%s0 + $0x209] sm:$0xff]
    %v3544 = vld [vmem:[%s0 + $0x211] sm:$0xff]
    %v3545 = vmul.f32 %v3481, %v1010
    %v3546 = vmul.f32 %v3482, %v1011
    %v3547 = vmul.f32 %v3483, %v1012
    %v3548 = vmul.f32 %v3484, %v1013
    %v3549 = vmul.f32 %v3485, %v1014
    %v3550 = vmul.f32 %v3486, %v1015
    %v3551 = vmul.f32 %v3487, %v1016
    %v3552 = vmul.f32 %v3488, %v1017
    %v3553 = vmul.f32 %v3489, %v1018
    %v3554 = vmul.f32 %v3490, %v1019
    %v3555 = vmul.f32 %v3491, %v1020
    %v3556 = vmul.f32 %v3492, %v1021
    %v3557 = vmul.f32 %v3493, %v1022
    %v3558 = vmul.f32 %v3494, %v1023
    %v3559 = vmul.f32 %v3495, %v1024
    %v3560 = vmul.f32 %v3496, %v1025
    %v3561 = vmul.f32 %v3497, %v1026
    %v3562 = vmul.f32 %v3498, %v1027
    %v3563 = vmul.f32 %v3499, %v1028
    %v3564 = vmul.f32 %v3500, %v1029
    %v3565 = vmul.f32 %v3501, %v1030
    %v3566 = vmul.f32 %v3502, %v1031
    %v3567 = vmul.f32 %v3503, %v1032
    %v3568 = vmul.f32 %v3504, %v1033
    %v3569 = vmul.f32 %v3505, %v1034
    %v3570 = vmul.f32 %v3506, %v1035
    %v3571 = vmul.f32 %v3507, %v1036
    %v3572 = vmul.f32 %v3508, %v1037
    %v3573 = vmul.f32 %v3509, %v1038
    %v3574 = vmul.f32 %v3510, %v1039
    %v3575 = vmul.f32 %v3511, %v1040
    %v3576 = vmul.f32 %v3512, %v1041
    %v3577 = vmul.f32 %v3513, %v1042
    %v3578 = vmul.f32 %v3514, %v1043
    %v3579 = vmul.f32 %v3515, %v1044
    %v3580 = vmul.f32 %v3516, %v1045
    %v3581 = vmul.f32 %v3517, %v1046
    %v3582 = vmul.f32 %v3518, %v1047
    %v3583 = vmul.f32 %v3519, %v1048
    %v3584 = vmul.f32 %v3520, %v1049
    %v3585 = vmul.f32 %v3521, %v1050
    %v3586 = vmul.f32 %v3522, %v1051
    %v3587 = vmul.f32 %v3523, %v1052
    %v3588 = vmul.f32 %v3524, %v1053
    %v3589 = vmul.f32 %v3525, %v1054
    %v3590 = vmul.f32 %v3526, %v1055
    %v3591 = vmul.f32 %v3527, %v1056
    %v3592 = vmul.f32 %v3528, %v1057
    %v3593 = vmul.f32 %v3529, %v1058
    %v3594 = vmul.f32 %v3530, %v1059
    %v3595 = vmul.f32 %v3531, %v1060
    %v3596 = vmul.f32 %v3532, %v1061
    %v3597 = vmul.f32 %v3533, %v1062
    %v3598 = vmul.f32 %v3534, %v1063
    %v3599 = vmul.f32 %v3535, %v1064
    %v3600 = vmul.f32 %v3536, %v1065
    %v3601 = vmul.f32 %v3537, %v1066
    %v3602 = vmul.f32 %v3538, %v1067
    %v3603 = vmul.f32 %v3539, %v1068
    %v3604 = vmul.f32 %v3540, %v1069
    %v3605 = vmul.f32 %v3541, %v1070
    %v3606 = vmul.f32 %v3542, %v1071
    %v3607 = vmul.f32 %v3543, %v1072
    %v3608 = vmul.f32 %v3544, %v1073
    %v3609 = vpack.c.bf16 %v3546, %v3545
    %v3610 = vpack.c.bf16 %v3548, %v3547
    %v3611 = vpack.c.bf16 %v3550, %v3549
    %v3612 = vpack.c.bf16 %v3552, %v3551
    %v3613 = vpack.c.bf16 %v3554, %v3553
    %v3614 = vpack.c.bf16 %v3556, %v3555
    %v3615 = vpack.c.bf16 %v3558, %v3557
    %v3616 = vpack.c.bf16 %v3560, %v3559
    %v3617 = vpack.c.bf16 %v3562, %v3561
    %v3618 = vpack.c.bf16 %v3564, %v3563
    %v3619 = vpack.c.bf16 %v3566, %v3565
    %v3620 = vpack.c.bf16 %v3568, %v3567
    %v3621 = vpack.c.bf16 %v3570, %v3569
    %v3622 = vpack.c.bf16 %v3572, %v3571
    %v3623 = vpack.c.bf16 %v3574, %v3573
    %v3624 = vpack.c.bf16 %v3576, %v3575
    %v3625 = vpack.c.bf16 %v3578, %v3577
    %v3626 = vpack.c.bf16 %v3580, %v3579
    %v3627 = vpack.c.bf16 %v3582, %v3581
    %v3628 = vpack.c.bf16 %v3584, %v3583
    %v3629 = vpack.c.bf16 %v3586, %v3585
    %v3630 = vpack.c.bf16 %v3588, %v3587
    %v3631 = vpack.c.bf16 %v3590, %v3589
    %v3632 = vpack.c.bf16 %v3592, %v3591
    %v3633 = vpack.c.bf16 %v3594, %v3593
    %v3634 = vpack.c.bf16 %v3596, %v3595
    %v3635 = vpack.c.bf16 %v3598, %v3597
    %v3636 = vpack.c.bf16 %v3600, %v3599
    %v3637 = vpack.c.bf16 %v3602, %v3601
    %v3638 = vpack.c.bf16 %v3604, %v3603
    %v3639 = vpack.c.bf16 %v3606, %v3605
    %v3640 = vpack.c.bf16 %v3608, %v3607
    %s3641 = scalar_lea.vmem %s1, 20
    %v3642 = vld [vmem:[%s3641] sm:$0xf]
    %v3644 = vsel %vm1461, %v3609, 0
    %v3647 = vsel %vm1461, %v3610, 0
    %v3650 = vsel %vm1461, %v3611, 0
    %v3653 = vsel %vm1461, %v3612, 0
    %v3656 = vsel %vm1461, %v3613, 0
    %v3659 = vsel %vm1461, %v3614, 0
    %v3662 = vsel %vm1461, %v3615, 0
    %v3665 = vsel %vm1461, %v3616, 0
    %v3668 = vsel %vm1461, %v3617, 0
    %v3671 = vsel %vm1461, %v3618, 0
    %v3674 = vsel %vm1461, %v3619, 0
    %v3677 = vsel %vm1461, %v3620, 0
    %v3680 = vsel %vm1461, %v3621, 0
    %v3683 = vsel %vm1461, %v3622, 0
    %v3686 = vsel %vm1461, %v3623, 0
    %v3689 = vsel %vm1461, %v3624, 0
    %v3692 = vsel %vm1461, %v3625, 0
    %v3695 = vsel %vm1461, %v3626, 0
    %v3698 = vsel %vm1461, %v3627, 0
    %v3701 = vsel %vm1461, %v3628, 0
    %v3704 = vsel %vm1461, %v3629, 0
    %v3707 = vsel %vm1461, %v3630, 0
    %v3710 = vsel %vm1461, %v3631, 0
    %v3713 = vsel %vm1461, %v3632, 0
    %v3716 = vsel %vm1461, %v3633, 0
    %v3719 = vsel %vm1461, %v3634, 0
    %v3722 = vsel %vm1461, %v3635, 0
    %v3725 = vsel %vm1461, %v3636, 0
    %v3728 = vsel %vm1461, %v3637, 0
    %v3731 = vsel %vm1461, %v3638, 0
    %v3734 = vsel %vm1461, %v3639, 0
    %v3737 = vsel %vm1461, %v3640, 0
    %v3740 = vsel %vm1558, %v3642, 0
    %3742 = vmatpush.bf16.msra.mxu0 0
    %3743 = vmatpush.bf16.msra.mxu0 0
    %3744 = vmatpush.bf16.msra.mxu0 0
    %3745 = vmatpush.bf16.msra.mxu0 0
    %3746 = vmatpush.bf16.msra.mxu0 0
    %3747 = vmatpush.bf16.msra.mxu0 0
    %3748 = vmatpush.bf16.msra.mxu0 0
    %3749 = vmatpush.bf16.msra.mxu0 %v3740
    %3750 = vmatmul.bf16.gmra.mxu0 %v3644
    %v3751 = vpop.f32.mrf.mxu0
    %v3752 = vadd.f32 0.0, %v3751
    %v3753 = vpop.f32.mrf.mxu0
    %v3754 = vadd.f32 0.0, %v3753
    %3755 = vmatmul.bf16.gmra.mxu0 %v3647
    %v3756 = vpop.f32.mrf.mxu0
    %v3757 = vadd.f32 0.0, %v3756
    %v3758 = vpop.f32.mrf.mxu0
    %v3759 = vadd.f32 0.0, %v3758
    %3760 = vmatmul.bf16.gmra.mxu0 %v3650
    %v3761 = vpop.f32.mrf.mxu0
    %v3762 = vadd.f32 0.0, %v3761
    %v3763 = vpop.f32.mrf.mxu0
    %v3764 = vadd.f32 0.0, %v3763
    %3765 = vmatmul.bf16.gmra.mxu0 %v3653
    %v3766 = vpop.f32.mrf.mxu0
    %v3767 = vadd.f32 0.0, %v3766
    %v3768 = vpop.f32.mrf.mxu0
    %v3769 = vadd.f32 0.0, %v3768
    %3770 = vmatmul.bf16.gmra.mxu0 %v3656
    %v3771 = vpop.f32.mrf.mxu0
    %v3772 = vadd.f32 0.0, %v3771
    %v3773 = vpop.f32.mrf.mxu0
    %v3774 = vadd.f32 0.0, %v3773
    %3775 = vmatmul.bf16.gmra.mxu0 %v3659
    %v3776 = vpop.f32.mrf.mxu0
    %v3777 = vadd.f32 0.0, %v3776
    %v3778 = vpop.f32.mrf.mxu0
    %v3779 = vadd.f32 0.0, %v3778
    %3780 = vmatmul.bf16.gmra.mxu0 %v3662
    %v3781 = vpop.f32.mrf.mxu0
    %v3782 = vadd.f32 0.0, %v3781
    %v3783 = vpop.f32.mrf.mxu0
    %v3784 = vadd.f32 0.0, %v3783
    %3785 = vmatmul.bf16.gmra.mxu0 %v3665
    %v3786 = vpop.f32.mrf.mxu0
    %v3787 = vadd.f32 0.0, %v3786
    %v3788 = vpop.f32.mrf.mxu0
    %v3789 = vadd.f32 0.0, %v3788
    %3790 = vmatmul.bf16.gmra.mxu0 %v3668
    %v3791 = vpop.f32.mrf.mxu0
    %v3792 = vadd.f32 0.0, %v3791
    %v3793 = vpop.f32.mrf.mxu0
    %v3794 = vadd.f32 0.0, %v3793
    %3795 = vmatmul.bf16.gmra.mxu0 %v3671
    %v3796 = vpop.f32.mrf.mxu0
    %v3797 = vadd.f32 0.0, %v3796
    %v3798 = vpop.f32.mrf.mxu0
    %v3799 = vadd.f32 0.0, %v3798
    %3800 = vmatmul.bf16.gmra.mxu0 %v3674
    %v3801 = vpop.f32.mrf.mxu0
    %v3802 = vadd.f32 0.0, %v3801
    %v3803 = vpop.f32.mrf.mxu0
    %v3804 = vadd.f32 0.0, %v3803
    %3805 = vmatmul.bf16.gmra.mxu0 %v3677
    %v3806 = vpop.f32.mrf.mxu0
    %v3807 = vadd.f32 0.0, %v3806
    %v3808 = vpop.f32.mrf.mxu0
    %v3809 = vadd.f32 0.0, %v3808
    %3810 = vmatmul.bf16.gmra.mxu0 %v3680
    %v3811 = vpop.f32.mrf.mxu0
    %v3812 = vadd.f32 0.0, %v3811
    %v3813 = vpop.f32.mrf.mxu0
    %v3814 = vadd.f32 0.0, %v3813
    %3815 = vmatmul.bf16.gmra.mxu0 %v3683
    %v3816 = vpop.f32.mrf.mxu0
    %v3817 = vadd.f32 0.0, %v3816
    %v3818 = vpop.f32.mrf.mxu0
    %v3819 = vadd.f32 0.0, %v3818
    %3820 = vmatmul.bf16.gmra.mxu0 %v3686
    %v3821 = vpop.f32.mrf.mxu0
    %v3822 = vadd.f32 0.0, %v3821
    %v3823 = vpop.f32.mrf.mxu0
    %v3824 = vadd.f32 0.0, %v3823
    %3825 = vmatmul.bf16.gmra.mxu0 %v3689
    %v3826 = vpop.f32.mrf.mxu0
    %v3827 = vadd.f32 0.0, %v3826
    %v3828 = vpop.f32.mrf.mxu0
    %v3829 = vadd.f32 0.0, %v3828
    %3830 = vmatmul.bf16.gmra.mxu0 %v3692
    %v3831 = vpop.f32.mrf.mxu0
    %v3832 = vadd.f32 0.0, %v3831
    %v3833 = vpop.f32.mrf.mxu0
    %v3834 = vadd.f32 0.0, %v3833
    %3835 = vmatmul.bf16.gmra.mxu0 %v3695
    %v3836 = vpop.f32.mrf.mxu0
    %v3837 = vadd.f32 0.0, %v3836
    %v3838 = vpop.f32.mrf.mxu0
    %v3839 = vadd.f32 0.0, %v3838
    %3840 = vmatmul.bf16.gmra.mxu0 %v3698
    %v3841 = vpop.f32.mrf.mxu0
    %v3842 = vadd.f32 0.0, %v3841
    %v3843 = vpop.f32.mrf.mxu0
    %v3844 = vadd.f32 0.0, %v3843
    %3845 = vmatmul.bf16.gmra.mxu0 %v3701
    %v3846 = vpop.f32.mrf.mxu0
    %v3847 = vadd.f32 0.0, %v3846
    %v3848 = vpop.f32.mrf.mxu0
    %v3849 = vadd.f32 0.0, %v3848
    %3850 = vmatmul.bf16.gmra.mxu0 %v3704
    %v3851 = vpop.f32.mrf.mxu0
    %v3852 = vadd.f32 0.0, %v3851
    %v3853 = vpop.f32.mrf.mxu0
    %v3854 = vadd.f32 0.0, %v3853
    %3855 = vmatmul.bf16.gmra.mxu0 %v3707
    %v3856 = vpop.f32.mrf.mxu0
    %v3857 = vadd.f32 0.0, %v3856
    %v3858 = vpop.f32.mrf.mxu0
    %v3859 = vadd.f32 0.0, %v3858
    %3860 = vmatmul.bf16.gmra.mxu0 %v3710
    %v3861 = vpop.f32.mrf.mxu0
    %v3862 = vadd.f32 0.0, %v3861
    %v3863 = vpop.f32.mrf.mxu0
    %v3864 = vadd.f32 0.0, %v3863
    %3865 = vmatmul.bf16.gmra.mxu0 %v3713
    %v3866 = vpop.f32.mrf.mxu0
    %v3867 = vadd.f32 0.0, %v3866
    %v3868 = vpop.f32.mrf.mxu0
    %v3869 = vadd.f32 0.0, %v3868
    %3870 = vmatmul.bf16.gmra.mxu0 %v3716
    %v3871 = vpop.f32.mrf.mxu0
    %v3872 = vadd.f32 0.0, %v3871
    %v3873 = vpop.f32.mrf.mxu0
    %v3874 = vadd.f32 0.0, %v3873
    %3875 = vmatmul.bf16.gmra.mxu0 %v3719
    %v3876 = vpop.f32.mrf.mxu0
    %v3877 = vadd.f32 0.0, %v3876
    %v3878 = vpop.f32.mrf.mxu0
    %v3879 = vadd.f32 0.0, %v3878
    %3880 = vmatmul.bf16.gmra.mxu0 %v3722
    %v3881 = vpop.f32.mrf.mxu0
    %v3882 = vadd.f32 0.0, %v3881
    %v3883 = vpop.f32.mrf.mxu0
    %v3884 = vadd.f32 0.0, %v3883
    %3885 = vmatmul.bf16.gmra.mxu0 %v3725
    %v3886 = vpop.f32.mrf.mxu0
    %v3887 = vadd.f32 0.0, %v3886
    %v3888 = vpop.f32.mrf.mxu0
    %v3889 = vadd.f32 0.0, %v3888
    %3890 = vmatmul.bf16.gmra.mxu0 %v3728
    %v3891 = vpop.f32.mrf.mxu0
    %v3892 = vadd.f32 0.0, %v3891
    %v3893 = vpop.f32.mrf.mxu0
    %v3894 = vadd.f32 0.0, %v3893
    %3895 = vmatmul.bf16.gmra.mxu0 %v3731
    %v3896 = vpop.f32.mrf.mxu0
    %v3897 = vadd.f32 0.0, %v3896
    %v3898 = vpop.f32.mrf.mxu0
    %v3899 = vadd.f32 0.0, %v3898
    %3900 = vmatmul.bf16.gmra.mxu0 %v3734
    %v3901 = vpop.f32.mrf.mxu0
    %v3902 = vadd.f32 0.0, %v3901
    %v3903 = vpop.f32.mrf.mxu0
    %v3904 = vadd.f32 0.0, %v3903
    %3905 = vmatmul.bf16.gmra.mxu0 %v3737
    %v3906 = vpop.f32.mrf.mxu0
    %v3907 = vadd.f32 0.0, %v3906
    %v3908 = vpop.f32.mrf.mxu0
    %v3909 = vadd.f32 0.0, %v3908
    %3910 = vdwg.mxu0
    %v3911 = vadd.f32 %v3417, %v3752
    %v3912 = vadd.f32 %v3418, %v3754
    %v3913 = vadd.f32 %v3419, %v3757
    %v3914 = vadd.f32 %v3420, %v3759
    %v3915 = vadd.f32 %v3421, %v3762
    %v3916 = vadd.f32 %v3422, %v3764
    %v3917 = vadd.f32 %v3423, %v3767
    %v3918 = vadd.f32 %v3424, %v3769
    %v3919 = vadd.f32 %v3425, %v3772
    %v3920 = vadd.f32 %v3426, %v3774
    %v3921 = vadd.f32 %v3427, %v3777
    %v3922 = vadd.f32 %v3428, %v3779
    %v3923 = vadd.f32 %v3429, %v3782
    %v3924 = vadd.f32 %v3430, %v3784
    %v3925 = vadd.f32 %v3431, %v3787
    %v3926 = vadd.f32 %v3432, %v3789
    %v3927 = vadd.f32 %v3433, %v3792
    %v3928 = vadd.f32 %v3434, %v3794
    %v3929 = vadd.f32 %v3435, %v3797
    %v3930 = vadd.f32 %v3436, %v3799
    %v3931 = vadd.f32 %v3437, %v3802
    %v3932 = vadd.f32 %v3438, %v3804
    %v3933 = vadd.f32 %v3439, %v3807
    %v3934 = vadd.f32 %v3440, %v3809
    %v3935 = vadd.f32 %v3441, %v3812
    %v3936 = vadd.f32 %v3442, %v3814
    %v3937 = vadd.f32 %v3443, %v3817
    %v3938 = vadd.f32 %v3444, %v3819
    %v3939 = vadd.f32 %v3445, %v3822
    %v3940 = vadd.f32 %v3446, %v3824
    %v3941 = vadd.f32 %v3447, %v3827
    %v3942 = vadd.f32 %v3448, %v3829
    %v3943 = vadd.f32 %v3449, %v3832
    %v3944 = vadd.f32 %v3450, %v3834
    %v3945 = vadd.f32 %v3451, %v3837
    %v3946 = vadd.f32 %v3452, %v3839
    %v3947 = vadd.f32 %v3453, %v3842
    %v3948 = vadd.f32 %v3454, %v3844
    %v3949 = vadd.f32 %v3455, %v3847
    %v3950 = vadd.f32 %v3456, %v3849
    %v3951 = vadd.f32 %v3457, %v3852
    %v3952 = vadd.f32 %v3458, %v3854
    %v3953 = vadd.f32 %v3459, %v3857
    %v3954 = vadd.f32 %v3460, %v3859
    %v3955 = vadd.f32 %v3461, %v3862
    %v3956 = vadd.f32 %v3462, %v3864
    %v3957 = vadd.f32 %v3463, %v3867
    %v3958 = vadd.f32 %v3464, %v3869
    %v3959 = vadd.f32 %v3465, %v3872
    %v3960 = vadd.f32 %v3466, %v3874
    %v3961 = vadd.f32 %v3467, %v3877
    %v3962 = vadd.f32 %v3468, %v3879
    %v3963 = vadd.f32 %v3469, %v3882
    %v3964 = vadd.f32 %v3470, %v3884
    %v3965 = vadd.f32 %v3471, %v3887
    %v3966 = vadd.f32 %v3472, %v3889
    %v3967 = vadd.f32 %v3473, %v3892
    %v3968 = vadd.f32 %v3474, %v3894
    %v3969 = vadd.f32 %v3475, %v3897
    %v3970 = vadd.f32 %v3476, %v3899
    %v3971 = vadd.f32 %v3477, %v3902
    %v3972 = vadd.f32 %v3478, %v3904
    %v3973 = vadd.f32 %v3479, %v3907
    %v3974 = vadd.f32 %v3480, %v3909
    %v3975 = vld [vmem:[%s0 + $0x27] sm:$0xff]
    %v3976 = vld [vmem:[%s0 + $0x2f] sm:$0xff]
    %v3977 = vld [vmem:[%s0 + $0x37] sm:$0xff]
    %v3978 = vld [vmem:[%s0 + $0x3f] sm:$0xff]
    %v3979 = vld [vmem:[%s0 + $0x47] sm:$0xff]
    %v3980 = vld [vmem:[%s0 + $0x4f] sm:$0xff]
    %v3981 = vld [vmem:[%s0 + $0x57] sm:$0xff]
    %v3982 = vld [vmem:[%s0 + $0x5f] sm:$0xff]
    %v3983 = vld [vmem:[%s0 + $0x67] sm:$0xff]
    %v3984 = vld [vmem:[%s0 + $0x6f] sm:$0xff]
    %v3985 = vld [vmem:[%s0 + $0x77] sm:$0xff]
    %v3986 = vld [vmem:[%s0 + $0x7f] sm:$0xff]
    %v3987 = vld [vmem:[%s0 + $0x87] sm:$0xff]
    %v3988 = vld [vmem:[%s0 + $0x8f] sm:$0xff]
    %v3989 = vld [vmem:[%s0 + $0x97] sm:$0xff]
    %v3990 = vld [vmem:[%s0 + $0x9f] sm:$0xff]
    %v3991 = vld [vmem:[%s0 + $0xa7] sm:$0xff]
    %v3992 = vld [vmem:[%s0 + $0xaf] sm:$0xff]
    %v3993 = vld [vmem:[%s0 + $0xb7] sm:$0xff]
    %v3994 = vld [vmem:[%s0 + $0xbf] sm:$0xff]
    %v3995 = vld [vmem:[%s0 + $0xc7] sm:$0xff]
    %v3996 = vld [vmem:[%s0 + $0xcf] sm:$0xff]
    %v3997 = vld [vmem:[%s0 + $0xd7] sm:$0xff]
    %v3998 = vld [vmem:[%s0 + $0xdf] sm:$0xff]
    %v3999 = vld [vmem:[%s0 + $0xe7] sm:$0xff]
    %v4000 = vld [vmem:[%s0 + $0xef] sm:$0xff]
    %v4001 = vld [vmem:[%s0 + $0xf7] sm:$0xff]
    %v4002 = vld [vmem:[%s0 + $0xff] sm:$0xff]
    %v4003 = vld [vmem:[%s0 + $0x107] sm:$0xff]
    %v4004 = vld [vmem:[%s0 + $0x10f] sm:$0xff]
    %v4005 = vld [vmem:[%s0 + $0x117] sm:$0xff]
    %v4006 = vld [vmem:[%s0 + $0x11f] sm:$0xff]
    %v4007 = vld [vmem:[%s0 + $0x127] sm:$0xff]
    %v4008 = vld [vmem:[%s0 + $0x12f] sm:$0xff]
    %v4009 = vld [vmem:[%s0 + $0x137] sm:$0xff]
    %v4010 = vld [vmem:[%s0 + $0x13f] sm:$0xff]
    %v4011 = vld [vmem:[%s0 + $0x147] sm:$0xff]
    %v4012 = vld [vmem:[%s0 + $0x14f] sm:$0xff]
    %v4013 = vld [vmem:[%s0 + $0x157] sm:$0xff]
    %v4014 = vld [vmem:[%s0 + $0x15f] sm:$0xff]
    %v4015 = vld [vmem:[%s0 + $0x167] sm:$0xff]
    %v4016 = vld [vmem:[%s0 + $0x16f] sm:$0xff]
    %v4017 = vld [vmem:[%s0 + $0x177] sm:$0xff]
    %v4018 = vld [vmem:[%s0 + $0x17f] sm:$0xff]
    %v4019 = vld [vmem:[%s0 + $0x187] sm:$0xff]
    %v4020 = vld [vmem:[%s0 + $0x18f] sm:$0xff]
    %v4021 = vld [vmem:[%s0 + $0x197] sm:$0xff]
    %v4022 = vld [vmem:[%s0 + $0x19f] sm:$0xff]
    %v4023 = vld [vmem:[%s0 + $0x1a7] sm:$0xff]
    %v4024 = vld [vmem:[%s0 + $0x1af] sm:$0xff]
    %v4025 = vld [vmem:[%s0 + $0x1b7] sm:$0xff]
    %v4026 = vld [vmem:[%s0 + $0x1bf] sm:$0xff]
    %v4027 = vld [vmem:[%s0 + $0x1c7] sm:$0xff]
    %v4028 = vld [vmem:[%s0 + $0x1cf] sm:$0xff]
    %v4029 = vld [vmem:[%s0 + $0x1d7] sm:$0xff]
    %v4030 = vld [vmem:[%s0 + $0x1df] sm:$0xff]
    %v4031 = vld [vmem:[%s0 + $0x1e7] sm:$0xff]
    %v4032 = vld [vmem:[%s0 + $0x1ef] sm:$0xff]
    %v4033 = vld [vmem:[%s0 + $0x1f7] sm:$0xff]
    %v4034 = vld [vmem:[%s0 + $0x1ff] sm:$0xff]
    %v4035 = vld [vmem:[%s0 + $0x207] sm:$0xff]
    %v4036 = vld [vmem:[%s0 + $0x20f] sm:$0xff]
    %v4037 = vld [vmem:[%s0 + $0x217] sm:$0xff]
    %v4038 = vld [vmem:[%s0 + $0x21f] sm:$0xff]
    %v4039 = vmul.f32 %v626, %v818
    %v4040 = vmul.f32 %v627, %v819
    %v4041 = vmul.f32 %v628, %v820
    %v4042 = vmul.f32 %v629, %v821
    %v4043 = vmul.f32 %v630, %v822
    %v4044 = vmul.f32 %v631, %v823
    %v4045 = vmul.f32 %v632, %v824
    %v4046 = vmul.f32 %v633, %v825
    %v4047 = vmul.f32 %v634, %v826
    %v4048 = vmul.f32 %v635, %v827
    %v4049 = vmul.f32 %v636, %v828
    %v4050 = vmul.f32 %v637, %v829
    %v4051 = vmul.f32 %v638, %v830
    %v4052 = vmul.f32 %v639, %v831
    %v4053 = vmul.f32 %v640, %v832
    %v4054 = vmul.f32 %v641, %v833
    %v4055 = vmul.f32 %v642, %v834
    %v4056 = vmul.f32 %v643, %v835
    %v4057 = vmul.f32 %v644, %v836
    %v4058 = vmul.f32 %v645, %v837
    %v4059 = vmul.f32 %v646, %v838
    %v4060 = vmul.f32 %v647, %v839
    %v4061 = vmul.f32 %v648, %v840
    %v4062 = vmul.f32 %v649, %v841
    %v4063 = vmul.f32 %v650, %v842
    %v4064 = vmul.f32 %v651, %v843
    %v4065 = vmul.f32 %v652, %v844
    %v4066 = vmul.f32 %v653, %v845
    %v4067 = vmul.f32 %v654, %v846
    %v4068 = vmul.f32 %v655, %v847
    %v4069 = vmul.f32 %v656, %v848
    %v4070 = vmul.f32 %v657, %v849
    %v4071 = vmul.f32 %v658, %v850
    %v4072 = vmul.f32 %v659, %v851
    %v4073 = vmul.f32 %v660, %v852
    %v4074 = vmul.f32 %v661, %v853
    %v4075 = vmul.f32 %v662, %v854
    %v4076 = vmul.f32 %v663, %v855
    %v4077 = vmul.f32 %v664, %v856
    %v4078 = vmul.f32 %v665, %v857
    %v4079 = vmul.f32 %v666, %v858
    %v4080 = vmul.f32 %v667, %v859
    %v4081 = vmul.f32 %v668, %v860
    %v4082 = vmul.f32 %v669, %v861
    %v4083 = vmul.f32 %v670, %v862
    %v4084 = vmul.f32 %v671, %v863
    %v4085 = vmul.f32 %v672, %v864
    %v4086 = vmul.f32 %v673, %v865
    %v4087 = vmul.f32 %v674, %v866
    %v4088 = vmul.f32 %v675, %v867
    %v4089 = vmul.f32 %v676, %v868
    %v4090 = vmul.f32 %v677, %v869
    %v4091 = vmul.f32 %v678, %v870
    %v4092 = vmul.f32 %v679, %v871
    %v4093 = vmul.f32 %v680, %v872
    %v4094 = vmul.f32 %v681, %v873
    %v4095 = vmul.f32 %v682, %v874
    %v4096 = vmul.f32 %v683, %v875
    %v4097 = vmul.f32 %v684, %v876
    %v4098 = vmul.f32 %v685, %v877
    %v4099 = vmul.f32 %v686, %v878
    %v4100 = vmul.f32 %v687, %v879
    %v4101 = vmul.f32 %v688, %v880
    %v4102 = vmul.f32 %v689, %v881
    %v4103 = vmul.f32 %v3975, %v4039
    %v4104 = vmul.f32 %v3976, %v4040
    %v4105 = vmul.f32 %v3977, %v4041
    %v4106 = vmul.f32 %v3978, %v4042
    %v4107 = vmul.f32 %v3979, %v4043
    %v4108 = vmul.f32 %v3980, %v4044
    %v4109 = vmul.f32 %v3981, %v4045
    %v4110 = vmul.f32 %v3982, %v4046
    %v4111 = vmul.f32 %v3983, %v4047
    %v4112 = vmul.f32 %v3984, %v4048
    %v4113 = vmul.f32 %v3985, %v4049
    %v4114 = vmul.f32 %v3986, %v4050
    %v4115 = vmul.f32 %v3987, %v4051
    %v4116 = vmul.f32 %v3988, %v4052
    %v4117 = vmul.f32 %v3989, %v4053
    %v4118 = vmul.f32 %v3990, %v4054
    %v4119 = vmul.f32 %v3991, %v4055
    %v4120 = vmul.f32 %v3992, %v4056
    %v4121 = vmul.f32 %v3993, %v4057
    %v4122 = vmul.f32 %v3994, %v4058
    %v4123 = vmul.f32 %v3995, %v4059
    %v4124 = vmul.f32 %v3996, %v4060
    %v4125 = vmul.f32 %v3997, %v4061
    %v4126 = vmul.f32 %v3998, %v4062
    %v4127 = vmul.f32 %v3999, %v4063
    %v4128 = vmul.f32 %v4000, %v4064
    %v4129 = vmul.f32 %v4001, %v4065
    %v4130 = vmul.f32 %v4002, %v4066
    %v4131 = vmul.f32 %v4003, %v4067
    %v4132 = vmul.f32 %v4004, %v4068
    %v4133 = vmul.f32 %v4005, %v4069
    %v4134 = vmul.f32 %v4006, %v4070
    %v4135 = vmul.f32 %v4007, %v4071
    %v4136 = vmul.f32 %v4008, %v4072
    %v4137 = vmul.f32 %v4009, %v4073
    %v4138 = vmul.f32 %v4010, %v4074
    %v4139 = vmul.f32 %v4011, %v4075
    %v4140 = vmul.f32 %v4012, %v4076
    %v4141 = vmul.f32 %v4013, %v4077
    %v4142 = vmul.f32 %v4014, %v4078
    %v4143 = vmul.f32 %v4015, %v4079
    %v4144 = vmul.f32 %v4016, %v4080
    %v4145 = vmul.f32 %v4017, %v4081
    %v4146 = vmul.f32 %v4018, %v4082
    %v4147 = vmul.f32 %v4019, %v4083
    %v4148 = vmul.f32 %v4020, %v4084
    %v4149 = vmul.f32 %v4021, %v4085
    %v4150 = vmul.f32 %v4022, %v4086
    %v4151 = vmul.f32 %v4023, %v4087
    %v4152 = vmul.f32 %v4024, %v4088
    %v4153 = vmul.f32 %v4025, %v4089
    %v4154 = vmul.f32 %v4026, %v4090
    %v4155 = vmul.f32 %v4027, %v4091
    %v4156 = vmul.f32 %v4028, %v4092
    %v4157 = vmul.f32 %v4029, %v4093
    %v4158 = vmul.f32 %v4030, %v4094
    %v4159 = vmul.f32 %v4031, %v4095
    %v4160 = vmul.f32 %v4032, %v4096
    %v4161 = vmul.f32 %v4033, %v4097
    %v4162 = vmul.f32 %v4034, %v4098
    %v4163 = vmul.f32 %v4035, %v4099
    %v4164 = vmul.f32 %v4036, %v4100
    %v4165 = vmul.f32 %v4037, %v4101
    %v4166 = vmul.f32 %v4038, %v4102
    %v4167 = vpack.c.bf16 %v4104, %v4103
    %v4168 = vpack.c.bf16 %v4106, %v4105
    %v4169 = vpack.c.bf16 %v4108, %v4107
    %v4170 = vpack.c.bf16 %v4110, %v4109
    %v4171 = vpack.c.bf16 %v4112, %v4111
    %v4172 = vpack.c.bf16 %v4114, %v4113
    %v4173 = vpack.c.bf16 %v4116, %v4115
    %v4174 = vpack.c.bf16 %v4118, %v4117
    %v4175 = vpack.c.bf16 %v4120, %v4119
    %v4176 = vpack.c.bf16 %v4122, %v4121
    %v4177 = vpack.c.bf16 %v4124, %v4123
    %v4178 = vpack.c.bf16 %v4126, %v4125
    %v4179 = vpack.c.bf16 %v4128, %v4127
    %v4180 = vpack.c.bf16 %v4130, %v4129
    %v4181 = vpack.c.bf16 %v4132, %v4131
    %v4182 = vpack.c.bf16 %v4134, %v4133
    %v4183 = vpack.c.bf16 %v4136, %v4135
    %v4184 = vpack.c.bf16 %v4138, %v4137
    %v4185 = vpack.c.bf16 %v4140, %v4139
    %v4186 = vpack.c.bf16 %v4142, %v4141
    %v4187 = vpack.c.bf16 %v4144, %v4143
    %v4188 = vpack.c.bf16 %v4146, %v4145
    %v4189 = vpack.c.bf16 %v4148, %v4147
    %v4190 = vpack.c.bf16 %v4150, %v4149
    %v4191 = vpack.c.bf16 %v4152, %v4151
    %v4192 = vpack.c.bf16 %v4154, %v4153
    %v4193 = vpack.c.bf16 %v4156, %v4155
    %v4194 = vpack.c.bf16 %v4158, %v4157
    %v4195 = vpack.c.bf16 %v4160, %v4159
    %v4196 = vpack.c.bf16 %v4162, %v4161
    %v4197 = vpack.c.bf16 %v4164, %v4163
    %v4198 = vpack.c.bf16 %v4166, %v4165
    %s4199 = scalar_lea.vmem %s1, 24
    %v4200 = vld [vmem:[%s4199] sm:$0xf]
    %v4202 = vsel %vm1461, %v4167, 0
    %v4205 = vsel %vm1461, %v4168, 0
    %v4208 = vsel %vm1461, %v4169, 0
    %v4211 = vsel %vm1461, %v4170, 0
    %v4214 = vsel %vm1461, %v4171, 0
    %v4217 = vsel %vm1461, %v4172, 0
    %v4220 = vsel %vm1461, %v4173, 0
    %v4223 = vsel %vm1461, %v4174, 0
    %v4226 = vsel %vm1461, %v4175, 0
    %v4229 = vsel %vm1461, %v4176, 0
    %v4232 = vsel %vm1461, %v4177, 0
    %v4235 = vsel %vm1461, %v4178, 0
    %v4238 = vsel %vm1461, %v4179, 0
    %v4241 = vsel %vm1461, %v4180, 0
    %v4244 = vsel %vm1461, %v4181, 0
    %v4247 = vsel %vm1461, %v4182, 0
    %v4250 = vsel %vm1461, %v4183, 0
    %v4253 = vsel %vm1461, %v4184, 0
    %v4256 = vsel %vm1461, %v4185, 0
    %v4259 = vsel %vm1461, %v4186, 0
    %v4262 = vsel %vm1461, %v4187, 0
    %v4265 = vsel %vm1461, %v4188, 0
    %v4268 = vsel %vm1461, %v4189, 0
    %v4271 = vsel %vm1461, %v4190, 0
    %v4274 = vsel %vm1461, %v4191, 0
    %v4277 = vsel %vm1461, %v4192, 0
    %v4280 = vsel %vm1461, %v4193, 0
    %v4283 = vsel %vm1461, %v4194, 0
    %v4286 = vsel %vm1461, %v4195, 0
    %v4289 = vsel %vm1461, %v4196, 0
    %v4292 = vsel %vm1461, %v4197, 0
    %v4295 = vsel %vm1461, %v4198, 0
    %v4298 = vsel %vm1558, %v4200, 0
    %4300 = vmatpush.bf16.msra.mxu0 0
    %4301 = vmatpush.bf16.msra.mxu0 0
    %4302 = vmatpush.bf16.msra.mxu0 0
    %4303 = vmatpush.bf16.msra.mxu0 0
    %4304 = vmatpush.bf16.msra.mxu0 0
    %4305 = vmatpush.bf16.msra.mxu0 0
    %4306 = vmatpush.bf16.msra.mxu0 0
    %4307 = vmatpush.bf16.msra.mxu0 %v4298
    %4308 = vmatmul.bf16.gmra.mxu0 %v4202
    %v4309 = vpop.f32.mrf.mxu0
    %v4310 = vadd.f32 0.0, %v4309
    %v4311 = vpop.f32.mrf.mxu0
    %v4312 = vadd.f32 0.0, %v4311
    %4313 = vmatmul.bf16.gmra.mxu0 %v4205
    %v4314 = vpop.f32.mrf.mxu0
    %v4315 = vadd.f32 0.0, %v4314
    %v4316 = vpop.f32.mrf.mxu0
    %v4317 = vadd.f32 0.0, %v4316
    %4318 = vmatmul.bf16.gmra.mxu0 %v4208
    %v4319 = vpop.f32.mrf.mxu0
    %v4320 = vadd.f32 0.0, %v4319
    %v4321 = vpop.f32.mrf.mxu0
    %v4322 = vadd.f32 0.0, %v4321
    %4323 = vmatmul.bf16.gmra.mxu0 %v4211
    %v4324 = vpop.f32.mrf.mxu0
    %v4325 = vadd.f32 0.0, %v4324
    %v4326 = vpop.f32.mrf.mxu0
    %v4327 = vadd.f32 0.0, %v4326
    %4328 = vmatmul.bf16.gmra.mxu0 %v4214
    %v4329 = vpop.f32.mrf.mxu0
    %v4330 = vadd.f32 0.0, %v4329
    %v4331 = vpop.f32.mrf.mxu0
    %v4332 = vadd.f32 0.0, %v4331
    %4333 = vmatmul.bf16.gmra.mxu0 %v4217
    %v4334 = vpop.f32.mrf.mxu0
    %v4335 = vadd.f32 0.0, %v4334
    %v4336 = vpop.f32.mrf.mxu0
    %v4337 = vadd.f32 0.0, %v4336
    %4338 = vmatmul.bf16.gmra.mxu0 %v4220
    %v4339 = vpop.f32.mrf.mxu0
    %v4340 = vadd.f32 0.0, %v4339
    %v4341 = vpop.f32.mrf.mxu0
    %v4342 = vadd.f32 0.0, %v4341
    %4343 = vmatmul.bf16.gmra.mxu0 %v4223
    %v4344 = vpop.f32.mrf.mxu0
    %v4345 = vadd.f32 0.0, %v4344
    %v4346 = vpop.f32.mrf.mxu0
    %v4347 = vadd.f32 0.0, %v4346
    %4348 = vmatmul.bf16.gmra.mxu0 %v4226
    %v4349 = vpop.f32.mrf.mxu0
    %v4350 = vadd.f32 0.0, %v4349
    %v4351 = vpop.f32.mrf.mxu0
    %v4352 = vadd.f32 0.0, %v4351
    %4353 = vmatmul.bf16.gmra.mxu0 %v4229
    %v4354 = vpop.f32.mrf.mxu0
    %v4355 = vadd.f32 0.0, %v4354
    %v4356 = vpop.f32.mrf.mxu0
    %v4357 = vadd.f32 0.0, %v4356
    %4358 = vmatmul.bf16.gmra.mxu0 %v4232
    %v4359 = vpop.f32.mrf.mxu0
    %v4360 = vadd.f32 0.0, %v4359
    %v4361 = vpop.f32.mrf.mxu0
    %v4362 = vadd.f32 0.0, %v4361
    %4363 = vmatmul.bf16.gmra.mxu0 %v4235
    %v4364 = vpop.f32.mrf.mxu0
    %v4365 = vadd.f32 0.0, %v4364
    %v4366 = vpop.f32.mrf.mxu0
    %v4367 = vadd.f32 0.0, %v4366
    %4368 = vmatmul.bf16.gmra.mxu0 %v4238
    %v4369 = vpop.f32.mrf.mxu0
    %v4370 = vadd.f32 0.0, %v4369
    %v4371 = vpop.f32.mrf.mxu0
    %v4372 = vadd.f32 0.0, %v4371
    %4373 = vmatmul.bf16.gmra.mxu0 %v4241
    %v4374 = vpop.f32.mrf.mxu0
    %v4375 = vadd.f32 0.0, %v4374
    %v4376 = vpop.f32.mrf.mxu0
    %v4377 = vadd.f32 0.0, %v4376
    %4378 = vmatmul.bf16.gmra.mxu0 %v4244
    %v4379 = vpop.f32.mrf.mxu0
    %v4380 = vadd.f32 0.0, %v4379
    %v4381 = vpop.f32.mrf.mxu0
    %v4382 = vadd.f32 0.0, %v4381
    %4383 = vmatmul.bf16.gmra.mxu0 %v4247
    %v4384 = vpop.f32.mrf.mxu0
    %v4385 = vadd.f32 0.0, %v4384
    %v4386 = vpop.f32.mrf.mxu0
    %v4387 = vadd.f32 0.0, %v4386
    %4388 = vmatmul.bf16.gmra.mxu0 %v4250
    %v4389 = vpop.f32.mrf.mxu0
    %v4390 = vadd.f32 0.0, %v4389
    %v4391 = vpop.f32.mrf.mxu0
    %v4392 = vadd.f32 0.0, %v4391
    %4393 = vmatmul.bf16.gmra.mxu0 %v4253
    %v4394 = vpop.f32.mrf.mxu0
    %v4395 = vadd.f32 0.0, %v4394
    %v4396 = vpop.f32.mrf.mxu0
    %v4397 = vadd.f32 0.0, %v4396
    %4398 = vmatmul.bf16.gmra.mxu0 %v4256
    %v4399 = vpop.f32.mrf.mxu0
    %v4400 = vadd.f32 0.0, %v4399
    %v4401 = vpop.f32.mrf.mxu0
    %v4402 = vadd.f32 0.0, %v4401
    %4403 = vmatmul.bf16.gmra.mxu0 %v4259
    %v4404 = vpop.f32.mrf.mxu0
    %v4405 = vadd.f32 0.0, %v4404
    %v4406 = vpop.f32.mrf.mxu0
    %v4407 = vadd.f32 0.0, %v4406
    %4408 = vmatmul.bf16.gmra.mxu0 %v4262
    %v4409 = vpop.f32.mrf.mxu0
    %v4410 = vadd.f32 0.0, %v4409
    %v4411 = vpop.f32.mrf.mxu0
    %v4412 = vadd.f32 0.0, %v4411
    %4413 = vmatmul.bf16.gmra.mxu0 %v4265
    %v4414 = vpop.f32.mrf.mxu0
    %v4415 = vadd.f32 0.0, %v4414
    %v4416 = vpop.f32.mrf.mxu0
    %v4417 = vadd.f32 0.0, %v4416
    %4418 = vmatmul.bf16.gmra.mxu0 %v4268
    %v4419 = vpop.f32.mrf.mxu0
    %v4420 = vadd.f32 0.0, %v4419
    %v4421 = vpop.f32.mrf.mxu0
    %v4422 = vadd.f32 0.0, %v4421
    %4423 = vmatmul.bf16.gmra.mxu0 %v4271
    %v4424 = vpop.f32.mrf.mxu0
    %v4425 = vadd.f32 0.0, %v4424
    %v4426 = vpop.f32.mrf.mxu0
    %v4427 = vadd.f32 0.0, %v4426
    %4428 = vmatmul.bf16.gmra.mxu0 %v4274
    %v4429 = vpop.f32.mrf.mxu0
    %v4430 = vadd.f32 0.0, %v4429
    %v4431 = vpop.f32.mrf.mxu0
    %v4432 = vadd.f32 0.0, %v4431
    %4433 = vmatmul.bf16.gmra.mxu0 %v4277
    %v4434 = vpop.f32.mrf.mxu0
    %v4435 = vadd.f32 0.0, %v4434
    %v4436 = vpop.f32.mrf.mxu0
    %v4437 = vadd.f32 0.0, %v4436
    %4438 = vmatmul.bf16.gmra.mxu0 %v4280
    %v4439 = vpop.f32.mrf.mxu0
    %v4440 = vadd.f32 0.0, %v4439
    %v4441 = vpop.f32.mrf.mxu0
    %v4442 = vadd.f32 0.0, %v4441
    %4443 = vmatmul.bf16.gmra.mxu0 %v4283
    %v4444 = vpop.f32.mrf.mxu0
    %v4445 = vadd.f32 0.0, %v4444
    %v4446 = vpop.f32.mrf.mxu0
    %v4447 = vadd.f32 0.0, %v4446
    %4448 = vmatmul.bf16.gmra.mxu0 %v4286
    %v4449 = vpop.f32.mrf.mxu0
    %v4450 = vadd.f32 0.0, %v4449
    %v4451 = vpop.f32.mrf.mxu0
    %v4452 = vadd.f32 0.0, %v4451
    %4453 = vmatmul.bf16.gmra.mxu0 %v4289
    %v4454 = vpop.f32.mrf.mxu0
    %v4455 = vadd.f32 0.0, %v4454
    %v4456 = vpop.f32.mrf.mxu0
    %v4457 = vadd.f32 0.0, %v4456
    %4458 = vmatmul.bf16.gmra.mxu0 %v4292
    %v4459 = vpop.f32.mrf.mxu0
    %v4460 = vadd.f32 0.0, %v4459
    %v4461 = vpop.f32.mrf.mxu0
    %v4462 = vadd.f32 0.0, %v4461
    %4463 = vmatmul.bf16.gmra.mxu0 %v4295
    %v4464 = vpop.f32.mrf.mxu0
    %v4465 = vadd.f32 0.0, %v4464
    %v4466 = vpop.f32.mrf.mxu0
    %v4467 = vadd.f32 0.0, %v4466
    %4468 = vdwg.mxu0
    %v4469 = vadd.f32 %v3911, %v4310
    %v4470 = vadd.f32 %v3912, %v4312
    %v4471 = vadd.f32 %v3913, %v4315
    %v4472 = vadd.f32 %v3914, %v4317
    %v4473 = vadd.f32 %v3915, %v4320
    %v4474 = vadd.f32 %v3916, %v4322
    %v4475 = vadd.f32 %v3917, %v4325
    %v4476 = vadd.f32 %v3918, %v4327
    %v4477 = vadd.f32 %v3919, %v4330
    %v4478 = vadd.f32 %v3920, %v4332
    %v4479 = vadd.f32 %v3921, %v4335
    %v4480 = vadd.f32 %v3922, %v4337
    %v4481 = vadd.f32 %v3923, %v4340
    %v4482 = vadd.f32 %v3924, %v4342
    %v4483 = vadd.f32 %v3925, %v4345
    %v4484 = vadd.f32 %v3926, %v4347
    %v4485 = vadd.f32 %v3927, %v4350
    %v4486 = vadd.f32 %v3928, %v4352
    %v4487 = vadd.f32 %v3929, %v4355
    %v4488 = vadd.f32 %v3930, %v4357
    %v4489 = vadd.f32 %v3931, %v4360
    %v4490 = vadd.f32 %v3932, %v4362
    %v4491 = vadd.f32 %v3933, %v4365
    %v4492 = vadd.f32 %v3934, %v4367
    %v4493 = vadd.f32 %v3935, %v4370
    %v4494 = vadd.f32 %v3936, %v4372
    %v4495 = vadd.f32 %v3937, %v4375
    %v4496 = vadd.f32 %v3938, %v4377
    %v4497 = vadd.f32 %v3939, %v4380
    %v4498 = vadd.f32 %v3940, %v4382
    %v4499 = vadd.f32 %v3941, %v4385
    %v4500 = vadd.f32 %v3942, %v4387
    %v4501 = vadd.f32 %v3943, %v4390
    %v4502 = vadd.f32 %v3944, %v4392
    %v4503 = vadd.f32 %v3945, %v4395
    %v4504 = vadd.f32 %v3946, %v4397
    %v4505 = vadd.f32 %v3947, %v4400
    %v4506 = vadd.f32 %v3948, %v4402
    %v4507 = vadd.f32 %v3949, %v4405
    %v4508 = vadd.f32 %v3950, %v4407
    %v4509 = vadd.f32 %v3951, %v4410
    %v4510 = vadd.f32 %v3952, %v4412
    %v4511 = vadd.f32 %v3953, %v4415
    %v4512 = vadd.f32 %v3954, %v4417
    %v4513 = vadd.f32 %v3955, %v4420
    %v4514 = vadd.f32 %v3956, %v4422
    %v4515 = vadd.f32 %v3957, %v4425
    %v4516 = vadd.f32 %v3958, %v4427
    %v4517 = vadd.f32 %v3959, %v4430
    %v4518 = vadd.f32 %v3960, %v4432
    %v4519 = vadd.f32 %v3961, %v4435
    %v4520 = vadd.f32 %v3962, %v4437
    %v4521 = vadd.f32 %v3963, %v4440
    %v4522 = vadd.f32 %v3964, %v4442
    %v4523 = vadd.f32 %v3965, %v4445
    %v4524 = vadd.f32 %v3966, %v4447
    %v4525 = vadd.f32 %v3967, %v4450
    %v4526 = vadd.f32 %v3968, %v4452
    %v4527 = vadd.f32 %v3969, %v4455
    %v4528 = vadd.f32 %v3970, %v4457
    %v4529 = vadd.f32 %v3971, %v4460
    %v4530 = vadd.f32 %v3972, %v4462
    %v4531 = vadd.f32 %v3973, %v4465
    %v4532 = vadd.f32 %v3974, %v4467
    %v4533 = vld [vmem:[%s0 + $0x28] sm:$0xff]
    %v4534 = vld [vmem:[%s0 + $0x30] sm:$0xff]
    %v4535 = vld [vmem:[%s0 + $0x38] sm:$0xff]
    %v4536 = vld [vmem:[%s0 + $0x40] sm:$0xff]
    %v4537 = vld [vmem:[%s0 + $0x48] sm:$0xff]
    %v4538 = vld [vmem:[%s0 + $0x50] sm:$0xff]
    %v4539 = vld [vmem:[%s0 + $0x58] sm:$0xff]
    %v4540 = vld [vmem:[%s0 + $0x60] sm:$0xff]
    %v4541 = vld [vmem:[%s0 + $0x68] sm:$0xff]
    %v4542 = vld [vmem:[%s0 + $0x70] sm:$0xff]
    %v4543 = vld [vmem:[%s0 + $0x78] sm:$0xff]
    %v4544 = vld [vmem:[%s0 + $0x80] sm:$0xff]
    %v4545 = vld [vmem:[%s0 + $0x88] sm:$0xff]
    %v4546 = vld [vmem:[%s0 + $0x90] sm:$0xff]
    %v4547 = vld [vmem:[%s0 + $0x98] sm:$0xff]
    %v4548 = vld [vmem:[%s0 + $0xa0] sm:$0xff]
    %v4549 = vld [vmem:[%s0 + $0xa8] sm:$0xff]
    %v4550 = vld [vmem:[%s0 + $0xb0] sm:$0xff]
    %v4551 = vld [vmem:[%s0 + $0xb8] sm:$0xff]
    %v4552 = vld [vmem:[%s0 + $0xc0] sm:$0xff]
    %v4553 = vld [vmem:[%s0 + $0xc8] sm:$0xff]
    %v4554 = vld [vmem:[%s0 + $0xd0] sm:$0xff]
    %v4555 = vld [vmem:[%s0 + $0xd8] sm:$0xff]
    %v4556 = vld [vmem:[%s0 + $0xe0] sm:$0xff]
    %v4557 = vld [vmem:[%s0 + $0xe8] sm:$0xff]
    %v4558 = vld [vmem:[%s0 + $0xf0] sm:$0xff]
    %v4559 = vld [vmem:[%s0 + $0xf8] sm:$0xff]
    %v4560 = vld [vmem:[%s0 + $0x100] sm:$0xff]
    %v4561 = vld [vmem:[%s0 + $0x108] sm:$0xff]
    %v4562 = vld [vmem:[%s0 + $0x110] sm:$0xff]
    %v4563 = vld [vmem:[%s0 + $0x118] sm:$0xff]
    %v4564 = vld [vmem:[%s0 + $0x120] sm:$0xff]
    %v4565 = vld [vmem:[%s0 + $0x128] sm:$0xff]
    %v4566 = vld [vmem:[%s0 + $0x130] sm:$0xff]
    %v4567 = vld [vmem:[%s0 + $0x138] sm:$0xff]
    %v4568 = vld [vmem:[%s0 + $0x140] sm:$0xff]
    %v4569 = vld [vmem:[%s0 + $0x148] sm:$0xff]
    %v4570 = vld [vmem:[%s0 + $0x150] sm:$0xff]
    %v4571 = vld [vmem:[%s0 + $0x158] sm:$0xff]
    %v4572 = vld [vmem:[%s0 + $0x160] sm:$0xff]
    %v4573 = vld [vmem:[%s0 + $0x168] sm:$0xff]
    %v4574 = vld [vmem:[%s0 + $0x170] sm:$0xff]
    %v4575 = vld [vmem:[%s0 + $0x178] sm:$0xff]
    %v4576 = vld [vmem:[%s0 + $0x180] sm:$0xff]
    %v4577 = vld [vmem:[%s0 + $0x188] sm:$0xff]
    %v4578 = vld [vmem:[%s0 + $0x190] sm:$0xff]
    %v4579 = vld [vmem:[%s0 + $0x198] sm:$0xff]
    %v4580 = vld [vmem:[%s0 + $0x1a0] sm:$0xff]
    %v4581 = vld [vmem:[%s0 + $0x1a8] sm:$0xff]
    %v4582 = vld [vmem:[%s0 + $0x1b0] sm:$0xff]
    %v4583 = vld [vmem:[%s0 + $0x1b8] sm:$0xff]
    %v4584 = vld [vmem:[%s0 + $0x1c0] sm:$0xff]
    %v4585 = vld [vmem:[%s0 + $0x1c8] sm:$0xff]
    %v4586 = vld [vmem:[%s0 + $0x1d0] sm:$0xff]
    %v4587 = vld [vmem:[%s0 + $0x1d8] sm:$0xff]
    %v4588 = vld [vmem:[%s0 + $0x1e0] sm:$0xff]
    %v4589 = vld [vmem:[%s0 + $0x1e8] sm:$0xff]
    %v4590 = vld [vmem:[%s0 + $0x1f0] sm:$0xff]
    %v4591 = vld [vmem:[%s0 + $0x1f8] sm:$0xff]
    %v4592 = vld [vmem:[%s0 + $0x200] sm:$0xff]
    %v4593 = vld [vmem:[%s0 + $0x208] sm:$0xff]
    %v4594 = vld [vmem:[%s0 + $0x210] sm:$0xff]
    %v4595 = vld [vmem:[%s0 + $0x218] sm:$0xff]
    %v4596 = vld [vmem:[%s0 + $0x220] sm:$0xff]
    %v4597 = vmul.f32 %v4533, %v626
    %v4598 = vmul.f32 %v4534, %v627
    %v4599 = vmul.f32 %v4535, %v628
    %v4600 = vmul.f32 %v4536, %v629
    %v4601 = vmul.f32 %v4537, %v630
    %v4602 = vmul.f32 %v4538, %v631
    %v4603 = vmul.f32 %v4539, %v632
    %v4604 = vmul.f32 %v4540, %v633
    %v4605 = vmul.f32 %v4541, %v634
    %v4606 = vmul.f32 %v4542, %v635
    %v4607 = vmul.f32 %v4543, %v636
    %v4608 = vmul.f32 %v4544, %v637
    %v4609 = vmul.f32 %v4545, %v638
    %v4610 = vmul.f32 %v4546, %v639
    %v4611 = vmul.f32 %v4547, %v640
    %v4612 = vmul.f32 %v4548, %v641
    %v4613 = vmul.f32 %v4549, %v642
    %v4614 = vmul.f32 %v4550, %v643
    %v4615 = vmul.f32 %v4551, %v644
    %v4616 = vmul.f32 %v4552, %v645
    %v4617 = vmul.f32 %v4553, %v646
    %v4618 = vmul.f32 %v4554, %v647
    %v4619 = vmul.f32 %v4555, %v648
    %v4620 = vmul.f32 %v4556, %v649
    %v4621 = vmul.f32 %v4557, %v650
    %v4622 = vmul.f32 %v4558, %v651
    %v4623 = vmul.f32 %v4559, %v652
    %v4624 = vmul.f32 %v4560, %v653
    %v4625 = vmul.f32 %v4561, %v654
    %v4626 = vmul.f32 %v4562, %v655
    %v4627 = vmul.f32 %v4563, %v656
    %v4628 = vmul.f32 %v4564, %v657
    %v4629 = vmul.f32 %v4565, %v658
    %v4630 = vmul.f32 %v4566, %v659
    %v4631 = vmul.f32 %v4567, %v660
    %v4632 = vmul.f32 %v4568, %v661
    %v4633 = vmul.f32 %v4569, %v662
    %v4634 = vmul.f32 %v4570, %v663
    %v4635 = vmul.f32 %v4571, %v664
    %v4636 = vmul.f32 %v4572, %v665
    %v4637 = vmul.f32 %v4573, %v666
    %v4638 = vmul.f32 %v4574, %v667
    %v4639 = vmul.f32 %v4575, %v668
    %v4640 = vmul.f32 %v4576, %v669
    %v4641 = vmul.f32 %v4577, %v670
    %v4642 = vmul.f32 %v4578, %v671
    %v4643 = vmul.f32 %v4579, %v672
    %v4644 = vmul.f32 %v4580, %v673
    %v4645 = vmul.f32 %v4581, %v674
    %v4646 = vmul.f32 %v4582, %v675
    %v4647 = vmul.f32 %v4583, %v676
    %v4648 = vmul.f32 %v4584, %v677
    %v4649 = vmul.f32 %v4585, %v678
    %v4650 = vmul.f32 %v4586, %v679
    %v4651 = vmul.f32 %v4587, %v680
    %v4652 = vmul.f32 %v4588, %v681
    %v4653 = vmul.f32 %v4589, %v682
    %v4654 = vmul.f32 %v4590, %v683
    %v4655 = vmul.f32 %v4591, %v684
    %v4656 = vmul.f32 %v4592, %v685
    %v4657 = vmul.f32 %v4593, %v686
    %v4658 = vmul.f32 %v4594, %v687
    %v4659 = vmul.f32 %v4595, %v688
    %v4660 = vmul.f32 %v4596, %v689
    %v4661 = vpack.c.bf16 %v4598, %v4597
    %v4662 = vpack.c.bf16 %v4600, %v4599
    %v4663 = vpack.c.bf16 %v4602, %v4601
    %v4664 = vpack.c.bf16 %v4604, %v4603
    %v4665 = vpack.c.bf16 %v4606, %v4605
    %v4666 = vpack.c.bf16 %v4608, %v4607
    %v4667 = vpack.c.bf16 %v4610, %v4609
    %v4668 = vpack.c.bf16 %v4612, %v4611
    %v4669 = vpack.c.bf16 %v4614, %v4613
    %v4670 = vpack.c.bf16 %v4616, %v4615
    %v4671 = vpack.c.bf16 %v4618, %v4617
    %v4672 = vpack.c.bf16 %v4620, %v4619
    %v4673 = vpack.c.bf16 %v4622, %v4621
    %v4674 = vpack.c.bf16 %v4624, %v4623
    %v4675 = vpack.c.bf16 %v4626, %v4625
    %v4676 = vpack.c.bf16 %v4628, %v4627
    %v4677 = vpack.c.bf16 %v4630, %v4629
    %v4678 = vpack.c.bf16 %v4632, %v4631
    %v4679 = vpack.c.bf16 %v4634, %v4633
    %v4680 = vpack.c.bf16 %v4636, %v4635
    %v4681 = vpack.c.bf16 %v4638, %v4637
    %v4682 = vpack.c.bf16 %v4640, %v4639
    %v4683 = vpack.c.bf16 %v4642, %v4641
    %v4684 = vpack.c.bf16 %v4644, %v4643
    %v4685 = vpack.c.bf16 %v4646, %v4645
    %v4686 = vpack.c.bf16 %v4648, %v4647
    %v4687 = vpack.c.bf16 %v4650, %v4649
    %v4688 = vpack.c.bf16 %v4652, %v4651
    %v4689 = vpack.c.bf16 %v4654, %v4653
    %v4690 = vpack.c.bf16 %v4656, %v4655
    %v4691 = vpack.c.bf16 %v4658, %v4657
    %v4692 = vpack.c.bf16 %v4660, %v4659
    %s4693 = scalar_lea.vmem %s1, 28
    %v4694 = vld [vmem:[%s4693] sm:$0xf]
    %v4696 = vsel %vm1461, %v4661, 0
    %v4699 = vsel %vm1461, %v4662, 0
    %v4702 = vsel %vm1461, %v4663, 0
    %v4705 = vsel %vm1461, %v4664, 0
    %v4708 = vsel %vm1461, %v4665, 0
    %v4711 = vsel %vm1461, %v4666, 0
    %v4714 = vsel %vm1461, %v4667, 0
    %v4717 = vsel %vm1461, %v4668, 0
    %v4720 = vsel %vm1461, %v4669, 0
    %v4723 = vsel %vm1461, %v4670, 0
    %v4726 = vsel %vm1461, %v4671, 0
    %v4729 = vsel %vm1461, %v4672, 0
    %v4732 = vsel %vm1461, %v4673, 0
    %v4735 = vsel %vm1461, %v4674, 0
    %v4738 = vsel %vm1461, %v4675, 0
    %v4741 = vsel %vm1461, %v4676, 0
    %v4744 = vsel %vm1461, %v4677, 0
    %v4747 = vsel %vm1461, %v4678, 0
    %v4750 = vsel %vm1461, %v4679, 0
    %v4753 = vsel %vm1461, %v4680, 0
    %v4756 = vsel %vm1461, %v4681, 0
    %v4759 = vsel %vm1461, %v4682, 0
    %v4762 = vsel %vm1461, %v4683, 0
    %v4765 = vsel %vm1461, %v4684, 0
    %v4768 = vsel %vm1461, %v4685, 0
    %v4771 = vsel %vm1461, %v4686, 0
    %v4774 = vsel %vm1461, %v4687, 0
    %v4777 = vsel %vm1461, %v4688, 0
    %v4780 = vsel %vm1461, %v4689, 0
    %v4783 = vsel %vm1461, %v4690, 0
    %v4786 = vsel %vm1461, %v4691, 0
    %v4789 = vsel %vm1461, %v4692, 0
    %v4792 = vsel %vm1558, %v4694, 0
    %4794 = vmatpush.bf16.msra.mxu0 0
    %4795 = vmatpush.bf16.msra.mxu0 0
    %4796 = vmatpush.bf16.msra.mxu0 0
    %4797 = vmatpush.bf16.msra.mxu0 0
    %4798 = vmatpush.bf16.msra.mxu0 0
    %4799 = vmatpush.bf16.msra.mxu0 0
    %4800 = vmatpush.bf16.msra.mxu0 0
    %4801 = vmatpush.bf16.msra.mxu0 %v4792
    %4802 = vmatmul.bf16.gmra.mxu0 %v4696
    %v4803 = vpop.f32.mrf.mxu0
    %v4804 = vadd.f32 0.0, %v4803
    %v4805 = vpop.f32.mrf.mxu0
    %v4806 = vadd.f32 0.0, %v4805
    %4807 = vmatmul.bf16.gmra.mxu0 %v4699
    %v4808 = vpop.f32.mrf.mxu0
    %v4809 = vadd.f32 0.0, %v4808
    %v4810 = vpop.f32.mrf.mxu0
    %v4811 = vadd.f32 0.0, %v4810
    %4812 = vmatmul.bf16.gmra.mxu0 %v4702
    %v4813 = vpop.f32.mrf.mxu0
    %v4814 = vadd.f32 0.0, %v4813
    %v4815 = vpop.f32.mrf.mxu0
    %v4816 = vadd.f32 0.0, %v4815
    %4817 = vmatmul.bf16.gmra.mxu0 %v4705
    %v4818 = vpop.f32.mrf.mxu0
    %v4819 = vadd.f32 0.0, %v4818
    %v4820 = vpop.f32.mrf.mxu0
    %v4821 = vadd.f32 0.0, %v4820
    %4822 = vmatmul.bf16.gmra.mxu0 %v4708
    %v4823 = vpop.f32.mrf.mxu0
    %v4824 = vadd.f32 0.0, %v4823
    %v4825 = vpop.f32.mrf.mxu0
    %v4826 = vadd.f32 0.0, %v4825
    %4827 = vmatmul.bf16.gmra.mxu0 %v4711
    %v4828 = vpop.f32.mrf.mxu0
    %v4829 = vadd.f32 0.0, %v4828
    %v4830 = vpop.f32.mrf.mxu0
    %v4831 = vadd.f32 0.0, %v4830
    %4832 = vmatmul.bf16.gmra.mxu0 %v4714
    %v4833 = vpop.f32.mrf.mxu0
    %v4834 = vadd.f32 0.0, %v4833
    %v4835 = vpop.f32.mrf.mxu0
    %v4836 = vadd.f32 0.0, %v4835
    %4837 = vmatmul.bf16.gmra.mxu0 %v4717
    %v4838 = vpop.f32.mrf.mxu0
    %v4839 = vadd.f32 0.0, %v4838
    %v4840 = vpop.f32.mrf.mxu0
    %v4841 = vadd.f32 0.0, %v4840
    %4842 = vmatmul.bf16.gmra.mxu0 %v4720
    %v4843 = vpop.f32.mrf.mxu0
    %v4844 = vadd.f32 0.0, %v4843
    %v4845 = vpop.f32.mrf.mxu0
    %v4846 = vadd.f32 0.0, %v4845
    %4847 = vmatmul.bf16.gmra.mxu0 %v4723
    %v4848 = vpop.f32.mrf.mxu0
    %v4849 = vadd.f32 0.0, %v4848
    %v4850 = vpop.f32.mrf.mxu0
    %v4851 = vadd.f32 0.0, %v4850
    %4852 = vmatmul.bf16.gmra.mxu0 %v4726
    %v4853 = vpop.f32.mrf.mxu0
    %v4854 = vadd.f32 0.0, %v4853
    %v4855 = vpop.f32.mrf.mxu0
    %v4856 = vadd.f32 0.0, %v4855
    %4857 = vmatmul.bf16.gmra.mxu0 %v4729
    %v4858 = vpop.f32.mrf.mxu0
    %v4859 = vadd.f32 0.0, %v4858
    %v4860 = vpop.f32.mrf.mxu0
    %v4861 = vadd.f32 0.0, %v4860
    %4862 = vmatmul.bf16.gmra.mxu0 %v4732
    %v4863 = vpop.f32.mrf.mxu0
    %v4864 = vadd.f32 0.0, %v4863
    %v4865 = vpop.f32.mrf.mxu0
    %v4866 = vadd.f32 0.0, %v4865
    %4867 = vmatmul.bf16.gmra.mxu0 %v4735
    %v4868 = vpop.f32.mrf.mxu0
    %v4869 = vadd.f32 0.0, %v4868
    %v4870 = vpop.f32.mrf.mxu0
    %v4871 = vadd.f32 0.0, %v4870
    %4872 = vmatmul.bf16.gmra.mxu0 %v4738
    %v4873 = vpop.f32.mrf.mxu0
    %v4874 = vadd.f32 0.0, %v4873
    %v4875 = vpop.f32.mrf.mxu0
    %v4876 = vadd.f32 0.0, %v4875
    %4877 = vmatmul.bf16.gmra.mxu0 %v4741
    %v4878 = vpop.f32.mrf.mxu0
    %v4879 = vadd.f32 0.0, %v4878
    %v4880 = vpop.f32.mrf.mxu0
    %v4881 = vadd.f32 0.0, %v4880
    %4882 = vmatmul.bf16.gmra.mxu0 %v4744
    %v4883 = vpop.f32.mrf.mxu0
    %v4884 = vadd.f32 0.0, %v4883
    %v4885 = vpop.f32.mrf.mxu0
    %v4886 = vadd.f32 0.0, %v4885
    %4887 = vmatmul.bf16.gmra.mxu0 %v4747
    %v4888 = vpop.f32.mrf.mxu0
    %v4889 = vadd.f32 0.0, %v4888
    %v4890 = vpop.f32.mrf.mxu0
    %v4891 = vadd.f32 0.0, %v4890
    %4892 = vmatmul.bf16.gmra.mxu0 %v4750
    %v4893 = vpop.f32.mrf.mxu0
    %v4894 = vadd.f32 0.0, %v4893
    %v4895 = vpop.f32.mrf.mxu0
    %v4896 = vadd.f32 0.0, %v4895
    %4897 = vmatmul.bf16.gmra.mxu0 %v4753
    %v4898 = vpop.f32.mrf.mxu0
    %v4899 = vadd.f32 0.0, %v4898
    %v4900 = vpop.f32.mrf.mxu0
    %v4901 = vadd.f32 0.0, %v4900
    %4902 = vmatmul.bf16.gmra.mxu0 %v4756
    %v4903 = vpop.f32.mrf.mxu0
    %v4904 = vadd.f32 0.0, %v4903
    %v4905 = vpop.f32.mrf.mxu0
    %v4906 = vadd.f32 0.0, %v4905
    %4907 = vmatmul.bf16.gmra.mxu0 %v4759
    %v4908 = vpop.f32.mrf.mxu0
    %v4909 = vadd.f32 0.0, %v4908
    %v4910 = vpop.f32.mrf.mxu0
    %v4911 = vadd.f32 0.0, %v4910
    %4912 = vmatmul.bf16.gmra.mxu0 %v4762
    %v4913 = vpop.f32.mrf.mxu0
    %v4914 = vadd.f32 0.0, %v4913
    %v4915 = vpop.f32.mrf.mxu0
    %v4916 = vadd.f32 0.0, %v4915
    %4917 = vmatmul.bf16.gmra.mxu0 %v4765
    %v4918 = vpop.f32.mrf.mxu0
    %v4919 = vadd.f32 0.0, %v4918
    %v4920 = vpop.f32.mrf.mxu0
    %v4921 = vadd.f32 0.0, %v4920
    %4922 = vmatmul.bf16.gmra.mxu0 %v4768
    %v4923 = vpop.f32.mrf.mxu0
    %v4924 = vadd.f32 0.0, %v4923
    %v4925 = vpop.f32.mrf.mxu0
    %v4926 = vadd.f32 0.0, %v4925
    %4927 = vmatmul.bf16.gmra.mxu0 %v4771
    %v4928 = vpop.f32.mrf.mxu0
    %v4929 = vadd.f32 0.0, %v4928
    %v4930 = vpop.f32.mrf.mxu0
    %v4931 = vadd.f32 0.0, %v4930
    %4932 = vmatmul.bf16.gmra.mxu0 %v4774
    %v4933 = vpop.f32.mrf.mxu0
    %v4934 = vadd.f32 0.0, %v4933
    %v4935 = vpop.f32.mrf.mxu0
    %v4936 = vadd.f32 0.0, %v4935
    %4937 = vmatmul.bf16.gmra.mxu0 %v4777
    %v4938 = vpop.f32.mrf.mxu0
    %v4939 = vadd.f32 0.0, %v4938
    %v4940 = vpop.f32.mrf.mxu0
    %v4941 = vadd.f32 0.0, %v4940
    %4942 = vmatmul.bf16.gmra.mxu0 %v4780
    %v4943 = vpop.f32.mrf.mxu0
    %v4944 = vadd.f32 0.0, %v4943
    %v4945 = vpop.f32.mrf.mxu0
    %v4946 = vadd.f32 0.0, %v4945
    %4947 = vmatmul.bf16.gmra.mxu0 %v4783
    %v4948 = vpop.f32.mrf.mxu0
    %v4949 = vadd.f32 0.0, %v4948
    %v4950 = vpop.f32.mrf.mxu0
    %v4951 = vadd.f32 0.0, %v4950
    %4952 = vmatmul.bf16.gmra.mxu0 %v4786
    %v4953 = vpop.f32.mrf.mxu0
    %v4954 = vadd.f32 0.0, %v4953
    %v4955 = vpop.f32.mrf.mxu0
    %v4956 = vadd.f32 0.0, %v4955
    %4957 = vmatmul.bf16.gmra.mxu0 %v4789
    %v4958 = vpop.f32.mrf.mxu0
    %v4959 = vadd.f32 0.0, %v4958
    %v4960 = vpop.f32.mrf.mxu0
    %v4961 = vadd.f32 0.0, %v4960
    %4962 = vdwg.mxu0
    %v4963 = vadd.f32 %v4469, %v4804
    %v4964 = vadd.f32 %v4470, %v4806
    %v4965 = vadd.f32 %v4471, %v4809
    %v4966 = vadd.f32 %v4472, %v4811
    %v4967 = vadd.f32 %v4473, %v4814
    %v4968 = vadd.f32 %v4474, %v4816
    %v4969 = vadd.f32 %v4475, %v4819
    %v4970 = vadd.f32 %v4476, %v4821
    %v4971 = vadd.f32 %v4477, %v4824
    %v4972 = vadd.f32 %v4478, %v4826
    %v4973 = vadd.f32 %v4479, %v4829
    %v4974 = vadd.f32 %v4480, %v4831
    %v4975 = vadd.f32 %v4481, %v4834
    %v4976 = vadd.f32 %v4482, %v4836
    %v4977 = vadd.f32 %v4483, %v4839
    %v4978 = vadd.f32 %v4484, %v4841
    %v4979 = vadd.f32 %v4485, %v4844
    %v4980 = vadd.f32 %v4486, %v4846
    %v4981 = vadd.f32 %v4487, %v4849
    %v4982 = vadd.f32 %v4488, %v4851
    %v4983 = vadd.f32 %v4489, %v4854
    %v4984 = vadd.f32 %v4490, %v4856
    %v4985 = vadd.f32 %v4491, %v4859
    %v4986 = vadd.f32 %v4492, %v4861
    %v4987 = vadd.f32 %v4493, %v4864
    %v4988 = vadd.f32 %v4494, %v4866
    %v4989 = vadd.f32 %v4495, %v4869
    %v4990 = vadd.f32 %v4496, %v4871
    %v4991 = vadd.f32 %v4497, %v4874
    %v4992 = vadd.f32 %v4498, %v4876
    %v4993 = vadd.f32 %v4499, %v4879
    %v4994 = vadd.f32 %v4500, %v4881
    %v4995 = vadd.f32 %v4501, %v4884
    %v4996 = vadd.f32 %v4502, %v4886
    %v4997 = vadd.f32 %v4503, %v4889
    %v4998 = vadd.f32 %v4504, %v4891
    %v4999 = vadd.f32 %v4505, %v4894
    %v5000 = vadd.f32 %v4506, %v4896
    %v5001 = vadd.f32 %v4507, %v4899
    %v5002 = vadd.f32 %v4508, %v4901
    %v5003 = vadd.f32 %v4509, %v4904
    %v5004 = vadd.f32 %v4510, %v4906
    %v5005 = vadd.f32 %v4511, %v4909
    %v5006 = vadd.f32 %v4512, %v4911
    %v5007 = vadd.f32 %v4513, %v4914
    %v5008 = vadd.f32 %v4514, %v4916
    %v5009 = vadd.f32 %v4515, %v4919
    %v5010 = vadd.f32 %v4516, %v4921
    %v5011 = vadd.f32 %v4517, %v4924
    %v5012 = vadd.f32 %v4518, %v4926
    %v5013 = vadd.f32 %v4519, %v4929
    %v5014 = vadd.f32 %v4520, %v4931
    %v5015 = vadd.f32 %v4521, %v4934
    %v5016 = vadd.f32 %v4522, %v4936
    %v5017 = vadd.f32 %v4523, %v4939
    %v5018 = vadd.f32 %v4524, %v4941
    %v5019 = vadd.f32 %v4525, %v4944
    %v5020 = vadd.f32 %v4526, %v4946
    %v5021 = vadd.f32 %v4527, %v4949
    %v5022 = vadd.f32 %v4528, %v4951
    %v5023 = vadd.f32 %v4529, %v4954
    %v5024 = vadd.f32 %v4530, %v4956
    %v5025 = vadd.f32 %v4531, %v4959
    %v5026 = vadd.f32 %v4532, %v4961
    %v5027 = vld [vmem:[%s0 + $0x29] sm:$0xff]
    %v5028 = vld [vmem:[%s0 + $0x31] sm:$0xff]
    %v5029 = vld [vmem:[%s0 + $0x39] sm:$0xff]
    %v5030 = vld [vmem:[%s0 + $0x41] sm:$0xff]
    %v5031 = vld [vmem:[%s0 + $0x49] sm:$0xff]
    %v5032 = vld [vmem:[%s0 + $0x51] sm:$0xff]
    %v5033 = vld [vmem:[%s0 + $0x59] sm:$0xff]
    %v5034 = vld [vmem:[%s0 + $0x61] sm:$0xff]
    %v5035 = vld [vmem:[%s0 + $0x69] sm:$0xff]
    %v5036 = vld [vmem:[%s0 + $0x71] sm:$0xff]
    %v5037 = vld [vmem:[%s0 + $0x79] sm:$0xff]
    %v5038 = vld [vmem:[%s0 + $0x81] sm:$0xff]
    %v5039 = vld [vmem:[%s0 + $0x89] sm:$0xff]
    %v5040 = vld [vmem:[%s0 + $0x91] sm:$0xff]
    %v5041 = vld [vmem:[%s0 + $0x99] sm:$0xff]
    %v5042 = vld [vmem:[%s0 + $0xa1] sm:$0xff]
    %v5043 = vld [vmem:[%s0 + $0xa9] sm:$0xff]
    %v5044 = vld [vmem:[%s0 + $0xb1] sm:$0xff]
    %v5045 = vld [vmem:[%s0 + $0xb9] sm:$0xff]
    %v5046 = vld [vmem:[%s0 + $0xc1] sm:$0xff]
    %v5047 = vld [vmem:[%s0 + $0xc9] sm:$0xff]
    %v5048 = vld [vmem:[%s0 + $0xd1] sm:$0xff]
    %v5049 = vld [vmem:[%s0 + $0xd9] sm:$0xff]
    %v5050 = vld [vmem:[%s0 + $0xe1] sm:$0xff]
    %v5051 = vld [vmem:[%s0 + $0xe9] sm:$0xff]
    %v5052 = vld [vmem:[%s0 + $0xf1] sm:$0xff]
    %v5053 = vld [vmem:[%s0 + $0xf9] sm:$0xff]
    %v5054 = vld [vmem:[%s0 + $0x101] sm:$0xff]
    %v5055 = vld [vmem:[%s0 + $0x109] sm:$0xff]
    %v5056 = vld [vmem:[%s0 + $0x111] sm:$0xff]
    %v5057 = vld [vmem:[%s0 + $0x119] sm:$0xff]
    %v5058 = vld [vmem:[%s0 + $0x121] sm:$0xff]
    %v5059 = vld [vmem:[%s0 + $0x129] sm:$0xff]
    %v5060 = vld [vmem:[%s0 + $0x131] sm:$0xff]
    %v5061 = vld [vmem:[%s0 + $0x139] sm:$0xff]
    %v5062 = vld [vmem:[%s0 + $0x141] sm:$0xff]
    %v5063 = vld [vmem:[%s0 + $0x149] sm:$0xff]
    %v5064 = vld [vmem:[%s0 + $0x151] sm:$0xff]
    %v5065 = vld [vmem:[%s0 + $0x159] sm:$0xff]
    %v5066 = vld [vmem:[%s0 + $0x161] sm:$0xff]
    %v5067 = vld [vmem:[%s0 + $0x169] sm:$0xff]
    %v5068 = vld [vmem:[%s0 + $0x171] sm:$0xff]
    %v5069 = vld [vmem:[%s0 + $0x179] sm:$0xff]
    %v5070 = vld [vmem:[%s0 + $0x181] sm:$0xff]
    %v5071 = vld [vmem:[%s0 + $0x189] sm:$0xff]
    %v5072 = vld [vmem:[%s0 + $0x191] sm:$0xff]
    %v5073 = vld [vmem:[%s0 + $0x199] sm:$0xff]
    %v5074 = vld [vmem:[%s0 + $0x1a1] sm:$0xff]
    %v5075 = vld [vmem:[%s0 + $0x1a9] sm:$0xff]
    %v5076 = vld [vmem:[%s0 + $0x1b1] sm:$0xff]
    %v5077 = vld [vmem:[%s0 + $0x1b9] sm:$0xff]
    %v5078 = vld [vmem:[%s0 + $0x1c1] sm:$0xff]
    %v5079 = vld [vmem:[%s0 + $0x1c9] sm:$0xff]
    %v5080 = vld [vmem:[%s0 + $0x1d1] sm:$0xff]
    %v5081 = vld [vmem:[%s0 + $0x1d9] sm:$0xff]
    %v5082 = vld [vmem:[%s0 + $0x1e1] sm:$0xff]
    %v5083 = vld [vmem:[%s0 + $0x1e9] sm:$0xff]
    %v5084 = vld [vmem:[%s0 + $0x1f1] sm:$0xff]
    %v5085 = vld [vmem:[%s0 + $0x1f9] sm:$0xff]
    %v5086 = vld [vmem:[%s0 + $0x201] sm:$0xff]
    %v5087 = vld [vmem:[%s0 + $0x209] sm:$0xff]
    %v5088 = vld [vmem:[%s0 + $0x211] sm:$0xff]
    %v5089 = vld [vmem:[%s0 + $0x219] sm:$0xff]
    %v5090 = vld [vmem:[%s0 + $0x221] sm:$0xff]
    %v5091 = vmul.f32 %v626, %v1010
    %v5092 = vmul.f32 %v627, %v1011
    %v5093 = vmul.f32 %v628, %v1012
    %v5094 = vmul.f32 %v629, %v1013
    %v5095 = vmul.f32 %v630, %v1014
    %v5096 = vmul.f32 %v631, %v1015
    %v5097 = vmul.f32 %v632, %v1016
    %v5098 = vmul.f32 %v633, %v1017
    %v5099 = vmul.f32 %v634, %v1018
    %v5100 = vmul.f32 %v635, %v1019
    %v5101 = vmul.f32 %v636, %v1020
    %v5102 = vmul.f32 %v637, %v1021
    %v5103 = vmul.f32 %v638, %v1022
    %v5104 = vmul.f32 %v639, %v1023
    %v5105 = vmul.f32 %v640, %v1024
    %v5106 = vmul.f32 %v641, %v1025
    %v5107 = vmul.f32 %v642, %v1026
    %v5108 = vmul.f32 %v643, %v1027
    %v5109 = vmul.f32 %v644, %v1028
    %v5110 = vmul.f32 %v645, %v1029
    %v5111 = vmul.f32 %v646, %v1030
    %v5112 = vmul.f32 %v647, %v1031
    %v5113 = vmul.f32 %v648, %v1032
    %v5114 = vmul.f32 %v649, %v1033
    %v5115 = vmul.f32 %v650, %v1034
    %v5116 = vmul.f32 %v651, %v1035
    %v5117 = vmul.f32 %v652, %v1036
    %v5118 = vmul.f32 %v653, %v1037
    %v5119 = vmul.f32 %v654, %v1038
    %v5120 = vmul.f32 %v655, %v1039
    %v5121 = vmul.f32 %v656, %v1040
    %v5122 = vmul.f32 %v657, %v1041
    %v5123 = vmul.f32 %v658, %v1042
    %v5124 = vmul.f32 %v659, %v1043
    %v5125 = vmul.f32 %v660, %v1044
    %v5126 = vmul.f32 %v661, %v1045
    %v5127 = vmul.f32 %v662, %v1046
    %v5128 = vmul.f32 %v663, %v1047
    %v5129 = vmul.f32 %v664, %v1048
    %v5130 = vmul.f32 %v665, %v1049
    %v5131 = vmul.f32 %v666, %v1050
    %v5132 = vmul.f32 %v667, %v1051
    %v5133 = vmul.f32 %v668, %v1052
    %v5134 = vmul.f32 %v669, %v1053
    %v5135 = vmul.f32 %v670, %v1054
    %v5136 = vmul.f32 %v671, %v1055
    %v5137 = vmul.f32 %v672, %v1056
    %v5138 = vmul.f32 %v673, %v1057
    %v5139 = vmul.f32 %v674, %v1058
    %v5140 = vmul.f32 %v675, %v1059
    %v5141 = vmul.f32 %v676, %v1060
    %v5142 = vmul.f32 %v677, %v1061
    %v5143 = vmul.f32 %v678, %v1062
    %v5144 = vmul.f32 %v679, %v1063
    %v5145 = vmul.f32 %v680, %v1064
    %v5146 = vmul.f32 %v681, %v1065
    %v5147 = vmul.f32 %v682, %v1066
    %v5148 = vmul.f32 %v683, %v1067
    %v5149 = vmul.f32 %v684, %v1068
    %v5150 = vmul.f32 %v685, %v1069
    %v5151 = vmul.f32 %v686, %v1070
    %v5152 = vmul.f32 %v687, %v1071
    %v5153 = vmul.f32 %v688, %v1072
    %v5154 = vmul.f32 %v689, %v1073
    %v5155 = vmul.f32 %v5027, %v5091
    %v5156 = vmul.f32 %v5028, %v5092
    %v5157 = vmul.f32 %v5029, %v5093
    %v5158 = vmul.f32 %v5030, %v5094
    %v5159 = vmul.f32 %v5031, %v5095
    %v5160 = vmul.f32 %v5032, %v5096
    %v5161 = vmul.f32 %v5033, %v5097
    %v5162 = vmul.f32 %v5034, %v5098
    %v5163 = vmul.f32 %v5035, %v5099
    %v5164 = vmul.f32 %v5036, %v5100
    %v5165 = vmul.f32 %v5037, %v5101
    %v5166 = vmul.f32 %v5038, %v5102
    %v5167 = vmul.f32 %v5039, %v5103
    %v5168 = vmul.f32 %v5040, %v5104
    %v5169 = vmul.f32 %v5041, %v5105
    %v5170 = vmul.f32 %v5042, %v5106
    %v5171 = vmul.f32 %v5043, %v5107
    %v5172 = vmul.f32 %v5044, %v5108
    %v5173 = vmul.f32 %v5045, %v5109
    %v5174 = vmul.f32 %v5046, %v5110
    %v5175 = vmul.f32 %v5047, %v5111
    %v5176 = vmul.f32 %v5048, %v5112
    %v5177 = vmul.f32 %v5049, %v5113
    %v5178 = vmul.f32 %v5050, %v5114
    %v5179 = vmul.f32 %v5051, %v5115
    %v5180 = vmul.f32 %v5052, %v5116
    %v5181 = vmul.f32 %v5053, %v5117
    %v5182 = vmul.f32 %v5054, %v5118
    %v5183 = vmul.f32 %v5055, %v5119
    %v5184 = vmul.f32 %v5056, %v5120
    %v5185 = vmul.f32 %v5057, %v5121
    %v5186 = vmul.f32 %v5058, %v5122
    %v5187 = vmul.f32 %v5059, %v5123
    %v5188 = vmul.f32 %v5060, %v5124
    %v5189 = vmul.f32 %v5061, %v5125
    %v5190 = vmul.f32 %v5062, %v5126
    %v5191 = vmul.f32 %v5063, %v5127
    %v5192 = vmul.f32 %v5064, %v5128
    %v5193 = vmul.f32 %v5065, %v5129
    %v5194 = vmul.f32 %v5066, %v5130
    %v5195 = vmul.f32 %v5067, %v5131
    %v5196 = vmul.f32 %v5068, %v5132
    %v5197 = vmul.f32 %v5069, %v5133
    %v5198 = vmul.f32 %v5070, %v5134
    %v5199 = vmul.f32 %v5071, %v5135
    %v5200 = vmul.f32 %v5072, %v5136
    %v5201 = vmul.f32 %v5073, %v5137
    %v5202 = vmul.f32 %v5074, %v5138
    %v5203 = vmul.f32 %v5075, %v5139
    %v5204 = vmul.f32 %v5076, %v5140
    %v5205 = vmul.f32 %v5077, %v5141
    %v5206 = vmul.f32 %v5078, %v5142
    %v5207 = vmul.f32 %v5079, %v5143
    %v5208 = vmul.f32 %v5080, %v5144
    %v5209 = vmul.f32 %v5081, %v5145
    %v5210 = vmul.f32 %v5082, %v5146
    %v5211 = vmul.f32 %v5083, %v5147
    %v5212 = vmul.f32 %v5084, %v5148
    %v5213 = vmul.f32 %v5085, %v5149
    %v5214 = vmul.f32 %v5086, %v5150
    %v5215 = vmul.f32 %v5087, %v5151
    %v5216 = vmul.f32 %v5088, %v5152
    %v5217 = vmul.f32 %v5089, %v5153
    %v5218 = vmul.f32 %v5090, %v5154
    %v5219 = vpack.c.bf16 %v5156, %v5155
    %v5220 = vpack.c.bf16 %v5158, %v5157
    %v5221 = vpack.c.bf16 %v5160, %v5159
    %v5222 = vpack.c.bf16 %v5162, %v5161
    %v5223 = vpack.c.bf16 %v5164, %v5163
    %v5224 = vpack.c.bf16 %v5166, %v5165
    %v5225 = vpack.c.bf16 %v5168, %v5167
    %v5226 = vpack.c.bf16 %v5170, %v5169
    %v5227 = vpack.c.bf16 %v5172, %v5171
    %v5228 = vpack.c.bf16 %v5174, %v5173
    %v5229 = vpack.c.bf16 %v5176, %v5175
    %v5230 = vpack.c.bf16 %v5178, %v5177
    %v5231 = vpack.c.bf16 %v5180, %v5179
    %v5232 = vpack.c.bf16 %v5182, %v5181
    %v5233 = vpack.c.bf16 %v5184, %v5183
    %v5234 = vpack.c.bf16 %v5186, %v5185
    %v5235 = vpack.c.bf16 %v5188, %v5187
    %v5236 = vpack.c.bf16 %v5190, %v5189
    %v5237 = vpack.c.bf16 %v5192, %v5191
    %v5238 = vpack.c.bf16 %v5194, %v5193
    %v5239 = vpack.c.bf16 %v5196, %v5195
    %v5240 = vpack.c.bf16 %v5198, %v5197
    %v5241 = vpack.c.bf16 %v5200, %v5199
    %v5242 = vpack.c.bf16 %v5202, %v5201
    %v5243 = vpack.c.bf16 %v5204, %v5203
    %v5244 = vpack.c.bf16 %v5206, %v5205
    %v5245 = vpack.c.bf16 %v5208, %v5207
    %v5246 = vpack.c.bf16 %v5210, %v5209
    %v5247 = vpack.c.bf16 %v5212, %v5211
    %v5248 = vpack.c.bf16 %v5214, %v5213
    %v5249 = vpack.c.bf16 %v5216, %v5215
    %v5250 = vpack.c.bf16 %v5218, %v5217
    %s5251 = scalar_lea.vmem %s1, 32
    %v5252 = vld [vmem:[%s5251] sm:$0xf]
    %v5254 = vsel %vm1461, %v5219, 0
    %v5257 = vsel %vm1461, %v5220, 0
    %v5260 = vsel %vm1461, %v5221, 0
    %v5263 = vsel %vm1461, %v5222, 0
    %v5266 = vsel %vm1461, %v5223, 0
    %v5269 = vsel %vm1461, %v5224, 0
    %v5272 = vsel %vm1461, %v5225, 0
    %v5275 = vsel %vm1461, %v5226, 0
    %v5278 = vsel %vm1461, %v5227, 0
    %v5281 = vsel %vm1461, %v5228, 0
    %v5284 = vsel %vm1461, %v5229, 0
    %v5287 = vsel %vm1461, %v5230, 0
    %v5290 = vsel %vm1461, %v5231, 0
    %v5293 = vsel %vm1461, %v5232, 0
    %v5296 = vsel %vm1461, %v5233, 0
    %v5299 = vsel %vm1461, %v5234, 0
    %v5302 = vsel %vm1461, %v5235, 0
    %v5305 = vsel %vm1461, %v5236, 0
    %v5308 = vsel %vm1461, %v5237, 0
    %v5311 = vsel %vm1461, %v5238, 0
    %v5314 = vsel %vm1461, %v5239, 0
    %v5317 = vsel %vm1461, %v5240, 0
    %v5320 = vsel %vm1461, %v5241, 0
    %v5323 = vsel %vm1461, %v5242, 0
    %v5326 = vsel %vm1461, %v5243, 0
    %v5329 = vsel %vm1461, %v5244, 0
    %v5332 = vsel %vm1461, %v5245, 0
    %v5335 = vsel %vm1461, %v5246, 0
    %v5338 = vsel %vm1461, %v5247, 0
    %v5341 = vsel %vm1461, %v5248, 0
    %v5344 = vsel %vm1461, %v5249, 0
    %v5347 = vsel %vm1461, %v5250, 0
    %v5350 = vsel %vm1558, %v5252, 0
    %5352 = vmatpush.bf16.msra.mxu0 0
    %5353 = vmatpush.bf16.msra.mxu0 0
    %5354 = vmatpush.bf16.msra.mxu0 0
    %5355 = vmatpush.bf16.msra.mxu0 0
    %5356 = vmatpush.bf16.msra.mxu0 0
    %5357 = vmatpush.bf16.msra.mxu0 0
    %5358 = vmatpush.bf16.msra.mxu0 0
    %5359 = vmatpush.bf16.msra.mxu0 %v5350
    %5360 = vmatmul.bf16.gmra.mxu0 %v5254
    %v5361 = vpop.f32.mrf.mxu0
    %v5362 = vadd.f32 0.0, %v5361
    %v5363 = vpop.f32.mrf.mxu0
    %v5364 = vadd.f32 0.0, %v5363
    %5365 = vmatmul.bf16.gmra.mxu0 %v5257
    %v5366 = vpop.f32.mrf.mxu0
    %v5367 = vadd.f32 0.0, %v5366
    %v5368 = vpop.f32.mrf.mxu0
    %v5369 = vadd.f32 0.0, %v5368
    %5370 = vmatmul.bf16.gmra.mxu0 %v5260
    %v5371 = vpop.f32.mrf.mxu0
    %v5372 = vadd.f32 0.0, %v5371
    %v5373 = vpop.f32.mrf.mxu0
    %v5374 = vadd.f32 0.0, %v5373
    %5375 = vmatmul.bf16.gmra.mxu0 %v5263
    %v5376 = vpop.f32.mrf.mxu0
    %v5377 = vadd.f32 0.0, %v5376
    %v5378 = vpop.f32.mrf.mxu0
    %v5379 = vadd.f32 0.0, %v5378
    %5380 = vmatmul.bf16.gmra.mxu0 %v5266
    %v5381 = vpop.f32.mrf.mxu0
    %v5382 = vadd.f32 0.0, %v5381
    %v5383 = vpop.f32.mrf.mxu0
    %v5384 = vadd.f32 0.0, %v5383
    %5385 = vmatmul.bf16.gmra.mxu0 %v5269
    %v5386 = vpop.f32.mrf.mxu0
    %v5387 = vadd.f32 0.0, %v5386
    %v5388 = vpop.f32.mrf.mxu0
    %v5389 = vadd.f32 0.0, %v5388
    %5390 = vmatmul.bf16.gmra.mxu0 %v5272
    %v5391 = vpop.f32.mrf.mxu0
    %v5392 = vadd.f32 0.0, %v5391
    %v5393 = vpop.f32.mrf.mxu0
    %v5394 = vadd.f32 0.0, %v5393
    %5395 = vmatmul.bf16.gmra.mxu0 %v5275
    %v5396 = vpop.f32.mrf.mxu0
    %v5397 = vadd.f32 0.0, %v5396
    %v5398 = vpop.f32.mrf.mxu0
    %v5399 = vadd.f32 0.0, %v5398
    %5400 = vmatmul.bf16.gmra.mxu0 %v5278
    %v5401 = vpop.f32.mrf.mxu0
    %v5402 = vadd.f32 0.0, %v5401
    %v5403 = vpop.f32.mrf.mxu0
    %v5404 = vadd.f32 0.0, %v5403
    %5405 = vmatmul.bf16.gmra.mxu0 %v5281
    %v5406 = vpop.f32.mrf.mxu0
    %v5407 = vadd.f32 0.0, %v5406
    %v5408 = vpop.f32.mrf.mxu0
    %v5409 = vadd.f32 0.0, %v5408
    %5410 = vmatmul.bf16.gmra.mxu0 %v5284
    %v5411 = vpop.f32.mrf.mxu0
    %v5412 = vadd.f32 0.0, %v5411
    %v5413 = vpop.f32.mrf.mxu0
    %v5414 = vadd.f32 0.0, %v5413
    %5415 = vmatmul.bf16.gmra.mxu0 %v5287
    %v5416 = vpop.f32.mrf.mxu0
    %v5417 = vadd.f32 0.0, %v5416
    %v5418 = vpop.f32.mrf.mxu0
    %v5419 = vadd.f32 0.0, %v5418
    %5420 = vmatmul.bf16.gmra.mxu0 %v5290
    %v5421 = vpop.f32.mrf.mxu0
    %v5422 = vadd.f32 0.0, %v5421
    %v5423 = vpop.f32.mrf.mxu0
    %v5424 = vadd.f32 0.0, %v5423
    %5425 = vmatmul.bf16.gmra.mxu0 %v5293
    %v5426 = vpop.f32.mrf.mxu0
    %v5427 = vadd.f32 0.0, %v5426
    %v5428 = vpop.f32.mrf.mxu0
    %v5429 = vadd.f32 0.0, %v5428
    %5430 = vmatmul.bf16.gmra.mxu0 %v5296
    %v5431 = vpop.f32.mrf.mxu0
    %v5432 = vadd.f32 0.0, %v5431
    %v5433 = vpop.f32.mrf.mxu0
    %v5434 = vadd.f32 0.0, %v5433
    %5435 = vmatmul.bf16.gmra.mxu0 %v5299
    %v5436 = vpop.f32.mrf.mxu0
    %v5437 = vadd.f32 0.0, %v5436
    %v5438 = vpop.f32.mrf.mxu0
    %v5439 = vadd.f32 0.0, %v5438
    %5440 = vmatmul.bf16.gmra.mxu0 %v5302
    %v5441 = vpop.f32.mrf.mxu0
    %v5442 = vadd.f32 0.0, %v5441
    %v5443 = vpop.f32.mrf.mxu0
    %v5444 = vadd.f32 0.0, %v5443
    %5445 = vmatmul.bf16.gmra.mxu0 %v5305
    %v5446 = vpop.f32.mrf.mxu0
    %v5447 = vadd.f32 0.0, %v5446
    %v5448 = vpop.f32.mrf.mxu0
    %v5449 = vadd.f32 0.0, %v5448
    %5450 = vmatmul.bf16.gmra.mxu0 %v5308
    %v5451 = vpop.f32.mrf.mxu0
    %v5452 = vadd.f32 0.0, %v5451
    %v5453 = vpop.f32.mrf.mxu0
    %v5454 = vadd.f32 0.0, %v5453
    %5455 = vmatmul.bf16.gmra.mxu0 %v5311
    %v5456 = vpop.f32.mrf.mxu0
    %v5457 = vadd.f32 0.0, %v5456
    %v5458 = vpop.f32.mrf.mxu0
    %v5459 = vadd.f32 0.0, %v5458
    %5460 = vmatmul.bf16.gmra.mxu0 %v5314
    %v5461 = vpop.f32.mrf.mxu0
    %v5462 = vadd.f32 0.0, %v5461
    %v5463 = vpop.f32.mrf.mxu0
    %v5464 = vadd.f32 0.0, %v5463
    %5465 = vmatmul.bf16.gmra.mxu0 %v5317
    %v5466 = vpop.f32.mrf.mxu0
    %v5467 = vadd.f32 0.0, %v5466
    %v5468 = vpop.f32.mrf.mxu0
    %v5469 = vadd.f32 0.0, %v5468
    %5470 = vmatmul.bf16.gmra.mxu0 %v5320
    %v5471 = vpop.f32.mrf.mxu0
    %v5472 = vadd.f32 0.0, %v5471
    %v5473 = vpop.f32.mrf.mxu0
    %v5474 = vadd.f32 0.0, %v5473
    %5475 = vmatmul.bf16.gmra.mxu0 %v5323
    %v5476 = vpop.f32.mrf.mxu0
    %v5477 = vadd.f32 0.0, %v5476
    %v5478 = vpop.f32.mrf.mxu0
    %v5479 = vadd.f32 0.0, %v5478
    %5480 = vmatmul.bf16.gmra.mxu0 %v5326
    %v5481 = vpop.f32.mrf.mxu0
    %v5482 = vadd.f32 0.0, %v5481
    %v5483 = vpop.f32.mrf.mxu0
    %v5484 = vadd.f32 0.0, %v5483
    %5485 = vmatmul.bf16.gmra.mxu0 %v5329
    %v5486 = vpop.f32.mrf.mxu0
    %v5487 = vadd.f32 0.0, %v5486
    %v5488 = vpop.f32.mrf.mxu0
    %v5489 = vadd.f32 0.0, %v5488
    %5490 = vmatmul.bf16.gmra.mxu0 %v5332
    %v5491 = vpop.f32.mrf.mxu0
    %v5492 = vadd.f32 0.0, %v5491
    %v5493 = vpop.f32.mrf.mxu0
    %v5494 = vadd.f32 0.0, %v5493
    %5495 = vmatmul.bf16.gmra.mxu0 %v5335
    %v5496 = vpop.f32.mrf.mxu0
    %v5497 = vadd.f32 0.0, %v5496
    %v5498 = vpop.f32.mrf.mxu0
    %v5499 = vadd.f32 0.0, %v5498
    %5500 = vmatmul.bf16.gmra.mxu0 %v5338
    %v5501 = vpop.f32.mrf.mxu0
    %v5502 = vadd.f32 0.0, %v5501
    %v5503 = vpop.f32.mrf.mxu0
    %v5504 = vadd.f32 0.0, %v5503
    %5505 = vmatmul.bf16.gmra.mxu0 %v5341
    %v5506 = vpop.f32.mrf.mxu0
    %v5507 = vadd.f32 0.0, %v5506
    %v5508 = vpop.f32.mrf.mxu0
    %v5509 = vadd.f32 0.0, %v5508
    %5510 = vmatmul.bf16.gmra.mxu0 %v5344
    %v5511 = vpop.f32.mrf.mxu0
    %v5512 = vadd.f32 0.0, %v5511
    %v5513 = vpop.f32.mrf.mxu0
    %v5514 = vadd.f32 0.0, %v5513
    %5515 = vmatmul.bf16.gmra.mxu0 %v5347
    %v5516 = vpop.f32.mrf.mxu0
    %v5517 = vadd.f32 0.0, %v5516
    %v5518 = vpop.f32.mrf.mxu0
    %v5519 = vadd.f32 0.0, %v5518
    %5520 = vdwg.mxu0
    %v5521 = vadd.f32 %v4963, %v5362
    %v5522 = vadd.f32 %v4964, %v5364
    %v5523 = vadd.f32 %v4965, %v5367
    %v5524 = vadd.f32 %v4966, %v5369
    %v5525 = vadd.f32 %v4967, %v5372
    %v5526 = vadd.f32 %v4968, %v5374
    %v5527 = vadd.f32 %v4969, %v5377
    %v5528 = vadd.f32 %v4970, %v5379
    %v5529 = vadd.f32 %v4971, %v5382
    %v5530 = vadd.f32 %v4972, %v5384
    %v5531 = vadd.f32 %v4973, %v5387
    %v5532 = vadd.f32 %v4974, %v5389
    %v5533 = vadd.f32 %v4975, %v5392
    %v5534 = vadd.f32 %v4976, %v5394
    %v5535 = vadd.f32 %v4977, %v5397
    %v5536 = vadd.f32 %v4978, %v5399
    %v5537 = vadd.f32 %v4979, %v5402
    %v5538 = vadd.f32 %v4980, %v5404
    %v5539 = vadd.f32 %v4981, %v5407
    %v5540 = vadd.f32 %v4982, %v5409
    %v5541 = vadd.f32 %v4983, %v5412
    %v5542 = vadd.f32 %v4984, %v5414
    %v5543 = vadd.f32 %v4985, %v5417
    %v5544 = vadd.f32 %v4986, %v5419
    %v5545 = vadd.f32 %v4987, %v5422
    %v5546 = vadd.f32 %v4988, %v5424
    %v5547 = vadd.f32 %v4989, %v5427
    %v5548 = vadd.f32 %v4990, %v5429
    %v5549 = vadd.f32 %v4991, %v5432
    %v5550 = vadd.f32 %v4992, %v5434
    %v5551 = vadd.f32 %v4993, %v5437
    %v5552 = vadd.f32 %v4994, %v5439
    %v5553 = vadd.f32 %v4995, %v5442
    %v5554 = vadd.f32 %v4996, %v5444
    %v5555 = vadd.f32 %v4997, %v5447
    %v5556 = vadd.f32 %v4998, %v5449
    %v5557 = vadd.f32 %v4999, %v5452
    %v5558 = vadd.f32 %v5000, %v5454
    %v5559 = vadd.f32 %v5001, %v5457
    %v5560 = vadd.f32 %v5002, %v5459
    %v5561 = vadd.f32 %v5003, %v5462
    %v5562 = vadd.f32 %v5004, %v5464
    %v5563 = vadd.f32 %v5005, %v5467
    %v5564 = vadd.f32 %v5006, %v5469
    %v5565 = vadd.f32 %v5007, %v5472
    %v5566 = vadd.f32 %v5008, %v5474
    %v5567 = vadd.f32 %v5009, %v5477
    %v5568 = vadd.f32 %v5010, %v5479
    %v5569 = vadd.f32 %v5011, %v5482
    %v5570 = vadd.f32 %v5012, %v5484
    %v5571 = vadd.f32 %v5013, %v5487
    %v5572 = vadd.f32 %v5014, %v5489
    %v5573 = vadd.f32 %v5015, %v5492
    %v5574 = vadd.f32 %v5016, %v5494
    %v5575 = vadd.f32 %v5017, %v5497
    %v5576 = vadd.f32 %v5018, %v5499
    %v5577 = vadd.f32 %v5019, %v5502
    %v5578 = vadd.f32 %v5020, %v5504
    %v5579 = vadd.f32 %v5021, %v5507
    %v5580 = vadd.f32 %v5022, %v5509
    %v5581 = vadd.f32 %v5023, %v5512
    %v5582 = vadd.f32 %v5024, %v5514
    %v5583 = vadd.f32 %v5025, %v5517
    %v5584 = vadd.f32 %v5026, %v5519
    %v5585 = vld [vmem:[%s3] sm:$0xff]
    %v5586 = vld [vmem:[%s3 + $0x8] sm:$0xff]
    %v5587 = vld [vmem:[%s3 + $0x10] sm:$0xff]
    %v5588 = vld [vmem:[%s3 + $0x18] sm:$0xff]
    %v5589 = vld [vmem:[%s3 + $0x20] sm:$0xff]
    %v5590 = vld [vmem:[%s3 + $0x28] sm:$0xff]
    %v5591 = vld [vmem:[%s3 + $0x30] sm:$0xff]
    %v5592 = vld [vmem:[%s3 + $0x38] sm:$0xff]
    %v5593 = vld [vmem:[%s3 + $0x40] sm:$0xff]
    %v5594 = vld [vmem:[%s3 + $0x48] sm:$0xff]
    %v5595 = vld [vmem:[%s3 + $0x50] sm:$0xff]
    %v5596 = vld [vmem:[%s3 + $0x58] sm:$0xff]
    %v5597 = vld [vmem:[%s3 + $0x60] sm:$0xff]
    %v5598 = vld [vmem:[%s3 + $0x68] sm:$0xff]
    %v5599 = vld [vmem:[%s3 + $0x70] sm:$0xff]
    %v5600 = vld [vmem:[%s3 + $0x78] sm:$0xff]
    %v5601 = vld [vmem:[%s3 + $0x80] sm:$0xff]
    %v5602 = vld [vmem:[%s3 + $0x88] sm:$0xff]
    %v5603 = vld [vmem:[%s3 + $0x90] sm:$0xff]
    %v5604 = vld [vmem:[%s3 + $0x98] sm:$0xff]
    %v5605 = vld [vmem:[%s3 + $0xa0] sm:$0xff]
    %v5606 = vld [vmem:[%s3 + $0xa8] sm:$0xff]
    %v5607 = vld [vmem:[%s3 + $0xb0] sm:$0xff]
    %v5608 = vld [vmem:[%s3 + $0xb8] sm:$0xff]
    %v5609 = vld [vmem:[%s3 + $0xc0] sm:$0xff]
    %v5610 = vld [vmem:[%s3 + $0xc8] sm:$0xff]
    %v5611 = vld [vmem:[%s3 + $0xd0] sm:$0xff]
    %v5612 = vld [vmem:[%s3 + $0xd8] sm:$0xff]
    %v5613 = vld [vmem:[%s3 + $0xe0] sm:$0xff]
    %v5614 = vld [vmem:[%s3 + $0xe8] sm:$0xff]
    %v5615 = vld [vmem:[%s3 + $0xf0] sm:$0xff]
    %v5616 = vld [vmem:[%s3 + $0xf8] sm:$0xff]
    %v5617 = vld [vmem:[%s3 + $0x100] sm:$0xff]
    %v5618 = vld [vmem:[%s3 + $0x108] sm:$0xff]
    %v5619 = vld [vmem:[%s3 + $0x110] sm:$0xff]
    %v5620 = vld [vmem:[%s3 + $0x118] sm:$0xff]
    %v5621 = vld [vmem:[%s3 + $0x120] sm:$0xff]
    %v5622 = vld [vmem:[%s3 + $0x128] sm:$0xff]
    %v5623 = vld [vmem:[%s3 + $0x130] sm:$0xff]
    %v5624 = vld [vmem:[%s3 + $0x138] sm:$0xff]
    %v5625 = vld [vmem:[%s3 + $0x140] sm:$0xff]
    %v5626 = vld [vmem:[%s3 + $0x148] sm:$0xff]
    %v5627 = vld [vmem:[%s3 + $0x150] sm:$0xff]
    %v5628 = vld [vmem:[%s3 + $0x158] sm:$0xff]
    %v5629 = vld [vmem:[%s3 + $0x160] sm:$0xff]
    %v5630 = vld [vmem:[%s3 + $0x168] sm:$0xff]
    %v5631 = vld [vmem:[%s3 + $0x170] sm:$0xff]
    %v5632 = vld [vmem:[%s3 + $0x178] sm:$0xff]
    %v5633 = vld [vmem:[%s3 + $0x180] sm:$0xff]
    %v5634 = vld [vmem:[%s3 + $0x188] sm:$0xff]
    %v5635 = vld [vmem:[%s3 + $0x190] sm:$0xff]
    %v5636 = vld [vmem:[%s3 + $0x198] sm:$0xff]
    %v5637 = vld [vmem:[%s3 + $0x1a0] sm:$0xff]
    %v5638 = vld [vmem:[%s3 + $0x1a8] sm:$0xff]
    %v5639 = vld [vmem:[%s3 + $0x1b0] sm:$0xff]
    %v5640 = vld [vmem:[%s3 + $0x1b8] sm:$0xff]
    %v5641 = vld [vmem:[%s3 + $0x1c0] sm:$0xff]
    %v5642 = vld [vmem:[%s3 + $0x1c8] sm:$0xff]
    %v5643 = vld [vmem:[%s3 + $0x1d0] sm:$0xff]
    %v5644 = vld [vmem:[%s3 + $0x1d8] sm:$0xff]
    %v5645 = vld [vmem:[%s3 + $0x1e0] sm:$0xff]
    %v5646 = vld [vmem:[%s3 + $0x1e8] sm:$0xff]
    %v5647 = vld [vmem:[%s3 + $0x1f0] sm:$0xff]
    %v5648 = vld [vmem:[%s3 + $0x1f8] sm:$0xff]
    %v5649 = vld [vmem:[%s3 + $0x200] sm:$0xff]
    %v5650 = vld [vmem:[%s3 + $0x208] sm:$0xff]
    %v5651 = vld [vmem:[%s3 + $0x210] sm:$0xff]
    %v5652 = vld [vmem:[%s3 + $0x218] sm:$0xff]
    %v5653 = vld [vmem:[%s3 + $0x220] sm:$0xff]
    %v5654 = vld [vmem:[%s3 + $0x228] sm:$0xff]
    %v5655 = vld [vmem:[%s3 + $0x230] sm:$0xff]
    %v5656 = vld [vmem:[%s3 + $0x238] sm:$0xff]
    %v5657 = vld [vmem:[%s3 + $0x240] sm:$0xff]
    %v5658 = vld [vmem:[%s3 + $0x248] sm:$0xff]
    %v5659 = vld [vmem:[%s3 + $0x250] sm:$0xff]
    %v5660 = vld [vmem:[%s3 + $0x258] sm:$0xff]
    %v5661 = vld [vmem:[%s3 + $0x260] sm:$0xff]
    %v5662 = vld [vmem:[%s3 + $0x268] sm:$0xff]
    %v5663 = vld [vmem:[%s3 + $0x270] sm:$0xff]
    %v5664 = vld [vmem:[%s3 + $0x278] sm:$0xff]
    %v5665 = vld [vmem:[%s3 + $0x280] sm:$0xff]
    %v5666 = vld [vmem:[%s3 + $0x288] sm:$0xff]
    %v5667 = vld [vmem:[%s3 + $0x290] sm:$0xff]
    %v5668 = vld [vmem:[%s3 + $0x298] sm:$0xff]
    %v5669 = vld [vmem:[%s3 + $0x2a0] sm:$0xff]
    %v5670 = vld [vmem:[%s3 + $0x2a8] sm:$0xff]
    %v5671 = vld [vmem:[%s3 + $0x2b0] sm:$0xff]
    %v5672 = vld [vmem:[%s3 + $0x2b8] sm:$0xff]
    %v5673 = vld [vmem:[%s3 + $0x2c0] sm:$0xff]
    %v5674 = vld [vmem:[%s3 + $0x2c8] sm:$0xff]
    %v5675 = vld [vmem:[%s3 + $0x2d0] sm:$0xff]
    %v5676 = vld [vmem:[%s3 + $0x2d8] sm:$0xff]
    %v5677 = vld [vmem:[%s3 + $0x2e0] sm:$0xff]
    %v5678 = vld [vmem:[%s3 + $0x2e8] sm:$0xff]
    %v5679 = vld [vmem:[%s3 + $0x2f0] sm:$0xff]
    %v5680 = vld [vmem:[%s3 + $0x2f8] sm:$0xff]
    %v5681 = vld [vmem:[%s3 + $0x300] sm:$0xff]
    %v5682 = vld [vmem:[%s3 + $0x308] sm:$0xff]
    %v5683 = vld [vmem:[%s3 + $0x310] sm:$0xff]
    %v5684 = vld [vmem:[%s3 + $0x318] sm:$0xff]
    %v5685 = vld [vmem:[%s3 + $0x320] sm:$0xff]
    %v5686 = vld [vmem:[%s3 + $0x328] sm:$0xff]
    %v5687 = vld [vmem:[%s3 + $0x330] sm:$0xff]
    %v5688 = vld [vmem:[%s3 + $0x338] sm:$0xff]
    %v5689 = vld [vmem:[%s3 + $0x340] sm:$0xff]
    %v5690 = vld [vmem:[%s3 + $0x348] sm:$0xff]
    %v5691 = vld [vmem:[%s3 + $0x350] sm:$0xff]
    %v5692 = vld [vmem:[%s3 + $0x358] sm:$0xff]
    %v5693 = vld [vmem:[%s3 + $0x360] sm:$0xff]
    %v5694 = vld [vmem:[%s3 + $0x368] sm:$0xff]
    %v5695 = vld [vmem:[%s3 + $0x370] sm:$0xff]
    %v5696 = vld [vmem:[%s3 + $0x378] sm:$0xff]
    %v5697 = vld [vmem:[%s3 + $0x380] sm:$0xff]
    %v5698 = vld [vmem:[%s3 + $0x388] sm:$0xff]
    %v5699 = vld [vmem:[%s3 + $0x390] sm:$0xff]
    %v5700 = vld [vmem:[%s3 + $0x398] sm:$0xff]
    %v5701 = vld [vmem:[%s3 + $0x3a0] sm:$0xff]
    %v5702 = vld [vmem:[%s3 + $0x3a8] sm:$0xff]
    %v5703 = vld [vmem:[%s3 + $0x3b0] sm:$0xff]
    %v5704 = vld [vmem:[%s3 + $0x3b8] sm:$0xff]
    %v5705 = vld [vmem:[%s3 + $0x3c0] sm:$0xff]
    %v5706 = vld [vmem:[%s3 + $0x3c8] sm:$0xff]
    %v5707 = vld [vmem:[%s3 + $0x3d0] sm:$0xff]
    %v5708 = vld [vmem:[%s3 + $0x3d8] sm:$0xff]
    %v5709 = vld [vmem:[%s3 + $0x3e0] sm:$0xff]
    %v5710 = vld [vmem:[%s3 + $0x3e8] sm:$0xff]
    %v5711 = vld [vmem:[%s3 + $0x3f0] sm:$0xff]
    %v5712 = vld [vmem:[%s3 + $0x3f8] sm:$0xff]
    %v5713 = vld [vmem:[%s3 + $0x400] sm:$0xff]
    %v5714 = vld [vmem:[%s3 + $0x408] sm:$0xff]
    %v5715 = vld [vmem:[%s3 + $0x410] sm:$0xff]
    %v5716 = vld [vmem:[%s3 + $0x418] sm:$0xff]
    %v5717 = vld [vmem:[%s3 + $0x420] sm:$0xff]
    %v5718 = vld [vmem:[%s3 + $0x428] sm:$0xff]
    %v5719 = vld [vmem:[%s3 + $0x430] sm:$0xff]
    %v5720 = vld [vmem:[%s3 + $0x438] sm:$0xff]
    %v5721 = vld [vmem:[%s3 + $0x440] sm:$0xff]
    %v5722 = vld [vmem:[%s3 + $0x448] sm:$0xff]
    %v5723 = vld [vmem:[%s3 + $0x450] sm:$0xff]
    %v5724 = vld [vmem:[%s3 + $0x458] sm:$0xff]
    %v5725 = vld [vmem:[%s3 + $0x460] sm:$0xff]
    %v5726 = vld [vmem:[%s3 + $0x468] sm:$0xff]
    %v5727 = vld [vmem:[%s3 + $0x470] sm:$0xff]
    %v5728 = vld [vmem:[%s3 + $0x478] sm:$0xff]
    %v5729 = vld [vmem:[%s3 + $0x480] sm:$0xff]
    %v5730 = vld [vmem:[%s3 + $0x488] sm:$0xff]
    %v5731 = vld [vmem:[%s3 + $0x490] sm:$0xff]
    %v5732 = vld [vmem:[%s3 + $0x498] sm:$0xff]
    %v5733 = vld [vmem:[%s3 + $0x4a0] sm:$0xff]
    %v5734 = vld [vmem:[%s3 + $0x4a8] sm:$0xff]
    %v5735 = vld [vmem:[%s3 + $0x4b0] sm:$0xff]
    %v5736 = vld [vmem:[%s3 + $0x4b8] sm:$0xff]
    %v5737 = vld [vmem:[%s3 + $0x4c0] sm:$0xff]
    %v5738 = vld [vmem:[%s3 + $0x4c8] sm:$0xff]
    %v5739 = vld [vmem:[%s3 + $0x4d0] sm:$0xff]
    %v5740 = vld [vmem:[%s3 + $0x4d8] sm:$0xff]
    %v5741 = vld [vmem:[%s3 + $0x4e0] sm:$0xff]
    %v5742 = vld [vmem:[%s3 + $0x4e8] sm:$0xff]
    %v5743 = vld [vmem:[%s3 + $0x4f0] sm:$0xff]
    %v5744 = vld [vmem:[%s3 + $0x4f8] sm:$0xff]
    %v5745 = vld [vmem:[%s3 + $0x500] sm:$0xff]
    %v5746 = vld [vmem:[%s3 + $0x508] sm:$0xff]
    %v5747 = vld [vmem:[%s3 + $0x510] sm:$0xff]
    %v5748 = vld [vmem:[%s3 + $0x518] sm:$0xff]
    %v5749 = vld [vmem:[%s3 + $0x520] sm:$0xff]
    %v5750 = vld [vmem:[%s3 + $0x528] sm:$0xff]
    %v5751 = vld [vmem:[%s3 + $0x530] sm:$0xff]
    %v5752 = vld [vmem:[%s3 + $0x538] sm:$0xff]
    %v5753 = vld [vmem:[%s3 + $0x540] sm:$0xff]
    %v5754 = vld [vmem:[%s3 + $0x548] sm:$0xff]
    %v5755 = vld [vmem:[%s3 + $0x550] sm:$0xff]
    %v5756 = vld [vmem:[%s3 + $0x558] sm:$0xff]
    %v5757 = vld [vmem:[%s3 + $0x560] sm:$0xff]
    %v5758 = vld [vmem:[%s3 + $0x568] sm:$0xff]
    %v5759 = vld [vmem:[%s3 + $0x570] sm:$0xff]
    %v5760 = vld [vmem:[%s3 + $0x578] sm:$0xff]
    %v5761 = vld [vmem:[%s3 + $0x580] sm:$0xff]
    %v5762 = vld [vmem:[%s3 + $0x588] sm:$0xff]
    %v5763 = vld [vmem:[%s3 + $0x590] sm:$0xff]
    %v5764 = vld [vmem:[%s3 + $0x598] sm:$0xff]
    %v5765 = vld [vmem:[%s3 + $0x5a0] sm:$0xff]
    %v5766 = vld [vmem:[%s3 + $0x5a8] sm:$0xff]
    %v5767 = vld [vmem:[%s3 + $0x5b0] sm:$0xff]
    %v5768 = vld [vmem:[%s3 + $0x5b8] sm:$0xff]
    %v5769 = vld [vmem:[%s3 + $0x5c0] sm:$0xff]
    %v5770 = vld [vmem:[%s3 + $0x5c8] sm:$0xff]
    %v5771 = vld [vmem:[%s3 + $0x5d0] sm:$0xff]
    %v5772 = vld [vmem:[%s3 + $0x5d8] sm:$0xff]
    %v5773 = vld [vmem:[%s3 + $0x5e0] sm:$0xff]
    %v5774 = vld [vmem:[%s3 + $0x5e8] sm:$0xff]
    %v5775 = vld [vmem:[%s3 + $0x5f0] sm:$0xff]
    %v5776 = vld [vmem:[%s3 + $0x5f8] sm:$0xff]
    %v5777 = vld [vmem:[%s3 + $0x600] sm:$0xff]
    %v5778 = vld [vmem:[%s3 + $0x608] sm:$0xff]
    %v5779 = vld [vmem:[%s3 + $0x610] sm:$0xff]
    %v5780 = vld [vmem:[%s3 + $0x618] sm:$0xff]
    %v5781 = vld [vmem:[%s3 + $0x620] sm:$0xff]
    %v5782 = vld [vmem:[%s3 + $0x628] sm:$0xff]
    %v5783 = vld [vmem:[%s3 + $0x630] sm:$0xff]
    %v5784 = vld [vmem:[%s3 + $0x638] sm:$0xff]
    %v5785 = vld [vmem:[%s3 + $0x640] sm:$0xff]
    %v5786 = vld [vmem:[%s3 + $0x648] sm:$0xff]
    %v5787 = vld [vmem:[%s3 + $0x650] sm:$0xff]
    %v5788 = vld [vmem:[%s3 + $0x658] sm:$0xff]
    %v5789 = vld [vmem:[%s3 + $0x660] sm:$0xff]
    %v5790 = vld [vmem:[%s3 + $0x668] sm:$0xff]
    %v5791 = vld [vmem:[%s3 + $0x670] sm:$0xff]
    %v5792 = vld [vmem:[%s3 + $0x678] sm:$0xff]
    %v5793 = vld [vmem:[%s3 + $0x680] sm:$0xff]
    %v5794 = vld [vmem:[%s3 + $0x688] sm:$0xff]
    %v5795 = vld [vmem:[%s3 + $0x690] sm:$0xff]
    %v5796 = vld [vmem:[%s3 + $0x698] sm:$0xff]
    %v5797 = vld [vmem:[%s3 + $0x6a0] sm:$0xff]
    %v5798 = vld [vmem:[%s3 + $0x6a8] sm:$0xff]
    %v5799 = vld [vmem:[%s3 + $0x6b0] sm:$0xff]
    %v5800 = vld [vmem:[%s3 + $0x6b8] sm:$0xff]
    %v5801 = vld [vmem:[%s3 + $0x6c0] sm:$0xff]
    %v5802 = vld [vmem:[%s3 + $0x6c8] sm:$0xff]
    %v5803 = vld [vmem:[%s3 + $0x6d0] sm:$0xff]
    %v5804 = vld [vmem:[%s3 + $0x6d8] sm:$0xff]
    %v5805 = vld [vmem:[%s3 + $0x6e0] sm:$0xff]
    %v5806 = vld [vmem:[%s3 + $0x6e8] sm:$0xff]
    %v5807 = vld [vmem:[%s3 + $0x6f0] sm:$0xff]
    %v5808 = vld [vmem:[%s3 + $0x6f8] sm:$0xff]
    %v5809 = vld [vmem:[%s3 + $0x700] sm:$0xff]
    %v5810 = vld [vmem:[%s3 + $0x708] sm:$0xff]
    %v5811 = vld [vmem:[%s3 + $0x710] sm:$0xff]
    %v5812 = vld [vmem:[%s3 + $0x718] sm:$0xff]
    %v5813 = vld [vmem:[%s3 + $0x720] sm:$0xff]
    %v5814 = vld [vmem:[%s3 + $0x728] sm:$0xff]
    %v5815 = vld [vmem:[%s3 + $0x730] sm:$0xff]
    %v5816 = vld [vmem:[%s3 + $0x738] sm:$0xff]
    %v5817 = vld [vmem:[%s3 + $0x740] sm:$0xff]
    %v5818 = vld [vmem:[%s3 + $0x748] sm:$0xff]
    %v5819 = vld [vmem:[%s3 + $0x750] sm:$0xff]
    %v5820 = vld [vmem:[%s3 + $0x758] sm:$0xff]
    %v5821 = vld [vmem:[%s3 + $0x760] sm:$0xff]
    %v5822 = vld [vmem:[%s3 + $0x768] sm:$0xff]
    %v5823 = vld [vmem:[%s3 + $0x770] sm:$0xff]
    %v5824 = vld [vmem:[%s3 + $0x778] sm:$0xff]
    %v5825 = vld [vmem:[%s3 + $0x780] sm:$0xff]
    %v5826 = vld [vmem:[%s3 + $0x788] sm:$0xff]
    %v5827 = vld [vmem:[%s3 + $0x790] sm:$0xff]
    %v5828 = vld [vmem:[%s3 + $0x798] sm:$0xff]
    %v5829 = vld [vmem:[%s3 + $0x7a0] sm:$0xff]
    %v5830 = vld [vmem:[%s3 + $0x7a8] sm:$0xff]
    %v5831 = vld [vmem:[%s3 + $0x7b0] sm:$0xff]
    %v5832 = vld [vmem:[%s3 + $0x7b8] sm:$0xff]
    %v5833 = vld [vmem:[%s3 + $0x7c0] sm:$0xff]
    %v5834 = vld [vmem:[%s3 + $0x7c8] sm:$0xff]
    %v5835 = vld [vmem:[%s3 + $0x7d0] sm:$0xff]
    %v5836 = vld [vmem:[%s3 + $0x7d8] sm:$0xff]
    %v5837 = vld [vmem:[%s3 + $0x7e0] sm:$0xff]
    %v5838 = vld [vmem:[%s3 + $0x7e8] sm:$0xff]
    %v5839 = vld [vmem:[%s3 + $0x7f0] sm:$0xff]
    %v5840 = vld [vmem:[%s3 + $0x7f8] sm:$0xff]
    %5841 = vmatpush.msra.mxu0 %v5536
    %5842 = vmatpush.msra.mxu0 %v5535
    %5843 = vmatpush.msra.mxu0 %v5534
    %5844 = vmatpush.msra.mxu0 %v5533
    %5845 = vmatpush.msra.mxu0 %v5532
    %5846 = vmatpush.msra.mxu0 %v5531
    %5847 = vmatpush.msra.mxu0 %v5530
    %5848 = vmatpush.msra.mxu0 %v5529
    %5849 = vmatpush.msra.mxu0 %v5528
    %5850 = vmatpush.msra.mxu0 %v5527
    %5851 = vmatpush.msra.mxu0 %v5526
    %5852 = vmatpush.msra.mxu0 %v5525
    %5853 = vmatpush.msra.mxu0 %v5524
    %5854 = vmatpush.msra.mxu0 %v5523
    %5855 = vmatpush.msra.mxu0 %v5522
    %5856 = vmatpush.msra.mxu0 %v5521
    %5857 = vmatmul.f32.gmra.mxu0 %v5585
    %v5858 = vpop.f32.mrf.mxu0
    %v5859 = vadd.f32 0.0, %v5858
    %5860 = vmatmul.f32.gmra.mxu0 %v5589
    %v5861 = vpop.f32.mrf.mxu0
    %v5862 = vadd.f32 0.0, %v5861
    %5863 = vmatmul.f32.gmra.mxu0 %v5593
    %v5864 = vpop.f32.mrf.mxu0
    %v5865 = vadd.f32 0.0, %v5864
    %5866 = vmatmul.f32.gmra.mxu0 %v5597
    %v5867 = vpop.f32.mrf.mxu0
    %v5868 = vadd.f32 0.0, %v5867
    %5869 = vmatmul.f32.gmra.mxu0 %v5601
    %v5870 = vpop.f32.mrf.mxu0
    %v5871 = vadd.f32 0.0, %v5870
    %5872 = vmatmul.f32.gmra.mxu0 %v5605
    %v5873 = vpop.f32.mrf.mxu0
    %v5874 = vadd.f32 0.0, %v5873
    %5875 = vmatmul.f32.gmra.mxu0 %v5609
    %v5876 = vpop.f32.mrf.mxu0
    %v5877 = vadd.f32 0.0, %v5876
    %5878 = vmatmul.f32.gmra.mxu0 %v5613
    %v5879 = vpop.f32.mrf.mxu0
    %v5880 = vadd.f32 0.0, %v5879
    %5881 = vmatmul.f32.gmra.mxu0 %v5617
    %v5882 = vpop.f32.mrf.mxu0
    %v5883 = vadd.f32 0.0, %v5882
    %5884 = vmatmul.f32.gmra.mxu0 %v5621
    %v5885 = vpop.f32.mrf.mxu0
    %v5886 = vadd.f32 0.0, %v5885
    %5887 = vmatmul.f32.gmra.mxu0 %v5625
    %v5888 = vpop.f32.mrf.mxu0
    %v5889 = vadd.f32 0.0, %v5888
    %5890 = vmatmul.f32.gmra.mxu0 %v5629
    %v5891 = vpop.f32.mrf.mxu0
    %v5892 = vadd.f32 0.0, %v5891
    %5893 = vmatmul.f32.gmra.mxu0 %v5633
    %v5894 = vpop.f32.mrf.mxu0
    %v5895 = vadd.f32 0.0, %v5894
    %5896 = vmatmul.f32.gmra.mxu0 %v5637
    %v5897 = vpop.f32.mrf.mxu0
    %v5898 = vadd.f32 0.0, %v5897
    %5899 = vmatmul.f32.gmra.mxu0 %v5641
    %v5900 = vpop.f32.mrf.mxu0
    %v5901 = vadd.f32 0.0, %v5900
    %5902 = vmatmul.f32.gmra.mxu0 %v5645
    %v5903 = vpop.f32.mrf.mxu0
    %v5904 = vadd.f32 0.0, %v5903
    %5905 = vmatmul.f32.gmra.mxu0 %v5649
    %v5906 = vpop.f32.mrf.mxu0
    %v5907 = vadd.f32 0.0, %v5906
    %5908 = vmatmul.f32.gmra.mxu0 %v5653
    %v5909 = vpop.f32.mrf.mxu0
    %v5910 = vadd.f32 0.0, %v5909
    %5911 = vmatmul.f32.gmra.mxu0 %v5657
    %v5912 = vpop.f32.mrf.mxu0
    %v5913 = vadd.f32 0.0, %v5912
    %5914 = vmatmul.f32.gmra.mxu0 %v5661
    %v5915 = vpop.f32.mrf.mxu0
    %v5916 = vadd.f32 0.0, %v5915
    %5917 = vmatmul.f32.gmra.mxu0 %v5665
    %v5918 = vpop.f32.mrf.mxu0
    %v5919 = vadd.f32 0.0, %v5918
    %5920 = vmatmul.f32.gmra.mxu0 %v5669
    %v5921 = vpop.f32.mrf.mxu0
    %v5922 = vadd.f32 0.0, %v5921
    %5923 = vmatmul.f32.gmra.mxu0 %v5673
    %v5924 = vpop.f32.mrf.mxu0
    %v5925 = vadd.f32 0.0, %v5924
    %5926 = vmatmul.f32.gmra.mxu0 %v5677
    %v5927 = vpop.f32.mrf.mxu0
    %v5928 = vadd.f32 0.0, %v5927
    %5929 = vmatmul.f32.gmra.mxu0 %v5681
    %v5930 = vpop.f32.mrf.mxu0
    %v5931 = vadd.f32 0.0, %v5930
    %5932 = vmatmul.f32.gmra.mxu0 %v5685
    %v5933 = vpop.f32.mrf.mxu0
    %v5934 = vadd.f32 0.0, %v5933
    %5935 = vmatmul.f32.gmra.mxu0 %v5689
    %v5936 = vpop.f32.mrf.mxu0
    %v5937 = vadd.f32 0.0, %v5936
    %5938 = vmatmul.f32.gmra.mxu0 %v5693
    %v5939 = vpop.f32.mrf.mxu0
    %v5940 = vadd.f32 0.0, %v5939
    %5941 = vmatmul.f32.gmra.mxu0 %v5697
    %v5942 = vpop.f32.mrf.mxu0
    %v5943 = vadd.f32 0.0, %v5942
    %5944 = vmatmul.f32.gmra.mxu0 %v5701
    %v5945 = vpop.f32.mrf.mxu0
    %v5946 = vadd.f32 0.0, %v5945
    %5947 = vmatmul.f32.gmra.mxu0 %v5705
    %v5948 = vpop.f32.mrf.mxu0
    %v5949 = vadd.f32 0.0, %v5948
    %5950 = vmatmul.f32.gmra.mxu0 %v5709
    %v5951 = vpop.f32.mrf.mxu0
    %v5952 = vadd.f32 0.0, %v5951
    %5953 = vmatmul.f32.gmra.mxu0 %v5713
    %v5954 = vpop.f32.mrf.mxu0
    %v5955 = vadd.f32 0.0, %v5954
    %5956 = vmatmul.f32.gmra.mxu0 %v5717
    %v5957 = vpop.f32.mrf.mxu0
    %v5958 = vadd.f32 0.0, %v5957
    %5959 = vmatmul.f32.gmra.mxu0 %v5721
    %v5960 = vpop.f32.mrf.mxu0
    %v5961 = vadd.f32 0.0, %v5960
    %5962 = vmatmul.f32.gmra.mxu0 %v5725
    %v5963 = vpop.f32.mrf.mxu0
    %v5964 = vadd.f32 0.0, %v5963
    %5965 = vmatmul.f32.gmra.mxu0 %v5729
    %v5966 = vpop.f32.mrf.mxu0
    %v5967 = vadd.f32 0.0, %v5966
    %5968 = vmatmul.f32.gmra.mxu0 %v5733
    %v5969 = vpop.f32.mrf.mxu0
    %v5970 = vadd.f32 0.0, %v5969
    %5971 = vmatmul.f32.gmra.mxu0 %v5737
    %v5972 = vpop.f32.mrf.mxu0
    %v5973 = vadd.f32 0.0, %v5972
    %5974 = vmatmul.f32.gmra.mxu0 %v5741
    %v5975 = vpop.f32.mrf.mxu0
    %v5976 = vadd.f32 0.0, %v5975
    %5977 = vmatmul.f32.gmra.mxu0 %v5745
    %v5978 = vpop.f32.mrf.mxu0
    %v5979 = vadd.f32 0.0, %v5978
    %5980 = vmatmul.f32.gmra.mxu0 %v5749
    %v5981 = vpop.f32.mrf.mxu0
    %v5982 = vadd.f32 0.0, %v5981
    %5983 = vmatmul.f32.gmra.mxu0 %v5753
    %v5984 = vpop.f32.mrf.mxu0
    %v5985 = vadd.f32 0.0, %v5984
    %5986 = vmatmul.f32.gmra.mxu0 %v5757
    %v5987 = vpop.f32.mrf.mxu0
    %v5988 = vadd.f32 0.0, %v5987
    %5989 = vmatmul.f32.gmra.mxu0 %v5761
    %v5990 = vpop.f32.mrf.mxu0
    %v5991 = vadd.f32 0.0, %v5990
    %5992 = vmatmul.f32.gmra.mxu0 %v5765
    %v5993 = vpop.f32.mrf.mxu0
    %v5994 = vadd.f32 0.0, %v5993
    %5995 = vmatmul.f32.gmra.mxu0 %v5769
    %v5996 = vpop.f32.mrf.mxu0
    %v5997 = vadd.f32 0.0, %v5996
    %5998 = vmatmul.f32.gmra.mxu0 %v5773
    %v5999 = vpop.f32.mrf.mxu0
    %v6000 = vadd.f32 0.0, %v5999
    %6001 = vmatmul.f32.gmra.mxu0 %v5777
    %v6002 = vpop.f32.mrf.mxu0
    %v6003 = vadd.f32 0.0, %v6002
    %6004 = vmatmul.f32.gmra.mxu0 %v5781
    %v6005 = vpop.f32.mrf.mxu0
    %v6006 = vadd.f32 0.0, %v6005
    %6007 = vmatmul.f32.gmra.mxu0 %v5785
    %v6008 = vpop.f32.mrf.mxu0
    %v6009 = vadd.f32 0.0, %v6008
    %6010 = vmatmul.f32.gmra.mxu0 %v5789
    %v6011 = vpop.f32.mrf.mxu0
    %v6012 = vadd.f32 0.0, %v6011
    %6013 = vmatmul.f32.gmra.mxu0 %v5793
    %v6014 = vpop.f32.mrf.mxu0
    %v6015 = vadd.f32 0.0, %v6014
    %6016 = vmatmul.f32.gmra.mxu0 %v5797
    %v6017 = vpop.f32.mrf.mxu0
    %v6018 = vadd.f32 0.0, %v6017
    %6019 = vmatmul.f32.gmra.mxu0 %v5801
    %v6020 = vpop.f32.mrf.mxu0
    %v6021 = vadd.f32 0.0, %v6020
    %6022 = vmatmul.f32.gmra.mxu0 %v5805
    %v6023 = vpop.f32.mrf.mxu0
    %v6024 = vadd.f32 0.0, %v6023
    %6025 = vmatmul.f32.gmra.mxu0 %v5809
    %v6026 = vpop.f32.mrf.mxu0
    %v6027 = vadd.f32 0.0, %v6026
    %6028 = vmatmul.f32.gmra.mxu0 %v5813
    %v6029 = vpop.f32.mrf.mxu0
    %v6030 = vadd.f32 0.0, %v6029
    %6031 = vmatmul.f32.gmra.mxu0 %v5817
    %v6032 = vpop.f32.mrf.mxu0
    %v6033 = vadd.f32 0.0, %v6032
    %6034 = vmatmul.f32.gmra.mxu0 %v5821
    %v6035 = vpop.f32.mrf.mxu0
    %v6036 = vadd.f32 0.0, %v6035
    %6037 = vmatmul.f32.gmra.mxu0 %v5825
    %v6038 = vpop.f32.mrf.mxu0
    %v6039 = vadd.f32 0.0, %v6038
    %6040 = vmatmul.f32.gmra.mxu0 %v5829
    %v6041 = vpop.f32.mrf.mxu0
    %v6042 = vadd.f32 0.0, %v6041
    %6043 = vmatmul.f32.gmra.mxu0 %v5833
    %v6044 = vpop.f32.mrf.mxu0
    %v6045 = vadd.f32 0.0, %v6044
    %6046 = vmatmul.f32.gmra.mxu0 %v5837
    %v6047 = vpop.f32.mrf.mxu0
    %v6048 = vadd.f32 0.0, %v6047
    %6049 = vdwg.mxu0
    %6050 = vmatpush.msra.mxu0 %v5552
    %6051 = vmatpush.msra.mxu0 %v5551
    %6052 = vmatpush.msra.mxu0 %v5550
    %6053 = vmatpush.msra.mxu0 %v5549
    %6054 = vmatpush.msra.mxu0 %v5548
    %6055 = vmatpush.msra.mxu0 %v5547
    %6056 = vmatpush.msra.mxu0 %v5546
    %6057 = vmatpush.msra.mxu0 %v5545
    %6058 = vmatpush.msra.mxu0 %v5544
    %6059 = vmatpush.msra.mxu0 %v5543
    %6060 = vmatpush.msra.mxu0 %v5542
    %6061 = vmatpush.msra.mxu0 %v5541
    %6062 = vmatpush.msra.mxu0 %v5540
    %6063 = vmatpush.msra.mxu0 %v5539
    %6064 = vmatpush.msra.mxu0 %v5538
    %6065 = vmatpush.msra.mxu0 %v5537
    %6066 = vmatmul.f32.gmra.mxu0 %v5586
    %v6067 = vpop.f32.mrf.mxu0
    %v6068 = vadd.f32 %v5859, %v6067
    %6069 = vmatmul.f32.gmra.mxu0 %v5590
    %v6070 = vpop.f32.mrf.mxu0
    %v6071 = vadd.f32 %v5862, %v6070
    %6072 = vmatmul.f32.gmra.mxu0 %v5594
    %v6073 = vpop.f32.mrf.mxu0
    %v6074 = vadd.f32 %v5865, %v6073
    %6075 = vmatmul.f32.gmra.mxu0 %v5598
    %v6076 = vpop.f32.mrf.mxu0
    %v6077 = vadd.f32 %v5868, %v6076
    %6078 = vmatmul.f32.gmra.mxu0 %v5602
    %v6079 = vpop.f32.mrf.mxu0
    %v6080 = vadd.f32 %v5871, %v6079
    %6081 = vmatmul.f32.gmra.mxu0 %v5606
    %v6082 = vpop.f32.mrf.mxu0
    %v6083 = vadd.f32 %v5874, %v6082
    %6084 = vmatmul.f32.gmra.mxu0 %v5610
    %v6085 = vpop.f32.mrf.mxu0
    %v6086 = vadd.f32 %v5877, %v6085
    %6087 = vmatmul.f32.gmra.mxu0 %v5614
    %v6088 = vpop.f32.mrf.mxu0
    %v6089 = vadd.f32 %v5880, %v6088
    %6090 = vmatmul.f32.gmra.mxu0 %v5618
    %v6091 = vpop.f32.mrf.mxu0
    %v6092 = vadd.f32 %v5883, %v6091
    %6093 = vmatmul.f32.gmra.mxu0 %v5622
    %v6094 = vpop.f32.mrf.mxu0
    %v6095 = vadd.f32 %v5886, %v6094
    %6096 = vmatmul.f32.gmra.mxu0 %v5626
    %v6097 = vpop.f32.mrf.mxu0
    %v6098 = vadd.f32 %v5889, %v6097
    %6099 = vmatmul.f32.gmra.mxu0 %v5630
    %v6100 = vpop.f32.mrf.mxu0
    %v6101 = vadd.f32 %v5892, %v6100
    %6102 = vmatmul.f32.gmra.mxu0 %v5634
    %v6103 = vpop.f32.mrf.mxu0
    %v6104 = vadd.f32 %v5895, %v6103
    %6105 = vmatmul.f32.gmra.mxu0 %v5638
    %v6106 = vpop.f32.mrf.mxu0
    %v6107 = vadd.f32 %v5898, %v6106
    %6108 = vmatmul.f32.gmra.mxu0 %v5642
    %v6109 = vpop.f32.mrf.mxu0
    %v6110 = vadd.f32 %v5901, %v6109
    %6111 = vmatmul.f32.gmra.mxu0 %v5646
    %v6112 = vpop.f32.mrf.mxu0
    %v6113 = vadd.f32 %v5904, %v6112
    %6114 = vmatmul.f32.gmra.mxu0 %v5650
    %v6115 = vpop.f32.mrf.mxu0
    %v6116 = vadd.f32 %v5907, %v6115
    %6117 = vmatmul.f32.gmra.mxu0 %v5654
    %v6118 = vpop.f32.mrf.mxu0
    %v6119 = vadd.f32 %v5910, %v6118
    %6120 = vmatmul.f32.gmra.mxu0 %v5658
    %v6121 = vpop.f32.mrf.mxu0
    %v6122 = vadd.f32 %v5913, %v6121
    %6123 = vmatmul.f32.gmra.mxu0 %v5662
    %v6124 = vpop.f32.mrf.mxu0
    %v6125 = vadd.f32 %v5916, %v6124
    %6126 = vmatmul.f32.gmra.mxu0 %v5666
    %v6127 = vpop.f32.mrf.mxu0
    %v6128 = vadd.f32 %v5919, %v6127
    %6129 = vmatmul.f32.gmra.mxu0 %v5670
    %v6130 = vpop.f32.mrf.mxu0
    %v6131 = vadd.f32 %v5922, %v6130
    %6132 = vmatmul.f32.gmra.mxu0 %v5674
    %v6133 = vpop.f32.mrf.mxu0
    %v6134 = vadd.f32 %v5925, %v6133
    %6135 = vmatmul.f32.gmra.mxu0 %v5678
    %v6136 = vpop.f32.mrf.mxu0
    %v6137 = vadd.f32 %v5928, %v6136
    %6138 = vmatmul.f32.gmra.mxu0 %v5682
    %v6139 = vpop.f32.mrf.mxu0
    %v6140 = vadd.f32 %v5931, %v6139
    %6141 = vmatmul.f32.gmra.mxu0 %v5686
    %v6142 = vpop.f32.mrf.mxu0
    %v6143 = vadd.f32 %v5934, %v6142
    %6144 = vmatmul.f32.gmra.mxu0 %v5690
    %v6145 = vpop.f32.mrf.mxu0
    %v6146 = vadd.f32 %v5937, %v6145
    %6147 = vmatmul.f32.gmra.mxu0 %v5694
    %v6148 = vpop.f32.mrf.mxu0
    %v6149 = vadd.f32 %v5940, %v6148
    %6150 = vmatmul.f32.gmra.mxu0 %v5698
    %v6151 = vpop.f32.mrf.mxu0
    %v6152 = vadd.f32 %v5943, %v6151
    %6153 = vmatmul.f32.gmra.mxu0 %v5702
    %v6154 = vpop.f32.mrf.mxu0
    %v6155 = vadd.f32 %v5946, %v6154
    %6156 = vmatmul.f32.gmra.mxu0 %v5706
    %v6157 = vpop.f32.mrf.mxu0
    %v6158 = vadd.f32 %v5949, %v6157
    %6159 = vmatmul.f32.gmra.mxu0 %v5710
    %v6160 = vpop.f32.mrf.mxu0
    %v6161 = vadd.f32 %v5952, %v6160
    %6162 = vmatmul.f32.gmra.mxu0 %v5714
    %v6163 = vpop.f32.mrf.mxu0
    %v6164 = vadd.f32 %v5955, %v6163
    %6165 = vmatmul.f32.gmra.mxu0 %v5718
    %v6166 = vpop.f32.mrf.mxu0
    %v6167 = vadd.f32 %v5958, %v6166
    %6168 = vmatmul.f32.gmra.mxu0 %v5722
    %v6169 = vpop.f32.mrf.mxu0
    %v6170 = vadd.f32 %v5961, %v6169
    %6171 = vmatmul.f32.gmra.mxu0 %v5726
    %v6172 = vpop.f32.mrf.mxu0
    %v6173 = vadd.f32 %v5964, %v6172
    %6174 = vmatmul.f32.gmra.mxu0 %v5730
    %v6175 = vpop.f32.mrf.mxu0
    %v6176 = vadd.f32 %v5967, %v6175
    %6177 = vmatmul.f32.gmra.mxu0 %v5734
    %v6178 = vpop.f32.mrf.mxu0
    %v6179 = vadd.f32 %v5970, %v6178
    %6180 = vmatmul.f32.gmra.mxu0 %v5738
    %v6181 = vpop.f32.mrf.mxu0
    %v6182 = vadd.f32 %v5973, %v6181
    %6183 = vmatmul.f32.gmra.mxu0 %v5742
    %v6184 = vpop.f32.mrf.mxu0
    %v6185 = vadd.f32 %v5976, %v6184
    %6186 = vmatmul.f32.gmra.mxu0 %v5746
    %v6187 = vpop.f32.mrf.mxu0
    %v6188 = vadd.f32 %v5979, %v6187
    %6189 = vmatmul.f32.gmra.mxu0 %v5750
    %v6190 = vpop.f32.mrf.mxu0
    %v6191 = vadd.f32 %v5982, %v6190
    %6192 = vmatmul.f32.gmra.mxu0 %v5754
    %v6193 = vpop.f32.mrf.mxu0
    %v6194 = vadd.f32 %v5985, %v6193
    %6195 = vmatmul.f32.gmra.mxu0 %v5758
    %v6196 = vpop.f32.mrf.mxu0
    %v6197 = vadd.f32 %v5988, %v6196
    %6198 = vmatmul.f32.gmra.mxu0 %v5762
    %v6199 = vpop.f32.mrf.mxu0
    %v6200 = vadd.f32 %v5991, %v6199
    %6201 = vmatmul.f32.gmra.mxu0 %v5766
    %v6202 = vpop.f32.mrf.mxu0
    %v6203 = vadd.f32 %v5994, %v6202
    %6204 = vmatmul.f32.gmra.mxu0 %v5770
    %v6205 = vpop.f32.mrf.mxu0
    %v6206 = vadd.f32 %v5997, %v6205
    %6207 = vmatmul.f32.gmra.mxu0 %v5774
    %v6208 = vpop.f32.mrf.mxu0
    %v6209 = vadd.f32 %v6000, %v6208
    %6210 = vmatmul.f32.gmra.mxu0 %v5778
    %v6211 = vpop.f32.mrf.mxu0
    %v6212 = vadd.f32 %v6003, %v6211
    %6213 = vmatmul.f32.gmra.mxu0 %v5782
    %v6214 = vpop.f32.mrf.mxu0
    %v6215 = vadd.f32 %v6006, %v6214
    %6216 = vmatmul.f32.gmra.mxu0 %v5786
    %v6217 = vpop.f32.mrf.mxu0
    %v6218 = vadd.f32 %v6009, %v6217
    %6219 = vmatmul.f32.gmra.mxu0 %v5790
    %v6220 = vpop.f32.mrf.mxu0
    %v6221 = vadd.f32 %v6012, %v6220
    %6222 = vmatmul.f32.gmra.mxu0 %v5794
    %v6223 = vpop.f32.mrf.mxu0
    %v6224 = vadd.f32 %v6015, %v6223
    %6225 = vmatmul.f32.gmra.mxu0 %v5798
    %v6226 = vpop.f32.mrf.mxu0
    %v6227 = vadd.f32 %v6018, %v6226
    %6228 = vmatmul.f32.gmra.mxu0 %v5802
    %v6229 = vpop.f32.mrf.mxu0
    %v6230 = vadd.f32 %v6021, %v6229
    %6231 = vmatmul.f32.gmra.mxu0 %v5806
    %v6232 = vpop.f32.mrf.mxu0
    %v6233 = vadd.f32 %v6024, %v6232
    %6234 = vmatmul.f32.gmra.mxu0 %v5810
    %v6235 = vpop.f32.mrf.mxu0
    %v6236 = vadd.f32 %v6027, %v6235
    %6237 = vmatmul.f32.gmra.mxu0 %v5814
    %v6238 = vpop.f32.mrf.mxu0
    %v6239 = vadd.f32 %v6030, %v6238
    %6240 = vmatmul.f32.gmra.mxu0 %v5818
    %v6241 = vpop.f32.mrf.mxu0
    %v6242 = vadd.f32 %v6033, %v6241
    %6243 = vmatmul.f32.gmra.mxu0 %v5822
    %v6244 = vpop.f32.mrf.mxu0
    %v6245 = vadd.f32 %v6036, %v6244
    %6246 = vmatmul.f32.gmra.mxu0 %v5826
    %v6247 = vpop.f32.mrf.mxu0
    %v6248 = vadd.f32 %v6039, %v6247
    %6249 = vmatmul.f32.gmra.mxu0 %v5830
    %v6250 = vpop.f32.mrf.mxu0
    %v6251 = vadd.f32 %v6042, %v6250
    %6252 = vmatmul.f32.gmra.mxu0 %v5834
    %v6253 = vpop.f32.mrf.mxu0
    %v6254 = vadd.f32 %v6045, %v6253
    %6255 = vmatmul.f32.gmra.mxu0 %v5838
    %v6256 = vpop.f32.mrf.mxu0
    %v6257 = vadd.f32 %v6048, %v6256
    %6258 = vdwg.mxu0
    %6259 = vmatpush.msra.mxu0 %v5568
    %6260 = vmatpush.msra.mxu0 %v5567
    %6261 = vmatpush.msra.mxu0 %v5566
    %6262 = vmatpush.msra.mxu0 %v5565
    %6263 = vmatpush.msra.mxu0 %v5564
    %6264 = vmatpush.msra.mxu0 %v5563
    %6265 = vmatpush.msra.mxu0 %v5562
    %6266 = vmatpush.msra.mxu0 %v5561
    %6267 = vmatpush.msra.mxu0 %v5560
    %6268 = vmatpush.msra.mxu0 %v5559
    %6269 = vmatpush.msra.mxu0 %v5558
    %6270 = vmatpush.msra.mxu0 %v5557
    %6271 = vmatpush.msra.mxu0 %v5556
    %6272 = vmatpush.msra.mxu0 %v5555
    %6273 = vmatpush.msra.mxu0 %v5554
    %6274 = vmatpush.msra.mxu0 %v5553
    %6275 = vmatmul.f32.gmra.mxu0 %v5587
    %v6276 = vpop.f32.mrf.mxu0
    %v6277 = vadd.f32 %v6068, %v6276
    %6278 = vmatmul.f32.gmra.mxu0 %v5591
    %v6279 = vpop.f32.mrf.mxu0
    %v6280 = vadd.f32 %v6071, %v6279
    %6281 = vmatmul.f32.gmra.mxu0 %v5595
    %v6282 = vpop.f32.mrf.mxu0
    %v6283 = vadd.f32 %v6074, %v6282
    %6284 = vmatmul.f32.gmra.mxu0 %v5599
    %v6285 = vpop.f32.mrf.mxu0
    %v6286 = vadd.f32 %v6077, %v6285
    %6287 = vmatmul.f32.gmra.mxu0 %v5603
    %v6288 = vpop.f32.mrf.mxu0
    %v6289 = vadd.f32 %v6080, %v6288
    %6290 = vmatmul.f32.gmra.mxu0 %v5607
    %v6291 = vpop.f32.mrf.mxu0
    %v6292 = vadd.f32 %v6083, %v6291
    %6293 = vmatmul.f32.gmra.mxu0 %v5611
    %v6294 = vpop.f32.mrf.mxu0
    %v6295 = vadd.f32 %v6086, %v6294
    %6296 = vmatmul.f32.gmra.mxu0 %v5615
    %v6297 = vpop.f32.mrf.mxu0
    %v6298 = vadd.f32 %v6089, %v6297
    %6299 = vmatmul.f32.gmra.mxu0 %v5619
    %v6300 = vpop.f32.mrf.mxu0
    %v6301 = vadd.f32 %v6092, %v6300
    %6302 = vmatmul.f32.gmra.mxu0 %v5623
    %v6303 = vpop.f32.mrf.mxu0
    %v6304 = vadd.f32 %v6095, %v6303
    %6305 = vmatmul.f32.gmra.mxu0 %v5627
    %v6306 = vpop.f32.mrf.mxu0
    %v6307 = vadd.f32 %v6098, %v6306
    %6308 = vmatmul.f32.gmra.mxu0 %v5631
    %v6309 = vpop.f32.mrf.mxu0
    %v6310 = vadd.f32 %v6101, %v6309
    %6311 = vmatmul.f32.gmra.mxu0 %v5635
    %v6312 = vpop.f32.mrf.mxu0
    %v6313 = vadd.f32 %v6104, %v6312
    %6314 = vmatmul.f32.gmra.mxu0 %v5639
    %v6315 = vpop.f32.mrf.mxu0
    %v6316 = vadd.f32 %v6107, %v6315
    %6317 = vmatmul.f32.gmra.mxu0 %v5643
    %v6318 = vpop.f32.mrf.mxu0
    %v6319 = vadd.f32 %v6110, %v6318
    %6320 = vmatmul.f32.gmra.mxu0 %v5647
    %v6321 = vpop.f32.mrf.mxu0
    %v6322 = vadd.f32 %v6113, %v6321
    %6323 = vmatmul.f32.gmra.mxu0 %v5651
    %v6324 = vpop.f32.mrf.mxu0
    %v6325 = vadd.f32 %v6116, %v6324
    %6326 = vmatmul.f32.gmra.mxu0 %v5655
    %v6327 = vpop.f32.mrf.mxu0
    %v6328 = vadd.f32 %v6119, %v6327
    %6329 = vmatmul.f32.gmra.mxu0 %v5659
    %v6330 = vpop.f32.mrf.mxu0
    %v6331 = vadd.f32 %v6122, %v6330
    %6332 = vmatmul.f32.gmra.mxu0 %v5663
    %v6333 = vpop.f32.mrf.mxu0
    %v6334 = vadd.f32 %v6125, %v6333
    %6335 = vmatmul.f32.gmra.mxu0 %v5667
    %v6336 = vpop.f32.mrf.mxu0
    %v6337 = vadd.f32 %v6128, %v6336
    %6338 = vmatmul.f32.gmra.mxu0 %v5671
    %v6339 = vpop.f32.mrf.mxu0
    %v6340 = vadd.f32 %v6131, %v6339
    %6341 = vmatmul.f32.gmra.mxu0 %v5675
    %v6342 = vpop.f32.mrf.mxu0
    %v6343 = vadd.f32 %v6134, %v6342
    %6344 = vmatmul.f32.gmra.mxu0 %v5679
    %v6345 = vpop.f32.mrf.mxu0
    %v6346 = vadd.f32 %v6137, %v6345
    %6347 = vmatmul.f32.gmra.mxu0 %v5683
    %v6348 = vpop.f32.mrf.mxu0
    %v6349 = vadd.f32 %v6140, %v6348
    %6350 = vmatmul.f32.gmra.mxu0 %v5687
    %v6351 = vpop.f32.mrf.mxu0
    %v6352 = vadd.f32 %v6143, %v6351
    %6353 = vmatmul.f32.gmra.mxu0 %v5691
    %v6354 = vpop.f32.mrf.mxu0
    %v6355 = vadd.f32 %v6146, %v6354
    %6356 = vmatmul.f32.gmra.mxu0 %v5695
    %v6357 = vpop.f32.mrf.mxu0
    %v6358 = vadd.f32 %v6149, %v6357
    %6359 = vmatmul.f32.gmra.mxu0 %v5699
    %v6360 = vpop.f32.mrf.mxu0
    %v6361 = vadd.f32 %v6152, %v6360
    %6362 = vmatmul.f32.gmra.mxu0 %v5703
    %v6363 = vpop.f32.mrf.mxu0
    %v6364 = vadd.f32 %v6155, %v6363
    %6365 = vmatmul.f32.gmra.mxu0 %v5707
    %v6366 = vpop.f32.mrf.mxu0
    %v6367 = vadd.f32 %v6158, %v6366
    %6368 = vmatmul.f32.gmra.mxu0 %v5711
    %v6369 = vpop.f32.mrf.mxu0
    %v6370 = vadd.f32 %v6161, %v6369
    %6371 = vmatmul.f32.gmra.mxu0 %v5715
    %v6372 = vpop.f32.mrf.mxu0
    %v6373 = vadd.f32 %v6164, %v6372
    %6374 = vmatmul.f32.gmra.mxu0 %v5719
    %v6375 = vpop.f32.mrf.mxu0
    %v6376 = vadd.f32 %v6167, %v6375
    %6377 = vmatmul.f32.gmra.mxu0 %v5723
    %v6378 = vpop.f32.mrf.mxu0
    %v6379 = vadd.f32 %v6170, %v6378
    %6380 = vmatmul.f32.gmra.mxu0 %v5727
    %v6381 = vpop.f32.mrf.mxu0
    %v6382 = vadd.f32 %v6173, %v6381
    %6383 = vmatmul.f32.gmra.mxu0 %v5731
    %v6384 = vpop.f32.mrf.mxu0
    %v6385 = vadd.f32 %v6176, %v6384
    %6386 = vmatmul.f32.gmra.mxu0 %v5735
    %v6387 = vpop.f32.mrf.mxu0
    %v6388 = vadd.f32 %v6179, %v6387
    %6389 = vmatmul.f32.gmra.mxu0 %v5739
    %v6390 = vpop.f32.mrf.mxu0
    %v6391 = vadd.f32 %v6182, %v6390
    %6392 = vmatmul.f32.gmra.mxu0 %v5743
    %v6393 = vpop.f32.mrf.mxu0
    %v6394 = vadd.f32 %v6185, %v6393
    %6395 = vmatmul.f32.gmra.mxu0 %v5747
    %v6396 = vpop.f32.mrf.mxu0
    %v6397 = vadd.f32 %v6188, %v6396
    %6398 = vmatmul.f32.gmra.mxu0 %v5751
    %v6399 = vpop.f32.mrf.mxu0
    %v6400 = vadd.f32 %v6191, %v6399
    %6401 = vmatmul.f32.gmra.mxu0 %v5755
    %v6402 = vpop.f32.mrf.mxu0
    %v6403 = vadd.f32 %v6194, %v6402
    %6404 = vmatmul.f32.gmra.mxu0 %v5759
    %v6405 = vpop.f32.mrf.mxu0
    %v6406 = vadd.f32 %v6197, %v6405
    %6407 = vmatmul.f32.gmra.mxu0 %v5763
    %v6408 = vpop.f32.mrf.mxu0
    %v6409 = vadd.f32 %v6200, %v6408
    %6410 = vmatmul.f32.gmra.mxu0 %v5767
    %v6411 = vpop.f32.mrf.mxu0
    %v6412 = vadd.f32 %v6203, %v6411
    %6413 = vmatmul.f32.gmra.mxu0 %v5771
    %v6414 = vpop.f32.mrf.mxu0
    %v6415 = vadd.f32 %v6206, %v6414
    %6416 = vmatmul.f32.gmra.mxu0 %v5775
    %v6417 = vpop.f32.mrf.mxu0
    %v6418 = vadd.f32 %v6209, %v6417
    %6419 = vmatmul.f32.gmra.mxu0 %v5779
    %v6420 = vpop.f32.mrf.mxu0
    %v6421 = vadd.f32 %v6212, %v6420
    %6422 = vmatmul.f32.gmra.mxu0 %v5783
    %v6423 = vpop.f32.mrf.mxu0
    %v6424 = vadd.f32 %v6215, %v6423
    %6425 = vmatmul.f32.gmra.mxu0 %v5787
    %v6426 = vpop.f32.mrf.mxu0
    %v6427 = vadd.f32 %v6218, %v6426
    %6428 = vmatmul.f32.gmra.mxu0 %v5791
    %v6429 = vpop.f32.mrf.mxu0
    %v6430 = vadd.f32 %v6221, %v6429
    %6431 = vmatmul.f32.gmra.mxu0 %v5795
    %v6432 = vpop.f32.mrf.mxu0
    %v6433 = vadd.f32 %v6224, %v6432
    %6434 = vmatmul.f32.gmra.mxu0 %v5799
    %v6435 = vpop.f32.mrf.mxu0
    %v6436 = vadd.f32 %v6227, %v6435
    %6437 = vmatmul.f32.gmra.mxu0 %v5803
    %v6438 = vpop.f32.mrf.mxu0
    %v6439 = vadd.f32 %v6230, %v6438
    %6440 = vmatmul.f32.gmra.mxu0 %v5807
    %v6441 = vpop.f32.mrf.mxu0
    %v6442 = vadd.f32 %v6233, %v6441
    %6443 = vmatmul.f32.gmra.mxu0 %v5811
    %v6444 = vpop.f32.mrf.mxu0
    %v6445 = vadd.f32 %v6236, %v6444
    %6446 = vmatmul.f32.gmra.mxu0 %v5815
    %v6447 = vpop.f32.mrf.mxu0
    %v6448 = vadd.f32 %v6239, %v6447
    %6449 = vmatmul.f32.gmra.mxu0 %v5819
    %v6450 = vpop.f32.mrf.mxu0
    %v6451 = vadd.f32 %v6242, %v6450
    %6452 = vmatmul.f32.gmra.mxu0 %v5823
    %v6453 = vpop.f32.mrf.mxu0
    %v6454 = vadd.f32 %v6245, %v6453
    %6455 = vmatmul.f32.gmra.mxu0 %v5827
    %v6456 = vpop.f32.mrf.mxu0
    %v6457 = vadd.f32 %v6248, %v6456
    %6458 = vmatmul.f32.gmra.mxu0 %v5831
    %v6459 = vpop.f32.mrf.mxu0
    %v6460 = vadd.f32 %v6251, %v6459
    %6461 = vmatmul.f32.gmra.mxu0 %v5835
    %v6462 = vpop.f32.mrf.mxu0
    %v6463 = vadd.f32 %v6254, %v6462
    %6464 = vmatmul.f32.gmra.mxu0 %v5839
    %v6465 = vpop.f32.mrf.mxu0
    %v6466 = vadd.f32 %v6257, %v6465
    %6467 = vdwg.mxu0
    %6468 = vmatpush.msra.mxu0 %v5584
    %6469 = vmatpush.msra.mxu0 %v5583
    %6470 = vmatpush.msra.mxu0 %v5582
    %6471 = vmatpush.msra.mxu0 %v5581
    %6472 = vmatpush.msra.mxu0 %v5580
    %6473 = vmatpush.msra.mxu0 %v5579
    %6474 = vmatpush.msra.mxu0 %v5578
    %6475 = vmatpush.msra.mxu0 %v5577
    %6476 = vmatpush.msra.mxu0 %v5576
    %6477 = vmatpush.msra.mxu0 %v5575
    %6478 = vmatpush.msra.mxu0 %v5574
    %6479 = vmatpush.msra.mxu0 %v5573
    %6480 = vmatpush.msra.mxu0 %v5572
    %6481 = vmatpush.msra.mxu0 %v5571
    %6482 = vmatpush.msra.mxu0 %v5570
    %6483 = vmatpush.msra.mxu0 %v5569
    %6484 = vmatmul.f32.gmra.mxu0 %v5588
    %v6485 = vpop.f32.mrf.mxu0
    %v6486 = vadd.f32 %v6277, %v6485
    %6487 = vmatmul.f32.gmra.mxu0 %v5592
    %v6488 = vpop.f32.mrf.mxu0
    %v6489 = vadd.f32 %v6280, %v6488
    %6490 = vmatmul.f32.gmra.mxu0 %v5596
    %v6491 = vpop.f32.mrf.mxu0
    %v6492 = vadd.f32 %v6283, %v6491
    %6493 = vmatmul.f32.gmra.mxu0 %v5600
    %v6494 = vpop.f32.mrf.mxu0
    %v6495 = vadd.f32 %v6286, %v6494
    %6496 = vmatmul.f32.gmra.mxu0 %v5604
    %v6497 = vpop.f32.mrf.mxu0
    %v6498 = vadd.f32 %v6289, %v6497
    %6499 = vmatmul.f32.gmra.mxu0 %v5608
    %v6500 = vpop.f32.mrf.mxu0
    %v6501 = vadd.f32 %v6292, %v6500
    %6502 = vmatmul.f32.gmra.mxu0 %v5612
    %v6503 = vpop.f32.mrf.mxu0
    %v6504 = vadd.f32 %v6295, %v6503
    %6505 = vmatmul.f32.gmra.mxu0 %v5616
    %v6506 = vpop.f32.mrf.mxu0
    %v6507 = vadd.f32 %v6298, %v6506
    %6508 = vmatmul.f32.gmra.mxu0 %v5620
    %v6509 = vpop.f32.mrf.mxu0
    %v6510 = vadd.f32 %v6301, %v6509
    %6511 = vmatmul.f32.gmra.mxu0 %v5624
    %v6512 = vpop.f32.mrf.mxu0
    %v6513 = vadd.f32 %v6304, %v6512
    %6514 = vmatmul.f32.gmra.mxu0 %v5628
    %v6515 = vpop.f32.mrf.mxu0
    %v6516 = vadd.f32 %v6307, %v6515
    %6517 = vmatmul.f32.gmra.mxu0 %v5632
    %v6518 = vpop.f32.mrf.mxu0
    %v6519 = vadd.f32 %v6310, %v6518
    %6520 = vmatmul.f32.gmra.mxu0 %v5636
    %v6521 = vpop.f32.mrf.mxu0
    %v6522 = vadd.f32 %v6313, %v6521
    %6523 = vmatmul.f32.gmra.mxu0 %v5640
    %v6524 = vpop.f32.mrf.mxu0
    %v6525 = vadd.f32 %v6316, %v6524
    %6526 = vmatmul.f32.gmra.mxu0 %v5644
    %v6527 = vpop.f32.mrf.mxu0
    %v6528 = vadd.f32 %v6319, %v6527
    %6529 = vmatmul.f32.gmra.mxu0 %v5648
    %v6530 = vpop.f32.mrf.mxu0
    %v6531 = vadd.f32 %v6322, %v6530
    %6532 = vmatmul.f32.gmra.mxu0 %v5652
    %v6533 = vpop.f32.mrf.mxu0
    %v6534 = vadd.f32 %v6325, %v6533
    %6535 = vmatmul.f32.gmra.mxu0 %v5656
    %v6536 = vpop.f32.mrf.mxu0
    %v6537 = vadd.f32 %v6328, %v6536
    %6538 = vmatmul.f32.gmra.mxu0 %v5660
    %v6539 = vpop.f32.mrf.mxu0
    %v6540 = vadd.f32 %v6331, %v6539
    %6541 = vmatmul.f32.gmra.mxu0 %v5664
    %v6542 = vpop.f32.mrf.mxu0
    %v6543 = vadd.f32 %v6334, %v6542
    %6544 = vmatmul.f32.gmra.mxu0 %v5668
    %v6545 = vpop.f32.mrf.mxu0
    %v6546 = vadd.f32 %v6337, %v6545
    %6547 = vmatmul.f32.gmra.mxu0 %v5672
    %v6548 = vpop.f32.mrf.mxu0
    %v6549 = vadd.f32 %v6340, %v6548
    %6550 = vmatmul.f32.gmra.mxu0 %v5676
    %v6551 = vpop.f32.mrf.mxu0
    %v6552 = vadd.f32 %v6343, %v6551
    %6553 = vmatmul.f32.gmra.mxu0 %v5680
    %v6554 = vpop.f32.mrf.mxu0
    %v6555 = vadd.f32 %v6346, %v6554
    %6556 = vmatmul.f32.gmra.mxu0 %v5684
    %v6557 = vpop.f32.mrf.mxu0
    %v6558 = vadd.f32 %v6349, %v6557
    %6559 = vmatmul.f32.gmra.mxu0 %v5688
    %v6560 = vpop.f32.mrf.mxu0
    %v6561 = vadd.f32 %v6352, %v6560
    %6562 = vmatmul.f32.gmra.mxu0 %v5692
    %v6563 = vpop.f32.mrf.mxu0
    %v6564 = vadd.f32 %v6355, %v6563
    %6565 = vmatmul.f32.gmra.mxu0 %v5696
    %v6566 = vpop.f32.mrf.mxu0
    %v6567 = vadd.f32 %v6358, %v6566
    %6568 = vmatmul.f32.gmra.mxu0 %v5700
    %v6569 = vpop.f32.mrf.mxu0
    %v6570 = vadd.f32 %v6361, %v6569
    %6571 = vmatmul.f32.gmra.mxu0 %v5704
    %v6572 = vpop.f32.mrf.mxu0
    %v6573 = vadd.f32 %v6364, %v6572
    %6574 = vmatmul.f32.gmra.mxu0 %v5708
    %v6575 = vpop.f32.mrf.mxu0
    %v6576 = vadd.f32 %v6367, %v6575
    %6577 = vmatmul.f32.gmra.mxu0 %v5712
    %v6578 = vpop.f32.mrf.mxu0
    %v6579 = vadd.f32 %v6370, %v6578
    %6580 = vmatmul.f32.gmra.mxu0 %v5716
    %v6581 = vpop.f32.mrf.mxu0
    %v6582 = vadd.f32 %v6373, %v6581
    %6583 = vmatmul.f32.gmra.mxu0 %v5720
    %v6584 = vpop.f32.mrf.mxu0
    %v6585 = vadd.f32 %v6376, %v6584
    %6586 = vmatmul.f32.gmra.mxu0 %v5724
    %v6587 = vpop.f32.mrf.mxu0
    %v6588 = vadd.f32 %v6379, %v6587
    %6589 = vmatmul.f32.gmra.mxu0 %v5728
    %v6590 = vpop.f32.mrf.mxu0
    %v6591 = vadd.f32 %v6382, %v6590
    %6592 = vmatmul.f32.gmra.mxu0 %v5732
    %v6593 = vpop.f32.mrf.mxu0
    %v6594 = vadd.f32 %v6385, %v6593
    %6595 = vmatmul.f32.gmra.mxu0 %v5736
    %v6596 = vpop.f32.mrf.mxu0
    %v6597 = vadd.f32 %v6388, %v6596
    %6598 = vmatmul.f32.gmra.mxu0 %v5740
    %v6599 = vpop.f32.mrf.mxu0
    %v6600 = vadd.f32 %v6391, %v6599
    %6601 = vmatmul.f32.gmra.mxu0 %v5744
    %v6602 = vpop.f32.mrf.mxu0
    %v6603 = vadd.f32 %v6394, %v6602
    %6604 = vmatmul.f32.gmra.mxu0 %v5748
    %v6605 = vpop.f32.mrf.mxu0
    %v6606 = vadd.f32 %v6397, %v6605
    %6607 = vmatmul.f32.gmra.mxu0 %v5752
    %v6608 = vpop.f32.mrf.mxu0
    %v6609 = vadd.f32 %v6400, %v6608
    %6610 = vmatmul.f32.gmra.mxu0 %v5756
    %v6611 = vpop.f32.mrf.mxu0
    %v6612 = vadd.f32 %v6403, %v6611
    %6613 = vmatmul.f32.gmra.mxu0 %v5760
    %v6614 = vpop.f32.mrf.mxu0
    %v6615 = vadd.f32 %v6406, %v6614
    %6616 = vmatmul.f32.gmra.mxu0 %v5764
    %v6617 = vpop.f32.mrf.mxu0
    %v6618 = vadd.f32 %v6409, %v6617
    %6619 = vmatmul.f32.gmra.mxu0 %v5768
    %v6620 = vpop.f32.mrf.mxu0
    %v6621 = vadd.f32 %v6412, %v6620
    %6622 = vmatmul.f32.gmra.mxu0 %v5772
    %v6623 = vpop.f32.mrf.mxu0
    %v6624 = vadd.f32 %v6415, %v6623
    %6625 = vmatmul.f32.gmra.mxu0 %v5776
    %v6626 = vpop.f32.mrf.mxu0
    %v6627 = vadd.f32 %v6418, %v6626
    %6628 = vmatmul.f32.gmra.mxu0 %v5780
    %v6629 = vpop.f32.mrf.mxu0
    %v6630 = vadd.f32 %v6421, %v6629
    %6631 = vmatmul.f32.gmra.mxu0 %v5784
    %v6632 = vpop.f32.mrf.mxu0
    %v6633 = vadd.f32 %v6424, %v6632
    %6634 = vmatmul.f32.gmra.mxu0 %v5788
    %v6635 = vpop.f32.mrf.mxu0
    %v6636 = vadd.f32 %v6427, %v6635
    %6637 = vmatmul.f32.gmra.mxu0 %v5792
    %v6638 = vpop.f32.mrf.mxu0
    %v6639 = vadd.f32 %v6430, %v6638
    %6640 = vmatmul.f32.gmra.mxu0 %v5796
    %v6641 = vpop.f32.mrf.mxu0
    %v6642 = vadd.f32 %v6433, %v6641
    %6643 = vmatmul.f32.gmra.mxu0 %v5800
    %v6644 = vpop.f32.mrf.mxu0
    %v6645 = vadd.f32 %v6436, %v6644
    %6646 = vmatmul.f32.gmra.mxu0 %v5804
    %v6647 = vpop.f32.mrf.mxu0
    %v6648 = vadd.f32 %v6439, %v6647
    %6649 = vmatmul.f32.gmra.mxu0 %v5808
    %v6650 = vpop.f32.mrf.mxu0
    %v6651 = vadd.f32 %v6442, %v6650
    %6652 = vmatmul.f32.gmra.mxu0 %v5812
    %v6653 = vpop.f32.mrf.mxu0
    %v6654 = vadd.f32 %v6445, %v6653
    %6655 = vmatmul.f32.gmra.mxu0 %v5816
    %v6656 = vpop.f32.mrf.mxu0
    %v6657 = vadd.f32 %v6448, %v6656
    %6658 = vmatmul.f32.gmra.mxu0 %v5820
    %v6659 = vpop.f32.mrf.mxu0
    %v6660 = vadd.f32 %v6451, %v6659
    %6661 = vmatmul.f32.gmra.mxu0 %v5824
    %v6662 = vpop.f32.mrf.mxu0
    %v6663 = vadd.f32 %v6454, %v6662
    %6664 = vmatmul.f32.gmra.mxu0 %v5828
    %v6665 = vpop.f32.mrf.mxu0
    %v6666 = vadd.f32 %v6457, %v6665
    %6667 = vmatmul.f32.gmra.mxu0 %v5832
    %v6668 = vpop.f32.mrf.mxu0
    %v6669 = vadd.f32 %v6460, %v6668
    %6670 = vmatmul.f32.gmra.mxu0 %v5836
    %v6671 = vpop.f32.mrf.mxu0
    %v6672 = vadd.f32 %v6463, %v6671
    %6673 = vmatmul.f32.gmra.mxu0 %v5840
    %v6674 = vpop.f32.mrf.mxu0
    %v6675 = vadd.f32 %v6466, %v6674
    %6676 = vdwg.mxu0
    %v6677 = vmax.f32 %v6486, %v6534
    %v6678 = vmax.f32 %v6489, %v6537
    %v6679 = vmax.f32 %v6492, %v6540
    %v6680 = vmax.f32 %v6495, %v6543
    %v6681 = vmax.f32 %v6498, %v6546
    %v6682 = vmax.f32 %v6501, %v6549
    %v6683 = vmax.f32 %v6504, %v6552
    %v6684 = vmax.f32 %v6507, %v6555
    %v6685 = vmax.f32 %v6510, %v6558
    %v6686 = vmax.f32 %v6513, %v6561
    %v6687 = vmax.f32 %v6516, %v6564
    %v6688 = vmax.f32 %v6519, %v6567
    %v6689 = vmax.f32 %v6522, %v6570
    %v6690 = vmax.f32 %v6525, %v6573
    %v6691 = vmax.f32 %v6528, %v6576
    %v6692 = vmax.f32 %v6531, %v6579
    %v6693 = vmax.f32 %v6582, %v6630
    %v6694 = vmax.f32 %v6585, %v6633
    %v6695 = vmax.f32 %v6588, %v6636
    %v6696 = vmax.f32 %v6591, %v6639
    %v6697 = vmax.f32 %v6594, %v6642
    %v6698 = vmax.f32 %v6597, %v6645
    %v6699 = vmax.f32 %v6600, %v6648
    %v6700 = vmax.f32 %v6603, %v6651
    %v6701 = vmax.f32 %v6606, %v6654
    %v6702 = vmax.f32 %v6609, %v6657
    %v6703 = vmax.f32 %v6612, %v6660
    %v6704 = vmax.f32 %v6615, %v6663
    %v6705 = vmax.f32 %v6618, %v6666
    %v6706 = vmax.f32 %v6621, %v6669
    %v6707 = vmax.f32 %v6624, %v6672
    %v6708 = vmax.f32 %v6627, %v6675
    %v6709 = vmax.f32 %v6677, %v6693
    %v6710 = vmax.f32 %v6678, %v6694
    %v6711 = vmax.f32 %v6679, %v6695
    %v6712 = vmax.f32 %v6680, %v6696
    %v6713 = vmax.f32 %v6681, %v6697
    %v6714 = vmax.f32 %v6682, %v6698
    %v6715 = vmax.f32 %v6683, %v6699
    %v6716 = vmax.f32 %v6684, %v6700
    %v6717 = vmax.f32 %v6685, %v6701
    %v6718 = vmax.f32 %v6686, %v6702
    %v6719 = vmax.f32 %v6687, %v6703
    %v6720 = vmax.f32 %v6688, %v6704
    %v6721 = vmax.f32 %v6689, %v6705
    %v6722 = vmax.f32 %v6690, %v6706
    %v6723 = vmax.f32 %v6691, %v6707
    %v6724 = vmax.f32 %v6692, %v6708
    %v6725 = vld [vmem:[%s2] sm:$0x1]
    %v6727 = vperm.slane %v6725, 0
    %v6729 = vadd.f32 %v6709, %v6727
    %v6730 = vadd.f32 %v6710, %v6727
    %v6731 = vadd.f32 %v6711, %v6727
    %v6732 = vadd.f32 %v6712, %v6727
    %v6733 = vadd.f32 %v6713, %v6727
    %v6734 = vadd.f32 %v6714, %v6727
    %v6735 = vadd.f32 %v6715, %v6727
    %v6736 = vadd.f32 %v6716, %v6727
    %v6737 = vadd.f32 %v6717, %v6727
    %v6738 = vadd.f32 %v6718, %v6727
    %v6739 = vadd.f32 %v6719, %v6727
    %v6740 = vadd.f32 %v6720, %v6727
    %v6741 = vadd.f32 %v6721, %v6727
    %v6742 = vadd.f32 %v6722, %v6727
    %v6743 = vadd.f32 %v6723, %v6727
    %v6744 = vadd.f32 %v6724, %v6727
    %v6745 = vmax.f32 %v6729, 0.0
    %v6746 = vmax.f32 %v6730, 0.0
    %v6747 = vmax.f32 %v6731, 0.0
    %v6748 = vmax.f32 %v6732, 0.0
    %v6749 = vmax.f32 %v6733, 0.0
    %v6750 = vmax.f32 %v6734, 0.0
    %v6751 = vmax.f32 %v6735, 0.0
    %v6752 = vmax.f32 %v6736, 0.0
    %v6753 = vmax.f32 %v6737, 0.0
    %v6754 = vmax.f32 %v6738, 0.0
    %v6755 = vmax.f32 %v6739, 0.0
    %v6756 = vmax.f32 %v6740, 0.0
    %v6757 = vmax.f32 %v6741, 0.0
    %v6758 = vmax.f32 %v6742, 0.0
    %v6759 = vmax.f32 %v6743, 0.0
    %v6760 = vmax.f32 %v6744, 0.0
    %vm6761 = vcmask 261120
    %6762 = vst.msk [vmem:[#allocation2] sm:$0xff] %vm6761, 0.0
    %6763 = vst.msk [vmem:[#allocation2 + $0x8] sm:$0xff] %vm6761, 0.0
    %6764 = vst.msk [vmem:[#allocation2 + $0x10] sm:$0xff] %vm6761, 0.0
    %6765 = vst.msk [vmem:[#allocation2 + $0x18] sm:$0xff] %vm6761, 0.0
    %6766 = vst.msk [vmem:[#allocation2 + $0x20] sm:$0xff] %vm6761, 0.0
    %6767 = vst.msk [vmem:[#allocation2 + $0x28] sm:$0xff] %vm6761, 0.0
    %6768 = vst.msk [vmem:[#allocation2 + $0x30] sm:$0xff] %vm6761, 0.0
    %6769 = vst.msk [vmem:[#allocation2 + $0x38] sm:$0xff] %vm6761, 0.0
    %6770 = vst.msk [vmem:[#allocation2 + $0x40] sm:$0xff] %vm6761, 0.0
    %6771 = vst.msk [vmem:[#allocation2 + $0x48] sm:$0xff] %vm6761, 0.0
    %6772 = vst.msk [vmem:[#allocation2 + $0x50] sm:$0xff] %vm6761, 0.0
    %6773 = vst.msk [vmem:[#allocation2 + $0x58] sm:$0xff] %vm6761, 0.0
    %6774 = vst.msk [vmem:[#allocation2 + $0x60] sm:$0xff] %vm6761, 0.0
    %6775 = vst.msk [vmem:[#allocation2 + $0x68] sm:$0xff] %vm6761, 0.0
    %6776 = vst.msk [vmem:[#allocation2 + $0x70] sm:$0xff] %vm6761, 0.0
    %6777 = vst.msk [vmem:[#allocation2 + $0x78] sm:$0xff] %vm6761, 0.0
    %6778 = vst.msk [vmem:[#allocation2 + $0x80] sm:$0xff] %vm6761, 0.0
    %6779 = vst.msk [vmem:[#allocation2 + $0x88] sm:$0xff] %vm6761, 0.0
    %6780 = vst.msk [vmem:[#allocation2 + $0x90] sm:$0xff] %vm6761, 0.0
    %6781 = vst.msk [vmem:[#allocation2 + $0x98] sm:$0xff] %vm6761, 0.0
    %6782 = vst.msk [vmem:[#allocation2 + $0x10] sm:$0xff] %vm6761, %v6745
    %6783 = vst.msk [vmem:[#allocation2 + $0x18] sm:$0xff] %vm6761, %v6746
    %6784 = vst.msk [vmem:[#allocation2 + $0x20] sm:$0xff] %vm6761, %v6747
    %6785 = vst.msk [vmem:[#allocation2 + $0x28] sm:$0xff] %vm6761, %v6748
    %6786 = vst.msk [vmem:[#allocation2 + $0x30] sm:$0xff] %vm6761, %v6749
    %6787 = vst.msk [vmem:[#allocation2 + $0x38] sm:$0xff] %vm6761, %v6750
    %6788 = vst.msk [vmem:[#allocation2 + $0x40] sm:$0xff] %vm6761, %v6751
    %6789 = vst.msk [vmem:[#allocation2 + $0x48] sm:$0xff] %vm6761, %v6752
    %6790 = vst.msk [vmem:[#allocation2 + $0x50] sm:$0xff] %vm6761, %v6753
    %6791 = vst.msk [vmem:[#allocation2 + $0x58] sm:$0xff] %vm6761, %v6754
    %6792 = vst.msk [vmem:[#allocation2 + $0x60] sm:$0xff] %vm6761, %v6755
    %6793 = vst.msk [vmem:[#allocation2 + $0x68] sm:$0xff] %vm6761, %v6756
    %6794 = vst.msk [vmem:[#allocation2 + $0x70] sm:$0xff] %vm6761, %v6757
    %6795 = vst.msk [vmem:[#allocation2 + $0x78] sm:$0xff] %vm6761, %v6758
    %6796 = vst.msk [vmem:[#allocation2 + $0x80] sm:$0xff] %vm6761, %v6759
    %6797 = vst.msk [vmem:[#allocation2 + $0x88] sm:$0xff] %vm6761, %v6760
    %v6798 = vshra.s32 %v50, 3
    %v6799 = vshra.s32 %v51, 3
    %v6800 = vshra.s32 %v52, 3
    %v6801 = vshra.s32 %v53, 3
    %v6802 = vshra.s32 %v54, 3
    %v6803 = vshra.s32 %v55, 3
    %v6804 = vshra.s32 %v56, 3
    %v6805 = vshra.s32 %v57, 3
    %v6806 = vshra.s32 %v58, 3
    %v6807 = vshra.s32 %v59, 3
    %v6808 = vshra.s32 %v60, 3
    %v6809 = vshra.s32 %v61, 3
    %v6810 = vshra.s32 %v62, 3
    %v6811 = vshra.s32 %v63, 3
    %v6812 = vshra.s32 %v64, 3
    %v6813 = vshra.s32 %v65, 3
    %v6814 = vand.u32 %v6798, 7
    %v6815 = vand.u32 %v6799, 7
    %v6816 = vand.u32 %v6800, 7
    %v6817 = vand.u32 %v6801, 7
    %v6818 = vand.u32 %v6802, 7
    %v6819 = vand.u32 %v6803, 7
    %v6820 = vand.u32 %v6804, 7
    %v6821 = vand.u32 %v6805, 7
    %v6822 = vand.u32 %v6806, 7
    %v6823 = vand.u32 %v6807, 7
    %v6824 = vand.u32 %v6808, 7
    %v6825 = vand.u32 %v6809, 7
    %v6826 = vand.u32 %v6810, 7
    %v6827 = vand.u32 %v6811, 7
    %v6828 = vand.u32 %v6812, 7
    %v6829 = vand.u32 %v6813, 7
    %v6830 = vand.u32 %v50, 7
    %v6831 = vand.u32 %v51, 7
    %v6832 = vand.u32 %v52, 7
    %v6833 = vand.u32 %v53, 7
    %v6834 = vand.u32 %v54, 7
    %v6835 = vand.u32 %v55, 7
    %v6836 = vand.u32 %v56, 7
    %v6837 = vand.u32 %v57, 7
    %v6838 = vand.u32 %v58, 7
    %v6839 = vand.u32 %v59, 7
    %v6840 = vand.u32 %v60, 7
    %v6841 = vand.u32 %v61, 7
    %v6842 = vand.u32 %v62, 7
    %v6843 = vand.u32 %v63, 7
    %v6844 = vand.u32 %v64, 7
    %v6845 = vand.u32 %v65, 7
    %vm6846 = vcmp.ge.s32.totalorder %v6814, 1
    %vm6847 = vcmp.ge.s32.totalorder %v6815, 1
    %vm6848 = vcmp.ge.s32.totalorder %v6816, 1
    %vm6849 = vcmp.ge.s32.totalorder %v6817, 1
    %vm6850 = vcmp.ge.s32.totalorder %v6818, 1
    %vm6851 = vcmp.ge.s32.totalorder %v6819, 1
    %vm6852 = vcmp.ge.s32.totalorder %v6820, 1
    %vm6853 = vcmp.ge.s32.totalorder %v6821, 1
    %vm6854 = vcmp.ge.s32.totalorder %v6822, 1
    %vm6855 = vcmp.ge.s32.totalorder %v6823, 1
    %vm6856 = vcmp.ge.s32.totalorder %v6824, 1
    %vm6857 = vcmp.ge.s32.totalorder %v6825, 1
    %vm6858 = vcmp.ge.s32.totalorder %v6826, 1
    %vm6859 = vcmp.ge.s32.totalorder %v6827, 1
    %vm6860 = vcmp.ge.s32.totalorder %v6828, 1
    %vm6861 = vcmp.ge.s32.totalorder %v6829, 1
    %v6862 = vsel %vm6846, 1, 0
    %v6863 = vsel %vm6847, 1, 0
    %v6864 = vsel %vm6848, 1, 0
    %v6865 = vsel %vm6849, 1, 0
    %v6866 = vsel %vm6850, 1, 0
    %v6867 = vsel %vm6851, 1, 0
    %v6868 = vsel %vm6852, 1, 0
    %v6869 = vsel %vm6853, 1, 0
    %v6870 = vsel %vm6854, 1, 0
    %v6871 = vsel %vm6855, 1, 0
    %v6872 = vsel %vm6856, 1, 0
    %v6873 = vsel %vm6857, 1, 0
    %v6874 = vsel %vm6858, 1, 0
    %v6875 = vsel %vm6859, 1, 0
    %v6876 = vsel %vm6860, 1, 0
    %v6877 = vsel %vm6861, 1, 0
    %v6878 = vcvt.s32.f32 %v6862
    %v6879 = vcvt.s32.f32 %v6863
    %v6880 = vcvt.s32.f32 %v6864
    %v6881 = vcvt.s32.f32 %v6865
    %v6882 = vcvt.s32.f32 %v6866
    %v6883 = vcvt.s32.f32 %v6867
    %v6884 = vcvt.s32.f32 %v6868
    %v6885 = vcvt.s32.f32 %v6869
    %v6886 = vcvt.s32.f32 %v6870
    %v6887 = vcvt.s32.f32 %v6871
    %v6888 = vcvt.s32.f32 %v6872
    %v6889 = vcvt.s32.f32 %v6873
    %v6890 = vcvt.s32.f32 %v6874
    %v6891 = vcvt.s32.f32 %v6875
    %v6892 = vcvt.s32.f32 %v6876
    %v6893 = vcvt.s32.f32 %v6877
    %vm6894 = vcmp.le.s32.totalorder %v6814, 6
    %vm6895 = vcmp.le.s32.totalorder %v6815, 6
    %vm6896 = vcmp.le.s32.totalorder %v6816, 6
    %vm6897 = vcmp.le.s32.totalorder %v6817, 6
    %vm6898 = vcmp.le.s32.totalorder %v6818, 6
    %vm6899 = vcmp.le.s32.totalorder %v6819, 6
    %vm6900 = vcmp.le.s32.totalorder %v6820, 6
    %vm6901 = vcmp.le.s32.totalorder %v6821, 6
    %vm6902 = vcmp.le.s32.totalorder %v6822, 6
    %vm6903 = vcmp.le.s32.totalorder %v6823, 6
    %vm6904 = vcmp.le.s32.totalorder %v6824, 6
    %vm6905 = vcmp.le.s32.totalorder %v6825, 6
    %vm6906 = vcmp.le.s32.totalorder %v6826, 6
    %vm6907 = vcmp.le.s32.totalorder %v6827, 6
    %vm6908 = vcmp.le.s32.totalorder %v6828, 6
    %vm6909 = vcmp.le.s32.totalorder %v6829, 6
    %v6910 = vsel %vm6894, 1, 0
    %v6911 = vsel %vm6895, 1, 0
    %v6912 = vsel %vm6896, 1, 0
    %v6913 = vsel %vm6897, 1, 0
    %v6914 = vsel %vm6898, 1, 0
    %v6915 = vsel %vm6899, 1, 0
    %v6916 = vsel %vm6900, 1, 0
    %v6917 = vsel %vm6901, 1, 0
    %v6918 = vsel %vm6902, 1, 0
    %v6919 = vsel %vm6903, 1, 0
    %v6920 = vsel %vm6904, 1, 0
    %v6921 = vsel %vm6905, 1, 0
    %v6922 = vsel %vm6906, 1, 0
    %v6923 = vsel %vm6907, 1, 0
    %v6924 = vsel %vm6908, 1, 0
    %v6925 = vsel %vm6909, 1, 0
    %v6926 = vcvt.s32.f32 %v6910
    %v6927 = vcvt.s32.f32 %v6911
    %v6928 = vcvt.s32.f32 %v6912
    %v6929 = vcvt.s32.f32 %v6913
    %v6930 = vcvt.s32.f32 %v6914
    %v6931 = vcvt.s32.f32 %v6915
    %v6932 = vcvt.s32.f32 %v6916
    %v6933 = vcvt.s32.f32 %v6917
    %v6934 = vcvt.s32.f32 %v6918
    %v6935 = vcvt.s32.f32 %v6919
    %v6936 = vcvt.s32.f32 %v6920
    %v6937 = vcvt.s32.f32 %v6921
    %v6938 = vcvt.s32.f32 %v6922
    %v6939 = vcvt.s32.f32 %v6923
    %v6940 = vcvt.s32.f32 %v6924
    %v6941 = vcvt.s32.f32 %v6925
    %vm6942 = vcmp.ge.s32.totalorder %v6830, 1
    %vm6943 = vcmp.ge.s32.totalorder %v6831, 1
    %vm6944 = vcmp.ge.s32.totalorder %v6832, 1
    %vm6945 = vcmp.ge.s32.totalorder %v6833, 1
    %vm6946 = vcmp.ge.s32.totalorder %v6834, 1
    %vm6947 = vcmp.ge.s32.totalorder %v6835, 1
    %vm6948 = vcmp.ge.s32.totalorder %v6836, 1
    %vm6949 = vcmp.ge.s32.totalorder %v6837, 1
    %vm6950 = vcmp.ge.s32.totalorder %v6838, 1
    %vm6951 = vcmp.ge.s32.totalorder %v6839, 1
    %vm6952 = vcmp.ge.s32.totalorder %v6840, 1
    %vm6953 = vcmp.ge.s32.totalorder %v6841, 1
    %vm6954 = vcmp.ge.s32.totalorder %v6842, 1
    %vm6955 = vcmp.ge.s32.totalorder %v6843, 1
    %vm6956 = vcmp.ge.s32.totalorder %v6844, 1
    %vm6957 = vcmp.ge.s32.totalorder %v6845, 1
    %v6958 = vsel %vm6942, 1, 0
    %v6959 = vsel %vm6943, 1, 0
    %v6960 = vsel %vm6944, 1, 0
    %v6961 = vsel %vm6945, 1, 0
    %v6962 = vsel %vm6946, 1, 0
    %v6963 = vsel %vm6947, 1, 0
    %v6964 = vsel %vm6948, 1, 0
    %v6965 = vsel %vm6949, 1, 0
    %v6966 = vsel %vm6950, 1, 0
    %v6967 = vsel %vm6951, 1, 0
    %v6968 = vsel %vm6952, 1, 0
    %v6969 = vsel %vm6953, 1, 0
    %v6970 = vsel %vm6954, 1, 0
    %v6971 = vsel %vm6955, 1, 0
    %v6972 = vsel %vm6956, 1, 0
    %v6973 = vsel %vm6957, 1, 0
    %v6974 = vcvt.s32.f32 %v6958
    %v6975 = vcvt.s32.f32 %v6959
    %v6976 = vcvt.s32.f32 %v6960
    %v6977 = vcvt.s32.f32 %v6961
    %v6978 = vcvt.s32.f32 %v6962
    %v6979 = vcvt.s32.f32 %v6963
    %v6980 = vcvt.s32.f32 %v6964
    %v6981 = vcvt.s32.f32 %v6965
    %v6982 = vcvt.s32.f32 %v6966
    %v6983 = vcvt.s32.f32 %v6967
    %v6984 = vcvt.s32.f32 %v6968
    %v6985 = vcvt.s32.f32 %v6969
    %v6986 = vcvt.s32.f32 %v6970
    %v6987 = vcvt.s32.f32 %v6971
    %v6988 = vcvt.s32.f32 %v6972
    %v6989 = vcvt.s32.f32 %v6973
    %vm6990 = vcmp.le.s32.totalorder %v6830, 6
    %vm6991 = vcmp.le.s32.totalorder %v6831, 6
    %vm6992 = vcmp.le.s32.totalorder %v6832, 6
    %vm6993 = vcmp.le.s32.totalorder %v6833, 6
    %vm6994 = vcmp.le.s32.totalorder %v6834, 6
    %vm6995 = vcmp.le.s32.totalorder %v6835, 6
    %vm6996 = vcmp.le.s32.totalorder %v6836, 6
    %vm6997 = vcmp.le.s32.totalorder %v6837, 6
    %vm6998 = vcmp.le.s32.totalorder %v6838, 6
    %vm6999 = vcmp.le.s32.totalorder %v6839, 6
    %vm7000 = vcmp.le.s32.totalorder %v6840, 6
    %vm7001 = vcmp.le.s32.totalorder %v6841, 6
    %vm7002 = vcmp.le.s32.totalorder %v6842, 6
    %vm7003 = vcmp.le.s32.totalorder %v6843, 6
    %vm7004 = vcmp.le.s32.totalorder %v6844, 6
    %vm7005 = vcmp.le.s32.totalorder %v6845, 6
    %v7006 = vsel %vm6990, 1, 0
    %v7007 = vsel %vm6991, 1, 0
    %v7008 = vsel %vm6992, 1, 0
    %v7009 = vsel %vm6993, 1, 0
    %v7010 = vsel %vm6994, 1, 0
    %v7011 = vsel %vm6995, 1, 0
    %v7012 = vsel %vm6996, 1, 0
    %v7013 = vsel %vm6997, 1, 0
    %v7014 = vsel %vm6998, 1, 0
    %v7015 = vsel %vm6999, 1, 0
    %v7016 = vsel %vm7000, 1, 0
    %v7017 = vsel %vm7001, 1, 0
    %v7018 = vsel %vm7002, 1, 0
    %v7019 = vsel %vm7003, 1, 0
    %v7020 = vsel %vm7004, 1, 0
    %v7021 = vsel %vm7005, 1, 0
    %v7022 = vcvt.s32.f32 %v7006
    %v7023 = vcvt.s32.f32 %v7007
    %v7024 = vcvt.s32.f32 %v7008
    %v7025 = vcvt.s32.f32 %v7009
    %v7026 = vcvt.s32.f32 %v7010
    %v7027 = vcvt.s32.f32 %v7011
    %v7028 = vcvt.s32.f32 %v7012
    %v7029 = vcvt.s32.f32 %v7013
    %v7030 = vcvt.s32.f32 %v7014
    %v7031 = vcvt.s32.f32 %v7015
    %v7032 = vcvt.s32.f32 %v7016
    %v7033 = vcvt.s32.f32 %v7017
    %v7034 = vcvt.s32.f32 %v7018
    %v7035 = vcvt.s32.f32 %v7019
    %v7036 = vcvt.s32.f32 %v7020
    %v7037 = vcvt.s32.f32 %v7021
    %v7038 = vld [vmem:[#allocation2 + $0x7] sm:$0xff]
    %v7039 = vld [vmem:[#allocation2 + $0xf] sm:$0xff]
    %v7040 = vld [vmem:[#allocation2 + $0x17] sm:$0xff]
    %v7041 = vld [vmem:[#allocation2 + $0x1f] sm:$0xff]
    %v7042 = vld [vmem:[#allocation2 + $0x27] sm:$0xff]
    %v7043 = vld [vmem:[#allocation2 + $0x2f] sm:$0xff]
    %v7044 = vld [vmem:[#allocation2 + $0x37] sm:$0xff]
    %v7045 = vld [vmem:[#allocation2 + $0x3f] sm:$0xff]
    %v7046 = vld [vmem:[#allocation2 + $0x47] sm:$0xff]
    %v7047 = vld [vmem:[#allocation2 + $0x4f] sm:$0xff]
    %v7048 = vld [vmem:[#allocation2 + $0x57] sm:$0xff]
    %v7049 = vld [vmem:[#allocation2 + $0x5f] sm:$0xff]
    %v7050 = vld [vmem:[#allocation2 + $0x67] sm:$0xff]
    %v7051 = vld [vmem:[#allocation2 + $0x6f] sm:$0xff]
    %v7052 = vld [vmem:[#allocation2 + $0x77] sm:$0xff]
    %v7053 = vld [vmem:[#allocation2 + $0x7f] sm:$0xff]
    %v7054 = vmul.f32 %v6878, %v6974
    %v7055 = vmul.f32 %v6879, %v6975
    %v7056 = vmul.f32 %v6880, %v6976
    %v7057 = vmul.f32 %v6881, %v6977
    %v7058 = vmul.f32 %v6882, %v6978
    %v7059 = vmul.f32 %v6883, %v6979
    %v7060 = vmul.f32 %v6884, %v6980
    %v7061 = vmul.f32 %v6885, %v6981
    %v7062 = vmul.f32 %v6886, %v6982
    %v7063 = vmul.f32 %v6887, %v6983
    %v7064 = vmul.f32 %v6888, %v6984
    %v7065 = vmul.f32 %v6889, %v6985
    %v7066 = vmul.f32 %v6890, %v6986
    %v7067 = vmul.f32 %v6891, %v6987
    %v7068 = vmul.f32 %v6892, %v6988
    %v7069 = vmul.f32 %v6893, %v6989
    %v7070 = vmul.f32 %v7038, %v7054
    %v7071 = vmul.f32 %v7039, %v7055
    %v7072 = vmul.f32 %v7040, %v7056
    %v7073 = vmul.f32 %v7041, %v7057
    %v7074 = vmul.f32 %v7042, %v7058
    %v7075 = vmul.f32 %v7043, %v7059
    %v7076 = vmul.f32 %v7044, %v7060
    %v7077 = vmul.f32 %v7045, %v7061
    %v7078 = vmul.f32 %v7046, %v7062
    %v7079 = vmul.f32 %v7047, %v7063
    %v7080 = vmul.f32 %v7048, %v7064
    %v7081 = vmul.f32 %v7049, %v7065
    %v7082 = vmul.f32 %v7050, %v7066
    %v7083 = vmul.f32 %v7051, %v7067
    %v7084 = vmul.f32 %v7052, %v7068
    %v7085 = vmul.f32 %v7053, %v7069
    %v7086 = vpack.c.bf16 %v7071, %v7070
    %v7087 = vpack.c.bf16 %v7073, %v7072
    %v7088 = vpack.c.bf16 %v7075, %v7074
    %v7089 = vpack.c.bf16 %v7077, %v7076
    %v7090 = vpack.c.bf16 %v7079, %v7078
    %v7091 = vpack.c.bf16 %v7081, %v7080
    %v7092 = vpack.c.bf16 %v7083, %v7082
    %v7093 = vpack.c.bf16 %v7085, %v7084
    %v7094 = vld [vmem:[%s4] sm:$0xf]
    %v7095 = vld [vmem:[%s4 + $0x4] sm:$0xf]
    %v7096 = vld [vmem:[%s4 + $0x8] sm:$0xf]
    %v7097 = vld [vmem:[%s4 + $0xc] sm:$0xf]
    %v7098 = vld [vmem:[#allocation2 + $0x8] sm:$0xff]
    %v7099 = vld [vmem:[#allocation2 + $0x10] sm:$0xff]
    %v7100 = vld [vmem:[#allocation2 + $0x18] sm:$0xff]
    %v7101 = vld [vmem:[#allocation2 + $0x20] sm:$0xff]
    %v7102 = vld [vmem:[#allocation2 + $0x28] sm:$0xff]
    %v7103 = vld [vmem:[#allocation2 + $0x30] sm:$0xff]
    %v7104 = vld [vmem:[#allocation2 + $0x38] sm:$0xff]
    %v7105 = vld [vmem:[#allocation2 + $0x40] sm:$0xff]
    %v7106 = vld [vmem:[#allocation2 + $0x48] sm:$0xff]
    %v7107 = vld [vmem:[#allocation2 + $0x50] sm:$0xff]
    %v7108 = vld [vmem:[#allocation2 + $0x58] sm:$0xff]
    %v7109 = vld [vmem:[#allocation2 + $0x60] sm:$0xff]
    %v7110 = vld [vmem:[#allocation2 + $0x68] sm:$0xff]
    %v7111 = vld [vmem:[#allocation2 + $0x70] sm:$0xff]
    %v7112 = vld [vmem:[#allocation2 + $0x78] sm:$0xff]
    %v7113 = vld [vmem:[#allocation2 + $0x80] sm:$0xff]
    %v7114 = vmul.f32 %v7098, %v6878
    %v7115 = vmul.f32 %v7099, %v6879
    %v7116 = vmul.f32 %v7100, %v6880
    %v7117 = vmul.f32 %v7101, %v6881
    %v7118 = vmul.f32 %v7102, %v6882
    %v7119 = vmul.f32 %v7103, %v6883
    %v7120 = vmul.f32 %v7104, %v6884
    %v7121 = vmul.f32 %v7105, %v6885
    %v7122 = vmul.f32 %v7106, %v6886
    %v7123 = vmul.f32 %v7107, %v6887
    %v7124 = vmul.f32 %v7108, %v6888
    %v7125 = vmul.f32 %v7109, %v6889
    %v7126 = vmul.f32 %v7110, %v6890
    %v7127 = vmul.f32 %v7111, %v6891
    %v7128 = vmul.f32 %v7112, %v6892
    %v7129 = vmul.f32 %v7113, %v6893
    %v7130 = vpack.c.bf16 %v7115, %v7114
    %v7131 = vpack.c.bf16 %v7117, %v7116
    %v7132 = vpack.c.bf16 %v7119, %v7118
    %v7133 = vpack.c.bf16 %v7121, %v7120
    %v7134 = vpack.c.bf16 %v7123, %v7122
    %v7135 = vpack.c.bf16 %v7125, %v7124
    %v7136 = vpack.c.bf16 %v7127, %v7126
    %v7137 = vpack.c.bf16 %v7129, %v7128
    %s7138 = scalar_lea.vmem %s4, 16
    %v7139 = vld [vmem:[%s7138] sm:$0xf]
    %v7140 = vld [vmem:[%s7138 + $0x4] sm:$0xf]
    %v7141 = vld [vmem:[%s7138 + $0x8] sm:$0xf]
    %v7142 = vld [vmem:[%s7138 + $0xc] sm:$0xf]
    %v7147 = vunpack.c.l.b16 %v7139
    %v7148 = vunpack.c.l.b16 %v7140
    %v7149 = vunpack.c.l.b16 %v7141
    %v7150 = vunpack.c.l.b16 %v7142
    %v7151 = vpack.c.b16 %v7148, %v7147
    %v7152 = vpack.c.b16 %v7150, %v7149
    %v7156 = vsel %vm6761, %v7130, 0
    %v7159 = vsel %vm6761, %v7131, 0
    %v7162 = vsel %vm6761, %v7132, 0
    %v7165 = vsel %vm6761, %v7133, 0
    %v7168 = vsel %vm6761, %v7134, 0
    %v7171 = vsel %vm6761, %v7135, 0
    %v7174 = vsel %vm6761, %v7136, 0
    %v7177 = vsel %vm6761, %v7137, 0
    %7179 = vmatpush.bf16.msra.mxu0 0
    %7180 = vmatpush.bf16.msra.mxu0 0
    %7181 = vmatpush.bf16.msra.mxu0 0
    %7182 = vmatpush.bf16.msra.mxu0 0
    %7183 = vmatpush.bf16.msra.mxu0 0
    %7184 = vmatpush.bf16.msra.mxu0 0
    %7185 = vmatpush.bf16.msra.mxu0 %v7152
    %7186 = vmatpush.bf16.msra.mxu0 %v7151
    %7187 = vmatmul.bf16.gmra.mxu0 %v7156
    %v7188 = vpop.f32.mrf.mxu0
    %v7189 = vadd.f32 0.0, %v7188
    %v7190 = vpop.f32.mrf.mxu0
    %v7191 = vadd.f32 0.0, %v7190
    %7192 = vmatmul.bf16.gmra.mxu0 %v7159
    %v7193 = vpop.f32.mrf.mxu0
    %v7194 = vadd.f32 0.0, %v7193
    %v7195 = vpop.f32.mrf.mxu0
    %v7196 = vadd.f32 0.0, %v7195
    %7197 = vmatmul.bf16.gmra.mxu0 %v7162
    %v7198 = vpop.f32.mrf.mxu0
    %v7199 = vadd.f32 0.0, %v7198
    %v7200 = vpop.f32.mrf.mxu0
    %v7201 = vadd.f32 0.0, %v7200
    %7202 = vmatmul.bf16.gmra.mxu0 %v7165
    %v7203 = vpop.f32.mrf.mxu0
    %v7204 = vadd.f32 0.0, %v7203
    %v7205 = vpop.f32.mrf.mxu0
    %v7206 = vadd.f32 0.0, %v7205
    %7207 = vmatmul.bf16.gmra.mxu0 %v7168
    %v7208 = vpop.f32.mrf.mxu0
    %v7209 = vadd.f32 0.0, %v7208
    %v7210 = vpop.f32.mrf.mxu0
    %v7211 = vadd.f32 0.0, %v7210
    %7212 = vmatmul.bf16.gmra.mxu0 %v7171
    %v7213 = vpop.f32.mrf.mxu0
    %v7214 = vadd.f32 0.0, %v7213
    %v7215 = vpop.f32.mrf.mxu0
    %v7216 = vadd.f32 0.0, %v7215
    %7217 = vmatmul.bf16.gmra.mxu0 %v7174
    %v7218 = vpop.f32.mrf.mxu0
    %v7219 = vadd.f32 0.0, %v7218
    %v7220 = vpop.f32.mrf.mxu0
    %v7221 = vadd.f32 0.0, %v7220
    %7222 = vmatmul.bf16.gmra.mxu0 %v7177
    %v7223 = vpop.f32.mrf.mxu0
    %v7224 = vadd.f32 0.0, %v7223
    %v7225 = vpop.f32.mrf.mxu0
    %v7226 = vadd.f32 0.0, %v7225
    %7227 = vdwg.mxu0
    %v7232 = vunpack.c.l.b16 %v7094
    %v7233 = vunpack.c.l.b16 %v7095
    %v7234 = vunpack.c.l.b16 %v7096
    %v7235 = vunpack.c.l.b16 %v7097
    %v7236 = vpack.c.b16 %v7233, %v7232
    %v7237 = vpack.c.b16 %v7235, %v7234
    %v7241 = vsel %vm6761, %v7086, 0
    %v7244 = vsel %vm6761, %v7087, 0
    %v7247 = vsel %vm6761, %v7088, 0
    %v7250 = vsel %vm6761, %v7089, 0
    %v7253 = vsel %vm6761, %v7090, 0
    %v7256 = vsel %vm6761, %v7091, 0
    %v7259 = vsel %vm6761, %v7092, 0
    %v7262 = vsel %vm6761, %v7093, 0
    %7264 = vmatpush.bf16.msra.mxu0 0
    %7265 = vmatpush.bf16.msra.mxu0 0
    %7266 = vmatpush.bf16.msra.mxu0 0
    %7267 = vmatpush.bf16.msra.mxu0 0
    %7268 = vmatpush.bf16.msra.mxu0 0
    %7269 = vmatpush.bf16.msra.mxu0 0
    %7270 = vmatpush.bf16.msra.mxu0 %v7237
    %7271 = vmatpush.bf16.msra.mxu0 %v7236
    %7272 = vmatmul.bf16.gmra.mxu0 %v7241
    %v7273 = vpop.f32.mrf.mxu0
    %v7274 = vadd.f32 %v7189, %v7273
    %v7275 = vpop.f32.mrf.mxu0
    %v7276 = vadd.f32 %v7191, %v7275
    %7277 = vmatmul.bf16.gmra.mxu0 %v7244
    %v7278 = vpop.f32.mrf.mxu0
    %v7279 = vadd.f32 %v7194, %v7278
    %v7280 = vpop.f32.mrf.mxu0
    %v7281 = vadd.f32 %v7196, %v7280
    %7282 = vmatmul.bf16.gmra.mxu0 %v7247
    %v7283 = vpop.f32.mrf.mxu0
    %v7284 = vadd.f32 %v7199, %v7283
    %v7285 = vpop.f32.mrf.mxu0
    %v7286 = vadd.f32 %v7201, %v7285
    %7287 = vmatmul.bf16.gmra.mxu0 %v7250
    %v7288 = vpop.f32.mrf.mxu0
    %v7289 = vadd.f32 %v7204, %v7288
    %v7290 = vpop.f32.mrf.mxu0
    %v7291 = vadd.f32 %v7206, %v7290
    %7292 = vmatmul.bf16.gmra.mxu0 %v7253
    %v7293 = vpop.f32.mrf.mxu0
    %v7294 = vadd.f32 %v7209, %v7293
    %v7295 = vpop.f32.mrf.mxu0
    %v7296 = vadd.f32 %v7211, %v7295
    %7297 = vmatmul.bf16.gmra.mxu0 %v7256
    %v7298 = vpop.f32.mrf.mxu0
    %v7299 = vadd.f32 %v7214, %v7298
    %v7300 = vpop.f32.mrf.mxu0
    %v7301 = vadd.f32 %v7216, %v7300
    %7302 = vmatmul.bf16.gmra.mxu0 %v7259
    %v7303 = vpop.f32.mrf.mxu0
    %v7304 = vadd.f32 %v7219, %v7303
    %v7305 = vpop.f32.mrf.mxu0
    %v7306 = vadd.f32 %v7221, %v7305
    %7307 = vmatmul.bf16.gmra.mxu0 %v7262
    %v7308 = vpop.f32.mrf.mxu0
    %v7309 = vadd.f32 %v7224, %v7308
    %v7310 = vpop.f32.mrf.mxu0
    %v7311 = vadd.f32 %v7226, %v7310
    %7312 = vdwg.mxu0
    %v7313 = vld [vmem:[#allocation2 + $0x9] sm:$0xff]
    %v7314 = vld [vmem:[#allocation2 + $0x11] sm:$0xff]
    %v7315 = vld [vmem:[#allocation2 + $0x19] sm:$0xff]
    %v7316 = vld [vmem:[#allocation2 + $0x21] sm:$0xff]
    %v7317 = vld [vmem:[#allocation2 + $0x29] sm:$0xff]
    %v7318 = vld [vmem:[#allocation2 + $0x31] sm:$0xff]
    %v7319 = vld [vmem:[#allocation2 + $0x39] sm:$0xff]
    %v7320 = vld [vmem:[#allocation2 + $0x41] sm:$0xff]
    %v7321 = vld [vmem:[#allocation2 + $0x49] sm:$0xff]
    %v7322 = vld [vmem:[#allocation2 + $0x51] sm:$0xff]
    %v7323 = vld [vmem:[#allocation2 + $0x59] sm:$0xff]
    %v7324 = vld [vmem:[#allocation2 + $0x61] sm:$0xff]
    %v7325 = vld [vmem:[#allocation2 + $0x69] sm:$0xff]
    %v7326 = vld [vmem:[#allocation2 + $0x71] sm:$0xff]
    %v7327 = vld [vmem:[#allocation2 + $0x79] sm:$0xff]
    %v7328 = vld [vmem:[#allocation2 + $0x81] sm:$0xff]
    %v7329 = vmul.f32 %v6878, %v7022
    %v7330 = vmul.f32 %v6879, %v7023
    %v7331 = vmul.f32 %v6880, %v7024
    %v7332 = vmul.f32 %v6881, %v7025
    %v7333 = vmul.f32 %v6882, %v7026
    %v7334 = vmul.f32 %v6883, %v7027
    %v7335 = vmul.f32 %v6884, %v7028
    %v7336 = vmul.f32 %v6885, %v7029
    %v7337 = vmul.f32 %v6886, %v7030
    %v7338 = vmul.f32 %v6887, %v7031
    %v7339 = vmul.f32 %v6888, %v7032
    %v7340 = vmul.f32 %v6889, %v7033
    %v7341 = vmul.f32 %v6890, %v7034
    %v7342 = vmul.f32 %v6891, %v7035
    %v7343 = vmul.f32 %v6892, %v7036
    %v7344 = vmul.f32 %v6893, %v7037
    %v7345 = vmul.f32 %v7313, %v7329
    %v7346 = vmul.f32 %v7314, %v7330
    %v7347 = vmul.f32 %v7315, %v7331
    %v7348 = vmul.f32 %v7316, %v7332
    %v7349 = vmul.f32 %v7317, %v7333
    %v7350 = vmul.f32 %v7318, %v7334
    %v7351 = vmul.f32 %v7319, %v7335
    %v7352 = vmul.f32 %v7320, %v7336
    %v7353 = vmul.f32 %v7321, %v7337
    %v7354 = vmul.f32 %v7322, %v7338
    %v7355 = vmul.f32 %v7323, %v7339
    %v7356 = vmul.f32 %v7324, %v7340
    %v7357 = vmul.f32 %v7325, %v7341
    %v7358 = vmul.f32 %v7326, %v7342
    %v7359 = vmul.f32 %v7327, %v7343
    %v7360 = vmul.f32 %v7328, %v7344
    %v7361 = vpack.c.bf16 %v7346, %v7345
    %v7362 = vpack.c.bf16 %v7348, %v7347
    %v7363 = vpack.c.bf16 %v7350, %v7349
    %v7364 = vpack.c.bf16 %v7352, %v7351
    %v7365 = vpack.c.bf16 %v7354, %v7353
    %v7366 = vpack.c.bf16 %v7356, %v7355
    %v7367 = vpack.c.bf16 %v7358, %v7357
    %v7368 = vpack.c.bf16 %v7360, %v7359
    %s7369 = scalar_lea.vmem %s4, 32
    %v7370 = vld [vmem:[%s7369] sm:$0xf]
    %v7371 = vld [vmem:[%s7369 + $0x4] sm:$0xf]
    %v7372 = vld [vmem:[%s7369 + $0x8] sm:$0xf]
    %v7373 = vld [vmem:[%s7369 + $0xc] sm:$0xf]
    %v7378 = vunpack.c.l.b16 %v7370
    %v7379 = vunpack.c.l.b16 %v7371
    %v7380 = vunpack.c.l.b16 %v7372
    %v7381 = vunpack.c.l.b16 %v7373
    %v7382 = vpack.c.b16 %v7379, %v7378
    %v7383 = vpack.c.b16 %v7381, %v7380
    %v7387 = vsel %vm6761, %v7361, 0
    %v7390 = vsel %vm6761, %v7362, 0
    %v7393 = vsel %vm6761, %v7363, 0
    %v7396 = vsel %vm6761, %v7364, 0
    %v7399 = vsel %vm6761, %v7365, 0
    %v7402 = vsel %vm6761, %v7366, 0
    %v7405 = vsel %vm6761, %v7367, 0
    %v7408 = vsel %vm6761, %v7368, 0
    %7410 = vmatpush.bf16.msra.mxu0 0
    %7411 = vmatpush.bf16.msra.mxu0 0
    %7412 = vmatpush.bf16.msra.mxu0 0
    %7413 = vmatpush.bf16.msra.mxu0 0
    %7414 = vmatpush.bf16.msra.mxu0 0
    %7415 = vmatpush.bf16.msra.mxu0 0
    %7416 = vmatpush.bf16.msra.mxu0 %v7383
    %7417 = vmatpush.bf16.msra.mxu0 %v7382
    %7418 = vmatmul.bf16.gmra.mxu0 %v7387
    %v7419 = vpop.f32.mrf.mxu0
    %v7420 = vadd.f32 0.0, %v7419
    %v7421 = vpop.f32.mrf.mxu0
    %v7422 = vadd.f32 0.0, %v7421
    %7423 = vmatmul.bf16.gmra.mxu0 %v7390
    %v7424 = vpop.f32.mrf.mxu0
    %v7425 = vadd.f32 0.0, %v7424
    %v7426 = vpop.f32.mrf.mxu0
    %v7427 = vadd.f32 0.0, %v7426
    %7428 = vmatmul.bf16.gmra.mxu0 %v7393
    %v7429 = vpop.f32.mrf.mxu0
    %v7430 = vadd.f32 0.0, %v7429
    %v7431 = vpop.f32.mrf.mxu0
    %v7432 = vadd.f32 0.0, %v7431
    %7433 = vmatmul.bf16.gmra.mxu0 %v7396
    %v7434 = vpop.f32.mrf.mxu0
    %v7435 = vadd.f32 0.0, %v7434
    %v7436 = vpop.f32.mrf.mxu0
    %v7437 = vadd.f32 0.0, %v7436
    %7438 = vmatmul.bf16.gmra.mxu0 %v7399
    %v7439 = vpop.f32.mrf.mxu0
    %v7440 = vadd.f32 0.0, %v7439
    %v7441 = vpop.f32.mrf.mxu0
    %v7442 = vadd.f32 0.0, %v7441
    %7443 = vmatmul.bf16.gmra.mxu0 %v7402
    %v7444 = vpop.f32.mrf.mxu0
    %v7445 = vadd.f32 0.0, %v7444
    %v7446 = vpop.f32.mrf.mxu0
    %v7447 = vadd.f32 0.0, %v7446
    %7448 = vmatmul.bf16.gmra.mxu0 %v7405
    %v7449 = vpop.f32.mrf.mxu0
    %v7450 = vadd.f32 0.0, %v7449
    %v7451 = vpop.f32.mrf.mxu0
    %v7452 = vadd.f32 0.0, %v7451
    %7453 = vmatmul.bf16.gmra.mxu0 %v7408
    %v7454 = vpop.f32.mrf.mxu0
    %v7455 = vadd.f32 0.0, %v7454
    %v7456 = vpop.f32.mrf.mxu0
    %v7457 = vadd.f32 0.0, %v7456
    %7458 = vdwg.mxu0
    %v7459 = vadd.f32 %v7274, %v7420
    %v7460 = vadd.f32 %v7276, %v7422
    %v7461 = vadd.f32 %v7279, %v7425
    %v7462 = vadd.f32 %v7281, %v7427
    %v7463 = vadd.f32 %v7284, %v7430
    %v7464 = vadd.f32 %v7286, %v7432
    %v7465 = vadd.f32 %v7289, %v7435
    %v7466 = vadd.f32 %v7291, %v7437
    %v7467 = vadd.f32 %v7294, %v7440
    %v7468 = vadd.f32 %v7296, %v7442
    %v7469 = vadd.f32 %v7299, %v7445
    %v7470 = vadd.f32 %v7301, %v7447
    %v7471 = vadd.f32 %v7304, %v7450
    %v7472 = vadd.f32 %v7306, %v7452
    %v7473 = vadd.f32 %v7309, %v7455
    %v7474 = vadd.f32 %v7311, %v7457
    %v7475 = vld [vmem:[#allocation2 + $0xf] sm:$0xff]
    %v7476 = vld [vmem:[#allocation2 + $0x17] sm:$0xff]
    %v7477 = vld [vmem:[#allocation2 + $0x1f] sm:$0xff]
    %v7478 = vld [vmem:[#allocation2 + $0x27] sm:$0xff]
    %v7479 = vld [vmem:[#allocation2 + $0x2f] sm:$0xff]
    %v7480 = vld [vmem:[#allocation2 + $0x37] sm:$0xff]
    %v7481 = vld [vmem:[#allocation2 + $0x3f] sm:$0xff]
    %v7482 = vld [vmem:[#allocation2 + $0x47] sm:$0xff]
    %v7483 = vld [vmem:[#allocation2 + $0x4f] sm:$0xff]
    %v7484 = vld [vmem:[#allocation2 + $0x57] sm:$0xff]
    %v7485 = vld [vmem:[#allocation2 + $0x5f] sm:$0xff]
    %v7486 = vld [vmem:[#allocation2 + $0x67] sm:$0xff]
    %v7487 = vld [vmem:[#allocation2 + $0x6f] sm:$0xff]
    %v7488 = vld [vmem:[#allocation2 + $0x77] sm:$0xff]
    %v7489 = vld [vmem:[#allocation2 + $0x7f] sm:$0xff]
    %v7490 = vld [vmem:[#allocation2 + $0x87] sm:$0xff]
    %v7491 = vmul.f32 %v7475, %v6974
    %v7492 = vmul.f32 %v7476, %v6975
    %v7493 = vmul.f32 %v7477, %v6976
    %v7494 = vmul.f32 %v7478, %v6977
    %v7495 = vmul.f32 %v7479, %v6978
    %v7496 = vmul.f32 %v7480, %v6979
    %v7497 = vmul.f32 %v7481, %v6980
    %v7498 = vmul.f32 %v7482, %v6981
    %v7499 = vmul.f32 %v7483, %v6982
    %v7500 = vmul.f32 %v7484, %v6983
    %v7501 = vmul.f32 %v7485, %v6984
    %v7502 = vmul.f32 %v7486, %v6985
    %v7503 = vmul.f32 %v7487, %v6986
    %v7504 = vmul.f32 %v7488, %v6987
    %v7505 = vmul.f32 %v7489, %v6988
    %v7506 = vmul.f32 %v7490, %v6989
    %v7507 = vpack.c.bf16 %v7492, %v7491
    %v7508 = vpack.c.bf16 %v7494, %v7493
    %v7509 = vpack.c.bf16 %v7496, %v7495
    %v7510 = vpack.c.bf16 %v7498, %v7497
    %v7511 = vpack.c.bf16 %v7500, %v7499
    %v7512 = vpack.c.bf16 %v7502, %v7501
    %v7513 = vpack.c.bf16 %v7504, %v7503
    %v7514 = vpack.c.bf16 %v7506, %v7505
    %s7515 = scalar_lea.vmem %s4, 48
    %v7516 = vld [vmem:[%s7515] sm:$0xf]
    %v7517 = vld [vmem:[%s7515 + $0x4] sm:$0xf]
    %v7518 = vld [vmem:[%s7515 + $0x8] sm:$0xf]
    %v7519 = vld [vmem:[%s7515 + $0xc] sm:$0xf]
    %v7524 = vunpack.c.l.b16 %v7516
    %v7525 = vunpack.c.l.b16 %v7517
    %v7526 = vunpack.c.l.b16 %v7518
    %v7527 = vunpack.c.l.b16 %v7519
    %v7528 = vpack.c.b16 %v7525, %v7524
    %v7529 = vpack.c.b16 %v7527, %v7526
    %v7533 = vsel %vm6761, %v7507, 0
    %v7536 = vsel %vm6761, %v7508, 0
    %v7539 = vsel %vm6761, %v7509, 0
    %v7542 = vsel %vm6761, %v7510, 0
    %v7545 = vsel %vm6761, %v7511, 0
    %v7548 = vsel %vm6761, %v7512, 0
    %v7551 = vsel %vm6761, %v7513, 0
    %v7554 = vsel %vm6761, %v7514, 0
    %7556 = vmatpush.bf16.msra.mxu0 0
    %7557 = vmatpush.bf16.msra.mxu0 0
    %7558 = vmatpush.bf16.msra.mxu0 0
    %7559 = vmatpush.bf16.msra.mxu0 0
    %7560 = vmatpush.bf16.msra.mxu0 0
    %7561 = vmatpush.bf16.msra.mxu0 0
    %7562 = vmatpush.bf16.msra.mxu0 %v7529
    %7563 = vmatpush.bf16.msra.mxu0 %v7528
    %7564 = vmatmul.bf16.gmra.mxu0 %v7533
    %v7565 = vpop.f32.mrf.mxu0
    %v7566 = vadd.f32 0.0, %v7565
    %v7567 = vpop.f32.mrf.mxu0
    %v7568 = vadd.f32 0.0, %v7567
    %7569 = vmatmul.bf16.gmra.mxu0 %v7536
    %v7570 = vpop.f32.mrf.mxu0
    %v7571 = vadd.f32 0.0, %v7570
    %v7572 = vpop.f32.mrf.mxu0
    %v7573 = vadd.f32 0.0, %v7572
    %7574 = vmatmul.bf16.gmra.mxu0 %v7539
    %v7575 = vpop.f32.mrf.mxu0
    %v7576 = vadd.f32 0.0, %v7575
    %v7577 = vpop.f32.mrf.mxu0
    %v7578 = vadd.f32 0.0, %v7577
    %7579 = vmatmul.bf16.gmra.mxu0 %v7542
    %v7580 = vpop.f32.mrf.mxu0
    %v7581 = vadd.f32 0.0, %v7580
    %v7582 = vpop.f32.mrf.mxu0
    %v7583 = vadd.f32 0.0, %v7582
    %7584 = vmatmul.bf16.gmra.mxu0 %v7545
    %v7585 = vpop.f32.mrf.mxu0
    %v7586 = vadd.f32 0.0, %v7585
    %v7587 = vpop.f32.mrf.mxu0
    %v7588 = vadd.f32 0.0, %v7587
    %7589 = vmatmul.bf16.gmra.mxu0 %v7548
    %v7590 = vpop.f32.mrf.mxu0
    %v7591 = vadd.f32 0.0, %v7590
    %v7592 = vpop.f32.mrf.mxu0
    %v7593 = vadd.f32 0.0, %v7592
    %7594 = vmatmul.bf16.gmra.mxu0 %v7551
    %v7595 = vpop.f32.mrf.mxu0
    %v7596 = vadd.f32 0.0, %v7595
    %v7597 = vpop.f32.mrf.mxu0
    %v7598 = vadd.f32 0.0, %v7597
    %7599 = vmatmul.bf16.gmra.mxu0 %v7554
    %v7600 = vpop.f32.mrf.mxu0
    %v7601 = vadd.f32 0.0, %v7600
    %v7602 = vpop.f32.mrf.mxu0
    %v7603 = vadd.f32 0.0, %v7602
    %7604 = vdwg.mxu0
    %v7605 = vadd.f32 %v7459, %v7566
    %v7606 = vadd.f32 %v7460, %v7568
    %v7607 = vadd.f32 %v7461, %v7571
    %v7608 = vadd.f32 %v7462, %v7573
    %v7609 = vadd.f32 %v7463, %v7576
    %v7610 = vadd.f32 %v7464, %v7578
    %v7611 = vadd.f32 %v7465, %v7581
    %v7612 = vadd.f32 %v7466, %v7583
    %v7613 = vadd.f32 %v7467, %v7586
    %v7614 = vadd.f32 %v7468, %v7588
    %v7615 = vadd.f32 %v7469, %v7591
    %v7616 = vadd.f32 %v7470, %v7593
    %v7617 = vadd.f32 %v7471, %v7596
    %v7618 = vadd.f32 %v7472, %v7598
    %v7619 = vadd.f32 %v7473, %v7601
    %v7620 = vadd.f32 %v7474, %v7603
    %v7621 = vld [vmem:[#allocation2 + $0x10] sm:$0xff]
    %v7622 = vld [vmem:[#allocation2 + $0x18] sm:$0xff]
    %v7623 = vld [vmem:[#allocation2 + $0x20] sm:$0xff]
    %v7624 = vld [vmem:[#allocation2 + $0x28] sm:$0xff]
    %v7625 = vld [vmem:[#allocation2 + $0x30] sm:$0xff]
    %v7626 = vld [vmem:[#allocation2 + $0x38] sm:$0xff]
    %v7627 = vld [vmem:[#allocation2 + $0x40] sm:$0xff]
    %v7628 = vld [vmem:[#allocation2 + $0x48] sm:$0xff]
    %v7629 = vld [vmem:[#allocation2 + $0x50] sm:$0xff]
    %v7630 = vld [vmem:[#allocation2 + $0x58] sm:$0xff]
    %v7631 = vld [vmem:[#allocation2 + $0x60] sm:$0xff]
    %v7632 = vld [vmem:[#allocation2 + $0x68] sm:$0xff]
    %v7633 = vld [vmem:[#allocation2 + $0x70] sm:$0xff]
    %v7634 = vld [vmem:[#allocation2 + $0x78] sm:$0xff]
    %v7635 = vld [vmem:[#allocation2 + $0x80] sm:$0xff]
    %v7636 = vld [vmem:[#allocation2 + $0x88] sm:$0xff]
    %v7637 = vpack.c.bf16 %v7622, %v7621
    %v7638 = vpack.c.bf16 %v7624, %v7623
    %v7639 = vpack.c.bf16 %v7626, %v7625
    %v7640 = vpack.c.bf16 %v7628, %v7627
    %v7641 = vpack.c.bf16 %v7630, %v7629
    %v7642 = vpack.c.bf16 %v7632, %v7631
    %v7643 = vpack.c.bf16 %v7634, %v7633
    %v7644 = vpack.c.bf16 %v7636, %v7635
    %s7645 = scalar_lea.vmem %s4, 64
    %v7646 = vld [vmem:[%s7645] sm:$0xf]
    %v7647 = vld [vmem:[%s7645 + $0x4] sm:$0xf]
    %v7648 = vld [vmem:[%s7645 + $0x8] sm:$0xf]
    %v7649 = vld [vmem:[%s7645 + $0xc] sm:$0xf]
    %v7654 = vunpack.c.l.b16 %v7646
    %v7655 = vunpack.c.l.b16 %v7647
    %v7656 = vunpack.c.l.b16 %v7648
    %v7657 = vunpack.c.l.b16 %v7649
    %v7658 = vpack.c.b16 %v7655, %v7654
    %v7659 = vpack.c.b16 %v7657, %v7656
    %v7663 = vsel %vm6761, %v7637, 0
    %v7666 = vsel %vm6761, %v7638, 0
    %v7669 = vsel %vm6761, %v7639, 0
    %v7672 = vsel %vm6761, %v7640, 0
    %v7675 = vsel %vm6761, %v7641, 0
    %v7678 = vsel %vm6761, %v7642, 0
    %v7681 = vsel %vm6761, %v7643, 0
    %v7684 = vsel %vm6761, %v7644, 0
    %7686 = vmatpush.bf16.msra.mxu0 0
    %7687 = vmatpush.bf16.msra.mxu0 0
    %7688 = vmatpush.bf16.msra.mxu0 0
    %7689 = vmatpush.bf16.msra.mxu0 0
    %7690 = vmatpush.bf16.msra.mxu0 0
    %7691 = vmatpush.bf16.msra.mxu0 0
    %7692 = vmatpush.bf16.msra.mxu0 %v7659
    %7693 = vmatpush.bf16.msra.mxu0 %v7658
    %7694 = vmatmul.bf16.gmra.mxu0 %v7663
    %v7695 = vpop.f32.mrf.mxu0
    %v7696 = vadd.f32 0.0, %v7695
    %v7697 = vpop.f32.mrf.mxu0
    %v7698 = vadd.f32 0.0, %v7697
    %7699 = vmatmul.bf16.gmra.mxu0 %v7666
    %v7700 = vpop.f32.mrf.mxu0
    %v7701 = vadd.f32 0.0, %v7700
    %v7702 = vpop.f32.mrf.mxu0
    %v7703 = vadd.f32 0.0, %v7702
    %7704 = vmatmul.bf16.gmra.mxu0 %v7669
    %v7705 = vpop.f32.mrf.mxu0
    %v7706 = vadd.f32 0.0, %v7705
    %v7707 = vpop.f32.mrf.mxu0
    %v7708 = vadd.f32 0.0, %v7707
    %7709 = vmatmul.bf16.gmra.mxu0 %v7672
    %v7710 = vpop.f32.mrf.mxu0
    %v7711 = vadd.f32 0.0, %v7710
    %v7712 = vpop.f32.mrf.mxu0
    %v7713 = vadd.f32 0.0, %v7712
    %7714 = vmatmul.bf16.gmra.mxu0 %v7675
    %v7715 = vpop.f32.mrf.mxu0
    %v7716 = vadd.f32 0.0, %v7715
    %v7717 = vpop.f32.mrf.mxu0
    %v7718 = vadd.f32 0.0, %v7717
    %7719 = vmatmul.bf16.gmra.mxu0 %v7678
    %v7720 = vpop.f32.mrf.mxu0
    %v7721 = vadd.f32 0.0, %v7720
    %v7722 = vpop.f32.mrf.mxu0
    %v7723 = vadd.f32 0.0, %v7722
    %7724 = vmatmul.bf16.gmra.mxu0 %v7681
    %v7725 = vpop.f32.mrf.mxu0
    %v7726 = vadd.f32 0.0, %v7725
    %v7727 = vpop.f32.mrf.mxu0
    %v7728 = vadd.f32 0.0, %v7727
    %7729 = vmatmul.bf16.gmra.mxu0 %v7684
    %v7730 = vpop.f32.mrf.mxu0
    %v7731 = vadd.f32 0.0, %v7730
    %v7732 = vpop.f32.mrf.mxu0
    %v7733 = vadd.f32 0.0, %v7732
    %7734 = vdwg.mxu0
    %v7735 = vadd.f32 %v7605, %v7696
    %v7736 = vadd.f32 %v7606, %v7698
    %v7737 = vadd.f32 %v7607, %v7701
    %v7738 = vadd.f32 %v7608, %v7703
    %v7739 = vadd.f32 %v7609, %v7706
    %v7740 = vadd.f32 %v7610, %v7708
    %v7741 = vadd.f32 %v7611, %v7711
    %v7742 = vadd.f32 %v7612, %v7713
    %v7743 = vadd.f32 %v7613, %v7716
    %v7744 = vadd.f32 %v7614, %v7718
    %v7745 = vadd.f32 %v7615, %v7721
    %v7746 = vadd.f32 %v7616, %v7723
    %v7747 = vadd.f32 %v7617, %v7726
    %v7748 = vadd.f32 %v7618, %v7728
    %v7749 = vadd.f32 %v7619, %v7731
    %v7750 = vadd.f32 %v7620, %v7733
    %v7751 = vld [vmem:[#allocation2 + $0x11] sm:$0xff]
    %v7752 = vld [vmem:[#allocation2 + $0x19] sm:$0xff]
    %v7753 = vld [vmem:[#allocation2 + $0x21] sm:$0xff]
    %v7754 = vld [vmem:[#allocation2 + $0x29] sm:$0xff]
    %v7755 = vld [vmem:[#allocation2 + $0x31] sm:$0xff]
    %v7756 = vld [vmem:[#allocation2 + $0x39] sm:$0xff]
    %v7757 = vld [vmem:[#allocation2 + $0x41] sm:$0xff]
    %v7758 = vld [vmem:[#allocation2 + $0x49] sm:$0xff]
    %v7759 = vld [vmem:[#allocation2 + $0x51] sm:$0xff]
    %v7760 = vld [vmem:[#allocation2 + $0x59] sm:$0xff]
    %v7761 = vld [vmem:[#allocation2 + $0x61] sm:$0xff]
    %v7762 = vld [vmem:[#allocation2 + $0x69] sm:$0xff]
    %v7763 = vld [vmem:[#allocation2 + $0x71] sm:$0xff]
    %v7764 = vld [vmem:[#allocation2 + $0x79] sm:$0xff]
    %v7765 = vld [vmem:[#allocation2 + $0x81] sm:$0xff]
    %v7766 = vld [vmem:[#allocation2 + $0x89] sm:$0xff]
    %v7767 = vmul.f32 %v7751, %v7022
    %v7768 = vmul.f32 %v7752, %v7023
    %v7769 = vmul.f32 %v7753, %v7024
    %v7770 = vmul.f32 %v7754, %v7025
    %v7771 = vmul.f32 %v7755, %v7026
    %v7772 = vmul.f32 %v7756, %v7027
    %v7773 = vmul.f32 %v7757, %v7028
    %v7774 = vmul.f32 %v7758, %v7029
    %v7775 = vmul.f32 %v7759, %v7030
    %v7776 = vmul.f32 %v7760, %v7031
    %v7777 = vmul.f32 %v7761, %v7032
    %v7778 = vmul.f32 %v7762, %v7033
    %v7779 = vmul.f32 %v7763, %v7034
    %v7780 = vmul.f32 %v7764, %v7035
    %v7781 = vmul.f32 %v7765, %v7036
    %v7782 = vmul.f32 %v7766, %v7037
    %v7783 = vpack.c.bf16 %v7768, %v7767
    %v7784 = vpack.c.bf16 %v7770, %v7769
    %v7785 = vpack.c.bf16 %v7772, %v7771
    %v7786 = vpack.c.bf16 %v7774, %v7773
    %v7787 = vpack.c.bf16 %v7776, %v7775
    %v7788 = vpack.c.bf16 %v7778, %v7777
    %v7789 = vpack.c.bf16 %v7780, %v7779
    %v7790 = vpack.c.bf16 %v7782, %v7781
    %s7791 = scalar_lea.vmem %s4, 80
    %v7792 = vld [vmem:[%s7791] sm:$0xf]
    %v7793 = vld [vmem:[%s7791 + $0x4] sm:$0xf]
    %v7794 = vld [vmem:[%s7791 + $0x8] sm:$0xf]
    %v7795 = vld [vmem:[%s7791 + $0xc] sm:$0xf]
    %v7800 = vunpack.c.l.b16 %v7792
    %v7801 = vunpack.c.l.b16 %v7793
    %v7802 = vunpack.c.l.b16 %v7794
    %v7803 = vunpack.c.l.b16 %v7795
    %v7804 = vpack.c.b16 %v7801, %v7800
    %v7805 = vpack.c.b16 %v7803, %v7802
    %v7809 = vsel %vm6761, %v7783, 0
    %v7812 = vsel %vm6761, %v7784, 0
    %v7815 = vsel %vm6761, %v7785, 0
    %v7818 = vsel %vm6761, %v7786, 0
    %v7821 = vsel %vm6761, %v7787, 0
    %v7824 = vsel %vm6761, %v7788, 0
    %v7827 = vsel %vm6761, %v7789, 0
    %v7830 = vsel %vm6761, %v7790, 0
    %7832 = vmatpush.bf16.msra.mxu0 0
    %7833 = vmatpush.bf16.msra.mxu0 0
    %7834 = vmatpush.bf16.msra.mxu0 0
    %7835 = vmatpush.bf16.msra.mxu0 0
    %7836 = vmatpush.bf16.msra.mxu0 0
    %7837 = vmatpush.bf16.msra.mxu0 0
    %7838 = vmatpush.bf16.msra.mxu0 %v7805
    %7839 = vmatpush.bf16.msra.mxu0 %v7804
    %7840 = vmatmul.bf16.gmra.mxu0 %v7809
    %v7841 = vpop.f32.mrf.mxu0
    %v7842 = vadd.f32 0.0, %v7841
    %v7843 = vpop.f32.mrf.mxu0
    %v7844 = vadd.f32 0.0, %v7843
    %7845 = vmatmul.bf16.gmra.mxu0 %v7812
    %v7846 = vpop.f32.mrf.mxu0
    %v7847 = vadd.f32 0.0, %v7846
    %v7848 = vpop.f32.mrf.mxu0
    %v7849 = vadd.f32 0.0, %v7848
    %7850 = vmatmul.bf16.gmra.mxu0 %v7815
    %v7851 = vpop.f32.mrf.mxu0
    %v7852 = vadd.f32 0.0, %v7851
    %v7853 = vpop.f32.mrf.mxu0
    %v7854 = vadd.f32 0.0, %v7853
    %7855 = vmatmul.bf16.gmra.mxu0 %v7818
    %v7856 = vpop.f32.mrf.mxu0
    %v7857 = vadd.f32 0.0, %v7856
    %v7858 = vpop.f32.mrf.mxu0
    %v7859 = vadd.f32 0.0, %v7858
    %7860 = vmatmul.bf16.gmra.mxu0 %v7821
    %v7861 = vpop.f32.mrf.mxu0
    %v7862 = vadd.f32 0.0, %v7861
    %v7863 = vpop.f32.mrf.mxu0
    %v7864 = vadd.f32 0.0, %v7863
    %7865 = vmatmul.bf16.gmra.mxu0 %v7824
    %v7866 = vpop.f32.mrf.mxu0
    %v7867 = vadd.f32 0.0, %v7866
    %v7868 = vpop.f32.mrf.mxu0
    %v7869 = vadd.f32 0.0, %v7868
    %7870 = vmatmul.bf16.gmra.mxu0 %v7827
    %v7871 = vpop.f32.mrf.mxu0
    %v7872 = vadd.f32 0.0, %v7871
    %v7873 = vpop.f32.mrf.mxu0
    %v7874 = vadd.f32 0.0, %v7873
    %7875 = vmatmul.bf16.gmra.mxu0 %v7830
    %v7876 = vpop.f32.mrf.mxu0
    %v7877 = vadd.f32 0.0, %v7876
    %v7878 = vpop.f32.mrf.mxu0
    %v7879 = vadd.f32 0.0, %v7878
    %7880 = vdwg.mxu0
    %v7881 = vadd.f32 %v7735, %v7842
    %v7882 = vadd.f32 %v7736, %v7844
    %v7883 = vadd.f32 %v7737, %v7847
    %v7884 = vadd.f32 %v7738, %v7849
    %v7885 = vadd.f32 %v7739, %v7852
    %v7886 = vadd.f32 %v7740, %v7854
    %v7887 = vadd.f32 %v7741, %v7857
    %v7888 = vadd.f32 %v7742, %v7859
    %v7889 = vadd.f32 %v7743, %v7862
    %v7890 = vadd.f32 %v7744, %v7864
    %v7891 = vadd.f32 %v7745, %v7867
    %v7892 = vadd.f32 %v7746, %v7869
    %v7893 = vadd.f32 %v7747, %v7872
    %v7894 = vadd.f32 %v7748, %v7874
    %v7895 = vadd.f32 %v7749, %v7877
    %v7896 = vadd.f32 %v7750, %v7879
    %v7897 = vld [vmem:[#allocation2 + $0x17] sm:$0xff]
    %v7898 = vld [vmem:[#allocation2 + $0x1f] sm:$0xff]
    %v7899 = vld [vmem:[#allocation2 + $0x27] sm:$0xff]
    %v7900 = vld [vmem:[#allocation2 + $0x2f] sm:$0xff]
    %v7901 = vld [vmem:[#allocation2 + $0x37] sm:$0xff]
    %v7902 = vld [vmem:[#allocation2 + $0x3f] sm:$0xff]
    %v7903 = vld [vmem:[#allocation2 + $0x47] sm:$0xff]
    %v7904 = vld [vmem:[#allocation2 + $0x4f] sm:$0xff]
    %v7905 = vld [vmem:[#allocation2 + $0x57] sm:$0xff]
    %v7906 = vld [vmem:[#allocation2 + $0x5f] sm:$0xff]
    %v7907 = vld [vmem:[#allocation2 + $0x67] sm:$0xff]
    %v7908 = vld [vmem:[#allocation2 + $0x6f] sm:$0xff]
    %v7909 = vld [vmem:[#allocation2 + $0x77] sm:$0xff]
    %v7910 = vld [vmem:[#allocation2 + $0x7f] sm:$0xff]
    %v7911 = vld [vmem:[#allocation2 + $0x87] sm:$0xff]
    %v7912 = vld [vmem:[#allocation2 + $0x8f] sm:$0xff]
    %v7913 = vmul.f32 %v6926, %v6974
    %v7914 = vmul.f32 %v6927, %v6975
    %v7915 = vmul.f32 %v6928, %v6976
    %v7916 = vmul.f32 %v6929, %v6977
    %v7917 = vmul.f32 %v6930, %v6978
    %v7918 = vmul.f32 %v6931, %v6979
    %v7919 = vmul.f32 %v6932, %v6980
    %v7920 = vmul.f32 %v6933, %v6981
    %v7921 = vmul.f32 %v6934, %v6982
    %v7922 = vmul.f32 %v6935, %v6983
    %v7923 = vmul.f32 %v6936, %v6984
    %v7924 = vmul.f32 %v6937, %v6985
    %v7925 = vmul.f32 %v6938, %v6986
    %v7926 = vmul.f32 %v6939, %v6987
    %v7927 = vmul.f32 %v6940, %v6988
    %v7928 = vmul.f32 %v6941, %v6989
    %v7929 = vmul.f32 %v7897, %v7913
    %v7930 = vmul.f32 %v7898, %v7914
    %v7931 = vmul.f32 %v7899, %v7915
    %v7932 = vmul.f32 %v7900, %v7916
    %v7933 = vmul.f32 %v7901, %v7917
    %v7934 = vmul.f32 %v7902, %v7918
    %v7935 = vmul.f32 %v7903, %v7919
    %v7936 = vmul.f32 %v7904, %v7920
    %v7937 = vmul.f32 %v7905, %v7921
    %v7938 = vmul.f32 %v7906, %v7922
    %v7939 = vmul.f32 %v7907, %v7923
    %v7940 = vmul.f32 %v7908, %v7924
    %v7941 = vmul.f32 %v7909, %v7925
    %v7942 = vmul.f32 %v7910, %v7926
    %v7943 = vmul.f32 %v7911, %v7927
    %v7944 = vmul.f32 %v7912, %v7928
    %v7945 = vpack.c.bf16 %v7930, %v7929
    %v7946 = vpack.c.bf16 %v7932, %v7931
    %v7947 = vpack.c.bf16 %v7934, %v7933
    %v7948 = vpack.c.bf16 %v7936, %v7935
    %v7949 = vpack.c.bf16 %v7938, %v7937
    %v7950 = vpack.c.bf16 %v7940, %v7939
    %v7951 = vpack.c.bf16 %v7942, %v7941
    %v7952 = vpack.c.bf16 %v7944, %v7943
    %s7953 = scalar_lea.vmem %s4, 96
    %v7954 = vld [vmem:[%s7953] sm:$0xf]
    %v7955 = vld [vmem:[%s7953 + $0x4] sm:$0xf]
    %v7956 = vld [vmem:[%s7953 + $0x8] sm:$0xf]
    %v7957 = vld [vmem:[%s7953 + $0xc] sm:$0xf]
    %v7962 = vunpack.c.l.b16 %v7954
    %v7963 = vunpack.c.l.b16 %v7955
    %v7964 = vunpack.c.l.b16 %v7956
    %v7965 = vunpack.c.l.b16 %v7957
    %v7966 = vpack.c.b16 %v7963, %v7962
    %v7967 = vpack.c.b16 %v7965, %v7964
    %v7971 = vsel %vm6761, %v7945, 0
    %v7974 = vsel %vm6761, %v7946, 0
    %v7977 = vsel %vm6761, %v7947, 0
    %v7980 = vsel %vm6761, %v7948, 0
    %v7983 = vsel %vm6761, %v7949, 0
    %v7986 = vsel %vm6761, %v7950, 0
    %v7989 = vsel %vm6761, %v7951, 0
    %v7992 = vsel %vm6761, %v7952, 0
    %7994 = vmatpush.bf16.msra.mxu0 0
    %7995 = vmatpush.bf16.msra.mxu0 0
    %7996 = vmatpush.bf16.msra.mxu0 0
    %7997 = vmatpush.bf16.msra.mxu0 0
    %7998 = vmatpush.bf16.msra.mxu0 0
    %7999 = vmatpush.bf16.msra.mxu0 0
    %8000 = vmatpush.bf16.msra.mxu0 %v7967
    %8001 = vmatpush.bf16.msra.mxu0 %v7966
    %8002 = vmatmul.bf16.gmra.mxu0 %v7971
    %v8003 = vpop.f32.mrf.mxu0
    %v8004 = vadd.f32 0.0, %v8003
    %v8005 = vpop.f32.mrf.mxu0
    %v8006 = vadd.f32 0.0, %v8005
    %8007 = vmatmul.bf16.gmra.mxu0 %v7974
    %v8008 = vpop.f32.mrf.mxu0
    %v8009 = vadd.f32 0.0, %v8008
    %v8010 = vpop.f32.mrf.mxu0
    %v8011 = vadd.f32 0.0, %v8010
    %8012 = vmatmul.bf16.gmra.mxu0 %v7977
    %v8013 = vpop.f32.mrf.mxu0
    %v8014 = vadd.f32 0.0, %v8013
    %v8015 = vpop.f32.mrf.mxu0
    %v8016 = vadd.f32 0.0, %v8015
    %8017 = vmatmul.bf16.gmra.mxu0 %v7980
    %v8018 = vpop.f32.mrf.mxu0
    %v8019 = vadd.f32 0.0, %v8018
    %v8020 = vpop.f32.mrf.mxu0
    %v8021 = vadd.f32 0.0, %v8020
    %8022 = vmatmul.bf16.gmra.mxu0 %v7983
    %v8023 = vpop.f32.mrf.mxu0
    %v8024 = vadd.f32 0.0, %v8023
    %v8025 = vpop.f32.mrf.mxu0
    %v8026 = vadd.f32 0.0, %v8025
    %8027 = vmatmul.bf16.gmra.mxu0 %v7986
    %v8028 = vpop.f32.mrf.mxu0
    %v8029 = vadd.f32 0.0, %v8028
    %v8030 = vpop.f32.mrf.mxu0
    %v8031 = vadd.f32 0.0, %v8030
    %8032 = vmatmul.bf16.gmra.mxu0 %v7989
    %v8033 = vpop.f32.mrf.mxu0
    %v8034 = vadd.f32 0.0, %v8033
    %v8035 = vpop.f32.mrf.mxu0
    %v8036 = vadd.f32 0.0, %v8035
    %8037 = vmatmul.bf16.gmra.mxu0 %v7992
    %v8038 = vpop.f32.mrf.mxu0
    %v8039 = vadd.f32 0.0, %v8038
    %v8040 = vpop.f32.mrf.mxu0
    %v8041 = vadd.f32 0.0, %v8040
    %8042 = vdwg.mxu0
    %v8043 = vadd.f32 %v7881, %v8004
    %v8044 = vadd.f32 %v7882, %v8006
    %v8045 = vadd.f32 %v7883, %v8009
    %v8046 = vadd.f32 %v7884, %v8011
    %v8047 = vadd.f32 %v7885, %v8014
    %v8048 = vadd.f32 %v7886, %v8016
    %v8049 = vadd.f32 %v7887, %v8019
    %v8050 = vadd.f32 %v7888, %v8021
    %v8051 = vadd.f32 %v7889, %v8024
    %v8052 = vadd.f32 %v7890, %v8026
    %v8053 = vadd.f32 %v7891, %v8029
    %v8054 = vadd.f32 %v7892, %v8031
    %v8055 = vadd.f32 %v7893, %v8034
    %v8056 = vadd.f32 %v7894, %v8036
    %v8057 = vadd.f32 %v7895, %v8039
    %v8058 = vadd.f32 %v7896, %v8041
    %v8059 = vld [vmem:[#allocation2 + $0x18] sm:$0xff]
    %v8060 = vld [vmem:[#allocation2 + $0x20] sm:$0xff]
    %v8061 = vld [vmem:[#allocation2 + $0x28] sm:$0xff]
    %v8062 = vld [vmem:[#allocation2 + $0x30] sm:$0xff]
    %v8063 = vld [vmem:[#allocation2 + $0x38] sm:$0xff]
    %v8064 = vld [vmem:[#allocation2 + $0x40] sm:$0xff]
    %v8065 = vld [vmem:[#allocation2 + $0x48] sm:$0xff]
    %v8066 = vld [vmem:[#allocation2 + $0x50] sm:$0xff]
    %v8067 = vld [vmem:[#allocation2 + $0x58] sm:$0xff]
    %v8068 = vld [vmem:[#allocation2 + $0x60] sm:$0xff]
    %v8069 = vld [vmem:[#allocation2 + $0x68] sm:$0xff]
    %v8070 = vld [vmem:[#allocation2 + $0x70] sm:$0xff]
    %v8071 = vld [vmem:[#allocation2 + $0x78] sm:$0xff]
    %v8072 = vld [vmem:[#allocation2 + $0x80] sm:$0xff]
    %v8073 = vld [vmem:[#allocation2 + $0x88] sm:$0xff]
    %v8074 = vld [vmem:[#allocation2 + $0x90] sm:$0xff]
    %v8075 = vmul.f32 %v8059, %v6926
    %v8076 = vmul.f32 %v8060, %v6927
    %v8077 = vmul.f32 %v8061, %v6928
    %v8078 = vmul.f32 %v8062, %v6929
    %v8079 = vmul.f32 %v8063, %v6930
    %v8080 = vmul.f32 %v8064, %v6931
    %v8081 = vmul.f32 %v8065, %v6932
    %v8082 = vmul.f32 %v8066, %v6933
    %v8083 = vmul.f32 %v8067, %v6934
    %v8084 = vmul.f32 %v8068, %v6935
    %v8085 = vmul.f32 %v8069, %v6936
    %v8086 = vmul.f32 %v8070, %v6937
    %v8087 = vmul.f32 %v8071, %v6938
    %v8088 = vmul.f32 %v8072, %v6939
    %v8089 = vmul.f32 %v8073, %v6940
    %v8090 = vmul.f32 %v8074, %v6941
    %v8091 = vpack.c.bf16 %v8076, %v8075
    %v8092 = vpack.c.bf16 %v8078, %v8077
    %v8093 = vpack.c.bf16 %v8080, %v8079
    %v8094 = vpack.c.bf16 %v8082, %v8081
    %v8095 = vpack.c.bf16 %v8084, %v8083
    %v8096 = vpack.c.bf16 %v8086, %v8085
    %v8097 = vpack.c.bf16 %v8088, %v8087
    %v8098 = vpack.c.bf16 %v8090, %v8089
    %s8099 = scalar_lea.vmem %s4, 112
    %v8100 = vld [vmem:[%s8099] sm:$0xf]
    %v8101 = vld [vmem:[%s8099 + $0x4] sm:$0xf]
    %v8102 = vld [vmem:[%s8099 + $0x8] sm:$0xf]
    %v8103 = vld [vmem:[%s8099 + $0xc] sm:$0xf]
    %v8108 = vunpack.c.l.b16 %v8100
    %v8109 = vunpack.c.l.b16 %v8101
    %v8110 = vunpack.c.l.b16 %v8102
    %v8111 = vunpack.c.l.b16 %v8103
    %v8112 = vpack.c.b16 %v8109, %v8108
    %v8113 = vpack.c.b16 %v8111, %v8110
    %v8117 = vsel %vm6761, %v8091, 0
    %v8120 = vsel %vm6761, %v8092, 0
    %v8123 = vsel %vm6761, %v8093, 0
    %v8126 = vsel %vm6761, %v8094, 0
    %v8129 = vsel %vm6761, %v8095, 0
    %v8132 = vsel %vm6761, %v8096, 0
    %v8135 = vsel %vm6761, %v8097, 0
    %v8138 = vsel %vm6761, %v8098, 0
    %8140 = vmatpush.bf16.msra.mxu0 0
    %8141 = vmatpush.bf16.msra.mxu0 0
    %8142 = vmatpush.bf16.msra.mxu0 0
    %8143 = vmatpush.bf16.msra.mxu0 0
    %8144 = vmatpush.bf16.msra.mxu0 0
    %8145 = vmatpush.bf16.msra.mxu0 0
    %8146 = vmatpush.bf16.msra.mxu0 %v8113
    %8147 = vmatpush.bf16.msra.mxu0 %v8112
    %8148 = vmatmul.bf16.gmra.mxu0 %v8117
    %v8149 = vpop.f32.mrf.mxu0
    %v8150 = vadd.f32 0.0, %v8149
    %v8151 = vpop.f32.mrf.mxu0
    %v8152 = vadd.f32 0.0, %v8151
    %8153 = vmatmul.bf16.gmra.mxu0 %v8120
    %v8154 = vpop.f32.mrf.mxu0
    %v8155 = vadd.f32 0.0, %v8154
    %v8156 = vpop.f32.mrf.mxu0
    %v8157 = vadd.f32 0.0, %v8156
    %8158 = vmatmul.bf16.gmra.mxu0 %v8123
    %v8159 = vpop.f32.mrf.mxu0
    %v8160 = vadd.f32 0.0, %v8159
    %v8161 = vpop.f32.mrf.mxu0
    %v8162 = vadd.f32 0.0, %v8161
    %8163 = vmatmul.bf16.gmra.mxu0 %v8126
    %v8164 = vpop.f32.mrf.mxu0
    %v8165 = vadd.f32 0.0, %v8164
    %v8166 = vpop.f32.mrf.mxu0
    %v8167 = vadd.f32 0.0, %v8166
    %8168 = vmatmul.bf16.gmra.mxu0 %v8129
    %v8169 = vpop.f32.mrf.mxu0
    %v8170 = vadd.f32 0.0, %v8169
    %v8171 = vpop.f32.mrf.mxu0
    %v8172 = vadd.f32 0.0, %v8171
    %8173 = vmatmul.bf16.gmra.mxu0 %v8132
    %v8174 = vpop.f32.mrf.mxu0
    %v8175 = vadd.f32 0.0, %v8174
    %v8176 = vpop.f32.mrf.mxu0
    %v8177 = vadd.f32 0.0, %v8176
    %8178 = vmatmul.bf16.gmra.mxu0 %v8135
    %v8179 = vpop.f32.mrf.mxu0
    %v8180 = vadd.f32 0.0, %v8179
    %v8181 = vpop.f32.mrf.mxu0
    %v8182 = vadd.f32 0.0, %v8181
    %8183 = vmatmul.bf16.gmra.mxu0 %v8138
    %v8184 = vpop.f32.mrf.mxu0
    %v8185 = vadd.f32 0.0, %v8184
    %v8186 = vpop.f32.mrf.mxu0
    %v8187 = vadd.f32 0.0, %v8186
    %8188 = vdwg.mxu0
    %v8189 = vadd.f32 %v8043, %v8150
    %v8190 = vadd.f32 %v8044, %v8152
    %v8191 = vadd.f32 %v8045, %v8155
    %v8192 = vadd.f32 %v8046, %v8157
    %v8193 = vadd.f32 %v8047, %v8160
    %v8194 = vadd.f32 %v8048, %v8162
    %v8195 = vadd.f32 %v8049, %v8165
    %v8196 = vadd.f32 %v8050, %v8167
    %v8197 = vadd.f32 %v8051, %v8170
    %v8198 = vadd.f32 %v8052, %v8172
    %v8199 = vadd.f32 %v8053, %v8175
    %v8200 = vadd.f32 %v8054, %v8177
    %v8201 = vadd.f32 %v8055, %v8180
    %v8202 = vadd.f32 %v8056, %v8182
    %v8203 = vadd.f32 %v8057, %v8185
    %v8204 = vadd.f32 %v8058, %v8187
    %v8205 = vld [vmem:[#allocation2 + $0x19] sm:$0xff]
    %v8206 = vld [vmem:[#allocation2 + $0x21] sm:$0xff]
    %v8207 = vld [vmem:[#allocation2 + $0x29] sm:$0xff]
    %v8208 = vld [vmem:[#allocation2 + $0x31] sm:$0xff]
    %v8209 = vld [vmem:[#allocation2 + $0x39] sm:$0xff]
    %v8210 = vld [vmem:[#allocation2 + $0x41] sm:$0xff]
    %v8211 = vld [vmem:[#allocation2 + $0x49] sm:$0xff]
    %v8212 = vld [vmem:[#allocation2 + $0x51] sm:$0xff]
    %v8213 = vld [vmem:[#allocation2 + $0x59] sm:$0xff]
    %v8214 = vld [vmem:[#allocation2 + $0x61] sm:$0xff]
    %v8215 = vld [vmem:[#allocation2 + $0x69] sm:$0xff]
    %v8216 = vld [vmem:[#allocation2 + $0x71] sm:$0xff]
    %v8217 = vld [vmem:[#allocation2 + $0x79] sm:$0xff]
    %v8218 = vld [vmem:[#allocation2 + $0x81] sm:$0xff]
    %v8219 = vld [vmem:[#allocation2 + $0x89] sm:$0xff]
    %v8220 = vld [vmem:[#allocation2 + $0x91] sm:$0xff]
    %v8221 = vmul.f32 %v6926, %v7022
    %v8222 = vmul.f32 %v6927, %v7023
    %v8223 = vmul.f32 %v6928, %v7024
    %v8224 = vmul.f32 %v6929, %v7025
    %v8225 = vmul.f32 %v6930, %v7026
    %v8226 = vmul.f32 %v6931, %v7027
    %v8227 = vmul.f32 %v6932, %v7028
    %v8228 = vmul.f32 %v6933, %v7029
    %v8229 = vmul.f32 %v6934, %v7030
    %v8230 = vmul.f32 %v6935, %v7031
    %v8231 = vmul.f32 %v6936, %v7032
    %v8232 = vmul.f32 %v6937, %v7033
    %v8233 = vmul.f32 %v6938, %v7034
    %v8234 = vmul.f32 %v6939, %v7035
    %v8235 = vmul.f32 %v6940, %v7036
    %v8236 = vmul.f32 %v6941, %v7037
    %v8237 = vmul.f32 %v8205, %v8221
    %v8238 = vmul.f32 %v8206, %v8222
    %v8239 = vmul.f32 %v8207, %v8223
    %v8240 = vmul.f32 %v8208, %v8224
    %v8241 = vmul.f32 %v8209, %v8225
    %v8242 = vmul.f32 %v8210, %v8226
    %v8243 = vmul.f32 %v8211, %v8227
    %v8244 = vmul.f32 %v8212, %v8228
    %v8245 = vmul.f32 %v8213, %v8229
    %v8246 = vmul.f32 %v8214, %v8230
    %v8247 = vmul.f32 %v8215, %v8231
    %v8248 = vmul.f32 %v8216, %v8232
    %v8249 = vmul.f32 %v8217, %v8233
    %v8250 = vmul.f32 %v8218, %v8234
    %v8251 = vmul.f32 %v8219, %v8235
    %v8252 = vmul.f32 %v8220, %v8236
    %v8253 = vpack.c.bf16 %v8238, %v8237
    %v8254 = vpack.c.bf16 %v8240, %v8239
    %v8255 = vpack.c.bf16 %v8242, %v8241
    %v8256 = vpack.c.bf16 %v8244, %v8243
    %v8257 = vpack.c.bf16 %v8246, %v8245
    %v8258 = vpack.c.bf16 %v8248, %v8247
    %v8259 = vpack.c.bf16 %v8250, %v8249
    %v8260 = vpack.c.bf16 %v8252, %v8251
    %s8261 = scalar_lea.vmem %s4, 128
    %v8262 = vld [vmem:[%s8261] sm:$0xf]
    %v8263 = vld [vmem:[%s8261 + $0x4] sm:$0xf]
    %v8264 = vld [vmem:[%s8261 + $0x8] sm:$0xf]
    %v8265 = vld [vmem:[%s8261 + $0xc] sm:$0xf]
    %v8270 = vunpack.c.l.b16 %v8262
    %v8271 = vunpack.c.l.b16 %v8263
    %v8272 = vunpack.c.l.b16 %v8264
    %v8273 = vunpack.c.l.b16 %v8265
    %v8274 = vpack.c.b16 %v8271, %v8270
    %v8275 = vpack.c.b16 %v8273, %v8272
    %v8279 = vsel %vm6761, %v8253, 0
    %v8282 = vsel %vm6761, %v8254, 0
    %v8285 = vsel %vm6761, %v8255, 0
    %v8288 = vsel %vm6761, %v8256, 0
    %v8291 = vsel %vm6761, %v8257, 0
    %v8294 = vsel %vm6761, %v8258, 0
    %v8297 = vsel %vm6761, %v8259, 0
    %v8300 = vsel %vm6761, %v8260, 0
    %8302 = vmatpush.bf16.msra.mxu0 0
    %8303 = vmatpush.bf16.msra.mxu0 0
    %8304 = vmatpush.bf16.msra.mxu0 0
    %8305 = vmatpush.bf16.msra.mxu0 0
    %8306 = vmatpush.bf16.msra.mxu0 0
    %8307 = vmatpush.bf16.msra.mxu0 0
    %8308 = vmatpush.bf16.msra.mxu0 %v8275
    %8309 = vmatpush.bf16.msra.mxu0 %v8274
    %8310 = vmatmul.bf16.gmra.mxu0 %v8279
    %v8311 = vpop.f32.mrf.mxu0
    %v8312 = vadd.f32 0.0, %v8311
    %v8313 = vpop.f32.mrf.mxu0
    %v8314 = vadd.f32 0.0, %v8313
    %8315 = vmatmul.bf16.gmra.mxu0 %v8282
    %v8316 = vpop.f32.mrf.mxu0
    %v8317 = vadd.f32 0.0, %v8316
    %v8318 = vpop.f32.mrf.mxu0
    %v8319 = vadd.f32 0.0, %v8318
    %8320 = vmatmul.bf16.gmra.mxu0 %v8285
    %v8321 = vpop.f32.mrf.mxu0
    %v8322 = vadd.f32 0.0, %v8321
    %v8323 = vpop.f32.mrf.mxu0
    %v8324 = vadd.f32 0.0, %v8323
    %8325 = vmatmul.bf16.gmra.mxu0 %v8288
    %v8326 = vpop.f32.mrf.mxu0
    %v8327 = vadd.f32 0.0, %v8326
    %v8328 = vpop.f32.mrf.mxu0
    %v8329 = vadd.f32 0.0, %v8328
    %8330 = vmatmul.bf16.gmra.mxu0 %v8291
    %v8331 = vpop.f32.mrf.mxu0
    %v8332 = vadd.f32 0.0, %v8331
    %v8333 = vpop.f32.mrf.mxu0
    %v8334 = vadd.f32 0.0, %v8333
    %8335 = vmatmul.bf16.gmra.mxu0 %v8294
    %v8336 = vpop.f32.mrf.mxu0
    %v8337 = vadd.f32 0.0, %v8336
    %v8338 = vpop.f32.mrf.mxu0
    %v8339 = vadd.f32 0.0, %v8338
    %8340 = vmatmul.bf16.gmra.mxu0 %v8297
    %v8341 = vpop.f32.mrf.mxu0
    %v8342 = vadd.f32 0.0, %v8341
    %v8343 = vpop.f32.mrf.mxu0
    %v8344 = vadd.f32 0.0, %v8343
    %8345 = vmatmul.bf16.gmra.mxu0 %v8300
    %v8346 = vpop.f32.mrf.mxu0
    %v8347 = vadd.f32 0.0, %v8346
    %v8348 = vpop.f32.mrf.mxu0
    %v8349 = vadd.f32 0.0, %v8348
    %8350 = vdwg.mxu0
    %v8351 = vadd.f32 %v8189, %v8312
    %v8352 = vadd.f32 %v8190, %v8314
    %v8353 = vadd.f32 %v8191, %v8317
    %v8354 = vadd.f32 %v8192, %v8319
    %v8355 = vadd.f32 %v8193, %v8322
    %v8356 = vadd.f32 %v8194, %v8324
    %v8357 = vadd.f32 %v8195, %v8327
    %v8358 = vadd.f32 %v8196, %v8329
    %v8359 = vadd.f32 %v8197, %v8332
    %v8360 = vadd.f32 %v8198, %v8334
    %v8361 = vadd.f32 %v8199, %v8337
    %v8362 = vadd.f32 %v8200, %v8339
    %v8363 = vadd.f32 %v8201, %v8342
    %v8364 = vadd.f32 %v8202, %v8344
    %v8365 = vadd.f32 %v8203, %v8347
    %v8366 = vadd.f32 %v8204, %v8349
    %v8367 = vld [vmem:[%s6] sm:$0xff]
    %v8368 = vld [vmem:[%s6 + $0x8] sm:$0xff]
    %v8369 = vld [vmem:[%s6 + $0x10] sm:$0xff]
    %v8370 = vld [vmem:[%s6 + $0x18] sm:$0xff]
    %v8371 = vld [vmem:[%s6 + $0x20] sm:$0xff]
    %v8372 = vld [vmem:[%s6 + $0x28] sm:$0xff]
    %v8373 = vld [vmem:[%s6 + $0x30] sm:$0xff]
    %v8374 = vld [vmem:[%s6 + $0x38] sm:$0xff]
    %v8375 = vld [vmem:[%s6 + $0x40] sm:$0xff]
    %v8376 = vld [vmem:[%s6 + $0x48] sm:$0xff]
    %v8377 = vld [vmem:[%s6 + $0x50] sm:$0xff]
    %v8378 = vld [vmem:[%s6 + $0x58] sm:$0xff]
    %v8379 = vld [vmem:[%s6 + $0x60] sm:$0xff]
    %v8380 = vld [vmem:[%s6 + $0x68] sm:$0xff]
    %v8381 = vld [vmem:[%s6 + $0x70] sm:$0xff]
    %v8382 = vld [vmem:[%s6 + $0x78] sm:$0xff]
    %8383 = vmatpush.msra.mxu0 %v8366
    %8384 = vmatpush.msra.mxu0 %v8365
    %8385 = vmatpush.msra.mxu0 %v8364
    %8386 = vmatpush.msra.mxu0 %v8363
    %8387 = vmatpush.msra.mxu0 %v8362
    %8388 = vmatpush.msra.mxu0 %v8361
    %8389 = vmatpush.msra.mxu0 %v8360
    %8390 = vmatpush.msra.mxu0 %v8359
    %8391 = vmatpush.msra.mxu0 %v8358
    %8392 = vmatpush.msra.mxu0 %v8357
    %8393 = vmatpush.msra.mxu0 %v8356
    %8394 = vmatpush.msra.mxu0 %v8355
    %8395 = vmatpush.msra.mxu0 %v8354
    %8396 = vmatpush.msra.mxu0 %v8353
    %8397 = vmatpush.msra.mxu0 %v8352
    %8398 = vmatpush.msra.mxu0 %v8351
    %8399 = vmatmul.f32.gmra.mxu0 %v8367
    %v8400 = vpop.f32.mrf.mxu0
    %v8401 = vadd.f32 0.0, %v8400
    %8402 = vmatmul.f32.gmra.mxu0 %v8368
    %v8403 = vpop.f32.mrf.mxu0
    %v8404 = vadd.f32 0.0, %v8403
    %8405 = vmatmul.f32.gmra.mxu0 %v8369
    %v8406 = vpop.f32.mrf.mxu0
    %v8407 = vadd.f32 0.0, %v8406
    %8408 = vmatmul.f32.gmra.mxu0 %v8370
    %v8409 = vpop.f32.mrf.mxu0
    %v8410 = vadd.f32 0.0, %v8409
    %8411 = vmatmul.f32.gmra.mxu0 %v8371
    %v8412 = vpop.f32.mrf.mxu0
    %v8413 = vadd.f32 0.0, %v8412
    %8414 = vmatmul.f32.gmra.mxu0 %v8372
    %v8415 = vpop.f32.mrf.mxu0
    %v8416 = vadd.f32 0.0, %v8415
    %8417 = vmatmul.f32.gmra.mxu0 %v8373
    %v8418 = vpop.f32.mrf.mxu0
    %v8419 = vadd.f32 0.0, %v8418
    %8420 = vmatmul.f32.gmra.mxu0 %v8374
    %v8421 = vpop.f32.mrf.mxu0
    %v8422 = vadd.f32 0.0, %v8421
    %8423 = vmatmul.f32.gmra.mxu0 %v8375
    %v8424 = vpop.f32.mrf.mxu0
    %v8425 = vadd.f32 0.0, %v8424
    %8426 = vmatmul.f32.gmra.mxu0 %v8376
    %v8427 = vpop.f32.mrf.mxu0
    %v8428 = vadd.f32 0.0, %v8427
    %8429 = vmatmul.f32.gmra.mxu0 %v8377
    %v8430 = vpop.f32.mrf.mxu0
    %v8431 = vadd.f32 0.0, %v8430
    %8432 = vmatmul.f32.gmra.mxu0 %v8378
    %v8433 = vpop.f32.mrf.mxu0
    %v8434 = vadd.f32 0.0, %v8433
    %8435 = vmatmul.f32.gmra.mxu0 %v8379
    %v8436 = vpop.f32.mrf.mxu0
    %v8437 = vadd.f32 0.0, %v8436
    %8438 = vmatmul.f32.gmra.mxu0 %v8380
    %v8439 = vpop.f32.mrf.mxu0
    %v8440 = vadd.f32 0.0, %v8439
    %8441 = vmatmul.f32.gmra.mxu0 %v8381
    %v8442 = vpop.f32.mrf.mxu0
    %v8443 = vadd.f32 0.0, %v8442
    %8444 = vmatmul.f32.gmra.mxu0 %v8382
    %v8445 = vpop.f32.mrf.mxu0
    %v8446 = vadd.f32 0.0, %v8445
    %8447 = vdwg.mxu0
    %v8448 = vmax.f32 %v8401, %v8413
    %v8449 = vmax.f32 %v8404, %v8416
    %v8450 = vmax.f32 %v8407, %v8419
    %v8451 = vmax.f32 %v8410, %v8422
    %v8452 = vmax.f32 %v8425, %v8437
    %v8453 = vmax.f32 %v8428, %v8440
    %v8454 = vmax.f32 %v8431, %v8443
    %v8455 = vmax.f32 %v8434, %v8446
    %v8456 = vmax.f32 %v8448, %v8452
    %v8457 = vmax.f32 %v8449, %v8453
    %v8458 = vmax.f32 %v8450, %v8454
    %v8459 = vmax.f32 %v8451, %v8455
    %v8460 = vld [vmem:[%s5] sm:$0x1]
    %v8462 = vperm.slane %v8460, 0
    %v8464 = vadd.f32 %v8456, %v8462
    %v8465 = vadd.f32 %v8457, %v8462
    %v8466 = vadd.f32 %v8458, %v8462
    %v8467 = vadd.f32 %v8459, %v8462
    %v8468 = vmax.f32 %v8464, 0.0
    %v8469 = vmax.f32 %v8465, 0.0
    %v8470 = vmax.f32 %v8466, 0.0
    %v8471 = vmax.f32 %v8467, 0.0
    %vm8472 = vcmask 523264
    %8473 = vst.msk [vmem:[#allocation3] sm:$0xff] %vm8472, 0.0
    %8474 = vst.msk [vmem:[#allocation3 + $0x8] sm:$0xff] %vm8472, 0.0
    %8475 = vst.msk [vmem:[#allocation3 + $0x10] sm:$0xff] %vm8472, 0.0
    %8476 = vst.msk [vmem:[#allocation3 + $0x18] sm:$0xff] %vm8472, 0.0
    %8477 = vst.msk [vmem:[#allocation3 + $0x20] sm:$0xff] %vm8472, 0.0
    %8478 = vst.msk [vmem:[#allocation3 + $0x28] sm:$0xff] %vm8472, 0.0
    %8479 = vst.msk [vmem:[#allocation3 + $0x8] sm:$0xff] %vm8472, %v8468
    %8480 = vst.msk [vmem:[#allocation3 + $0x10] sm:$0xff] %vm8472, %v8469
    %8481 = vst.msk [vmem:[#allocation3 + $0x18] sm:$0xff] %vm8472, %v8470
    %8482 = vst.msk [vmem:[#allocation3 + $0x20] sm:$0xff] %vm8472, %v8471
    %v8483 = vshra.s32 %v50, 2
    %v8484 = vshra.s32 %v51, 2
    %v8485 = vshra.s32 %v52, 2
    %v8486 = vshra.s32 %v53, 2
    %v8487 = vand.u32 %v8483, 3
    %v8488 = vand.u32 %v8484, 3
    %v8489 = vand.u32 %v8485, 3
    %v8490 = vand.u32 %v8486, 3
    %v8491 = vand.u32 %v50, 3
    %v8492 = vand.u32 %v51, 3
    %v8493 = vand.u32 %v52, 3
    %v8494 = vand.u32 %v53, 3
    %vm8495 = vcmp.ge.s32.totalorder %v8487, 1
    %vm8496 = vcmp.ge.s32.totalorder %v8488, 1
    %vm8497 = vcmp.ge.s32.totalorder %v8489, 1
    %vm8498 = vcmp.ge.s32.totalorder %v8490, 1
    %v8499 = vsel %vm8495, 1, 0
    %v8500 = vsel %vm8496, 1, 0
    %v8501 = vsel %vm8497, 1, 0
    %v8502 = vsel %vm8498, 1, 0
    %v8503 = vcvt.s32.f32 %v8499
    %v8504 = vcvt.s32.f32 %v8500
    %v8505 = vcvt.s32.f32 %v8501
    %v8506 = vcvt.s32.f32 %v8502
    %vm8507 = vcmp.le.s32.totalorder %v8487, 2
    %vm8508 = vcmp.le.s32.totalorder %v8488, 2
    %vm8509 = vcmp.le.s32.totalorder %v8489, 2
    %vm8510 = vcmp.le.s32.totalorder %v8490, 2
    %v8511 = vsel %vm8507, 1, 0
    %v8512 = vsel %vm8508, 1, 0
    %v8513 = vsel %vm8509, 1, 0
    %v8514 = vsel %vm8510, 1, 0
    %v8515 = vcvt.s32.f32 %v8511
    %v8516 = vcvt.s32.f32 %v8512
    %v8517 = vcvt.s32.f32 %v8513
    %v8518 = vcvt.s32.f32 %v8514
    %vm8519 = vcmp.ge.s32.totalorder %v8491, 1
    %vm8520 = vcmp.ge.s32.totalorder %v8492, 1
    %vm8521 = vcmp.ge.s32.totalorder %v8493, 1
    %vm8522 = vcmp.ge.s32.totalorder %v8494, 1
    %v8523 = vsel %vm8519, 1, 0
    %v8524 = vsel %vm8520, 1, 0
    %v8525 = vsel %vm8521, 1, 0
    %v8526 = vsel %vm8522, 1, 0
    %v8527 = vcvt.s32.f32 %v8523
    %v8528 = vcvt.s32.f32 %v8524
    %v8529 = vcvt.s32.f32 %v8525
    %v8530 = vcvt.s32.f32 %v8526
    %vm8531 = vcmp.le.s32.totalorder %v8491, 2
    %vm8532 = vcmp.le.s32.totalorder %v8492, 2
    %vm8533 = vcmp.le.s32.totalorder %v8493, 2
    %vm8534 = vcmp.le.s32.totalorder %v8494, 2
    %v8535 = vsel %vm8531, 1, 0
    %v8536 = vsel %vm8532, 1, 0
    %v8537 = vsel %vm8533, 1, 0
    %v8538 = vsel %vm8534, 1, 0
    %v8539 = vcvt.s32.f32 %v8535
    %v8540 = vcvt.s32.f32 %v8536
    %v8541 = vcvt.s32.f32 %v8537
    %v8542 = vcvt.s32.f32 %v8538
    %v8543 = vld [vmem:[#allocation3 + $0x3] sm:$0xff]
    %v8544 = vld [vmem:[#allocation3 + $0xb] sm:$0xff]
    %v8545 = vld [vmem:[#allocation3 + $0x13] sm:$0xff]
    %v8546 = vld [vmem:[#allocation3 + $0x1b] sm:$0xff]
    %v8547 = vmul.f32 %v8503, %v8527
    %v8548 = vmul.f32 %v8504, %v8528
    %v8549 = vmul.f32 %v8505, %v8529
    %v8550 = vmul.f32 %v8506, %v8530
    %v8551 = vmul.f32 %v8543, %v8547
    %v8552 = vmul.f32 %v8544, %v8548
    %v8553 = vmul.f32 %v8545, %v8549
    %v8554 = vmul.f32 %v8546, %v8550
    %v8555 = vpack.c.bf16 %v8552, %v8551
    %v8556 = vpack.c.bf16 %v8554, %v8553
    %v8557 = vld [vmem:[%s7] sm:$0xf]
    %v8558 = vld [vmem:[%s7 + $0x4] sm:$0xf]
    %v8559 = vld [vmem:[%s7 + $0x8] sm:$0xf]
    %v8560 = vld [vmem:[%s7 + $0xc] sm:$0xf]
    %v8561 = vld [vmem:[%s7 + $0x10] sm:$0xf]
    %v8562 = vld [vmem:[%s7 + $0x14] sm:$0xf]
    %v8563 = vld [vmem:[%s7 + $0x18] sm:$0xf]
    %v8564 = vld [vmem:[%s7 + $0x1c] sm:$0xf]
    %v8565 = vld [vmem:[#allocation3 + $0x4] sm:$0xff]
    %v8566 = vld [vmem:[#allocation3 + $0xc] sm:$0xff]
    %v8567 = vld [vmem:[#allocation3 + $0x14] sm:$0xff]
    %v8568 = vld [vmem:[#allocation3 + $0x1c] sm:$0xff]
    %v8569 = vmul.f32 %v8565, %v8503
    %v8570 = vmul.f32 %v8566, %v8504
    %v8571 = vmul.f32 %v8567, %v8505
    %v8572 = vmul.f32 %v8568, %v8506
    %v8573 = vpack.c.bf16 %v8570, %v8569
    %v8574 = vpack.c.bf16 %v8572, %v8571
    %s8575 = scalar_lea.vmem %s7, 32
    %v8576 = vld [vmem:[%s8575] sm:$0xf]
    %v8577 = vld [vmem:[%s8575 + $0x4] sm:$0xf]
    %v8578 = vld [vmem:[%s8575 + $0x8] sm:$0xf]
    %v8579 = vld [vmem:[%s8575 + $0xc] sm:$0xf]
    %v8580 = vld [vmem:[%s8575 + $0x10] sm:$0xf]
    %v8581 = vld [vmem:[%s8575 + $0x14] sm:$0xf]
    %v8582 = vld [vmem:[%s8575 + $0x18] sm:$0xf]
    %v8583 = vld [vmem:[%s8575 + $0x1c] sm:$0xf]
    %v8592 = vunpack.c.l.b16 %v8576
    %v8593 = vunpack.c.l.b16 %v8577
    %v8594 = vunpack.c.l.b16 %v8578
    %v8595 = vunpack.c.l.b16 %v8579
    %v8596 = vunpack.c.l.b16 %v8580
    %v8597 = vunpack.c.l.b16 %v8581
    %v8598 = vunpack.c.l.b16 %v8582
    %v8599 = vunpack.c.l.b16 %v8583
    %v8600 = vpack.c.b16 %v8593, %v8592
    %v8601 = vpack.c.b16 %v8595, %v8594
    %v8602 = vpack.c.b16 %v8597, %v8596
    %v8603 = vpack.c.b16 %v8599, %v8598
    %v8609 = vsel %vm8472, %v8573, 0
    %v8612 = vsel %vm8472, %v8574, 0
    %8614 = vmatpush.bf16.msra.mxu0 0
    %8615 = vmatpush.bf16.msra.mxu0 0
    %8616 = vmatpush.bf16.msra.mxu0 0
    %8617 = vmatpush.bf16.msra.mxu0 0
    %8618 = vmatpush.bf16.msra.mxu0 %v8603
    %8619 = vmatpush.bf16.msra.mxu0 %v8602
    %8620 = vmatpush.bf16.msra.mxu0 %v8601
    %8621 = vmatpush.bf16.msra.mxu0 %v8600
    %8622 = vmatmul.bf16.gmra.mxu0 %v8609
    %v8623 = vpop.f32.mrf.mxu0
    %v8624 = vadd.f32 0.0, %v8623
    %v8625 = vpop.f32.mrf.mxu0
    %v8626 = vadd.f32 0.0, %v8625
    %8627 = vmatmul.bf16.gmra.mxu0 %v8612
    %v8628 = vpop.f32.mrf.mxu0
    %v8629 = vadd.f32 0.0, %v8628
    %v8630 = vpop.f32.mrf.mxu0
    %v8631 = vadd.f32 0.0, %v8630
    %8632 = vdwg.mxu0
    %v8641 = vunpack.c.l.b16 %v8557
    %v8642 = vunpack.c.l.b16 %v8558
    %v8643 = vunpack.c.l.b16 %v8559
    %v8644 = vunpack.c.l.b16 %v8560
    %v8645 = vunpack.c.l.b16 %v8561
    %v8646 = vunpack.c.l.b16 %v8562
    %v8647 = vunpack.c.l.b16 %v8563
    %v8648 = vunpack.c.l.b16 %v8564
    %v8649 = vpack.c.b16 %v8642, %v8641
    %v8650 = vpack.c.b16 %v8644, %v8643
    %v8651 = vpack.c.b16 %v8646, %v8645
    %v8652 = vpack.c.b16 %v8648, %v8647
    %v8658 = vsel %vm8472, %v8555, 0
    %v8661 = vsel %vm8472, %v8556, 0
    %8663 = vmatpush.bf16.msra.mxu0 0
    %8664 = vmatpush.bf16.msra.mxu0 0
    %8665 = vmatpush.bf16.msra.mxu0 0
    %8666 = vmatpush.bf16.msra.mxu0 0
    %8667 = vmatpush.bf16.msra.mxu0 %v8652
    %8668 = vmatpush.bf16.msra.mxu0 %v8651
    %8669 = vmatpush.bf16.msra.mxu0 %v8650
    %8670 = vmatpush.bf16.msra.mxu0 %v8649
    %8671 = vmatmul.bf16.gmra.mxu0 %v8658
    %v8672 = vpop.f32.mrf.mxu0
    %v8673 = vadd.f32 %v8624, %v8672
    %v8674 = vpop.f32.mrf.mxu0
    %v8675 = vadd.f32 %v8626, %v8674
    %8676 = vmatmul.bf16.gmra.mxu0 %v8661
    %v8677 = vpop.f32.mrf.mxu0
    %v8678 = vadd.f32 %v8629, %v8677
    %v8679 = vpop.f32.mrf.mxu0
    %v8680 = vadd.f32 %v8631, %v8679
    %8681 = vdwg.mxu0
    %v8682 = vld [vmem:[#allocation3 + $0x5] sm:$0xff]
    %v8683 = vld [vmem:[#allocation3 + $0xd] sm:$0xff]
    %v8684 = vld [vmem:[#allocation3 + $0x15] sm:$0xff]
    %v8685 = vld [vmem:[#allocation3 + $0x1d] sm:$0xff]
    %v8686 = vmul.f32 %v8503, %v8539
    %v8687 = vmul.f32 %v8504, %v8540
    %v8688 = vmul.f32 %v8505, %v8541
    %v8689 = vmul.f32 %v8506, %v8542
    %v8690 = vmul.f32 %v8682, %v8686
    %v8691 = vmul.f32 %v8683, %v8687
    %v8692 = vmul.f32 %v8684, %v8688
    %v8693 = vmul.f32 %v8685, %v8689
    %v8694 = vpack.c.bf16 %v8691, %v8690
    %v8695 = vpack.c.bf16 %v8693, %v8692
    %s8696 = scalar_lea.vmem %s7, 64
    %v8697 = vld [vmem:[%s8696] sm:$0xf]
    %v8698 = vld [vmem:[%s8696 + $0x4] sm:$0xf]
    %v8699 = vld [vmem:[%s8696 + $0x8] sm:$0xf]
    %v8700 = vld [vmem:[%s8696 + $0xc] sm:$0xf]
    %v8701 = vld [vmem:[%s8696 + $0x10] sm:$0xf]
    %v8702 = vld [vmem:[%s8696 + $0x14] sm:$0xf]
    %v8703 = vld [vmem:[%s8696 + $0x18] sm:$0xf]
    %v8704 = vld [vmem:[%s8696 + $0x1c] sm:$0xf]
    %v8713 = vunpack.c.l.b16 %v8697
    %v8714 = vunpack.c.l.b16 %v8698
    %v8715 = vunpack.c.l.b16 %v8699
    %v8716 = vunpack.c.l.b16 %v8700
    %v8717 = vunpack.c.l.b16 %v8701
    %v8718 = vunpack.c.l.b16 %v8702
    %v8719 = vunpack.c.l.b16 %v8703
    %v8720 = vunpack.c.l.b16 %v8704
    %v8721 = vpack.c.b16 %v8714, %v8713
    %v8722 = vpack.c.b16 %v8716, %v8715
    %v8723 = vpack.c.b16 %v8718, %v8717
    %v8724 = vpack.c.b16 %v8720, %v8719
    %v8730 = vsel %vm8472, %v8694, 0
    %v8733 = vsel %vm8472, %v8695, 0
    %8735 = vmatpush.bf16.msra.mxu0 0
    %8736 = vmatpush.bf16.msra.mxu0 0
    %8737 = vmatpush.bf16.msra.mxu0 0
    %8738 = vmatpush.bf16.msra.mxu0 0
    %8739 = vmatpush.bf16.msra.mxu0 %v8724
    %8740 = vmatpush.bf16.msra.mxu0 %v8723
    %8741 = vmatpush.bf16.msra.mxu0 %v8722
    %8742 = vmatpush.bf16.msra.mxu0 %v8721
    %8743 = vmatmul.bf16.gmra.mxu0 %v8730
    %v8744 = vpop.f32.mrf.mxu0
    %v8745 = vadd.f32 0.0, %v8744
    %v8746 = vpop.f32.mrf.mxu0
    %v8747 = vadd.f32 0.0, %v8746
    %8748 = vmatmul.bf16.gmra.mxu0 %v8733
    %v8749 = vpop.f32.mrf.mxu0
    %v8750 = vadd.f32 0.0, %v8749
    %v8751 = vpop.f32.mrf.mxu0
    %v8752 = vadd.f32 0.0, %v8751
    %8753 = vdwg.mxu0
    %v8754 = vadd.f32 %v8673, %v8745
    %v8755 = vadd.f32 %v8675, %v8747
    %v8756 = vadd.f32 %v8678, %v8750
    %v8757 = vadd.f32 %v8680, %v8752
    %v8758 = vld [vmem:[#allocation3 + $0x7] sm:$0xff]
    %v8759 = vld [vmem:[#allocation3 + $0xf] sm:$0xff]
    %v8760 = vld [vmem:[#allocation3 + $0x17] sm:$0xff]
    %v8761 = vld [vmem:[#allocation3 + $0x1f] sm:$0xff]
    %v8762 = vmul.f32 %v8758, %v8527
    %v8763 = vmul.f32 %v8759, %v8528
    %v8764 = vmul.f32 %v8760, %v8529
    %v8765 = vmul.f32 %v8761, %v8530
    %v8766 = vpack.c.bf16 %v8763, %v8762
    %v8767 = vpack.c.bf16 %v8765, %v8764
    %s8768 = scalar_lea.vmem %s7, 96
    %v8769 = vld [vmem:[%s8768] sm:$0xf]
    %v8770 = vld [vmem:[%s8768 + $0x4] sm:$0xf]
    %v8771 = vld [vmem:[%s8768 + $0x8] sm:$0xf]
    %v8772 = vld [vmem:[%s8768 + $0xc] sm:$0xf]
    %v8773 = vld [vmem:[%s8768 + $0x10] sm:$0xf]
    %v8774 = vld [vmem:[%s8768 + $0x14] sm:$0xf]
    %v8775 = vld [vmem:[%s8768 + $0x18] sm:$0xf]
    %v8776 = vld [vmem:[%s8768 + $0x1c] sm:$0xf]
    %v8785 = vunpack.c.l.b16 %v8769
    %v8786 = vunpack.c.l.b16 %v8770
    %v8787 = vunpack.c.l.b16 %v8771
    %v8788 = vunpack.c.l.b16 %v8772
    %v8789 = vunpack.c.l.b16 %v8773
    %v8790 = vunpack.c.l.b16 %v8774
    %v8791 = vunpack.c.l.b16 %v8775
    %v8792 = vunpack.c.l.b16 %v8776
    %v8793 = vpack.c.b16 %v8786, %v8785
    %v8794 = vpack.c.b16 %v8788, %v8787
    %v8795 = vpack.c.b16 %v8790, %v8789
    %v8796 = vpack.c.b16 %v8792, %v8791
    %v8802 = vsel %vm8472, %v8766, 0
    %v8805 = vsel %vm8472, %v8767, 0
    %8807 = vmatpush.bf16.msra.mxu0 0
    %8808 = vmatpush.bf16.msra.mxu0 0
    %8809 = vmatpush.bf16.msra.mxu0 0
    %8810 = vmatpush.bf16.msra.mxu0 0
    %8811 = vmatpush.bf16.msra.mxu0 %v8796
    %8812 = vmatpush.bf16.msra.mxu0 %v8795
    %8813 = vmatpush.bf16.msra.mxu0 %v8794
    %8814 = vmatpush.bf16.msra.mxu0 %v8793
    %8815 = vmatmul.bf16.gmra.mxu0 %v8802
    %v8816 = vpop.f32.mrf.mxu0
    %v8817 = vadd.f32 0.0, %v8816
    %v8818 = vpop.f32.mrf.mxu0
    %v8819 = vadd.f32 0.0, %v8818
    %8820 = vmatmul.bf16.gmra.mxu0 %v8805
    %v8821 = vpop.f32.mrf.mxu0
    %v8822 = vadd.f32 0.0, %v8821
    %v8823 = vpop.f32.mrf.mxu0
    %v8824 = vadd.f32 0.0, %v8823
    %8825 = vdwg.mxu0
    %v8826 = vadd.f32 %v8754, %v8817
    %v8827 = vadd.f32 %v8755, %v8819
    %v8828 = vadd.f32 %v8756, %v8822
    %v8829 = vadd.f32 %v8757, %v8824
    %v8830 = vld [vmem:[#allocation3 + $0x8] sm:$0xff]
    %v8831 = vld [vmem:[#allocation3 + $0x10] sm:$0xff]
    %v8832 = vld [vmem:[#allocation3 + $0x18] sm:$0xff]
    %v8833 = vld [vmem:[#allocation3 + $0x20] sm:$0xff]
    %v8834 = vpack.c.bf16 %v8831, %v8830
    %v8835 = vpack.c.bf16 %v8833, %v8832
    %s8836 = scalar_lea.vmem %s7, 128
    %v8837 = vld [vmem:[%s8836] sm:$0xf]
    %v8838 = vld [vmem:[%s8836 + $0x4] sm:$0xf]
    %v8839 = vld [vmem:[%s8836 + $0x8] sm:$0xf]
    %v8840 = vld [vmem:[%s8836 + $0xc] sm:$0xf]
    %v8841 = vld [vmem:[%s8836 + $0x10] sm:$0xf]
    %v8842 = vld [vmem:[%s8836 + $0x14] sm:$0xf]
    %v8843 = vld [vmem:[%s8836 + $0x18] sm:$0xf]
    %v8844 = vld [vmem:[%s8836 + $0x1c] sm:$0xf]
    %v8853 = vunpack.c.l.b16 %v8837
    %v8854 = vunpack.c.l.b16 %v8838
    %v8855 = vunpack.c.l.b16 %v8839
    %v8856 = vunpack.c.l.b16 %v8840
    %v8857 = vunpack.c.l.b16 %v8841
    %v8858 = vunpack.c.l.b16 %v8842
    %v8859 = vunpack.c.l.b16 %v8843
    %v8860 = vunpack.c.l.b16 %v8844
    %v8861 = vpack.c.b16 %v8854, %v8853
    %v8862 = vpack.c.b16 %v8856, %v8855
    %v8863 = vpack.c.b16 %v8858, %v8857
    %v8864 = vpack.c.b16 %v8860, %v8859
    %v8870 = vsel %vm8472, %v8834, 0
    %v8873 = vsel %vm8472, %v8835, 0
    %8875 = vmatpush.bf16.msra.mxu0 0
    %8876 = vmatpush.bf16.msra.mxu0 0
    %8877 = vmatpush.bf16.msra.mxu0 0
    %8878 = vmatpush.bf16.msra.mxu0 0
    %8879 = vmatpush.bf16.msra.mxu0 %v8864
    %8880 = vmatpush.bf16.msra.mxu0 %v8863
    %8881 = vmatpush.bf16.msra.mxu0 %v8862
    %8882 = vmatpush.bf16.msra.mxu0 %v8861
    %8883 = vmatmul.bf16.gmra.mxu0 %v8870
    %v8884 = vpop.f32.mrf.mxu0
    %v8885 = vadd.f32 0.0, %v8884
    %v8886 = vpop.f32.mrf.mxu0
    %v8887 = vadd.f32 0.0, %v8886
    %8888 = vmatmul.bf16.gmra.mxu0 %v8873
    %v8889 = vpop.f32.mrf.mxu0
    %v8890 = vadd.f32 0.0, %v8889
    %v8891 = vpop.f32.mrf.mxu0
    %v8892 = vadd.f32 0.0, %v8891
    %8893 = vdwg.mxu0
    %v8894 = vadd.f32 %v8826, %v8885
    %v8895 = vadd.f32 %v8827, %v8887
    %v8896 = vadd.f32 %v8828, %v8890
    %v8897 = vadd.f32 %v8829, %v8892
    %v8898 = vld [vmem:[#allocation3 + $0x9] sm:$0xff]
    %v8899 = vld [vmem:[#allocation3 + $0x11] sm:$0xff]
    %v8900 = vld [vmem:[#allocation3 + $0x19] sm:$0xff]
    %v8901 = vld [vmem:[#allocation3 + $0x21] sm:$0xff]
    %v8902 = vmul.f32 %v8898, %v8539
    %v8903 = vmul.f32 %v8899, %v8540
    %v8904 = vmul.f32 %v8900, %v8541
    %v8905 = vmul.f32 %v8901, %v8542
    %v8906 = vpack.c.bf16 %v8903, %v8902
    %v8907 = vpack.c.bf16 %v8905, %v8904
    %s8908 = scalar_lea.vmem %s7, 160
    %v8909 = vld [vmem:[%s8908] sm:$0xf]
    %v8910 = vld [vmem:[%s8908 + $0x4] sm:$0xf]
    %v8911 = vld [vmem:[%s8908 + $0x8] sm:$0xf]
    %v8912 = vld [vmem:[%s8908 + $0xc] sm:$0xf]
    %v8913 = vld [vmem:[%s8908 + $0x10] sm:$0xf]
    %v8914 = vld [vmem:[%s8908 + $0x14] sm:$0xf]
    %v8915 = vld [vmem:[%s8908 + $0x18] sm:$0xf]
    %v8916 = vld [vmem:[%s8908 + $0x1c] sm:$0xf]
    %v8925 = vunpack.c.l.b16 %v8909
    %v8926 = vunpack.c.l.b16 %v8910
    %v8927 = vunpack.c.l.b16 %v8911
    %v8928 = vunpack.c.l.b16 %v8912
    %v8929 = vunpack.c.l.b16 %v8913
    %v8930 = vunpack.c.l.b16 %v8914
    %v8931 = vunpack.c.l.b16 %v8915
    %v8932 = vunpack.c.l.b16 %v8916
    %v8933 = vpack.c.b16 %v8926, %v8925
    %v8934 = vpack.c.b16 %v8928, %v8927
    %v8935 = vpack.c.b16 %v8930, %v8929
    %v8936 = vpack.c.b16 %v8932, %v8931
    %v8942 = vsel %vm8472, %v8906, 0
    %v8945 = vsel %vm8472, %v8907, 0
    %8947 = vmatpush.bf16.msra.mxu0 0
    %8948 = vmatpush.bf16.msra.mxu0 0
    %8949 = vmatpush.bf16.msra.mxu0 0
    %8950 = vmatpush.bf16.msra.mxu0 0
    %8951 = vmatpush.bf16.msra.mxu0 %v8936
    %8952 = vmatpush.bf16.msra.mxu0 %v8935
    %8953 = vmatpush.bf16.msra.mxu0 %v8934
    %8954 = vmatpush.bf16.msra.mxu0 %v8933
    %8955 = vmatmul.bf16.gmra.mxu0 %v8942
    %v8956 = vpop.f32.mrf.mxu0
    %v8957 = vadd.f32 0.0, %v8956
    %v8958 = vpop.f32.mrf.mxu0
    %v8959 = vadd.f32 0.0, %v8958
    %8960 = vmatmul.bf16.gmra.mxu0 %v8945
    %v8961 = vpop.f32.mrf.mxu0
    %v8962 = vadd.f32 0.0, %v8961
    %v8963 = vpop.f32.mrf.mxu0
    %v8964 = vadd.f32 0.0, %v8963
    %8965 = vdwg.mxu0
    %v8966 = vadd.f32 %v8894, %v8957
    %v8967 = vadd.f32 %v8895, %v8959
    %v8968 = vadd.f32 %v8896, %v8962
    %v8969 = vadd.f32 %v8897, %v8964
    %v8970 = vld [vmem:[#allocation3 + $0xb] sm:$0xff]
    %v8971 = vld [vmem:[#allocation3 + $0x13] sm:$0xff]
    %v8972 = vld [vmem:[#allocation3 + $0x1b] sm:$0xff]
    %v8973 = vld [vmem:[#allocation3 + $0x23] sm:$0xff]
    %v8974 = vmul.f32 %v8515, %v8527
    %v8975 = vmul.f32 %v8516, %v8528
    %v8976 = vmul.f32 %v8517, %v8529
    %v8977 = vmul.f32 %v8518, %v8530
    %v8978 = vmul.f32 %v8970, %v8974
    %v8979 = vmul.f32 %v8971, %v8975
    %v8980 = vmul.f32 %v8972, %v8976
    %v8981 = vmul.f32 %v8973, %v8977
    %v8982 = vpack.c.bf16 %v8979, %v8978
    %v8983 = vpack.c.bf16 %v8981, %v8980
    %s8984 = scalar_lea.vmem %s7, 192
    %v8985 = vld [vmem:[%s8984] sm:$0xf]
    %v8986 = vld [vmem:[%s8984 + $0x4] sm:$0xf]
    %v8987 = vld [vmem:[%s8984 + $0x8] sm:$0xf]
    %v8988 = vld [vmem:[%s8984 + $0xc] sm:$0xf]
    %v8989 = vld [vmem:[%s8984 + $0x10] sm:$0xf]
    %v8990 = vld [vmem:[%s8984 + $0x14] sm:$0xf]
    %v8991 = vld [vmem:[%s8984 + $0x18] sm:$0xf]
    %v8992 = vld [vmem:[%s8984 + $0x1c] sm:$0xf]
    %v9001 = vunpack.c.l.b16 %v8985
    %v9002 = vunpack.c.l.b16 %v8986
    %v9003 = vunpack.c.l.b16 %v8987
    %v9004 = vunpack.c.l.b16 %v8988
    %v9005 = vunpack.c.l.b16 %v8989
    %v9006 = vunpack.c.l.b16 %v8990
    %v9007 = vunpack.c.l.b16 %v8991
    %v9008 = vunpack.c.l.b16 %v8992
    %v9009 = vpack.c.b16 %v9002, %v9001
    %v9010 = vpack.c.b16 %v9004, %v9003
    %v9011 = vpack.c.b16 %v9006, %v9005
    %v9012 = vpack.c.b16 %v9008, %v9007
    %v9018 = vsel %vm8472, %v8982, 0
    %v9021 = vsel %vm8472, %v8983, 0
    %9023 = vmatpush.bf16.msra.mxu0 0
    %9024 = vmatpush.bf16.msra.mxu0 0
    %9025 = vmatpush.bf16.msra.mxu0 0
    %9026 = vmatpush.bf16.msra.mxu0 0
    %9027 = vmatpush.bf16.msra.mxu0 %v9012
    %9028 = vmatpush.bf16.msra.mxu0 %v9011
    %9029 = vmatpush.bf16.msra.mxu0 %v9010
    %9030 = vmatpush.bf16.msra.mxu0 %v9009
    %9031 = vmatmul.bf16.gmra.mxu0 %v9018
    %v9032 = vpop.f32.mrf.mxu0
    %v9033 = vadd.f32 0.0, %v9032
    %v9034 = vpop.f32.mrf.mxu0
    %v9035 = vadd.f32 0.0, %v9034
    %9036 = vmatmul.bf16.gmra.mxu0 %v9021
    %v9037 = vpop.f32.mrf.mxu0
    %v9038 = vadd.f32 0.0, %v9037
    %v9039 = vpop.f32.mrf.mxu0
    %v9040 = vadd.f32 0.0, %v9039
    %9041 = vdwg.mxu0
    %v9042 = vadd.f32 %v8966, %v9033
    %v9043 = vadd.f32 %v8967, %v9035
    %v9044 = vadd.f32 %v8968, %v9038
    %v9045 = vadd.f32 %v8969, %v9040
    %v9046 = vld [vmem:[#allocation3 + $0xc] sm:$0xff]
    %v9047 = vld [vmem:[#allocation3 + $0x14] sm:$0xff]
    %v9048 = vld [vmem:[#allocation3 + $0x1c] sm:$0xff]
    %v9049 = vld [vmem:[#allocation3 + $0x24] sm:$0xff]
    %v9050 = vmul.f32 %v9046, %v8515
    %v9051 = vmul.f32 %v9047, %v8516
    %v9052 = vmul.f32 %v9048, %v8517
    %v9053 = vmul.f32 %v9049, %v8518
    %v9054 = vpack.c.bf16 %v9051, %v9050
    %v9055 = vpack.c.bf16 %v9053, %v9052
    %s9056 = scalar_lea.vmem %s7, 224
    %v9057 = vld [vmem:[%s9056] sm:$0xf]
    %v9058 = vld [vmem:[%s9056 + $0x4] sm:$0xf]
    %v9059 = vld [vmem:[%s9056 + $0x8] sm:$0xf]
    %v9060 = vld [vmem:[%s9056 + $0xc] sm:$0xf]
    %v9061 = vld [vmem:[%s9056 + $0x10] sm:$0xf]
    %v9062 = vld [vmem:[%s9056 + $0x14] sm:$0xf]
    %v9063 = vld [vmem:[%s9056 + $0x18] sm:$0xf]
    %v9064 = vld [vmem:[%s9056 + $0x1c] sm:$0xf]
    %v9073 = vunpack.c.l.b16 %v9057
    %v9074 = vunpack.c.l.b16 %v9058
    %v9075 = vunpack.c.l.b16 %v9059
    %v9076 = vunpack.c.l.b16 %v9060
    %v9077 = vunpack.c.l.b16 %v9061
    %v9078 = vunpack.c.l.b16 %v9062
    %v9079 = vunpack.c.l.b16 %v9063
    %v9080 = vunpack.c.l.b16 %v9064
    %v9081 = vpack.c.b16 %v9074, %v9073
    %v9082 = vpack.c.b16 %v9076, %v9075
    %v9083 = vpack.c.b16 %v9078, %v9077
    %v9084 = vpack.c.b16 %v9080, %v9079
    %v9090 = vsel %vm8472, %v9054, 0
    %v9093 = vsel %vm8472, %v9055, 0
    %9095 = vmatpush.bf16.msra.mxu0 0
    %9096 = vmatpush.bf16.msra.mxu0 0
    %9097 = vmatpush.bf16.msra.mxu0 0
    %9098 = vmatpush.bf16.msra.mxu0 0
    %9099 = vmatpush.bf16.msra.mxu0 %v9084
    %9100 = vmatpush.bf16.msra.mxu0 %v9083
    %9101 = vmatpush.bf16.msra.mxu0 %v9082
    %9102 = vmatpush.bf16.msra.mxu0 %v9081
    %9103 = vmatmul.bf16.gmra.mxu0 %v9090
    %v9104 = vpop.f32.mrf.mxu0
    %v9105 = vadd.f32 0.0, %v9104
    %v9106 = vpop.f32.mrf.mxu0
    %v9107 = vadd.f32 0.0, %v9106
    %9108 = vmatmul.bf16.gmra.mxu0 %v9093
    %v9109 = vpop.f32.mrf.mxu0
    %v9110 = vadd.f32 0.0, %v9109
    %v9111 = vpop.f32.mrf.mxu0
    %v9112 = vadd.f32 0.0, %v9111
    %9113 = vdwg.mxu0
    %v9114 = vadd.f32 %v9042, %v9105
    %v9115 = vadd.f32 %v9043, %v9107
    %v9116 = vadd.f32 %v9044, %v9110
    %v9117 = vadd.f32 %v9045, %v9112
    %v9118 = vld [vmem:[#allocation3 + $0xd] sm:$0xff]
    %v9119 = vld [vmem:[#allocation3 + $0x15] sm:$0xff]
    %v9120 = vld [vmem:[#allocation3 + $0x1d] sm:$0xff]
    %v9121 = vld [vmem:[#allocation3 + $0x25] sm:$0xff]
    %v9122 = vmul.f32 %v8515, %v8539
    %v9123 = vmul.f32 %v8516, %v8540
    %v9124 = vmul.f32 %v8517, %v8541
    %v9125 = vmul.f32 %v8518, %v8542
    %v9126 = vmul.f32 %v9118, %v9122
    %v9127 = vmul.f32 %v9119, %v9123
    %v9128 = vmul.f32 %v9120, %v9124
    %v9129 = vmul.f32 %v9121, %v9125
    %v9130 = vpack.c.bf16 %v9127, %v9126
    %v9131 = vpack.c.bf16 %v9129, %v9128
    %s9132 = scalar_lea.vmem %s7, 256
    %v9133 = vld [vmem:[%s9132] sm:$0xf]
    %v9134 = vld [vmem:[%s9132 + $0x4] sm:$0xf]
    %v9135 = vld [vmem:[%s9132 + $0x8] sm:$0xf]
    %v9136 = vld [vmem:[%s9132 + $0xc] sm:$0xf]
    %v9137 = vld [vmem:[%s9132 + $0x10] sm:$0xf]
    %v9138 = vld [vmem:[%s9132 + $0x14] sm:$0xf]
    %v9139 = vld [vmem:[%s9132 + $0x18] sm:$0xf]
    %v9140 = vld [vmem:[%s9132 + $0x1c] sm:$0xf]
    %v9149 = vunpack.c.l.b16 %v9133
    %v9150 = vunpack.c.l.b16 %v9134
    %v9151 = vunpack.c.l.b16 %v9135
    %v9152 = vunpack.c.l.b16 %v9136
    %v9153 = vunpack.c.l.b16 %v9137
    %v9154 = vunpack.c.l.b16 %v9138
    %v9155 = vunpack.c.l.b16 %v9139
    %v9156 = vunpack.c.l.b16 %v9140
    %v9157 = vpack.c.b16 %v9150, %v9149
    %v9158 = vpack.c.b16 %v9152, %v9151
    %v9159 = vpack.c.b16 %v9154, %v9153
    %v9160 = vpack.c.b16 %v9156, %v9155
    %v9166 = vsel %vm8472, %v9130, 0
    %v9169 = vsel %vm8472, %v9131, 0
    %9171 = vmatpush.bf16.msra.mxu0 0
    %9172 = vmatpush.bf16.msra.mxu0 0
    %9173 = vmatpush.bf16.msra.mxu0 0
    %9174 = vmatpush.bf16.msra.mxu0 0
    %9175 = vmatpush.bf16.msra.mxu0 %v9160
    %9176 = vmatpush.bf16.msra.mxu0 %v9159
    %9177 = vmatpush.bf16.msra.mxu0 %v9158
    %9178 = vmatpush.bf16.msra.mxu0 %v9157
    %9179 = vmatmul.bf16.gmra.mxu0 %v9166
    %v9180 = vpop.f32.mrf.mxu0
    %v9181 = vadd.f32 0.0, %v9180
    %v9182 = vpop.f32.mrf.mxu0
    %v9183 = vadd.f32 0.0, %v9182
    %9184 = vmatmul.bf16.gmra.mxu0 %v9169
    %v9185 = vpop.f32.mrf.mxu0
    %v9186 = vadd.f32 0.0, %v9185
    %v9187 = vpop.f32.mrf.mxu0
    %v9188 = vadd.f32 0.0, %v9187
    %9189 = vdwg.mxu0
    %v9190 = vadd.f32 %v9114, %v9181
    %v9191 = vadd.f32 %v9115, %v9183
    %v9192 = vadd.f32 %v9116, %v9186
    %v9193 = vadd.f32 %v9117, %v9188
    %v9194 = vld [vmem:[%s9] sm:$0xff]
    %v9195 = vld [vmem:[%s9 + $0x8] sm:$0xff]
    %v9196 = vld [vmem:[%s9 + $0x10] sm:$0xff]
    %v9197 = vld [vmem:[%s9 + $0x18] sm:$0xff]
    %v9199 = vsel %vm6761, %v9194, 0
    %v9202 = vsel %vm6761, %v9195, 0
    %v9205 = vsel %vm6761, %v9196, 0
    %v9208 = vsel %vm6761, %v9197, 0
    %9210 = vmatpush.msra.mxu0 0.0
    %9211 = vmatpush.msra.mxu0 0.0
    %9212 = vmatpush.msra.mxu0 0.0
    %9213 = vmatpush.msra.mxu0 0.0
    %9214 = vmatpush.msra.mxu0 0.0
    %9215 = vmatpush.msra.mxu0 0.0
    %9216 = vmatpush.msra.mxu0 0.0
    %9217 = vmatpush.msra.mxu0 0.0
    %9218 = vmatpush.msra.mxu0 0.0
    %9219 = vmatpush.msra.mxu0 0.0
    %9220 = vmatpush.msra.mxu0 0.0
    %9221 = vmatpush.msra.mxu0 0.0
    %9222 = vmatpush.msra.mxu0 %v9193
    %9223 = vmatpush.msra.mxu0 %v9192
    %9224 = vmatpush.msra.mxu0 %v9191
    %9225 = vmatpush.msra.mxu0 %v9190
    %9226 = vmatmul.f32.gmra.mxu0 %v9199
    %v9227 = vpop.f32.mrf.mxu0
    %v9228 = vadd.f32 0.0, %v9227
    %9229 = vmatmul.f32.gmra.mxu0 %v9202
    %v9230 = vpop.f32.mrf.mxu0
    %v9231 = vadd.f32 0.0, %v9230
    %9232 = vmatmul.f32.gmra.mxu0 %v9205
    %v9233 = vpop.f32.mrf.mxu0
    %v9234 = vadd.f32 0.0, %v9233
    %9235 = vmatmul.f32.gmra.mxu0 %v9208
    %v9236 = vpop.f32.mrf.mxu0
    %v9237 = vadd.f32 0.0, %v9236
    %9238 = vdwg.mxu0
    %v9239 = vmax.f32 %v9228, %v9231
    %v9240 = vmax.f32 %v9234, %v9237
    %v9241 = vmax.f32 %v9239, %v9240
    %v9242 = vld [vmem:[%s8] sm:$0x1]
    %v9244 = vperm.slane %v9242, 0
    %v9246 = vadd.f32 %v9241, %v9244
    %v9247 = vmax.f32 %v9246, 0.0
    %9248 = vst [vmem:[#allocation4] sm:$0xff] %v9247
    %v9249 = vld [vmem:[#allocation4] sm:$0x3]
    %v9250 = vpack.c.bf16 %v9249, %v9249
    %v9251 = vld [vmem:[%s10] sm:$0xff]
    %v9252 = vld [vmem:[%s10 + $0x8] sm:$0xff]
    %v9253 = vld [vmem:[%s10 + $0x10] sm:$0xff]
    %v9254 = vld [vmem:[%s10 + $0x18] sm:$0xff]
    %v9255 = vld [vmem:[%s10 + $0x20] sm:$0xff]
    %v9256 = vld [vmem:[%s10 + $0x28] sm:$0xff]
    %v9257 = vld [vmem:[%s10 + $0x30] sm:$0xff]
    %v9258 = vld [vmem:[%s10 + $0x38] sm:$0xff]
    %v9259 = vld [vmem:[%s10 + $0x40] sm:$0xff]
    %v9260 = vld [vmem:[%s10 + $0x48] sm:$0xff]
    %v9261 = vld [vmem:[%s10 + $0x50] sm:$0xff]
    %v9262 = vld [vmem:[%s10 + $0x58] sm:$0xff]
    %v9263 = vld [vmem:[%s10 + $0x60] sm:$0xff]
    %v9264 = vld [vmem:[%s10 + $0x68] sm:$0xff]
    %v9265 = vld [vmem:[%s10 + $0x70] sm:$0xff]
    %v9266 = vld [vmem:[%s10 + $0x78] sm:$0xff]
    %v9267 = vld [vmem:[#allocation4 + $0x2] sm:$0x3]
    %v9268 = vpack.c.bf16 %v9267, %v9267
    %s9269 = scalar_lea.vmem %s10, 128
    %v9270 = vld [vmem:[%s9269] sm:$0xff]
    %v9271 = vld [vmem:[%s9269 + $0x8] sm:$0xff]
    %v9272 = vld [vmem:[%s9269 + $0x10] sm:$0xff]
    %v9273 = vld [vmem:[%s9269 + $0x18] sm:$0xff]
    %v9274 = vld [vmem:[%s9269 + $0x20] sm:$0xff]
    %v9275 = vld [vmem:[%s9269 + $0x28] sm:$0xff]
    %v9276 = vld [vmem:[%s9269 + $0x30] sm:$0xff]
    %v9277 = vld [vmem:[%s9269 + $0x38] sm:$0xff]
    %v9278 = vld [vmem:[%s9269 + $0x40] sm:$0xff]
    %v9279 = vld [vmem:[%s9269 + $0x48] sm:$0xff]
    %v9280 = vld [vmem:[%s9269 + $0x50] sm:$0xff]
    %v9281 = vld [vmem:[%s9269 + $0x58] sm:$0xff]
    %v9282 = vld [vmem:[%s9269 + $0x60] sm:$0xff]
    %v9283 = vld [vmem:[%s9269 + $0x68] sm:$0xff]
    %v9284 = vld [vmem:[%s9269 + $0x70] sm:$0xff]
    %v9285 = vld [vmem:[%s9269 + $0x78] sm:$0xff]
    %v9302 = vunpack.c.l.b16 %v9270
    %v9303 = vunpack.c.h.b16 %v9270
    %v9304 = vunpack.c.l.b16 %v9271
    %v9305 = vunpack.c.h.b16 %v9271
    %v9306 = vunpack.c.l.b16 %v9272
    %v9307 = vunpack.c.h.b16 %v9272
    %v9308 = vunpack.c.l.b16 %v9273
    %v9309 = vunpack.c.h.b16 %v9273
    %v9310 = vunpack.c.l.b16 %v9274
    %v9311 = vunpack.c.h.b16 %v9274
    %v9312 = vunpack.c.l.b16 %v9275
    %v9313 = vunpack.c.h.b16 %v9275
    %v9314 = vunpack.c.l.b16 %v9276
    %v9315 = vunpack.c.h.b16 %v9276
    %v9316 = vunpack.c.l.b16 %v9277
    %v9317 = vunpack.c.h.b16 %v9277
    %v9318 = vunpack.c.l.b16 %v9278
    %v9319 = vunpack.c.h.b16 %v9278
    %v9320 = vunpack.c.l.b16 %v9279
    %v9321 = vunpack.c.h.b16 %v9279
    %v9322 = vunpack.c.l.b16 %v9280
    %v9323 = vunpack.c.h.b16 %v9280
    %v9324 = vunpack.c.l.b16 %v9281
    %v9325 = vunpack.c.h.b16 %v9281
    %v9326 = vunpack.c.l.b16 %v9282
    %v9327 = vunpack.c.h.b16 %v9282
    %v9328 = vunpack.c.l.b16 %v9283
    %v9329 = vunpack.c.h.b16 %v9283
    %v9330 = vunpack.c.l.b16 %v9284
    %v9331 = vunpack.c.h.b16 %v9284
    %v9332 = vunpack.c.l.b16 %v9285
    %v9333 = vunpack.c.h.b16 %v9285
    %v9334 = vpack.c.b16 %v9304, %v9302
    %v9335 = vpack.c.b16 %v9305, %v9303
    %v9336 = vpack.c.b16 %v9308, %v9306
    %v9337 = vpack.c.b16 %v9309, %v9307
    %v9338 = vpack.c.b16 %v9312, %v9310
    %v9339 = vpack.c.b16 %v9313, %v9311
    %v9340 = vpack.c.b16 %v9316, %v9314
    %v9341 = vpack.c.b16 %v9317, %v9315
    %v9342 = vpack.c.b16 %v9320, %v9318
    %v9343 = vpack.c.b16 %v9321, %v9319
    %v9344 = vpack.c.b16 %v9324, %v9322
    %v9345 = vpack.c.b16 %v9325, %v9323
    %v9346 = vpack.c.b16 %v9328, %v9326
    %v9347 = vpack.c.b16 %v9329, %v9327
    %v9348 = vpack.c.b16 %v9332, %v9330
    %v9349 = vpack.c.b16 %v9333, %v9331
    %9366 = vmatpush.bf16.msra.mxu0 %v9348
    %9367 = vmatpush.bf16.msra.mxu0 %v9346
    %9368 = vmatpush.bf16.msra.mxu0 %v9344
    %9369 = vmatpush.bf16.msra.mxu0 %v9342
    %9370 = vmatpush.bf16.msra.mxu0 %v9340
    %9371 = vmatpush.bf16.msra.mxu0 %v9338
    %9372 = vmatpush.bf16.msra.mxu0 %v9336
    %9373 = vmatpush.bf16.msra.mxu0 %v9334
    %9374 = vmatmul.bf16.gmra.mxu0 %v9268
    %v9375 = vpop.f32.mrf.mxu0
    %v9376 = vadd.f32 0.0, %v9375
    %v9377 = vpop.f32.mrf.mxu0
    %9378 = vdwg.mxu0
    %9379 = vmatpush.bf16.msra.mxu0 %v9349
    %9380 = vmatpush.bf16.msra.mxu0 %v9347
    %9381 = vmatpush.bf16.msra.mxu0 %v9345
    %9382 = vmatpush.bf16.msra.mxu0 %v9343
    %9383 = vmatpush.bf16.msra.mxu0 %v9341
    %9384 = vmatpush.bf16.msra.mxu0 %v9339
    %9385 = vmatpush.bf16.msra.mxu0 %v9337
    %9386 = vmatpush.bf16.msra.mxu0 %v9335
    %9387 = vmatmul.bf16.gmra.mxu0 %v9268
    %v9388 = vpop.f32.mrf.mxu0
    %v9389 = vadd.f32 0.0, %v9388
    %v9390 = vpop.f32.mrf.mxu0
    %9391 = vdwg.mxu0
    %v9408 = vunpack.c.l.b16 %v9251
    %v9409 = vunpack.c.h.b16 %v9251
    %v9410 = vunpack.c.l.b16 %v9252
    %v9411 = vunpack.c.h.b16 %v9252
    %v9412 = vunpack.c.l.b16 %v9253
    %v9413 = vunpack.c.h.b16 %v9253
    %v9414 = vunpack.c.l.b16 %v9254
    %v9415 = vunpack.c.h.b16 %v9254
    %v9416 = vunpack.c.l.b16 %v9255
    %v9417 = vunpack.c.h.b16 %v9255
    %v9418 = vunpack.c.l.b16 %v9256
    %v9419 = vunpack.c.h.b16 %v9256
    %v9420 = vunpack.c.l.b16 %v9257
    %v9421 = vunpack.c.h.b16 %v9257
    %v9422 = vunpack.c.l.b16 %v9258
    %v9423 = vunpack.c.h.b16 %v9258
    %v9424 = vunpack.c.l.b16 %v9259
    %v9425 = vunpack.c.h.b16 %v9259
    %v9426 = vunpack.c.l.b16 %v9260
    %v9427 = vunpack.c.h.b16 %v9260
    %v9428 = vunpack.c.l.b16 %v9261
    %v9429 = vunpack.c.h.b16 %v9261
    %v9430 = vunpack.c.l.b16 %v9262
    %v9431 = vunpack.c.h.b16 %v9262
    %v9432 = vunpack.c.l.b16 %v9263
    %v9433 = vunpack.c.h.b16 %v9263
    %v9434 = vunpack.c.l.b16 %v9264
    %v9435 = vunpack.c.h.b16 %v9264
    %v9436 = vunpack.c.l.b16 %v9265
    %v9437 = vunpack.c.h.b16 %v9265
    %v9438 = vunpack.c.l.b16 %v9266
    %v9439 = vunpack.c.h.b16 %v9266
    %v9440 = vpack.c.b16 %v9410, %v9408
    %v9441 = vpack.c.b16 %v9411, %v9409
    %v9442 = vpack.c.b16 %v9414, %v9412
    %v9443 = vpack.c.b16 %v9415, %v9413
    %v9444 = vpack.c.b16 %v9418, %v9416
    %v9445 = vpack.c.b16 %v9419, %v9417
    %v9446 = vpack.c.b16 %v9422, %v9420
    %v9447 = vpack.c.b16 %v9423, %v9421
    %v9448 = vpack.c.b16 %v9426, %v9424
    %v9449 = vpack.c.b16 %v9427, %v9425
    %v9450 = vpack.c.b16 %v9430, %v9428
    %v9451 = vpack.c.b16 %v9431, %v9429
    %v9452 = vpack.c.b16 %v9434, %v9432
    %v9453 = vpack.c.b16 %v9435, %v9433
    %v9454 = vpack.c.b16 %v9438, %v9436
    %v9455 = vpack.c.b16 %v9439, %v9437
    %9472 = vmatpush.bf16.msra.mxu0 %v9454
    %9473 = vmatpush.bf16.msra.mxu0 %v9452
    %9474 = vmatpush.bf16.msra.mxu0 %v9450
    %9475 = vmatpush.bf16.msra.mxu0 %v9448
    %9476 = vmatpush.bf16.msra.mxu0 %v9446
    %9477 = vmatpush.bf16.msra.mxu0 %v9444
    %9478 = vmatpush.bf16.msra.mxu0 %v9442
    %9479 = vmatpush.bf16.msra.mxu0 %v9440
    %9480 = vmatmul.bf16.gmra.mxu0 %v9250
    %v9481 = vpop.f32.mrf.mxu0
    %v9482 = vadd.f32 %v9376, %v9481
    %v9483 = vpop.f32.mrf.mxu0
    %9484 = vdwg.mxu0
    %9485 = vmatpush.bf16.msra.mxu0 %v9455
    %9486 = vmatpush.bf16.msra.mxu0 %v9453
    %9487 = vmatpush.bf16.msra.mxu0 %v9451
    %9488 = vmatpush.bf16.msra.mxu0 %v9449
    %9489 = vmatpush.bf16.msra.mxu0 %v9447
    %9490 = vmatpush.bf16.msra.mxu0 %v9445
    %9491 = vmatpush.bf16.msra.mxu0 %v9443
    %9492 = vmatpush.bf16.msra.mxu0 %v9441
    %9493 = vmatmul.bf16.gmra.mxu0 %v9250
    %v9494 = vpop.f32.mrf.mxu0
    %v9495 = vadd.f32 %v9389, %v9494
    %v9496 = vpop.f32.mrf.mxu0
    %9497 = vdwg.mxu0
    %v9498 = vld [vmem:[#allocation4 + $0x4] sm:$0x3]
    %v9499 = vpack.c.bf16 %v9498, %v9498
    %s9500 = scalar_lea.vmem %s10, 256
    %v9501 = vld [vmem:[%s9500] sm:$0xff]
    %v9502 = vld [vmem:[%s9500 + $0x8] sm:$0xff]
    %v9503 = vld [vmem:[%s9500 + $0x10] sm:$0xff]
    %v9504 = vld [vmem:[%s9500 + $0x18] sm:$0xff]
    %v9505 = vld [vmem:[%s9500 + $0x20] sm:$0xff]
    %v9506 = vld [vmem:[%s9500 + $0x28] sm:$0xff]
    %v9507 = vld [vmem:[%s9500 + $0x30] sm:$0xff]
    %v9508 = vld [vmem:[%s9500 + $0x38] sm:$0xff]
    %v9509 = vld [vmem:[%s9500 + $0x40] sm:$0xff]
    %v9510 = vld [vmem:[%s9500 + $0x48] sm:$0xff]
    %v9511 = vld [vmem:[%s9500 + $0x50] sm:$0xff]
    %v9512 = vld [vmem:[%s9500 + $0x58] sm:$0xff]
    %v9513 = vld [vmem:[%s9500 + $0x60] sm:$0xff]
    %v9514 = vld [vmem:[%s9500 + $0x68] sm:$0xff]
    %v9515 = vld [vmem:[%s9500 + $0x70] sm:$0xff]
    %v9516 = vld [vmem:[%s9500 + $0x78] sm:$0xff]
    %v9533 = vunpack.c.l.b16 %v9501
    %v9534 = vunpack.c.h.b16 %v9501
    %v9535 = vunpack.c.l.b16 %v9502
    %v9536 = vunpack.c.h.b16 %v9502
    %v9537 = vunpack.c.l.b16 %v9503
    %v9538 = vunpack.c.h.b16 %v9503
    %v9539 = vunpack.c.l.b16 %v9504
    %v9540 = vunpack.c.h.b16 %v9504
    %v9541 = vunpack.c.l.b16 %v9505
    %v9542 = vunpack.c.h.b16 %v9505
    %v9543 = vunpack.c.l.b16 %v9506
    %v9544 = vunpack.c.h.b16 %v9506
    %v9545 = vunpack.c.l.b16 %v9507
    %v9546 = vunpack.c.h.b16 %v9507
    %v9547 = vunpack.c.l.b16 %v9508
    %v9548 = vunpack.c.h.b16 %v9508
    %v9549 = vunpack.c.l.b16 %v9509
    %v9550 = vunpack.c.h.b16 %v9509
    %v9551 = vunpack.c.l.b16 %v9510
    %v9552 = vunpack.c.h.b16 %v9510
    %v9553 = vunpack.c.l.b16 %v9511
    %v9554 = vunpack.c.h.b16 %v9511
    %v9555 = vunpack.c.l.b16 %v9512
    %v9556 = vunpack.c.h.b16 %v9512
    %v9557 = vunpack.c.l.b16 %v9513
    %v9558 = vunpack.c.h.b16 %v9513
    %v9559 = vunpack.c.l.b16 %v9514
    %v9560 = vunpack.c.h.b16 %v9514
    %v9561 = vunpack.c.l.b16 %v9515
    %v9562 = vunpack.c.h.b16 %v9515
    %v9563 = vunpack.c.l.b16 %v9516
    %v9564 = vunpack.c.h.b16 %v9516
    %v9565 = vpack.c.b16 %v9535, %v9533
    %v9566 = vpack.c.b16 %v9536, %v9534
    %v9567 = vpack.c.b16 %v9539, %v9537
    %v9568 = vpack.c.b16 %v9540, %v9538
    %v9569 = vpack.c.b16 %v9543, %v9541
    %v9570 = vpack.c.b16 %v9544, %v9542
    %v9571 = vpack.c.b16 %v9547, %v9545
    %v9572 = vpack.c.b16 %v9548, %v9546
    %v9573 = vpack.c.b16 %v9551, %v9549
    %v9574 = vpack.c.b16 %v9552, %v9550
    %v9575 = vpack.c.b16 %v9555, %v9553
    %v9576 = vpack.c.b16 %v9556, %v9554
    %v9577 = vpack.c.b16 %v9559, %v9557
    %v9578 = vpack.c.b16 %v9560, %v9558
    %v9579 = vpack.c.b16 %v9563, %v9561
    %v9580 = vpack.c.b16 %v9564, %v9562
    %9597 = vmatpush.bf16.msra.mxu0 %v9579
    %9598 = vmatpush.bf16.msra.mxu0 %v9577
    %9599 = vmatpush.bf16.msra.mxu0 %v9575
    %9600 = vmatpush.bf16.msra.mxu0 %v9573
    %9601 = vmatpush.bf16.msra.mxu0 %v9571
    %9602 = vmatpush.bf16.msra.mxu0 %v9569
    %9603 = vmatpush.bf16.msra.mxu0 %v9567
    %9604 = vmatpush.bf16.msra.mxu0 %v9565
    %9605 = vmatmul.bf16.gmra.mxu0 %v9499
    %v9606 = vpop.f32.mrf.mxu0
    %v9607 = vadd.f32 0.0, %v9606
    %v9608 = vpop.f32.mrf.mxu0
    %9609 = vdwg.mxu0
    %9610 = vmatpush.bf16.msra.mxu0 %v9580
    %9611 = vmatpush.bf16.msra.mxu0 %v9578
    %9612 = vmatpush.bf16.msra.mxu0 %v9576
    %9613 = vmatpush.bf16.msra.mxu0 %v9574
    %9614 = vmatpush.bf16.msra.mxu0 %v9572
    %9615 = vmatpush.bf16.msra.mxu0 %v9570
    %9616 = vmatpush.bf16.msra.mxu0 %v9568
    %9617 = vmatpush.bf16.msra.mxu0 %v9566
    %9618 = vmatmul.bf16.gmra.mxu0 %v9499
    %v9619 = vpop.f32.mrf.mxu0
    %v9620 = vadd.f32 0.0, %v9619
    %v9621 = vpop.f32.mrf.mxu0
    %9622 = vdwg.mxu0
    %v9623 = vadd.f32 %v9482, %v9607
    %v9624 = vadd.f32 %v9495, %v9620
    %v9625 = vld [vmem:[#allocation4 + $0x6] sm:$0x3]
    %v9626 = vpack.c.bf16 %v9625, %v9625
    %s9627 = scalar_lea.vmem %s10, 384
    %v9628 = vld [vmem:[%s9627] sm:$0xff]
    %v9629 = vld [vmem:[%s9627 + $0x8] sm:$0xff]
    %v9630 = vld [vmem:[%s9627 + $0x10] sm:$0xff]
    %v9631 = vld [vmem:[%s9627 + $0x18] sm:$0xff]
    %v9632 = vld [vmem:[%s9627 + $0x20] sm:$0xff]
    %v9633 = vld [vmem:[%s9627 + $0x28] sm:$0xff]
    %v9634 = vld [vmem:[%s9627 + $0x30] sm:$0xff]
    %v9635 = vld [vmem:[%s9627 + $0x38] sm:$0xff]
    %v9636 = vld [vmem:[%s9627 + $0x40] sm:$0xff]
    %v9637 = vld [vmem:[%s9627 + $0x48] sm:$0xff]
    %v9638 = vld [vmem:[%s9627 + $0x50] sm:$0xff]
    %v9639 = vld [vmem:[%s9627 + $0x58] sm:$0xff]
    %v9640 = vld [vmem:[%s9627 + $0x60] sm:$0xff]
    %v9641 = vld [vmem:[%s9627 + $0x68] sm:$0xff]
    %v9642 = vld [vmem:[%s9627 + $0x70] sm:$0xff]
    %v9643 = vld [vmem:[%s9627 + $0x78] sm:$0xff]
    %v9660 = vunpack.c.l.b16 %v9628
    %v9661 = vunpack.c.h.b16 %v9628
    %v9662 = vunpack.c.l.b16 %v9629
    %v9663 = vunpack.c.h.b16 %v9629
    %v9664 = vunpack.c.l.b16 %v9630
    %v9665 = vunpack.c.h.b16 %v9630
    %v9666 = vunpack.c.l.b16 %v9631
    %v9667 = vunpack.c.h.b16 %v9631
    %v9668 = vunpack.c.l.b16 %v9632
    %v9669 = vunpack.c.h.b16 %v9632
    %v9670 = vunpack.c.l.b16 %v9633
    %v9671 = vunpack.c.h.b16 %v9633
    %v9672 = vunpack.c.l.b16 %v9634
    %v9673 = vunpack.c.h.b16 %v9634
    %v9674 = vunpack.c.l.b16 %v9635
    %v9675 = vunpack.c.h.b16 %v9635
    %v9676 = vunpack.c.l.b16 %v9636
    %v9677 = vunpack.c.h.b16 %v9636
    %v9678 = vunpack.c.l.b16 %v9637
    %v9679 = vunpack.c.h.b16 %v9637
    %v9680 = vunpack.c.l.b16 %v9638
    %v9681 = vunpack.c.h.b16 %v9638
    %v9682 = vunpack.c.l.b16 %v9639
    %v9683 = vunpack.c.h.b16 %v9639
    %v9684 = vunpack.c.l.b16 %v9640
    %v9685 = vunpack.c.h.b16 %v9640
    %v9686 = vunpack.c.l.b16 %v9641
    %v9687 = vunpack.c.h.b16 %v9641
    %v9688 = vunpack.c.l.b16 %v9642
    %v9689 = vunpack.c.h.b16 %v9642
    %v9690 = vunpack.c.l.b16 %v9643
    %v9691 = vunpack.c.h.b16 %v9643
    %v9692 = vpack.c.b16 %v9662, %v9660
    %v9693 = vpack.c.b16 %v9663, %v9661
    %v9694 = vpack.c.b16 %v9666, %v9664
    %v9695 = vpack.c.b16 %v9667, %v9665
    %v9696 = vpack.c.b16 %v9670, %v9668
    %v9697 = vpack.c.b16 %v9671, %v9669
    %v9698 = vpack.c.b16 %v9674, %v9672
    %v9699 = vpack.c.b16 %v9675, %v9673
    %v9700 = vpack.c.b16 %v9678, %v9676
    %v9701 = vpack.c.b16 %v9679, %v9677
    %v9702 = vpack.c.b16 %v9682, %v9680
    %v9703 = vpack.c.b16 %v9683, %v9681
    %v9704 = vpack.c.b16 %v9686, %v9684
    %v9705 = vpack.c.b16 %v9687, %v9685
    %v9706 = vpack.c.b16 %v9690, %v9688
    %v9707 = vpack.c.b16 %v9691, %v9689
    %9724 = vmatpush.bf16.msra.mxu0 %v9706
    %9725 = vmatpush.bf16.msra.mxu0 %v9704
    %9726 = vmatpush.bf16.msra.mxu0 %v9702
    %9727 = vmatpush.bf16.msra.mxu0 %v9700
    %9728 = vmatpush.bf16.msra.mxu0 %v9698
    %9729 = vmatpush.bf16.msra.mxu0 %v9696
    %9730 = vmatpush.bf16.msra.mxu0 %v9694
    %9731 = vmatpush.bf16.msra.mxu0 %v9692
    %9732 = vmatmul.bf16.gmra.mxu0 %v9626
    %v9733 = vpop.f32.mrf.mxu0
    %v9734 = vadd.f32 0.0, %v9733
    %v9735 = vpop.f32.mrf.mxu0
    %9736 = vdwg.mxu0
    %9737 = vmatpush.bf16.msra.mxu0 %v9707
    %9738 = vmatpush.bf16.msra.mxu0 %v9705
    %9739 = vmatpush.bf16.msra.mxu0 %v9703
    %9740 = vmatpush.bf16.msra.mxu0 %v9701
    %9741 = vmatpush.bf16.msra.mxu0 %v9699
    %9742 = vmatpush.bf16.msra.mxu0 %v9697
    %9743 = vmatpush.bf16.msra.mxu0 %v9695
    %9744 = vmatpush.bf16.msra.mxu0 %v9693
    %9745 = vmatmul.bf16.gmra.mxu0 %v9626
    %v9746 = vpop.f32.mrf.mxu0
    %v9747 = vadd.f32 0.0, %v9746
    %v9748 = vpop.f32.mrf.mxu0
    %9749 = vdwg.mxu0
    %v9750 = vadd.f32 %v9623, %v9734
    %v9751 = vadd.f32 %v9624, %v9747
    %v9752 = vld [vmem:[%s11] sm:$0x3]
    %v9754 = vperm.slane %v9752, 0
    %v9755 = vperm.slane %v9752, 1
    %v9758 = vadd.f32 %v9750, %v9754
    %v9759 = vadd.f32 %v9751, %v9755
    %v9760 = vmax.f32 %v9758, 0.0
    %v9761 = vmax.f32 %v9759, 0.0
    %v9762 = vpack.c.bf16 %v9760, %v9760
    %v9763 = vpack.c.bf16 %v9761, %v9761
    %v9764 = vld [vmem:[%s12] sm:$0xf]
    %v9765 = vld [vmem:[%s12 + $0x4] sm:$0xf]
    %v9766 = vld [vmem:[%s12 + $0x8] sm:$0xf]
    %v9767 = vld [vmem:[%s12 + $0xc] sm:$0xf]
    %v9768 = vld [vmem:[%s12 + $0x10] sm:$0xf]
    %v9769 = vld [vmem:[%s12 + $0x14] sm:$0xf]
    %v9770 = vld [vmem:[%s12 + $0x18] sm:$0xf]
    %v9771 = vld [vmem:[%s12 + $0x1c] sm:$0xf]
    %v9772 = vld [vmem:[%s12 + $0x20] sm:$0xf]
    %v9773 = vld [vmem:[%s12 + $0x24] sm:$0xf]
    %v9774 = vld [vmem:[%s12 + $0x28] sm:$0xf]
    %v9775 = vld [vmem:[%s12 + $0x2c] sm:$0xf]
    %v9776 = vld [vmem:[%s12 + $0x30] sm:$0xf]
    %v9777 = vld [vmem:[%s12 + $0x34] sm:$0xf]
    %v9778 = vld [vmem:[%s12 + $0x38] sm:$0xf]
    %v9779 = vld [vmem:[%s12 + $0x3c] sm:$0xf]
    %v9780 = vld [vmem:[%s12 + $0x40] sm:$0xf]
    %v9781 = vld [vmem:[%s12 + $0x44] sm:$0xf]
    %v9782 = vld [vmem:[%s12 + $0x48] sm:$0xf]
    %v9783 = vld [vmem:[%s12 + $0x4c] sm:$0xf]
    %v9784 = vld [vmem:[%s12 + $0x50] sm:$0xf]
    %v9785 = vld [vmem:[%s12 + $0x54] sm:$0xf]
    %v9786 = vld [vmem:[%s12 + $0x58] sm:$0xf]
    %v9787 = vld [vmem:[%s12 + $0x5c] sm:$0xf]
    %v9788 = vld [vmem:[%s12 + $0x60] sm:$0xf]
    %v9789 = vld [vmem:[%s12 + $0x64] sm:$0xf]
    %v9790 = vld [vmem:[%s12 + $0x68] sm:$0xf]
    %v9791 = vld [vmem:[%s12 + $0x6c] sm:$0xf]
    %v9792 = vld [vmem:[%s12 + $0x70] sm:$0xf]
    %v9793 = vld [vmem:[%s12 + $0x74] sm:$0xf]
    %v9794 = vld [vmem:[%s12 + $0x78] sm:$0xf]
    %v9795 = vld [vmem:[%s12 + $0x7c] sm:$0xf]
    %v9796 = vld [vmem:[%s13] sm:$0x1]
    %v9798 = vperm.slane %v9796, 0
    %v9832 = vunpack.c.l.b16 %v9764
    %v9833 = vunpack.c.l.b16 %v9765
    %v9834 = vunpack.c.l.b16 %v9766
    %v9835 = vunpack.c.l.b16 %v9767
    %v9836 = vunpack.c.l.b16 %v9768
    %v9837 = vunpack.c.l.b16 %v9769
    %v9838 = vunpack.c.l.b16 %v9770
    %v9839 = vunpack.c.l.b16 %v9771
    %v9840 = vunpack.c.l.b16 %v9772
    %v9841 = vunpack.c.l.b16 %v9773
    %v9842 = vunpack.c.l.b16 %v9774
    %v9843 = vunpack.c.l.b16 %v9775
    %v9844 = vunpack.c.l.b16 %v9776
    %v9845 = vunpack.c.l.b16 %v9777
    %v9846 = vunpack.c.l.b16 %v9778
    %v9847 = vunpack.c.l.b16 %v9779
    %v9848 = vunpack.c.l.b16 %v9780
    %v9849 = vunpack.c.l.b16 %v9781
    %v9850 = vunpack.c.l.b16 %v9782
    %v9851 = vunpack.c.l.b16 %v9783
    %v9852 = vunpack.c.l.b16 %v9784
    %v9853 = vunpack.c.l.b16 %v9785
    %v9854 = vunpack.c.l.b16 %v9786
    %v9855 = vunpack.c.l.b16 %v9787
    %v9856 = vunpack.c.l.b16 %v9788
    %v9857 = vunpack.c.l.b16 %v9789
    %v9858 = vunpack.c.l.b16 %v9790
    %v9859 = vunpack.c.l.b16 %v9791
    %v9860 = vunpack.c.l.b16 %v9792
    %v9861 = vunpack.c.l.b16 %v9793
    %v9862 = vunpack.c.l.b16 %v9794
    %v9863 = vunpack.c.l.b16 %v9795
    %v9864 = vpack.c.b16 %v9833, %v9832
    %v9865 = vpack.c.b16 %v9835, %v9834
    %v9866 = vpack.c.b16 %v9837, %v9836
    %v9867 = vpack.c.b16 %v9839, %v9838
    %v9868 = vpack.c.b16 %v9841, %v9840
    %v9869 = vpack.c.b16 %v9843, %v9842
    %v9870 = vpack.c.b16 %v9845, %v9844
    %v9871 = vpack.c.b16 %v9847, %v9846
    %v9872 = vpack.c.b16 %v9849, %v9848
    %v9873 = vpack.c.b16 %v9851, %v9850
    %v9874 = vpack.c.b16 %v9853, %v9852
    %v9875 = vpack.c.b16 %v9855, %v9854
    %v9876 = vpack.c.b16 %v9857, %v9856
    %v9877 = vpack.c.b16 %v9859, %v9858
    %v9878 = vpack.c.b16 %v9861, %v9860
    %v9879 = vpack.c.b16 %v9863, %v9862
    %9896 = vmatpush.bf16.msra.mxu0 %v9871
    %9897 = vmatpush.bf16.msra.mxu0 %v9870
    %9898 = vmatpush.bf16.msra.mxu0 %v9869
    %9899 = vmatpush.bf16.msra.mxu0 %v9868
    %9900 = vmatpush.bf16.msra.mxu0 %v9867
    %9901 = vmatpush.bf16.msra.mxu0 %v9866
    %9902 = vmatpush.bf16.msra.mxu0 %v9865
    %9903 = vmatpush.bf16.msra.mxu0 %v9864
    %9904 = vmatmul.bf16.gmra.mxu0 %v9762
    %v9905 = vpop.f32.mrf.mxu0
    %v9906 = vadd.f32 %v9798, %v9905
    %v9907 = vpop.f32.mrf.mxu0
    %9908 = vdwg.mxu0
    %9909 = vmatpush.bf16.msra.mxu0 %v9879
    %9910 = vmatpush.bf16.msra.mxu0 %v9878
    %9911 = vmatpush.bf16.msra.mxu0 %v9877
    %9912 = vmatpush.bf16.msra.mxu0 %v9876
    %9913 = vmatpush.bf16.msra.mxu0 %v9875
    %9914 = vmatpush.bf16.msra.mxu0 %v9874
    %9915 = vmatpush.bf16.msra.mxu0 %v9873
    %9916 = vmatpush.bf16.msra.mxu0 %v9872
    %9917 = vmatmul.bf16.gmra.mxu0 %v9763
    %v9918 = vpop.f32.mrf.mxu0
    %v9919 = vadd.f32 %v9906, %v9918
    %v9920 = vpop.f32.mrf.mxu0
    %9921 = vdwg.mxu0
    %9922 = vst [vmem:[#allocation5] sm:$0x3] %v9919
    // Predicated region
    $region58: #{cnn_bc_forward.1} parent=1 // pred_check
      _
    $region59: #{cnn_bc_forward.1} parent=1 // pred_check_branch
      %9924 = sbr.rel (0) target = $region61
    $region60: #{cnn_bc_forward.1} parent=1 // pred_region
      %9926 = vsyncadd [#allocation6], 0
      %s9928 = sshll.u32 [#allocation5], 4
      %s9929 = int_to_ptr.vmem [resolvable:$true] %s9928
      %s9930 = sshll.u32 %s14, 4
      %s9931 = int_to_ptr.hbm [resolvable:$true] %s9930
      %9933 = dma.vmem_to_hbm [thread:$0]  %s9929, 32, %s9931, [#allocation6]
    $region61: #{cnn_bc_forward.1} parent=1 // pred_fallthru
      _
    // Predicated region
    $region62: #{cnn_bc_forward.1} parent=1 // pred_check
      _
    $region63: #{cnn_bc_forward.1} parent=1 // pred_check_branch
      %9935 = sbr.rel (0) target = $region65
    $region64: #{cnn_bc_forward.1} parent=1 // pred_region
      %9937 = dma.done [#allocation6], 32
    $region65: #{cnn_bc_forward.1} parent=1 // pred_fallthru
      _
    %9938 = vsyncpa [#allocation6], 1

</llo_original>
